<compile_context>
chip_gen: v6e
topology: v6e:2x2x1
jax: 0.10.0
libtpu: 0.0.40
codegen_flags: <defaults>
</compile_context>

<pallas_src>
import functools

import numpy as np
import jax
import jax.numpy as jnp
from jax import lax
from jax.experimental import pallas as pl
from jax.experimental.pallas import tpu as pltpu

TWO_PI = 2.0 * np.pi


# --------------------------------------------------------------------------------------
# Kernel A : scattered-point Fourier basis + normal-equation pieces (one batch per step)
# --------------------------------------------------------------------------------------
def _scatter_basis_gram_kernel(pT_ref, kx_ref, ky_ref, vT_ref,
                               cp_ref, sp_ref, gr_ref, gi_ref, bc_ref, bs_ref):
    """pT_ref (1,2,N) points^T ; kx/ky (K,1) modes ; vT_ref (1,C,N) values^T.

    Outputs: cos/sin basis (1,K,N) [reused later as the target basis at p],
             Gram blocks Gr=C^T C+S^T S, Gi=C^T S-S^T C (1,K,K),
             projected rhs  bc=C^T v, bs=S^T v (1,K,C).
    """
    q = TWO_PI * (pT_ref[0] - 0.5)                                   # (2, N)
    phase = kx_ref[...] * q[0:1, :] + ky_ref[...] * q[1:2, :]        # (K, N) lane-dense
    ct = jnp.cos(phase)
    st = jnp.sin(phase)
    v = vT_ref[0]                                                    # (C, N)

    cp_ref[0] = ct
    sp_ref[0] = st

    dn = (((1,), (1,)), ((), ()))                                    # contract N (lanes)
    gcc = lax.dot_general(ct, ct, dn, preferred_element_type=jnp.float32)
    gss = lax.dot_general(st, st, dn, preferred_element_type=jnp.float32)
    gcs = lax.dot_general(ct, st, dn, preferred_element_type=jnp.float32)
    gsc = lax.dot_general(st, ct, dn, preferred_element_type=jnp.float32)
    gr_ref[0] = gcc + gss
    gi_ref[0] = gcs - gsc
    bc_ref[0] = lax.dot_general(ct, v, dn, preferred_element_type=jnp.float32)
    bs_ref[0] = lax.dot_general(st, v, dn, preferred_element_type=jnp.float32)


# --------------------------------------------------------------------------------------
# Kernel B : fused grid-recon -> circular-conv ODE -> grid->scattered reconstruction
# --------------------------------------------------------------------------------------
def _grind_fused_ode_kernel(cr_ref, ci_ref, cg_ref, sg_ref, pc_ref, ps_ref,
                            cp_ref, sp_ref, w1_ref, b1_ref, w2_ref, b2_ref,
                            o_ref, *, dts, n_substeps, H, W):
    """One batch per grid step.

    cr/ci_ref : (1, C, K)   direction-1 Fourier coefficients (real / imag), transposed
    cg/sg_ref : (K, HW)     constant grid basis cos/sin, transposed
    pc/ps_ref : (HW, K)     constant projections: cr2^T = u^T @ Pc, ci2^T = u^T @ Ps
    cp/sp_ref : (1, K, N)   scattered-point basis (from kernel A)
    w1_ref    : (9, Hd, C)  conv1 taps (dy-major, dx), (out, in) per tap ; b1 (Hd,1)
    w2_ref    : (9, C, Hd)  conv2 taps ; b2 (C,1)
    o_ref     : (1, T', C, N)
    """
    HW = H * W
    f32 = jnp.float32

    # grid reconstruction u = Re(B_grid c)^T : channel-first, spatial on lanes
    u = (jnp.dot(cr_ref[0], cg_ref[...], preferred_element_type=f32)
         - jnp.dot(ci_ref[0], sg_ref[...], preferred_element_type=f32))      # (C, HW)

    # lane masks fixing the x-wrap of the circular 3x3 conv (y-wrap is exact under
    # a flat lane roll by +-W)
    xpos = lax.broadcasted_iota(jnp.int32, (1, HW), 1) % W
    m_x0 = xpos == 0
    m_xW = xpos == (W - 1)

    w1_taps = [w1_ref[k] for k in range(9)]
    w2_taps = [w2_ref[k] for k in range(9)]
    bias1 = b1_ref[...]
    bias2 = b2_ref[...]

    def xshift(a, ox):
        if ox == 0:
            return a
        if ox == 1:                                    # fetch (x + 1) mod W
            main = pltpu.roll(a, HW - 1, axis=1)
            fix = pltpu.roll(a, W - 1, axis=1)
            return jnp.where(m_xW, fix, main)
        main = pltpu.roll(a, 1, axis=1)                # fetch (x - 1) mod W
        fix = pltpu.roll(a, HW - W + 1, axis=1)
        return jnp.where(m_x0, fix, main)

    def conv3x3(a, taps, bias):
        cout = taps[0].shape[0]
        acc = bias + jnp.zeros((cout, HW), f32)
        k = 0
        for oy in (-1, 0, 1):
            ay = a if oy == 0 else pltpu.roll(a, (-oy * W) % HW, axis=1)
            for ox in (-1, 0, 1):
                acc = acc + jnp.dot(taps[k], xshift(ay, ox),
                                    preferred_element_type=f32)
                k += 1
        return acc

    def dxdt(uu):
        h = jnp.tanh(conv3x3(uu, w1_taps, bias1))
        return conv3x3(h, w2_taps, bias2)

    for ti, dt in enumerate(dts):                      # static number of output times
        def substep(_, uu, dt=dt):
            return uu + dt * dxdt(uu)
        u = lax.fori_loop(0, n_substeps, substep, u)
        # grid -> scattered: hoisted constant projection + reconstruction at p
        cr2 = jnp.dot(u, pc_ref[...], preferred_element_type=f32)            # (C, K)
        ci2 = jnp.dot(u, ps_ref[...], preferred_element_type=f32)            # (C, K)
        o_ref[0, ti] = (jnp.dot(cr2, cp_ref[0], preferred_element_type=f32)
                        - jnp.dot(ci2, sp_ref[0], preferred_element_type=f32))


# --------------------------------------------------------------------------------------
# Prediction net: parameter container for du/dt = conv2(tanh(conv1(u))), circular 3x3.
# (GrIND consumes the tap-major weights inside its fused kernel so the grid state
#  never leaves VMEM.)
# --------------------------------------------------------------------------------------
class SimpleConvOdeNet:
    def __init__(self, channels, hidden=8, n_substeps=4, key=None):
        if key is None:
            key = jax.random.PRNGKey(42)
        k1, k2 = jax.random.split(key)
        s1 = 0.2 / np.sqrt(9 * channels)
        s2 = 0.2 / np.sqrt(9 * hidden)
        w1 = s1 * jax.random.normal(k1, (3, 3, channels, hidden), jnp.float32)   # HWIO
        w2 = s2 * jax.random.normal(k2, (3, 3, hidden, channels), jnp.float32)
        # tap-major (9, Cout, Cin); tap k = dy*3 + dx (cross-correlation convention)
        self.w1_taps = jnp.transpose(w1, (0, 1, 3, 2)).reshape(9, hidden, channels)
        self.b1 = jnp.zeros((hidden, 1), jnp.float32)
        self.w2_taps = jnp.transpose(w2, (0, 1, 3, 2)).reshape(9, channels, hidden)
        self.b2 = jnp.zeros((channels, 1), jnp.float32)
        self.channels = channels
        self.hidden = hidden
        self.n_substeps = n_substeps


# --------------------------------------------------------------------------------------
# GrIND
# --------------------------------------------------------------------------------------
def generate_fourier_ks(num_ks):
    if num_ks % 2 == 0:
        ks1d = jnp.arange(-num_ks // 2, num_ks // 2, dtype=jnp.float32)
    else:
        ks1d = jnp.arange(-(num_ks - 1) // 2, (num_ks - 1) // 2 + 1, dtype=jnp.float32)
    kx, ky = jnp.meshgrid(ks1d, ks1d, indexing="ij")
    return jnp.stack([kx.flatten(), ky.flatten()], axis=1)           # (K, 2)


class GrIND:
    def __init__(self, prediction_net, num_ks=5, grid_resolution=16, spatial_dim=2,
                 rcond=1e-6):
        assert spatial_dim == 2, "kernel implementation specialized to spatial_dim=2"
        self.grid_resolution = grid_resolution
        self.num_ks = num_ks
        self.rcond = rcond
        self.prediction_net = prediction_net

        self.ks = generate_fourier_ks(num_ks)                        # (K, 2)
        K = self.ks.shape[0]
        self.K = K
        R = grid_resolution
        self.interpolation_points = self.generate_interpolation_points(R)   # (R*R, 2)

        # ---- constants hoisted out of the per-forward path (fixed grid basis) ----
        qg = TWO_PI * (self.interpolation_points - 0.5)              # (HW, 2)
        phase_g = qg @ self.ks.T                                     # (HW, K)
        Cg, Sg = jnp.cos(phase_g), jnp.sin(phase_g)
        self.cos_gT = Cg.T                                           # (K, HW)
        self.sin_gT = Sg.T
        # constant normal matrix of the grid->scattered direction, regularized inverse,
        # folded with the basis into two (HW, K) projection matrices.
        Gr2 = Cg.T @ Cg + Sg.T @ Sg
        Gi2 = Cg.T @ Sg - Sg.T @ Cg
        A2 = jnp.concatenate(
            [jnp.concatenate([Gr2, -Gi2], axis=1),
             jnp.concatenate([Gi2, Gr2], axis=1)], axis=0)           # (2K, 2K)
        A2 = A2 + rcond * (jnp.trace(A2) / (2.0 * K)) * jnp.eye(2 * K, dtype=jnp.float32)
        A2inv = jnp.linalg.inv(A2)
        self.Pc = Cg @ A2inv[:K, :K].T - Sg @ A2inv[:K, K:].T         # (HW, K)
        self.Ps = Cg @ A2inv[K:, :K].T - Sg @ A2inv[K:, K:].T
        self.ksx = self.ks[:, 0:1]                                    # (K, 1)
        self.ksy = self.ks[:, 1:2]

    @staticmethod
    def generate_interpolation_points(grid_resolution):
        lin = jnp.linspace(0.0, 1.0, grid_resolution)
        x_grid, y_grid = jnp.meshgrid(lin, lin, indexing="ij")
        return jnp.stack([y_grid, x_grid], axis=-1).reshape(-1, 2)

    def __call__(self, x, p, t_eval=(0.0, 1.0)):
        # x: (B, N, C) values at scattered points p: (B, N, 2) in [0,1]^2
        B, N, C = x.shape
        K = self.K
        R = self.grid_resolution
        HW = R * R
        net = self.prediction_net
        Hd = net.hidden

        pT = jnp.swapaxes(p.astype(jnp.float32), -1, -2)             # (B, 2, N)
        vT = jnp.swapaxes(x.astype(jnp.float32), -1, -2)             # (B, C, N)
        par = pltpu.CompilerParams(dimension_semantics=("parallel",))

        # ---- Kernel A : scattered-point basis + normal-equation pieces ----
        cp, sp, gr, gi, bc, bs = pl.pallas_call(
            _scatter_basis_gram_kernel,
            grid=(B,),
            in_specs=[pl.BlockSpec((1, 2, N), lambda b: (b, 0, 0)),
                      pl.BlockSpec((K, 1), lambda b: (0, 0)),
                      pl.BlockSpec((K, 1), lambda b: (0, 0)),
                      pl.BlockSpec((1, C, N), lambda b: (b, 0, 0))],
            out_specs=(pl.BlockSpec((1, K, N), lambda b: (b, 0, 0)),
                       pl.BlockSpec((1, K, N), lambda b: (b, 0, 0)),
                       pl.BlockSpec((1, K, K), lambda b: (b, 0, 0)),
                       pl.BlockSpec((1, K, K), lambda b: (b, 0, 0)),
                       pl.BlockSpec((1, K, C), lambda b: (b, 0, 0)),
                       pl.BlockSpec((1, K, C), lambda b: (b, 0, 0))),
            out_shape=(jax.ShapeDtypeStruct((B, K, N), jnp.float32),
                       jax.ShapeDtypeStruct((B, K, N), jnp.float32),
                       jax.ShapeDtypeStruct((B, K, K), jnp.float32),
                       jax.ShapeDtypeStruct((B, K, K), jnp.float32),
                       jax.ShapeDtypeStruct((B, K, C), jnp.float32),
                       jax.ShapeDtypeStruct((B, K, C), jnp.float32)),
            compiler_params=par,
        )(pT, self.ksx, self.ksy, vT)

        # ---- glue: tiny (2K, 2K) real-block solve per batch (no Pallas equivalent) ----
        # TODO(synk): torch.linalg.lstsq replaced by regularized normal equations.
        A1 = jnp.concatenate(
            [jnp.concatenate([gr, -gi], axis=-1),
             jnp.concatenate([gi, gr], axis=-1)], axis=-2)            # (B, 2K, 2K)
        rhs1 = jnp.concatenate([bc, -bs], axis=-2)                     # (B, 2K, C)
        tr = jnp.trace(A1, axis1=-2, axis2=-1)[:, None, None] / (2.0 * K)
        A1 = A1 + self.rcond * tr * jnp.eye(2 * K, dtype=jnp.float32)
        sol = jnp.linalg.solve(A1, rhs1)                               # (B, 2K, C)
        crT1 = jnp.swapaxes(sol[:, :K, :], -1, -2)                     # (B, C, K)
        ciT1 = jnp.swapaxes(sol[:, K:, :], -1, -2)

        # ---- Kernel B : fused recon -> conv ODE -> grid->scattered reconstruction ----
        dts = tuple((float(t_eval[i]) - float(t_eval[i - 1])) / net.n_substeps
                    for i in range(1, len(t_eval)))
        Tp = len(dts)
        out = pl.pallas_call(
            functools.partial(_grind_fused_ode_kernel, dts=dts,
                              n_substeps=net.n_substeps, H=R, W=R),
            grid=(B,),
            in_specs=[pl.BlockSpec((1, C, K), lambda b: (b, 0, 0)),     # crT1
                      pl.BlockSpec((1, C, K), lambda b: (b, 0, 0)),     # ciT1
                      pl.BlockSpec((K, HW), lambda b: (0, 0)),           # cos_gT
                      pl.BlockSpec((K, HW), lambda b: (0, 0)),           # sin_gT
                      pl.BlockSpec((HW, K), lambda b: (0, 0)),           # Pc
                      pl.BlockSpec((HW, K), lambda b: (0, 0)),           # Ps
                      pl.BlockSpec((1, K, N), lambda b: (b, 0, 0)),      # cos basis @ p
                      pl.BlockSpec((1, K, N), lambda b: (b, 0, 0)),      # sin basis @ p
                      pl.BlockSpec((9, Hd, C), lambda b: (0, 0, 0)),
                      pl.BlockSpec((Hd, 1), lambda b: (0, 0)),
                      pl.BlockSpec((9, C, Hd), lambda b: (0, 0, 0)),
                      pl.BlockSpec((C, 1), lambda b: (0, 0))],
            out_specs=pl.BlockSpec((1, Tp, C, N), lambda b: (b, 0, 0, 0)),
            out_shape=jax.ShapeDtypeStruct((B, Tp, C, N), jnp.float32),
            compiler_params=par,
        )(crT1, ciT1, self.cos_gT, self.sin_gT, self.Pc, self.Ps, cp, sp,
          net.w1_taps, net.b1, net.w2_taps, net.b2)

        return jnp.swapaxes(out, -1, -2)                               # (B, T', N, C)


# --------------------------------------------------------------------------------------
if __name__ == "__main__":
    key = jax.random.PRNGKey(0)
    kp, kx = jax.random.split(key)

    B, N, C = 2, 64, 4
    num_ks, grid_resolution = 5, 16

    p = jax.random.uniform(kp, (B, N, 2), dtype=jnp.float32)          # points in [0,1]^2
    x = jax.random.normal(kx, (B, N, C), dtype=jnp.float32)           # values at points

    net = SimpleConvOdeNet(channels=C, hidden=8, n_substeps=4)
    model = GrIND(net, num_ks=num_ks, grid_resolution=grid_resolution)

    t_eval = [0.0, 1.0]
    fwd = jax.jit(lambda xx, pp: model(xx, pp, t_eval=t_eval))
    out = jax.block_until_ready(fwd(x, p))

    assert out.shape == (B, len(t_eval) - 1, N, C), out.shape
    assert bool(jnp.all(jnp.isfinite(out)))
    print("KERNEL_OK")
</pallas_src>

<mosaic_0001>
module attributes {stable_mosaic.version = 11 : i64} {
  func.func @_scatter_basis_gram_kernel(%arg0: i32, %arg1: memref<1x2x64xf32, #tpu.memory_space<vmem>>, %arg2: memref<25x1xf32, #tpu.memory_space<vmem>>, %arg3: memref<25x1xf32, #tpu.memory_space<vmem>>, %arg4: memref<1x4x64xf32, #tpu.memory_space<vmem>>, %arg5: memref<1x25x64xf32, #tpu.memory_space<vmem>>, %arg6: memref<1x25x64xf32, #tpu.memory_space<vmem>>, %arg7: memref<1x25x25xf32, #tpu.memory_space<vmem>>, %arg8: memref<1x25x25xf32, #tpu.memory_space<vmem>>, %arg9: memref<1x25x4xf32, #tpu.memory_space<vmem>>, %arg10: memref<1x25x4xf32, #tpu.memory_space<vmem>>) attributes {dimension_semantics = [#tpu.dimension_semantics<parallel>], iteration_bounds = array<i64: 2>, scalar_prefetch = 0 : i64, scratch_operands = 0 : i64, tpu.core_type = #tpu.core_type<tc>, window_params = [{transform_indices = @transform_0, window_bounds = array<i64: 1, 2, 64>}, {pipeline_mode = #tpu.pipeline_mode<synchronous>, transform_indices = @transform_1, window_bounds = array<i64: 25, 1>}, {pipeline_mode = #tpu.pipeline_mode<synchronous>, transform_indices = @transform_2, window_bounds = array<i64: 25, 1>}, {transform_indices = @transform_3, window_bounds = array<i64: 1, 4, 64>}, {transform_indices = @transform_4, window_bounds = array<i64: 1, 25, 64>}, {transform_indices = @transform_5, window_bounds = array<i64: 1, 25, 64>}, {transform_indices = @transform_6, window_bounds = array<i64: 1, 25, 25>}, {transform_indices = @transform_7, window_bounds = array<i64: 1, 25, 25>}, {transform_indices = @transform_8, window_bounds = array<i64: 1, 25, 4>}, {transform_indices = @transform_9, window_bounds = array<i64: 1, 25, 4>}]} {
    %c0 = arith.constant 0 : index
    %c0_0 = arith.constant 0 : index
    %c0_1 = arith.constant 0 : index
    %0 = vector.load %arg1[%c0, %c0_0, %c0_1] : memref<1x2x64xf32, #tpu.memory_space<vmem>>, vector<1x2x64xf32>
    %1 = vector.shape_cast %0 : vector<1x2x64xf32> to vector<2x64xf32>
    %cst = arith.constant 5.000000e-01 : f32
    %2 = vector.broadcast %cst : f32 to vector<2x64xf32>
    %3 = arith.subf %1, %2 : vector<2x64xf32>
    %cst_2 = arith.constant 6.28318548 : f32
    %4 = vector.broadcast %cst_2 : f32 to vector<2x64xf32>
    %5 = arith.mulf %4, %3 : vector<2x64xf32>
    %c0_3 = arith.constant 0 : index
    %c0_4 = arith.constant 0 : index
    %6 = vector.load %arg2[%c0_3, %c0_4] : memref<25x1xf32, #tpu.memory_space<vmem>>, vector<25x1xf32>
    %7 = vector.extract_strided_slice %5 {offsets = [0, 0], sizes = [1, 64], strides = [1, 1]} : vector<2x64xf32> to vector<1x64xf32>
    %8 = vector.broadcast %6 : vector<25x1xf32> to vector<25x64xf32>
    %9 = vector.broadcast %7 : vector<1x64xf32> to vector<25x64xf32>
    %10 = arith.mulf %8, %9 : vector<25x64xf32>
    %c0_5 = arith.constant 0 : index
    %c0_6 = arith.constant 0 : index
    %11 = vector.load %arg3[%c0_5, %c0_6] : memref<25x1xf32, #tpu.memory_space<vmem>>, vector<25x1xf32>
    %12 = vector.extract_strided_slice %5 {offsets = [1, 0], sizes = [1, 64], strides = [1, 1]} : vector<2x64xf32> to vector<1x64xf32>
    %13 = vector.broadcast %11 : vector<25x1xf32> to vector<25x64xf32>
    %14 = vector.broadcast %12 : vector<1x64xf32> to vector<25x64xf32>
    %15 = arith.mulf %13, %14 : vector<25x64xf32>
    %16 = arith.addf %10, %15 : vector<25x64xf32>
    %17 = math.cos %16 : vector<25x64xf32>
    %18 = math.sin %16 : vector<25x64xf32>
    %c0_7 = arith.constant 0 : index
    %c0_8 = arith.constant 0 : index
    %c0_9 = arith.constant 0 : index
    %19 = vector.load %arg4[%c0_7, %c0_8, %c0_9] : memref<1x4x64xf32, #tpu.memory_space<vmem>>, vector<1x4x64xf32>
    %20 = vector.shape_cast %19 : vector<1x4x64xf32> to vector<4x64xf32>
    %c0_10 = arith.constant 0 : index
    %c0_11 = arith.constant 0 : index
    %c0_12 = arith.constant 0 : index
    %21 = vector.load %arg5[%c0_10, %c0_11, %c0_12] : memref<1x25x64xf32, #tpu.memory_space<vmem>>, vector<1x25x64xf32>
    %22 = vector.shape_cast %21 : vector<1x25x64xf32> to vector<25x64xf32>
    %23 = vector.shape_cast %17 : vector<25x64xf32> to vector<1x25x64xf32>
    tpu.vector_store %arg5[%c0_10, %c0_11, %c0_12], %23 {strides = array<i32>} : memref<1x25x64xf32, #tpu.memory_space<vmem>>, vector<1x25x64xf32>,
    %c0_13 = arith.constant 0 : index
    %c0_14 = arith.constant 0 : index
    %c0_15 = arith.constant 0 : index
    %24 = vector.load %arg6[%c0_13, %c0_14, %c0_15] : memref<1x25x64xf32, #tpu.memory_space<vmem>>, vector<1x25x64xf32>
    %25 = vector.shape_cast %24 : vector<1x25x64xf32> to vector<25x64xf32>
    %26 = vector.shape_cast %18 : vector<25x64xf32> to vector<1x25x64xf32>
    tpu.vector_store %arg6[%c0_13, %c0_14, %c0_15], %26 {strides = array<i32>} : memref<1x25x64xf32, #tpu.memory_space<vmem>>, vector<1x25x64xf32>,
    %cst_16 = arith.constant dense<0.000000e+00> : vector<25x25xf32>
    %27 = tpu.matmul %17, %17, %cst_16 {dimension_numbers = #tpu.dot_dimension_numbers<[1], [1], [0], [0], [0, 0, 1, 0], [], []>} : vector<25x64xf32>, vector<25x64xf32>, vector<25x25xf32> -> vector<25x25xf32>
    %cst_17 = arith.constant dense<0.000000e+00> : vector<25x25xf32>
    %28 = tpu.matmul %18, %18, %cst_17 {dimension_numbers = #tpu.dot_dimension_numbers<[1], [1], [0], [0], [0, 0, 1, 0], [], []>} : vector<25x64xf32>, vector<25x64xf32>, vector<25x25xf32> -> vector<25x25xf32>
    %cst_18 = arith.constant dense<0.000000e+00> : vector<25x25xf32>
    %29 = tpu.matmul %17, %18, %cst_18 {dimension_numbers = #tpu.dot_dimension_numbers<[1], [1], [0], [0], [0, 0, 1, 0], [], []>} : vector<25x64xf32>, vector<25x64xf32>, vector<25x25xf32> -> vector<25x25xf32>
    %cst_19 = arith.constant dense<0.000000e+00> : vector<25x25xf32>
    %30 = tpu.matmul %18, %17, %cst_19 {dimension_numbers = #tpu.dot_dimension_numbers<[1], [1], [0], [0], [0, 0, 1, 0], [], []>} : vector<25x64xf32>, vector<25x64xf32>, vector<25x25xf32> -> vector<25x25xf32>
    %31 = arith.addf %27, %28 : vector<25x25xf32>
    %c0_20 = arith.constant 0 : index
    %c0_21 = arith.constant 0 : index
    %c0_22 = arith.constant 0 : index
    %32 = vector.load %arg7[%c0_20, %c0_21, %c0_22] : memref<1x25x25xf32, #tpu.memory_space<vmem>>, vector<1x25x25xf32>
    %33 = vector.shape_cast %32 : vector<1x25x25xf32> to vector<25x25xf32>
    %34 = vector.shape_cast %31 : vector<25x25xf32> to vector<1x25x25xf32>
    tpu.vector_store %arg7[%c0_20, %c0_21, %c0_22], %34 {strides = array<i32>} : memref<1x25x25xf32, #tpu.memory_space<vmem>>, vector<1x25x25xf32>,
    %35 = arith.subf %29, %30 : vector<25x25xf32>
    %c0_23 = arith.constant 0 : index
    %c0_24 = arith.constant 0 : index
    %c0_25 = arith.constant 0 : index
    %36 = vector.load %arg8[%c0_23, %c0_24, %c0_25] : memref<1x25x25xf32, #tpu.memory_space<vmem>>, vector<1x25x25xf32>
    %37 = vector.shape_cast %36 : vector<1x25x25xf32> to vector<25x25xf32>
    %38 = vector.shape_cast %35 : vector<25x25xf32> to vector<1x25x25xf32>
    tpu.vector_store %arg8[%c0_23, %c0_24, %c0_25], %38 {strides = array<i32>} : memref<1x25x25xf32, #tpu.memory_space<vmem>>, vector<1x25x25xf32>,
    %cst_26 = arith.constant dense<0.000000e+00> : vector<25x4xf32>
    %39 = tpu.matmul %17, %20, %cst_26 {dimension_numbers = #tpu.dot_dimension_numbers<[1], [1], [0], [0], [0, 0, 1, 0], [], []>} : vector<25x64xf32>, vector<4x64xf32>, vector<25x4xf32> -> vector<25x4xf32>
    %c0_27 = arith.constant 0 : index
    %c0_28 = arith.constant 0 : index
    %c0_29 = arith.constant 0 : index
    %40 = vector.load %arg9[%c0_27, %c0_28, %c0_29] : memref<1x25x4xf32, #tpu.memory_space<vmem>>, vector<1x25x4xf32>
    %41 = vector.shape_cast %40 : vector<1x25x4xf32> to vector<25x4xf32>
    %42 = vector.shape_cast %39 : vector<25x4xf32> to vector<1x25x4xf32>
    tpu.vector_store %arg9[%c0_27, %c0_28, %c0_29], %42 {strides = array<i32>} : memref<1x25x4xf32, #tpu.memory_space<vmem>>, vector<1x25x4xf32>,
    %cst_30 = arith.constant dense<0.000000e+00> : vector<25x4xf32>
    %43 = tpu.matmul %18, %20, %cst_30 {dimension_numbers = #tpu.dot_dimension_numbers<[1], [1], [0], [0], [0, 0, 1, 0], [], []>} : vector<25x64xf32>, vector<4x64xf32>, vector<25x4xf32> -> vector<25x4xf32>
    %c0_31 = arith.constant 0 : index
    %c0_32 = arith.constant 0 : index
    %c0_33 = arith.constant 0 : index
    %44 = vector.load %arg10[%c0_31, %c0_32, %c0_33] : memref<1x25x4xf32, #tpu.memory_space<vmem>>, vector<1x25x4xf32>
    %45 = vector.shape_cast %44 : vector<1x25x4xf32> to vector<25x4xf32>
    %46 = vector.shape_cast %43 : vector<25x4xf32> to vector<1x25x4xf32>
    tpu.vector_store %arg10[%c0_31, %c0_32, %c0_33], %46 {strides = array<i32>} : memref<1x25x4xf32, #tpu.memory_space<vmem>>, vector<1x25x4xf32>,
    return
  }
  func.func @transform_0(%arg0: i32) -> (i32, i32, i32) {
    %c0_i32 = arith.constant 0 : i32
    %c0_i32_0 = arith.constant 0 : i32
    %c0_i32_1 = arith.constant 0 : i32
    return %arg0, %c0_i32, %c0_i32_0 : i32, i32, i32
  }
  func.func @transform_1(%arg0: i32) -> (i32, i32) {
    %c0_i32 = arith.constant 0 : i32
    %c0_i32_0 = arith.constant 0 : i32
    %c0_i32_1 = arith.constant 0 : i32
    return %c0_i32, %c0_i32_0 : i32, i32
  }
  func.func @transform_2(%arg0: i32) -> (i32, i32) {
    %c0_i32 = arith.constant 0 : i32
    %c0_i32_0 = arith.constant 0 : i32
    %c0_i32_1 = arith.constant 0 : i32
    return %c0_i32, %c0_i32_0 : i32, i32
  }
  func.func @transform_3(%arg0: i32) -> (i32, i32, i32) {
    %c0_i32 = arith.constant 0 : i32
    %c0_i32_0 = arith.constant 0 : i32
    %c0_i32_1 = arith.constant 0 : i32
    return %arg0, %c0_i32, %c0_i32_0 : i32, i32, i32
  }
  func.func @transform_4(%arg0: i32) -> (i32, i32, i32) {
    %c0_i32 = arith.constant 0 : i32
    %c0_i32_0 = arith.constant 0 : i32
    %c0_i32_1 = arith.constant 0 : i32
    return %arg0, %c0_i32, %c0_i32_0 : i32, i32, i32
  }
  func.func @transform_5(%arg0: i32) -> (i32, i32, i32) {
    %c0_i32 = arith.constant 0 : i32
    %c0_i32_0 = arith.constant 0 : i32
    %c0_i32_1 = arith.constant 0 : i32
    return %arg0, %c0_i32, %c0_i32_0 : i32, i32, i32
  }
  func.func @transform_6(%arg0: i32) -> (i32, i32, i32) {
    %c0_i32 = arith.constant 0 : i32
    %c0_i32_0 = arith.constant 0 : i32
    %c0_i32_1 = arith.constant 0 : i32
    return %arg0, %c0_i32, %c0_i32_0 : i32, i32, i32
  }
  func.func @transform_7(%arg0: i32) -> (i32, i32, i32) {
    %c0_i32 = arith.constant 0 : i32
    %c0_i32_0 = arith.constant 0 : i32
    %c0_i32_1 = arith.constant 0 : i32
    return %arg0, %c0_i32, %c0_i32_0 : i32, i32, i32
  }
  func.func @transform_8(%arg0: i32) -> (i32, i32, i32) {
    %c0_i32 = arith.constant 0 : i32
    %c0_i32_0 = arith.constant 0 : i32
    %c0_i32_1 = arith.constant 0 : i32
    return %arg0, %c0_i32, %c0_i32_0 : i32, i32, i32
  }
  func.func @transform_9(%arg0: i32) -> (i32, i32, i32) {
    %c0_i32 = arith.constant 0 : i32
    %c0_i32_0 = arith.constant 0 : i32
    %c0_i32_1 = arith.constant 0 : i32
    return %arg0, %c0_i32, %c0_i32_0 : i32, i32, i32
  }
}

module attributes {stable_mosaic.version = 11 : i64} {
  func.func @_grind_fused_ode_kernel(%arg0: i32, %arg1: memref<1x4x25xf32, #tpu.memory_space<vmem>>, %arg2: memref<1x4x25xf32, #tpu.memory_space<vmem>>, %arg3: memref<25x256xf32, #tpu.memory_space<vmem>>, %arg4: memref<25x256xf32, #tpu.memory_space<vmem>>, %arg5: memref<256x25xf32, #tpu.memory_space<vmem>>, %arg6: memref<256x25xf32, #tpu.memory_space<vmem>>, %arg7: memref<1x25x64xf32, #tpu.memory_space<vmem>>, %arg8: memref<1x25x64xf32, #tpu.memory_space<vmem>>, %arg9: memref<9x8x4xf32, #tpu.memory_space<vmem>>, %arg10: memref<8x1xf32, #tpu.memory_space<vmem>>, %arg11: memref<9x4x8xf32, #tpu.memory_space<vmem>>, %arg12: memref<4x1xf32, #tpu.memory_space<vmem>>, %arg13: memref<1x1x4x64xf32, #tpu.memory_space<vmem>>) attributes {dimension_semantics = [#tpu.dimension_semantics<parallel>], iteration_bounds = array<i64: 2>, scalar_prefetch = 0 : i64, scratch_operands = 0 : i64, tpu.core_type = #tpu.core_type<tc>, window_params = [{transform_indices = @transform_0, window_bounds = array<i64: 1, 4, 25>}, {transform_indices = @transform_1, window_bounds = array<i64: 1, 4, 25>}, {pipeline_mode = #tpu.pipeline_mode<synchronous>, transform_indices = @transform_2, window_bounds = array<i64: 25, 256>}, {pipeline_mode = #tpu.pipeline_mode<synchronous>, transform_indices = @transform_3, window_bounds = array<i64: 25, 256>}, {pipeline_mode = #tpu.pipeline_mode<synchronous>, transform_indices = @transform_4, window_bounds = array<i64: 256, 25>}, {pipeline_mode = #tpu.pipeline_mode<synchronous>, transform_indices = @transform_5, window_bounds = array<i64: 256, 25>}, {transform_indices = @transform_6, window_bounds = array<i64: 1, 25, 64>}, {transform_indices = @transform_7, window_bounds = array<i64: 1, 25, 64>}, {pipeline_mode = #tpu.pipeline_mode<synchronous>, transform_indices = @transform_8, window_bounds = array<i64: 9, 8, 4>}, {pipeline_mode = #tpu.pipeline_mode<synchronous>, transform_indices = @transform_9, window_bounds = array<i64: 8, 1>}, {pipeline_mode = #tpu.pipeline_mode<synchronous>, transform_indices = @transform_10, window_bounds = array<i64: 9, 4, 8>}, {pipeline_mode = #tpu.pipeline_mode<synchronous>, transform_indices = @transform_11, window_bounds = array<i64: 4, 1>}, {transform_indices = @transform_12, window_bounds = array<i64: 1, 1, 4, 64>}]} {
    %c0 = arith.constant 0 : index
    %c0_0 = arith.constant 0 : index
    %c0_1 = arith.constant 0 : index
    %0 = vector.load %arg1[%c0, %c0_0, %c0_1] : memref<1x4x25xf32, #tpu.memory_space<vmem>>, vector<1x4x25xf32>
    %1 = vector.shape_cast %0 : vector<1x4x25xf32> to vector<4x25xf32>
    %c0_2 = arith.constant 0 : index
    %c0_3 = arith.constant 0 : index
    %2 = vector.load %arg3[%c0_2, %c0_3] : memref<25x256xf32, #tpu.memory_space<vmem>>, vector<25x256xf32>
    %cst = arith.constant dense<0.000000e+00> : vector<4x256xf32>
    %3 = tpu.matmul %1, %2, %cst {dimension_numbers = #tpu.dot_dimension_numbers<[1], [0], [0], [1], [0, 0, 1, 1], [], []>} : vector<4x25xf32>, vector<25x256xf32>, vector<4x256xf32> -> vector<4x256xf32>
    %c0_4 = arith.constant 0 : index
    %c0_5 = arith.constant 0 : index
    %c0_6 = arith.constant 0 : index
    %4 = vector.load %arg2[%c0_4, %c0_5, %c0_6] : memref<1x4x25xf32, #tpu.memory_space<vmem>>, vector<1x4x25xf32>
    %5 = vector.shape_cast %4 : vector<1x4x25xf32> to vector<4x25xf32>
    %c0_7 = arith.constant 0 : index
    %c0_8 = arith.constant 0 : index
    %6 = vector.load %arg4[%c0_7, %c0_8] : memref<25x256xf32, #tpu.memory_space<vmem>>, vector<25x256xf32>
    %cst_9 = arith.constant dense<0.000000e+00> : vector<4x256xf32>
    %7 = tpu.matmul %5, %6, %cst_9 {dimension_numbers = #tpu.dot_dimension_numbers<[1], [0], [0], [1], [0, 0, 1, 1], [], []>} : vector<4x25xf32>, vector<25x256xf32>, vector<4x256xf32> -> vector<4x256xf32>
    %8 = arith.subf %3, %7 : vector<4x256xf32>
    %9 = tpu.iota {dimensions = array<i32: 1>} : vector<1x256xi32>
    %c16_i32 = arith.constant 16 : i32
    %c0_i32 = arith.constant 0 : i32
    %10 = arith.cmpi eq, %c16_i32, %c0_i32 : i32
    %c1_i32 = arith.constant 1 : i32
    %11 = arith.select %10, %c1_i32, %c16_i32 : i32
    %12 = vector.broadcast %11 : i32 to vector<1x256xi32>
    %13 = arith.remsi %9, %12 : vector<1x256xi32>
    %c0_i32_10 = arith.constant 0 : i32
    %14 = vector.broadcast %c0_i32_10 : i32 to vector<1x256xi32>
    %15 = arith.cmpi ne, %13, %14 : vector<1x256xi32>
    %c0_i32_11 = arith.constant 0 : i32
    %16 = vector.broadcast %c0_i32_11 : i32 to vector<1x256xi32>
    %17 = arith.cmpi slt, %13, %16 : vector<1x256xi32>
    %c0_i32_12 = arith.constant 0 : i32
    %18 = arith.cmpi slt, %11, %c0_i32_12 : i32
    %19 = vector.broadcast %18 : i1 to vector<1x256xi1>
    %20 = vector.broadcast %19 : vector<1x256xi1> to vector<1x256xi1>
    %21 = arith.xori %17, %20 : vector<1x256xi1>
    %22 = arith.andi %21, %15 : vector<1x256xi1>
    %23 = vector.broadcast %11 : i32 to vector<1x256xi32>
    %24 = arith.addi %13, %23 : vector<1x256xi32>
    %25 = arith.select %22, %24, %13 : vector<1x256xi1>, vector<1x256xi32>
    %c0_i32_13 = arith.constant 0 : i32
    %26 = vector.broadcast %c0_i32_13 : i32 to vector<1x256xi32>
    %27 = arith.cmpi eq, %25, %26 : vector<1x256xi32>
    %c15_i32 = arith.constant 15 : i32
    %28 = vector.broadcast %c15_i32 : i32 to vector<1x256xi32>
    %29 = arith.cmpi eq, %25, %28 : vector<1x256xi32>
    %c0_14 = arith.constant 0 : index
    %c0_15 = arith.constant 0 : index
    %c0_16 = arith.constant 0 : index
    %30 = vector.load %arg9[%c0_14, %c0_15, %c0_16] : memref<9x8x4xf32, #tpu.memory_space<vmem>>, vector<1x8x4xf32>
    %31 = vector.shape_cast %30 : vector<1x8x4xf32> to vector<8x4xf32>
    %c1 = arith.constant 1 : index
    %c0_17 = arith.constant 0 : index
    %c0_18 = arith.constant 0 : index
    %32 = vector.load %arg9[%c1, %c0_17, %c0_18] : memref<9x8x4xf32, #tpu.memory_space<vmem>>, vector<1x8x4xf32>
    %33 = vector.shape_cast %32 : vector<1x8x4xf32> to vector<8x4xf32>
    %c2 = arith.constant 2 : index
    %c0_19 = arith.constant 0 : index
    %c0_20 = arith.constant 0 : index
    %34 = vector.load %arg9[%c2, %c0_19, %c0_20] : memref<9x8x4xf32, #tpu.memory_space<vmem>>, vector<1x8x4xf32>
    %35 = vector.shape_cast %34 : vector<1x8x4xf32> to vector<8x4xf32>
    %c3 = arith.constant 3 : index
    %c0_21 = arith.constant 0 : index
    %c0_22 = arith.constant 0 : index
    %36 = vector.load %arg9[%c3, %c0_21, %c0_22] : memref<9x8x4xf32, #tpu.memory_space<vmem>>, vector<1x8x4xf32>
    %37 = vector.shape_cast %36 : vector<1x8x4xf32> to vector<8x4xf32>
    %c4 = arith.constant 4 : index
    %c0_23 = arith.constant 0 : index
    %c0_24 = arith.constant 0 : index
    %38 = vector.load %arg9[%c4, %c0_23, %c0_24] : memref<9x8x4xf32, #tpu.memory_space<vmem>>, vector<1x8x4xf32>
    %39 = vector.shape_cast %38 : vector<1x8x4xf32> to vector<8x4xf32>
    %c5 = arith.constant 5 : index
    %c0_25 = arith.constant 0 : index
    %c0_26 = arith.constant 0 : index
    %40 = vector.load %arg9[%c5, %c0_25, %c0_26] : memref<9x8x4xf32, #tpu.memory_space<vmem>>, vector<1x8x4xf32>
    %41 = vector.shape_cast %40 : vector<1x8x4xf32> to vector<8x4xf32>
    %c6 = arith.constant 6 : index
    %c0_27 = arith.constant 0 : index
    %c0_28 = arith.constant 0 : index
    %42 = vector.load %arg9[%c6, %c0_27, %c0_28] : memref<9x8x4xf32, #tpu.memory_space<vmem>>, vector<1x8x4xf32>
    %43 = vector.shape_cast %42 : vector<1x8x4xf32> to vector<8x4xf32>
    %c7 = arith.constant 7 : index
    %c0_29 = arith.constant 0 : index
    %c0_30 = arith.constant 0 : index
    %44 = vector.load %arg9[%c7, %c0_29, %c0_30] : memref<9x8x4xf32, #tpu.memory_space<vmem>>, vector<1x8x4xf32>
    %45 = vector.shape_cast %44 : vector<1x8x4xf32> to vector<8x4xf32>
    %c8 = arith.constant 8 : index
    %c0_31 = arith.constant 0 : index
    %c0_32 = arith.constant 0 : index
    %46 = vector.load %arg9[%c8, %c0_31, %c0_32] : memref<9x8x4xf32, #tpu.memory_space<vmem>>, vector<1x8x4xf32>
    %47 = vector.shape_cast %46 : vector<1x8x4xf32> to vector<8x4xf32>
    %c0_33 = arith.constant 0 : index
    %c0_34 = arith.constant 0 : index
    %c0_35 = arith.constant 0 : index
    %48 = vector.load %arg11[%c0_33, %c0_34, %c0_35] : memref<9x4x8xf32, #tpu.memory_space<vmem>>, vector<1x4x8xf32>
    %49 = vector.shape_cast %48 : vector<1x4x8xf32> to vector<4x8xf32>
    %c1_36 = arith.constant 1 : index
    %c0_37 = arith.constant 0 : index
    %c0_38 = arith.constant 0 : index
    %50 = vector.load %arg11[%c1_36, %c0_37, %c0_38] : memref<9x4x8xf32, #tpu.memory_space<vmem>>, vector<1x4x8xf32>
    %51 = vector.shape_cast %50 : vector<1x4x8xf32> to vector<4x8xf32>
    %c2_39 = arith.constant 2 : index
    %c0_40 = arith.constant 0 : index
    %c0_41 = arith.constant 0 : index
    %52 = vector.load %arg11[%c2_39, %c0_40, %c0_41] : memref<9x4x8xf32, #tpu.memory_space<vmem>>, vector<1x4x8xf32>
    %53 = vector.shape_cast %52 : vector<1x4x8xf32> to vector<4x8xf32>
    %c3_42 = arith.constant 3 : index
    %c0_43 = arith.constant 0 : index
    %c0_44 = arith.constant 0 : index
    %54 = vector.load %arg11[%c3_42, %c0_43, %c0_44] : memref<9x4x8xf32, #tpu.memory_space<vmem>>, vector<1x4x8xf32>
    %55 = vector.shape_cast %54 : vector<1x4x8xf32> to vector<4x8xf32>
    %c4_45 = arith.constant 4 : index
    %c0_46 = arith.constant 0 : index
    %c0_47 = arith.constant 0 : index
    %56 = vector.load %arg11[%c4_45, %c0_46, %c0_47] : memref<9x4x8xf32, #tpu.memory_space<vmem>>, vector<1x4x8xf32>
    %57 = vector.shape_cast %56 : vector<1x4x8xf32> to vector<4x8xf32>
    %c5_48 = arith.constant 5 : index
    %c0_49 = arith.constant 0 : index
    %c0_50 = arith.constant 0 : index
    %58 = vector.load %arg11[%c5_48, %c0_49, %c0_50] : memref<9x4x8xf32, #tpu.memory_space<vmem>>, vector<1x4x8xf32>
    %59 = vector.shape_cast %58 : vector<1x4x8xf32> to vector<4x8xf32>
    %c6_51 = arith.constant 6 : index
    %c0_52 = arith.constant 0 : index
    %c0_53 = arith.constant 0 : index
    %60 = vector.load %arg11[%c6_51, %c0_52, %c0_53] : memref<9x4x8xf32, #tpu.memory_space<vmem>>, vector<1x4x8xf32>
    %61 = vector.shape_cast %60 : vector<1x4x8xf32> to vector<4x8xf32>
    %c7_54 = arith.constant 7 : index
    %c0_55 = arith.constant 0 : index
    %c0_56 = arith.constant 0 : index
    %62 = vector.load %arg11[%c7_54, %c0_55, %c0_56] : memref<9x4x8xf32, #tpu.memory_space<vmem>>, vector<1x4x8xf32>
    %63 = vector.shape_cast %62 : vector<1x4x8xf32> to vector<4x8xf32>
    %c8_57 = arith.constant 8 : index
    %c0_58 = arith.constant 0 : index
    %c0_59 = arith.constant 0 : index
    %64 = vector.load %arg11[%c8_57, %c0_58, %c0_59] : memref<9x4x8xf32, #tpu.memory_space<vmem>>, vector<1x4x8xf32>
    %65 = vector.shape_cast %64 : vector<1x4x8xf32> to vector<4x8xf32>
    %c0_60 = arith.constant 0 : index
    %c0_61 = arith.constant 0 : index
    %66 = vector.load %arg10[%c0_60, %c0_61] : memref<8x1xf32, #tpu.memory_space<vmem>>, vector<8x1xf32>
    %c0_62 = arith.constant 0 : index
    %c0_63 = arith.constant 0 : index
    %67 = vector.load %arg12[%c0_62, %c0_63] : memref<4x1xf32, #tpu.memory_space<vmem>>, vector<4x1xf32>
    %c0_i32_64 = arith.constant 0 : i32
    %c4_i32 = arith.constant 4 : i32
    %68 = arith.addi %c0_i32_64, %c4_i32 : i32
    %c1_i32_65 = arith.constant 1 : i32
    %69 = scf.for %arg14 = %c0_i32_64 to %68 step %c1_i32_65 iter_args(%arg15 = %8) -> (vector<4x256xf32>)  : i32 {
      %cst_84 = arith.constant 0.000000e+00 : f32
      %84 = vector.broadcast %cst_84 : f32 to vector<8x256xf32>
      %85 = vector.broadcast %66 : vector<8x1xf32> to vector<8x256xf32>
      %86 = arith.addf %85, %84 : vector<8x256xf32>
      %c16_i32_85 = arith.constant 16 : i32
      %87 = tpu.dynamic_rotate %arg15 by %c16_i32_85 dim 1 : vector<4x256xf32>, i32 -> vector<4x256xf32>
      %c1_i32_86 = arith.constant 1 : i32
      %88 = tpu.dynamic_rotate %87 by %c1_i32_86 dim 1 : vector<4x256xf32>, i32 -> vector<4x256xf32>
      %c241_i32 = arith.constant 241 : i32
      %89 = tpu.dynamic_rotate %87 by %c241_i32 dim 1 : vector<4x256xf32>, i32 -> vector<4x256xf32>
      %90 = vector.shape_cast %27 : vector<1x256xi1> to vector<1x256xi1>
      %91 = vector.broadcast %90 : vector<1x256xi1> to vector<4x256xi1>
      %92 = arith.select %91, %89, %88 : vector<4x256xi1>, vector<4x256xf32>
      %cst_87 = arith.constant dense<0.000000e+00> : vector<8x256xf32>
      %93 = tpu.matmul %31, %92, %cst_87 {dimension_numbers = #tpu.dot_dimension_numbers<[1], [0], [0], [1], [0, 0, 1, 1], [], []>} : vector<8x4xf32>, vector<4x256xf32>, vector<8x256xf32> -> vector<8x256xf32>
      %94 = arith.addf %86, %93 : vector<8x256xf32>
      %cst_88 = arith.constant dense<0.000000e+00> : vector<8x256xf32>
      %95 = tpu.matmul %33, %87, %cst_88 {dimension_numbers = #tpu.dot_dimension_numbers<[1], [0], [0], [1], [0, 0, 1, 1], [], []>} : vector<8x4xf32>, vector<4x256xf32>, vector<8x256xf32> -> vector<8x256xf32>
      %96 = arith.addf %94, %95 : vector<8x256xf32>
      %c255_i32 = arith.constant 255 : i32
      %97 = tpu.dynamic_rotate %87 by %c255_i32 dim 1 : vector<4x256xf32>, i32 -> vector<4x256xf32>
      %c15_i32_89 = arith.constant 15 : i32
      %98 = tpu.dynamic_rotate %87 by %c15_i32_89 dim 1 : vector<4x256xf32>, i32 -> vector<4x256xf32>
      %99 = vector.shape_cast %29 : vector<1x256xi1> to vector<1x256xi1>
      %100 = vector.broadcast %99 : vector<1x256xi1> to vector<4x256xi1>
      %101 = arith.select %100, %98, %97 : vector<4x256xi1>, vector<4x256xf32>
      %cst_90 = arith.constant dense<0.000000e+00> : vector<8x256xf32>
      %102 = tpu.matmul %35, %101, %cst_90 {dimension_numbers = #tpu.dot_dimension_numbers<[1], [0], [0], [1], [0, 0, 1, 1], [], []>} : vector<8x4xf32>, vector<4x256xf32>, vector<8x256xf32> -> vector<8x256xf32>
      %103 = arith.addf %96, %102 : vector<8x256xf32>
      %c1_i32_91 = arith.constant 1 : i32
      %104 = tpu.dynamic_rotate %arg15 by %c1_i32_91 dim 1 : vector<4x256xf32>, i32 -> vector<4x256xf32>
      %c241_i32_92 = arith.constant 241 : i32
      %105 = tpu.dynamic_rotate %arg15 by %c241_i32_92 dim 1 : vector<4x256xf32>, i32 -> vector<4x256xf32>
      %106 = vector.shape_cast %27 : vector<1x256xi1> to vector<1x256xi1>
      %107 = vector.broadcast %106 : vector<1x256xi1> to vector<4x256xi1>
      %108 = arith.select %107, %105, %104 : vector<4x256xi1>, vector<4x256xf32>
      %cst_93 = arith.constant dense<0.000000e+00> : vector<8x256xf32>
      %109 = tpu.matmul %37, %108, %cst_93 {dimension_numbers = #tpu.dot_dimension_numbers<[1], [0], [0], [1], [0, 0, 1, 1], [], []>} : vector<8x4xf32>, vector<4x256xf32>, vector<8x256xf32> -> vector<8x256xf32>
      %110 = arith.addf %103, %109 : vector<8x256xf32>
      %cst_94 = arith.constant dense<0.000000e+00> : vector<8x256xf32>
      %111 = tpu.matmul %39, %arg15, %cst_94 {dimension_numbers = #tpu.dot_dimension_numbers<[1], [0], [0], [1], [0, 0, 1, 1], [], []>} : vector<8x4xf32>, vector<4x256xf32>, vector<8x256xf32> -> vector<8x256xf32>
      %112 = arith.addf %110, %111 : vector<8x256xf32>
      %c255_i32_95 = arith.constant 255 : i32
      %113 = tpu.dynamic_rotate %arg15 by %c255_i32_95 dim 1 : vector<4x256xf32>, i32 -> vector<4x256xf32>
      %c15_i32_96 = arith.constant 15 : i32
      %114 = tpu.dynamic_rotate %arg15 by %c15_i32_96 dim 1 : vector<4x256xf32>, i32 -> vector<4x256xf32>
      %115 = vector.shape_cast %29 : vector<1x256xi1> to vector<1x256xi1>
      %116 = vector.broadcast %115 : vector<1x256xi1> to vector<4x256xi1>
      %117 = arith.select %116, %114, %113 : vector<4x256xi1>, vector<4x256xf32>
      %cst_97 = arith.constant dense<0.000000e+00> : vector<8x256xf32>
      %118 = tpu.matmul %41, %117, %cst_97 {dimension_numbers = #tpu.dot_dimension_numbers<[1], [0], [0], [1], [0, 0, 1, 1], [], []>} : vector<8x4xf32>, vector<4x256xf32>, vector<8x256xf32> -> vector<8x256xf32>
      %119 = arith.addf %112, %118 : vector<8x256xf32>
      %c240_i32 = arith.constant 240 : i32
      %120 = tpu.dynamic_rotate %arg15 by %c240_i32 dim 1 : vector<4x256xf32>, i32 -> vector<4x256xf32>
      %c1_i32_98 = arith.constant 1 : i32
      %121 = tpu.dynamic_rotate %120 by %c1_i32_98 dim 1 : vector<4x256xf32>, i32 -> vector<4x256xf32>
      %c241_i32_99 = arith.constant 241 : i32
      %122 = tpu.dynamic_rotate %120 by %c241_i32_99 dim 1 : vector<4x256xf32>, i32 -> vector<4x256xf32>
      %123 = vector.shape_cast %27 : vector<1x256xi1> to vector<1x256xi1>
      %124 = vector.broadcast %123 : vector<1x256xi1> to vector<4x256xi1>
      %125 = arith.select %124, %122, %121 : vector<4x256xi1>, vector<4x256xf32>
      %cst_100 = arith.constant dense<0.000000e+00> : vector<8x256xf32>
      %126 = tpu.matmul %43, %125, %cst_100 {dimension_numbers = #tpu.dot_dimension_numbers<[1], [0], [0], [1], [0, 0, 1, 1], [], []>} : vector<8x4xf32>, vector<4x256xf32>, vector<8x256xf32> -> vector<8x256xf32>
      %127 = arith.addf %119, %126 : vector<8x256xf32>
      %cst_101 = arith.constant dense<0.000000e+00> : vector<8x256xf32>
      %128 = tpu.matmul %45, %120, %cst_101 {dimension_numbers = #tpu.dot_dimension_numbers<[1], [0], [0], [1], [0, 0, 1, 1], [], []>} : vector<8x4xf32>, vector<4x256xf32>, vector<8x256xf32> -> vector<8x256xf32>
      %129 = arith.addf %127, %128 : vector<8x256xf32>
      %c255_i32_102 = arith.constant 255 : i32
      %130 = tpu.dynamic_rotate %120 by %c255_i32_102 dim 1 : vector<4x256xf32>, i32 -> vector<4x256xf32>
      %c15_i32_103 = arith.constant 15 : i32
      %131 = tpu.dynamic_rotate %120 by %c15_i32_103 dim 1 : vector<4x256xf32>, i32 -> vector<4x256xf32>
      %132 = vector.shape_cast %29 : vector<1x256xi1> to vector<1x256xi1>
      %133 = vector.broadcast %132 : vector<1x256xi1> to vector<4x256xi1>
      %134 = arith.select %133, %131, %130 : vector<4x256xi1>, vector<4x256xf32>
      %cst_104 = arith.constant dense<0.000000e+00> : vector<8x256xf32>
      %135 = tpu.matmul %47, %134, %cst_104 {dimension_numbers = #tpu.dot_dimension_numbers<[1], [0], [0], [1], [0, 0, 1, 1], [], []>} : vector<8x4xf32>, vector<4x256xf32>, vector<8x256xf32> -> vector<8x256xf32>
      %136 = arith.addf %129, %135 : vector<8x256xf32>
      %137 = math.tanh %136 : vector<8x256xf32>
      %cst_105 = arith.constant 0.000000e+00 : f32
      %138 = vector.broadcast %cst_105 : f32 to vector<4x256xf32>
      %139 = vector.broadcast %67 : vector<4x1xf32> to vector<4x256xf32>
      %140 = arith.addf %139, %138 : vector<4x256xf32>
      %c16_i32_106 = arith.constant 16 : i32
      %141 = tpu.dynamic_rotate %137 by %c16_i32_106 dim 1 : vector<8x256xf32>, i32 -> vector<8x256xf32>
      %c1_i32_107 = arith.constant 1 : i32
      %142 = tpu.dynamic_rotate %141 by %c1_i32_107 dim 1 : vector<8x256xf32>, i32 -> vector<8x256xf32>
      %c241_i32_108 = arith.constant 241 : i32
      %143 = tpu.dynamic_rotate %141 by %c241_i32_108 dim 1 : vector<8x256xf32>, i32 -> vector<8x256xf32>
      %144 = vector.shape_cast %27 : vector<1x256xi1> to vector<1x256xi1>
      %145 = vector.broadcast %144 : vector<1x256xi1> to vector<8x256xi1>
      %146 = arith.select %145, %143, %142 : vector<8x256xi1>, vector<8x256xf32>
      %cst_109 = arith.constant dense<0.000000e+00> : vector<4x256xf32>
      %147 = tpu.matmul %49, %146, %cst_109 {dimension_numbers = #tpu.dot_dimension_numbers<[1], [0], [0], [1], [0, 0, 1, 1], [], []>} : vector<4x8xf32>, vector<8x256xf32>, vector<4x256xf32> -> vector<4x256xf32>
      %148 = arith.addf %140, %147 : vector<4x256xf32>
      %cst_110 = arith.constant dense<0.000000e+00> : vector<4x256xf32>
      %149 = tpu.matmul %51, %141, %cst_110 {dimension_numbers = #tpu.dot_dimension_numbers<[1], [0], [0], [1], [0, 0, 1, 1], [], []>} : vector<4x8xf32>, vector<8x256xf32>, vector<4x256xf32> -> vector<4x256xf32>
      %150 = arith.addf %148, %149 : vector<4x256xf32>
      %c255_i32_111 = arith.constant 255 : i32
      %151 = tpu.dynamic_rotate %141 by %c255_i32_111 dim 1 : vector<8x256xf32>, i32 -> vector<8x256xf32>
      %c15_i32_112 = arith.constant 15 : i32
      %152 = tpu.dynamic_rotate %141 by %c15_i32_112 dim 1 : vector<8x256xf32>, i32 -> vector<8x256xf32>
      %153 = vector.shape_cast %29 : vector<1x256xi1> to vector<1x256xi1>
      %154 = vector.broadcast %153 : vector<1x256xi1> to vector<8x256xi1>
      %155 = arith.select %154, %152, %151 : vector<8x256xi1>, vector<8x256xf32>
      %cst_113 = arith.constant dense<0.000000e+00> : vector<4x256xf32>
      %156 = tpu.matmul %53, %155, %cst_113 {dimension_numbers = #tpu.dot_dimension_numbers<[1], [0], [0], [1], [0, 0, 1, 1], [], []>} : vector<4x8xf32>, vector<8x256xf32>, vector<4x256xf32> -> vector<4x256xf32>
      %157 = arith.addf %150, %156 : vector<4x256xf32>
      %c1_i32_114 = arith.constant 1 : i32
      %158 = tpu.dynamic_rotate %137 by %c1_i32_114 dim 1 : vector<8x256xf32>, i32 -> vector<8x256xf32>
      %c241_i32_115 = arith.constant 241 : i32
      %159 = tpu.dynamic_rotate %137 by %c241_i32_115 dim 1 : vector<8x256xf32>, i32 -> vector<8x256xf32>
      %160 = vector.shape_cast %27 : vector<1x256xi1> to vector<1x256xi1>
      %161 = vector.broadcast %160 : vector<1x256xi1> to vector<8x256xi1>
      %162 = arith.select %161, %159, %158 : vector<8x256xi1>, vector<8x256xf32>
      %cst_116 = arith.constant dense<0.000000e+00> : vector<4x256xf32>
      %163 = tpu.matmul %55, %162, %cst_116 {dimension_numbers = #tpu.dot_dimension_numbers<[1], [0], [0], [1], [0, 0, 1, 1], [], []>} : vector<4x8xf32>, vector<8x256xf32>, vector<4x256xf32> -> vector<4x256xf32>
      %164 = arith.addf %157, %163 : vector<4x256xf32>
      %cst_117 = arith.constant dense<0.000000e+00> : vector<4x256xf32>
      %165 = tpu.matmul %57, %137, %cst_117 {dimension_numbers = #tpu.dot_dimension_numbers<[1], [0], [0], [1], [0, 0, 1, 1], [], []>} : vector<4x8xf32>, vector<8x256xf32>, vector<4x256xf32> -> vector<4x256xf32>
      %166 = arith.addf %164, %165 : vector<4x256xf32>
      %c255_i32_118 = arith.constant 255 : i32
      %167 = tpu.dynamic_rotate %137 by %c255_i32_118 dim 1 : vector<8x256xf32>, i32 -> vector<8x256xf32>
      %c15_i32_119 = arith.constant 15 : i32
      %168 = tpu.dynamic_rotate %137 by %c15_i32_119 dim 1 : vector<8x256xf32>, i32 -> vector<8x256xf32>
      %169 = vector.shape_cast %29 : vector<1x256xi1> to vector<1x256xi1>
      %170 = vector.broadcast %169 : vector<1x256xi1> to vector<8x256xi1>
      %171 = arith.select %170, %168, %167 : vector<8x256xi1>, vector<8x256xf32>
      %cst_120 = arith.constant dense<0.000000e+00> : vector<4x256xf32>
      %172 = tpu.matmul %59, %171, %cst_120 {dimension_numbers = #tpu.dot_dimension_numbers<[1], [0], [0], [1], [0, 0, 1, 1], [], []>} : vector<4x8xf32>, vector<8x256xf32>, vector<4x256xf32> -> vector<4x256xf32>
      %173 = arith.addf %166, %172 : vector<4x256xf32>
      %c240_i32_121 = arith.constant 240 : i32
      %174 = tpu.dynamic_rotate %137 by %c240_i32_121 dim 1 : vector<8x256xf32>, i32 -> vector<8x256xf32>
      %c1_i32_122 = arith.constant 1 : i32
      %175 = tpu.dynamic_rotate %174 by %c1_i32_122 dim 1 : vector<8x256xf32>, i32 -> vector<8x256xf32>
      %c241_i32_123 = arith.constant 241 : i32
      %176 = tpu.dynamic_rotate %174 by %c241_i32_123 dim 1 : vector<8x256xf32>, i32 -> vector<8x256xf32>
      %177 = vector.shape_cast %27 : vector<1x256xi1> to vector<1x256xi1>
      %178 = vector.broadcast %177 : vector<1x256xi1> to vector<8x256xi1>
      %179 = arith.select %178, %176, %175 : vector<8x256xi1>, vector<8x256xf32>
      %cst_124 = arith.constant dense<0.000000e+00> : vector<4x256xf32>
      %180 = tpu.matmul %61, %179, %cst_124 {dimension_numbers = #tpu.dot_dimension_numbers<[1], [0], [0], [1], [0, 0, 1, 1], [], []>} : vector<4x8xf32>, vector<8x256xf32>, vector<4x256xf32> -> vector<4x256xf32>
      %181 = arith.addf %173, %180 : vector<4x256xf32>
      %cst_125 = arith.constant dense<0.000000e+00> : vector<4x256xf32>
      %182 = tpu.matmul %63, %174, %cst_125 {dimension_numbers = #tpu.dot_dimension_numbers<[1], [0], [0], [1], [0, 0, 1, 1], [], []>} : vector<4x8xf32>, vector<8x256xf32>, vector<4x256xf32> -> vector<4x256xf32>
      %183 = arith.addf %181, %182 : vector<4x256xf32>
      %c255_i32_126 = arith.constant 255 : i32
      %184 = tpu.dynamic_rotate %174 by %c255_i32_126 dim 1 : vector<8x256xf32>, i32 -> vector<8x256xf32>
      %c15_i32_127 = arith.constant 15 : i32
      %185 = tpu.dynamic_rotate %174 by %c15_i32_127 dim 1 : vector<8x256xf32>, i32 -> vector<8x256xf32>
      %186 = vector.shape_cast %29 : vector<1x256xi1> to vector<1x256xi1>
      %187 = vector.broadcast %186 : vector<1x256xi1> to vector<8x256xi1>
      %188 = arith.select %187, %185, %184 : vector<8x256xi1>, vector<8x256xf32>
      %cst_128 = arith.constant dense<0.000000e+00> : vector<4x256xf32>
      %189 = tpu.matmul %65, %188, %cst_128 {dimension_numbers = #tpu.dot_dimension_numbers<[1], [0], [0], [1], [0, 0, 1, 1], [], []>} : vector<4x8xf32>, vector<8x256xf32>, vector<4x256xf32> -> vector<4x256xf32>
      %190 = arith.addf %183, %189 : vector<4x256xf32>
      %cst_129 = arith.constant 2.500000e-01 : f32
      %191 = vector.broadcast %cst_129 : f32 to vector<4x256xf32>
      %192 = arith.mulf %191, %190 : vector<4x256xf32>
      %193 = arith.addf %arg15, %192 : vector<4x256xf32>
      scf.yield %193 : vector<4x256xf32>
    }
    %c0_66 = arith.constant 0 : index
    %c0_67 = arith.constant 0 : index
    %70 = vector.load %arg5[%c0_66, %c0_67] : memref<256x25xf32, #tpu.memory_space<vmem>>, vector<256x25xf32>
    %cst_68 = arith.constant dense<0.000000e+00> : vector<4x25xf32>
    %71 = tpu.matmul %69, %70, %cst_68 {dimension_numbers = #tpu.dot_dimension_numbers<[1], [0], [0], [1], [0, 0, 1, 1], [], []>} : vector<4x256xf32>, vector<256x25xf32>, vector<4x25xf32> -> vector<4x25xf32>
    %c0_69 = arith.constant 0 : index
    %c0_70 = arith.constant 0 : index
    %72 = vector.load %arg6[%c0_69, %c0_70] : memref<256x25xf32, #tpu.memory_space<vmem>>, vector<256x25xf32>
    %cst_71 = arith.constant dense<0.000000e+00> : vector<4x25xf32>
    %73 = tpu.matmul %69, %72, %cst_71 {dimension_numbers = #tpu.dot_dimension_numbers<[1], [0], [0], [1], [0, 0, 1, 1], [], []>} : vector<4x256xf32>, vector<256x25xf32>, vector<4x25xf32> -> vector<4x25xf32>
    %c0_72 = arith.constant 0 : index
    %c0_73 = arith.constant 0 : index
    %c0_74 = arith.constant 0 : index
    %74 = vector.load %arg7[%c0_72, %c0_73, %c0_74] : memref<1x25x64xf32, #tpu.memory_space<vmem>>, vector<1x25x64xf32>
    %75 = vector.shape_cast %74 : vector<1x25x64xf32> to vector<25x64xf32>
    %cst_75 = arith.constant dense<0.000000e+00> : vector<4x64xf32>
    %76 = tpu.matmul %71, %75, %cst_75 {dimension_numbers = #tpu.dot_dimension_numbers<[1], [0], [0], [1], [0, 0, 1, 1], [], []>} : vector<4x25xf32>, vector<25x64xf32>, vector<4x64xf32> -> vector<4x64xf32>
    %c0_76 = arith.constant 0 : index
    %c0_77 = arith.constant 0 : index
    %c0_78 = arith.constant 0 : index
    %77 = vector.load %arg8[%c0_76, %c0_77, %c0_78] : memref<1x25x64xf32, #tpu.memory_space<vmem>>, vector<1x25x64xf32>
    %78 = vector.shape_cast %77 : vector<1x25x64xf32> to vector<25x64xf32>
    %cst_79 = arith.constant dense<0.000000e+00> : vector<4x64xf32>
    %79 = tpu.matmul %73, %78, %cst_79 {dimension_numbers = #tpu.dot_dimension_numbers<[1], [0], [0], [1], [0, 0, 1, 1], [], []>} : vector<4x25xf32>, vector<25x64xf32>, vector<4x64xf32> -> vector<4x64xf32>
    %80 = arith.subf %76, %79 : vector<4x64xf32>
    %c0_80 = arith.constant 0 : index
    %c0_81 = arith.constant 0 : index
    %c0_82 = arith.constant 0 : index
    %c0_83 = arith.constant 0 : index
    %81 = vector.load %arg13[%c0_80, %c0_81, %c0_82, %c0_83] : memref<1x1x4x64xf32, #tpu.memory_space<vmem>>, vector<1x1x4x64xf32>
    %82 = vector.shape_cast %81 : vector<1x1x4x64xf32> to vector<4x64xf32>
    %83 = vector.shape_cast %80 : vector<4x64xf32> to vector<1x1x4x64xf32>
    tpu.vector_store %arg13[%c0_80, %c0_81, %c0_82, %c0_83], %83 {strides = array<i32>} : memref<1x1x4x64xf32, #tpu.memory_space<vmem>>, vector<1x1x4x64xf32>,
    return
  }
  func.func @transform_0(%arg0: i32) -> (i32, i32, i32) {
    %c0_i32 = arith.constant 0 : i32
    %c0_i32_0 = arith.constant 0 : i32
    %c0_i32_1 = arith.constant 0 : i32
    return %arg0, %c0_i32, %c0_i32_0 : i32, i32, i32
  }
  func.func @transform_1(%arg0: i32) -> (i32, i32, i32) {
    %c0_i32 = arith.constant 0 : i32
    %c0_i32_0 = arith.constant 0 : i32
    %c0_i32_1 = arith.constant 0 : i32
    return %arg0, %c0_i32, %c0_i32_0 : i32, i32, i32
  }
  func.func @transform_2(%arg0: i32) -> (i32, i32) {
    %c0_i32 = arith.constant 0 : i32
    %c0_i32_0 = arith.constant 0 : i32
    %c0_i32_1 = arith.constant 0 : i32
    return %c0_i32, %c0_i32_0 : i32, i32
  }
  func.func @transform_3(%arg0: i32) -> (i32, i32) {
    %c0_i32 = arith.constant 0 : i32
    %c0_i32_0 = arith.constant 0 : i32
    %c0_i32_1 = arith.constant 0 : i32
    return %c0_i32, %c0_i32_0 : i32, i32
  }
  func.func @transform_4(%arg0: i32) -> (i32, i32) {
    %c0_i32 = arith.constant 0 : i32
    %c0_i32_0 = arith.constant 0 : i32
    %c0_i32_1 = arith.constant 0 : i32
    return %c0_i32, %c0_i32_0 : i32, i32
  }
  func.func @transform_5(%arg0: i32) -> (i32, i32) {
    %c0_i32 = arith.constant 0 : i32
    %c0_i32_0 = arith.constant 0 : i32
    %c0_i32_1 = arith.constant 0 : i32
    return %c0_i32, %c0_i32_0 : i32, i32
  }
  func.func @transform_6(%arg0: i32) -> (i32, i32, i32) {
    %c0_i32 = arith.constant 0 : i32
    %c0_i32_0 = arith.constant 0 : i32
    %c0_i32_1 = arith.constant 0 : i32
    return %arg0, %c0_i32, %c0_i32_0 : i32, i32, i32
  }
  func.func @transform_7(%arg0: i32) -> (i32, i32, i32) {
    %c0_i32 = arith.constant 0 : i32
    %c0_i32_0 = arith.constant 0 : i32
    %c0_i32_1 = arith.constant 0 : i32
    return %arg0, %c0_i32, %c0_i32_0 : i32, i32, i32
  }
  func.func @transform_8(%arg0: i32) -> (i32, i32, i32) {
    %c0_i32 = arith.constant 0 : i32
    %c0_i32_0 = arith.constant 0 : i32
    %c0_i32_1 = arith.constant 0 : i32
    %c0_i32_2 = arith.constant 0 : i32
    return %c0_i32, %c0_i32_0, %c0_i32_1 : i32, i32, i32
  }
  func.func @transform_9(%arg0: i32) -> (i32, i32) {
    %c0_i32 = arith.constant 0 : i32
    %c0_i32_0 = arith.constant 0 : i32
    %c0_i32_1 = arith.constant 0 : i32
    return %c0_i32, %c0_i32_0 : i32, i32
  }
  func.func @transform_10(%arg0: i32) -> (i32, i32, i32) {
    %c0_i32 = arith.constant 0 : i32
    %c0_i32_0 = arith.constant 0 : i32
    %c0_i32_1 = arith.constant 0 : i32
    %c0_i32_2 = arith.constant 0 : i32
    return %c0_i32, %c0_i32_0, %c0_i32_1 : i32, i32, i32
  }
  func.func @transform_11(%arg0: i32) -> (i32, i32) {
    %c0_i32 = arith.constant 0 : i32
    %c0_i32_0 = arith.constant 0 : i32
    %c0_i32_1 = arith.constant 0 : i32
    return %c0_i32, %c0_i32_0 : i32, i32
  }
  func.func @transform_12(%arg0: i32) -> (i32, i32, i32, i32) {
    %c0_i32 = arith.constant 0 : i32
    %c0_i32_0 = arith.constant 0 : i32
    %c0_i32_1 = arith.constant 0 : i32
    %c0_i32_2 = arith.constant 0 : i32
    return %arg0, %c0_i32, %c0_i32_0, %c0_i32_1 : i32, i32, i32, i32
  }
}

</mosaic_0001>

<llo_original>
// kernel: neg.2
$region0: #{neg.2}
  #allocation0 [shape = 's32[1]{0}', space=sflag, size = 0x4, scoped, tag = 'scoped memory for neg.2']
  %s0 = inlined_call_operand.vmem [shape: f32[2,25,25], index: 0, kind: input, shape index: {}]
  %s1 = inlined_call_operand.vmem [shape: f32[2,25,25], index: 1, kind: output, shape index: {}]
  %v2 = vld [vmem:[%s0] sm:$0xff]
  %3 = xla_tuple %v2
  %4 = xla_tuple %3
  %v5 = vxor.u32 %v2, 2147483648
  %6 = xla_tuple %v5
  %7 = vst [vmem:[%s1] sm:$0xff] %v5
  %s8 = scalar_lea.vmem %s0, 32
  %v9 = vld [vmem:[%s8] sm:$0xff]
  %10 = xla_tuple %v9
  %11 = xla_tuple %10
  %v12 = vxor.u32 %v9, 2147483648
  %13 = xla_tuple %v12
  %s14 = scalar_lea.vmem %s1, 32
  %15 = vst [vmem:[%s14] sm:$0xff] %v12
  %s16 = scalar_lea.vmem %s0, 8
  %v17 = vld [vmem:[%s16] sm:$0xff]
  %18 = xla_tuple %v17
  %19 = xla_tuple %18
  %v20 = vxor.u32 %v17, 2147483648
  %21 = xla_tuple %v20
  %s22 = scalar_lea.vmem %s1, 8
  %23 = vst [vmem:[%s22] sm:$0xff] %v20
  %s24 = scalar_lea.vmem %s0, 40
  %v25 = vld [vmem:[%s24] sm:$0xff]
  %26 = xla_tuple %v25
  %27 = xla_tuple %26
  %v28 = vxor.u32 %v25, 2147483648
  %29 = xla_tuple %v28
  %s30 = scalar_lea.vmem %s1, 40
  %31 = vst [vmem:[%s30] sm:$0xff] %v28
  %s32 = scalar_lea.vmem %s0, 16
  %v33 = vld [vmem:[%s32] sm:$0xff]
  %34 = xla_tuple %v33
  %35 = xla_tuple %34
  %v36 = vxor.u32 %v33, 2147483648
  %37 = xla_tuple %v36
  %s38 = scalar_lea.vmem %s1, 16
  %39 = vst [vmem:[%s38] sm:$0xff] %v36
  %s40 = scalar_lea.vmem %s0, 48
  %v41 = vld [vmem:[%s40] sm:$0xff]
  %42 = xla_tuple %v41
  %43 = xla_tuple %42
  %v44 = vxor.u32 %v41, 2147483648
  %45 = xla_tuple %v44
  %s46 = scalar_lea.vmem %s1, 48
  %47 = vst [vmem:[%s46] sm:$0xff] %v44
  %s48 = scalar_lea.vmem %s0, 24
  %v49 = vld [vmem:[%s48] sm:$0xff]
  %50 = xla_tuple %v49
  %51 = xla_tuple %50
  %v52 = vxor.u32 %v49, 2147483648
  %53 = xla_tuple %v52
  %s54 = scalar_lea.vmem %s1, 24
  %55 = vst [vmem:[%s54] sm:$0xff] %v52
  %s56 = scalar_lea.vmem %s0, 56
  %v57 = vld [vmem:[%s56] sm:$0xff]
  %58 = xla_tuple %v57
  %59 = xla_tuple %58
  %v60 = vxor.u32 %v57, 2147483648
  %61 = xla_tuple %v60
  %s62 = scalar_lea.vmem %s1, 56
  %63 = vst [vmem:[%s62] sm:$0xff] %v60

// kernel: custom-call.8
$region0: #{custom-call.8}
  %s0 = inlined_call_operand.vmem [shape: f32[2,50,50], index: 0, kind: input, shape index: {}]
  %s1 = inlined_call_operand.vmem [shape: f32[2,50,50], index: 1, kind: output, shape index: {0}]
  %s2 = inlined_call_operand.hbm [shape: s32[2,50], index: 2, kind: output, shape index: {1}]
  %s3 = inlined_call_operand.vmem [shape: s32[2,50], index: 3, kind: output, shape index: {2}]
  %4 = xla_tuple %s1, %s2, %s3
  $region1: #{custom-call.8} parent=0
    #allocation0 [shape = 'u8[57344]{0}', space=vmem, size = 0xe000, scoped, tag = 'operand span for operand 0']
    #allocation1 [shape = 'u8[57344]{0}', space=vmem, size = 0xe000, scoped, tag = 'operand span for operand 1']
    #allocation2 [shape = 'u8[4096]{0}', space=vmem, size = 0x1000, scoped, tag = 'operand span for operand 2']
    #allocation3 [shape = 'u8[2048]{0}', space=vmem, size = 0x800, scoped, tag = 'packed  for operand 2']
    #allocation4 [shape = 's32[2]{0}', space=sflag, size = 0x8, scoped, tag = 'scoped memory for custom-call.8']
    #allocation5 [shape = 'u8[4096]{0}', space=vmem, size = 0x1000, scoped, tag = 'operand span for operand 3']
    #allocation6 [shape = 'u8[2048]{0}', space=vmem, size = 0x800, scoped, tag = 'packed  for operand 3']
    %5 = vsyncpa [#allocation4], 0
    %s6 = scalar_lea.sflag [#allocation4], 1
    %7 = vsyncpa %s6, 0
    loop: start=0, step=1, limit=4
    $region2: #{custom-call.8} parent=1 // loop_pre_header
      _
    $region3: #{custom-call.8} parent=1 // loop_header
      %s9 = sphi 0, %s13
      %p10 = scmp.ge.s32.totalorder %s9, 4
      %s21 = sphi 0, %s23
      %s24 = sphi 0, %s21
      %s25 = sphi 0, %s24
      %s41 = sphi 0, %s25
      %s49 = sphi 0, %s51
      %s52 = sphi 0, %s49
      %s53 = sphi 0, %s52
      %s69 = sphi 0, %s53
    $region4: #{custom-call.8} parent=1 // loop_header_branch
      %12 = sbr.rel (%p10) target = $region8
    $region5: #{custom-call.8} parent=1 // loop_body
      %s14 = ssub.s32 %s9, 1
      %s15 = ssub.s32 %s9, 2
      %s16 = sadd.s32 %s9, 1
      %s17 = sshrl.u32 %s9, 3
      %s18 = sshrl.u32 %s16, 3
      %s19 = ssub.s32 %s17, %s18
      %p20 = scmp.eq.s32.totalorder %s19, 0
      %s22 = sadd.s32 %s21, 1
      %s23 = scalar_select %p20, %s21, %s22
      %p26 = pneg %p20
      %p27 = scmp.eq.s32.totalorder %s9, 1
      %p28 = por %p26, %p27
      %p29 = scmp.ne.s32.totalorder %s21, %s24
      %p30 = scmp.eq.s32.totalorder %s9, 0
      %p31 = por %p29, %p30
      %p32 = scmp.ne.s32.totalorder %s21, %s24
      %p33 = scmp.eq.s32.totalorder %s14, 1
      %p34 = por %p32, %p33
      %p35 = scmp.ne.s32.totalorder %s24, %s25
      %p36 = scmp.eq.s32.totalorder %s14, 0
      %p37 = por %p35, %p36
      %p38 = scmp.ne.s32.totalorder %s24, %s25
      %p39 = scmp.eq.s32.totalorder %s15, 1
      %p40 = por %p38, %p39
      %p42 = scmp.ne.s32.totalorder %s25, %s41
      %p43 = scmp.eq.s32.totalorder %s15, 0
      %p44 = por %p42, %p43
      %s45 = sshrl.u32 %s9, 3
      %s46 = sshrl.u32 %s16, 3
      %s47 = ssub.s32 %s45, %s46
      %p48 = scmp.eq.s32.totalorder %s47, 0
      %s50 = sadd.s32 %s49, 1
      %s51 = scalar_select %p48, %s49, %s50
      %p54 = pneg %p48
      %p55 = scmp.eq.s32.totalorder %s9, 1
      %p56 = por %p54, %p55
      %p57 = scmp.ne.s32.totalorder %s49, %s52
      %p58 = scmp.eq.s32.totalorder %s9, 0
      %p59 = por %p57, %p58
      %p60 = scmp.ne.s32.totalorder %s49, %s52
      %p61 = scmp.eq.s32.totalorder %s14, 1
      %p62 = por %p60, %p61
      %p63 = scmp.ne.s32.totalorder %s52, %s53
      %p64 = scmp.eq.s32.totalorder %s14, 0
      %p65 = por %p63, %p64
      %p66 = scmp.ne.s32.totalorder %s52, %s53
      %p67 = scmp.eq.s32.totalorder %s15, 1
      %p68 = por %p66, %p67
      %p70 = scmp.ne.s32.totalorder %s53, %s69
      %p71 = scmp.eq.s32.totalorder %s15, 0
      %p72 = por %p70, %p71
      %p73 = scmp.le.s32.totalorder 1, %s9
      %p74 = scmp.lt.s32.totalorder %s9, 3
      %p75 = pnand %p73, %p74
      %p76 = pneg %p75
      // Predicated region
      $region9: #{custom-call.8} parent=5 // pred_check
        _
      $region10: #{custom-call.8} parent=5 // pred_check_branch
        %78 = sbr.rel (%p75) target = $region12
      $region11: #{custom-call.8} parent=5 // pred_region
        %s79 = ssub.s32 %s9, 1
      $region12: #{custom-call.8} parent=5 // pred_fallthru
        _
      %p80 = scmp.lt.s32.totalorder %s9, 2
      // Predicated region
      $region13: #{custom-call.8} parent=5 // pred_check
        %p81 = pneg %p80
      $region14: #{custom-call.8} parent=5 // pred_check_branch
        %83 = sbr.rel (%p81) target = $region16
      $region15: #{custom-call.8} parent=5 // pred_region
        %s84 = sand.u32 %s9, 1
        %s85 = sand.u32 %s9, 1
        %s86 = smul.addr %s85, 56
        %s87 = scalar_lea.vmem [#allocation0], %s86
        %s88 = smul.addr %s9, 56
        %s89 = scalar_lea.vmem %s0, %s88
        // Predicated region
        $region17: #{custom-call.8} parent=15 // pred_check
          _
        $region18: #{custom-call.8} parent=15 // pred_check_branch
          %91 = sbr.rel (0) target = $region20
        $region19: #{custom-call.8} parent=15 // pred_region
          // Predicated region
          $region21: #{custom-call.8} parent=19 // pred_check
            _
          $region22: #{custom-call.8} parent=19 // pred_check_branch
            %93 = sbr.rel (0) target = $region24
          $region23: #{custom-call.8} parent=19 // pred_region
            loop: start=0, step=1, limit=1
            $region25: #{custom-call.8} parent=23 // loop_pre_header
              _
            $region26: #{custom-call.8} parent=23 // loop_header
              %s95 = sphi 0, %s99
              %p96 = scmp.ge.s32.totalorder %s95, 1
              %s100 = sphi %s89, %s89
              %s101 = sphi %s87, %s87
            $region27: #{custom-call.8} parent=23 // loop_header_branch
              %98 = sbr.rel (%p96) target = $region31
            $region28: #{custom-call.8} parent=23 // loop_body
              %v102 = vld [vmem:[%s100] sm:$0xff]
              %103 = vst [vmem:[%s101] sm:$0xff] %v102
              %v104 = vld [vmem:[%s100 + $0x8] sm:$0xff]
              %105 = vst [vmem:[%s101 + $0x8] sm:$0xff] %v104
              %v106 = vld [vmem:[%s100 + $0x10] sm:$0xff]
              %107 = vst [vmem:[%s101 + $0x10] sm:$0xff] %v106
              %v108 = vld [vmem:[%s100 + $0x18] sm:$0xff]
              %109 = vst [vmem:[%s101 + $0x18] sm:$0xff] %v108
              %v110 = vld [vmem:[%s100 + $0x20] sm:$0xff]
              %111 = vst [vmem:[%s101 + $0x20] sm:$0xff] %v110
              %v112 = vld [vmem:[%s100 + $0x28] sm:$0xff]
              %113 = vst [vmem:[%s101 + $0x28] sm:$0xff] %v112
              %v114 = vld [vmem:[%s100 + $0x30] sm:$0xff]
              %115 = vst [vmem:[%s101 + $0x30] sm:$0xff] %v114
            $region29: #{custom-call.8} parent=23 // loop_footer
              %s99 = sadd.s32 1, %s95
            $region30: #{custom-call.8} parent=23 // loop_footer_branch
              %94 = sbr.rel target = $region26
            $region31: #{custom-call.8} parent=23 // loop_exit
              _
          $region24: #{custom-call.8} parent=19 // pred_fallthru
            _
          // Predicated region
          $region32: #{custom-call.8} parent=19 // pred_check
            _
          $region33: #{custom-call.8} parent=19 // pred_check_branch
            %117 = sbr.rel target = $region35
          $region34: #{custom-call.8} parent=19 // pred_region
            _
          $region35: #{custom-call.8} parent=19 // pred_fallthru
            _
        $region20: #{custom-call.8} parent=15 // pred_fallthru
          _
        %118 = vnop
      $region16: #{custom-call.8} parent=5 // pred_fallthru
        _
      %p119 = scmp.le.s32.totalorder 1, %s9
      %p120 = scmp.lt.s32.totalorder %s9, 3
      %p121 = pnand %p119, %p120
      %p122 = pneg %p121
      // Predicated region
      $region36: #{custom-call.8} parent=5 // pred_check
        _
      $region37: #{custom-call.8} parent=5 // pred_check_branch
        %124 = sbr.rel (%p121) target = $region39
      $region38: #{custom-call.8} parent=5 // pred_region
        #allocation7 [shape = 's32[50,128]{1,0}', space=vmem, size = 0x7000, scoped, tag = 'scratch for permutations']
        %s125 = ssub.s32 %s9, 1
        %s126 = sand.u32 %s14, 1
        %s127 = sand.u32 %s14, 1
        %s128 = smul.addr %s127, 56
        %s129 = scalar_lea.vmem [#allocation0], %s128
        %s130 = sand.u32 %s14, 1
        %s131 = sand.u32 %s14, 1
        %s132 = smul.addr %s131, 56
        %s133 = scalar_lea.vmem [#allocation0], %s132
        %s134 = sand.u32 %s14, 1
        %s135 = sand.u32 %s14, 1
        %s136 = smul.addr %s135, 56
        %s137 = scalar_lea.vmem [#allocation1], %s136
        %p138 = pneg %p37
        %p139 = pneg %p34
        %s140 = sand.u32 %s24, 1
        %s141 = scalar_lea.sflag [#allocation4], %s140
        %s142 = sand.u32 %s24, 1
        %s143 = smul.addr %s142, 2
        %s144 = scalar_lea.vmem [#allocation3], %s143
        %p145 = pneg %p65
        %p146 = pneg %p62
        %s147 = sand.u32 %s52, 1
        %s148 = sand.u32 %s52, 1
        %s149 = smul.addr %s148, 2
        %s150 = scalar_lea.vmem [#allocation6], %s149
        %s151 = sshrl.u32 %s14, 3
        %s152 = sshrl.u32 %s14, 3
        %v153 = vld [vmem:[%s129] sm:$0xff]
        %154 = vst [vmem:[%s137] sm:$0xff] %v153
        %s155 = scalar_lea.vmem %s137, 8 [#allocation1]
        %s156 = scalar_lea.vmem %s129, 8 [#allocation0]
        %v157 = vld [vmem:[%s156] sm:$0xff]
        %158 = vst [vmem:[%s155] sm:$0xff] %v157
        %s159 = scalar_lea.vmem %s137, 16 [#allocation1]
        %s160 = scalar_lea.vmem %s129, 16 [#allocation0]
        %v161 = vld [vmem:[%s160] sm:$0xff]
        %162 = vst [vmem:[%s159] sm:$0xff] %v161
        %s163 = scalar_lea.vmem %s137, 24 [#allocation1]
        %s164 = scalar_lea.vmem %s129, 24 [#allocation0]
        %v165 = vld [vmem:[%s164] sm:$0xff]
        %166 = vst [vmem:[%s163] sm:$0xff] %v165
        %s167 = scalar_lea.vmem %s137, 32 [#allocation1]
        %s168 = scalar_lea.vmem %s129, 32 [#allocation0]
        %v169 = vld [vmem:[%s168] sm:$0xff]
        %170 = vst [vmem:[%s167] sm:$0xff] %v169
        %s171 = scalar_lea.vmem %s137, 40 [#allocation1]
        %s172 = scalar_lea.vmem %s129, 40 [#allocation0]
        %v173 = vld [vmem:[%s172] sm:$0xff]
        %174 = vst [vmem:[%s171] sm:$0xff] %v173
        %s175 = scalar_lea.vmem %s137, 48 [#allocation1]
        %s176 = scalar_lea.vmem %s129, 48 [#allocation0]
        %v177 = vld [vmem:[%s176] sm:$0xff]
        %178 = vst [vmem:[%s175] sm:$0xff] %v177
        %s179 = sand.u32 %s14, 7
        %s180 = scalar_lea.vmem [#allocation2], %s179
        %s181 = sand.u32 %s14, 7
        %s182 = scalar_lea.vmem [#allocation5], %s181
        %183 = vst [vmem:[%s180] sm:$0x1] 0
        %v184 = vlaneseq
        %v185 = vshrl.u32 %v184, 7
        %v186 = vmov %v185
        loop: start=0, step=1, limit=7
        $region40: #{custom-call.8} parent=38 // loop_pre_header
          _
        $region41: #{custom-call.8} parent=38 // loop_header
          %s188 = sphi 0, %s192
          %p189 = scmp.ge.s32.totalorder %s188, 7
        $region42: #{custom-call.8} parent=38 // loop_header_branch
          %191 = sbr.rel (%p189) target = $region46
        $region43: #{custom-call.8} parent=38 // loop_body
          %s193 = smul.addr %s188, 8
          %s194 = scalar_lea.vmem [#allocation7], %s193
          %s195 = smul.u32 %s188, 8
          %v196 = vstv %s195
          %v197 = vadd.s32 %v186, %v196
          %198 = vst [vmem:[%s194] sm:$0xff] %v197
        $region44: #{custom-call.8} parent=38 // loop_footer
          %s192 = sadd.s32 1, %s188
        $region45: #{custom-call.8} parent=38 // loop_footer_branch
          %187 = sbr.rel target = $region41
        $region46: #{custom-call.8} parent=38 // loop_exit
          _
        loop: start=0, step=1, limit=50
        $region47: #{custom-call.8} parent=38 // loop_pre_header
          _
        $region48: #{custom-call.8} parent=38 // loop_header
          %s200 = sphi 0, %s204
          %p201 = scmp.ge.s32.totalorder %s200, 50
        $region49: #{custom-call.8} parent=38 // loop_header_branch
          %203 = sbr.rel (%p201) target = $region53
        $region50: #{custom-call.8} parent=38 // loop_body
          %v205 = vstv %s200
          %v206 = vlaneseq
          %v207 = vshrl.u32 %v206, 7
          %v208 = vmov %v207
          %v209 = vld [vmem:[%s137] sm:$0xff]
          %v210 = vand.u32 2147483647, %v209
          %v212 = vstv %s200
          %vm213 = vcmp.ge.s32.totalorder %v208, %v212
          %vm214 = vcmp.lt.s32.totalorder %v208, 50
          %vm215 = vmand %vm213, %vm214
          %vm216 = vcmp.lt.f32.partialorder -inf, %v210
          %vm217 = vmand %vm215, %vm216
          %v218 = vsel %vm217, %v208, %v205
          %v219 = vsel %vm217, %v210, -inf
          %s220 = scalar_lea.vmem %s137, 8 [#allocation1]
          %v221 = vld [vmem:[%s220] sm:$0xff]
          %v222 = vand.u32 2147483647, %v221
          %v223 = vadd.s32 %v208, 8
          %v224 = vstv %s200
          %vm225 = vcmp.ge.s32.totalorder %v223, %v224
          %vm226 = vcmp.lt.s32.totalorder %v223, 50
          %vm227 = vmand %vm225, %vm226
          %vm228 = vcmp.lt.f32.partialorder %v219, %v222
          %vm229 = vmand %vm227, %vm228
          %v230 = vsel %vm229, %v223, %v218
          %v231 = vsel %vm229, %v222, %v219
          %s232 = scalar_lea.vmem %s137, 16 [#allocation1]
          %v233 = vld [vmem:[%s232] sm:$0xff]
          %v234 = vand.u32 2147483647, %v233
          %v235 = vadd.s32 %v208, 16
          %v236 = vstv %s200
          %vm237 = vcmp.ge.s32.totalorder %v235, %v236
          %vm238 = vcmp.lt.s32.totalorder %v235, 50
          %vm239 = vmand %vm237, %vm238
          %vm240 = vcmp.lt.f32.partialorder %v231, %v234
          %vm241 = vmand %vm239, %vm240
          %v242 = vsel %vm241, %v235, %v230
          %v243 = vsel %vm241, %v234, %v231
          %s244 = scalar_lea.vmem %s137, 24 [#allocation1]
          %v245 = vld [vmem:[%s244] sm:$0xff]
          %v246 = vand.u32 2147483647, %v245
          %v247 = vadd.s32 %v208, 24
          %v248 = vstv %s200
          %vm249 = vcmp.ge.s32.totalorder %v247, %v248
          %vm250 = vcmp.lt.s32.totalorder %v247, 50
          %vm251 = vmand %vm249, %vm250
          %vm252 = vcmp.lt.f32.partialorder %v243, %v246
          %vm253 = vmand %vm251, %vm252
          %v254 = vsel %vm253, %v247, %v242
          %v255 = vsel %vm253, %v246, %v243
          %s256 = scalar_lea.vmem %s137, 32 [#allocation1]
          %v257 = vld [vmem:[%s256] sm:$0xff]
          %v258 = vand.u32 2147483647, %v257
          %v259 = vadd.s32 %v208, 32
          %v260 = vstv %s200
          %vm261 = vcmp.ge.s32.totalorder %v259, %v260
          %vm262 = vcmp.lt.s32.totalorder %v259, 50
          %vm263 = vmand %vm261, %vm262
          %vm264 = vcmp.lt.f32.partialorder %v255, %v258
          %vm265 = vmand %vm263, %vm264
          %v266 = vsel %vm265, %v259, %v254
          %v267 = vsel %vm265, %v258, %v255
          %s268 = scalar_lea.vmem %s137, 40 [#allocation1]
          %v269 = vld [vmem:[%s268] sm:$0xff]
          %v270 = vand.u32 2147483647, %v269
          %v271 = vadd.s32 %v208, 40
          %v272 = vstv %s200
          %vm273 = vcmp.ge.s32.totalorder %v271, %v272
          %vm274 = vcmp.lt.s32.totalorder %v271, 50
          %vm275 = vmand %vm273, %vm274
          %vm276 = vcmp.lt.f32.partialorder %v267, %v270
          %vm277 = vmand %vm275, %vm276
          %v278 = vsel %vm277, %v271, %v266
          %v279 = vsel %vm277, %v270, %v267
          %s280 = scalar_lea.vmem %s137, 48 [#allocation1]
          %v281 = vld [vmem:[%s280] sm:$0xff]
          %v282 = vand.u32 2147483647, %v281
          %v283 = vadd.s32 %v208, 48
          %v284 = vstv %s200
          %vm285 = vcmp.ge.s32.totalorder %v283, %v284
          %vm286 = vcmp.lt.s32.totalorder %v283, 50
          %vm287 = vmand %vm285, %vm286
          %vm288 = vcmp.lt.f32.partialorder %v279, %v282
          %vm289 = vmand %vm287, %vm288
          %v290 = vsel %vm289, %v283, %v278
          %v291 = vsel %vm289, %v282, %v279
          %v292 = vrot.slane %v291, 1
          %v293 = vrot.slane %v290, 1
          %vm294 = vcmp.ge.f32.partialorder %v292, %v291
          %v295 = vsel %vm294, %v292, %v291
          %v296 = vsel %vm294, %v293, %v290
          %v297 = vrot.slane %v292, 1
          %v298 = vrot.slane %v293, 1
          %vm299 = vcmp.ge.f32.partialorder %v297, %v295
          %v300 = vsel %vm299, %v297, %v295
          %v301 = vsel %vm299, %v298, %v296
          %v302 = vrot.slane %v297, 1
          %v303 = vrot.slane %v298, 1
          %vm304 = vcmp.ge.f32.partialorder %v302, %v300
          %v305 = vsel %vm304, %v302, %v300
          %v306 = vsel %vm304, %v303, %v301
          %v307 = vrot.slane %v302, 1
          %v308 = vrot.slane %v303, 1
          %vm309 = vcmp.ge.f32.partialorder %v307, %v305
          %v310 = vsel %vm309, %v307, %v305
          %v311 = vsel %vm309, %v308, %v306
          %v312 = vrot.slane %v307, 1
          %v313 = vrot.slane %v308, 1
          %vm314 = vcmp.ge.f32.partialorder %v312, %v310
          %v315 = vsel %vm314, %v312, %v310
          %v316 = vsel %vm314, %v313, %v311
          %v317 = vrot.slane %v312, 1
          %v318 = vrot.slane %v313, 1
          %vm319 = vcmp.ge.f32.partialorder %v317, %v315
          %v320 = vsel %vm319, %v317, %v315
          %v321 = vsel %vm319, %v318, %v316
          %v322 = vrot.slane %v317, 1
          %v323 = vrot.slane %v318, 1
          %vm324 = vcmp.ge.f32.partialorder %v322, %v320
          %v325 = vsel %vm324, %v322, %v320
          %v326 = vsel %vm324, %v323, %v321
          %s327 = ssub.s32 128, %s200
          %328 = vrot.lane.b32.xlu0 %v326, %s327
          %v329 = vpop.permute.xlu0 %328
          %s330 = vtos %v329
          %v331 = vstv %s200
          %v332 = vlaneseq
          %v333 = vand.u32 %v332, 127
          %vm334 = vcmp.eq.s32.totalorder %v333, %v331
          %v335 = vstv %s330
          %v336 = vld [vmem:[%s180] ss:$0 sm:$0xff]
          %v337 = vsel %vm334, %v335, %v336
          %338 = vst [vmem:[%s180] sm:$0x1] %v337
          %s339 = scalar_lea.vmem %s137, %s200 [#allocation1]
          %s340 = scalar_lea.vmem %s137, %s330 [#allocation1]
          %v341 = vld [vmem:[%s339] ss:$0 sm:$0xff]
          %v342 = vld [vmem:[%s340] ss:$0 sm:$0xff]
          %343 = vst [vmem:[%s340] sm:$0x1] %v341
          %344 = vst [vmem:[%s339] sm:$0x1] %v342
          %s345 = scalar_lea.vmem [#allocation7], %s200
          %s346 = scalar_lea.vmem [#allocation7], %s330
          %v347 = vld [vmem:[%s345] ss:$0 sm:$0xff]
          %v348 = vld [vmem:[%s346] ss:$0 sm:$0xff]
          %349 = vst [vmem:[%s346] sm:$0x1] %v347
          %350 = vst [vmem:[%s345] sm:$0x1] %v348
          %vm351 = vcmp.ne.f32.partialorder %v342, 0.0
          %vm352 = vmand %vm334, %vm351
          %v353 = vsel %vm352, %v342, 1.0
          %v354 = vlaneseq
          %v355 = vand.u32 %v354, 127
          %v356 = vstv %s200
          %vm357 = vcmp.gt.s32.totalorder %v355, %v356
          %v358 = vsel %vm357, %v342, 0.0
          %v359 = vlaneseq
          %v360 = vshrl.u32 %v359, 7
          %v361 = vmov %v360
          %v362 = vld [vmem:[%s137] sm:$0xff]
          %v364 = vstv %s200
          %vm365 = vcmp.gt.s32.totalorder %v361, %v364
          %v366 = vsel %vm365, %v353, 1.0
          %v367 = vrcp.pop %v366
          %v368 = vmul.f32 %v362, %v367
          %vm369 = vmand %vm365, %vm334
          %v370 = vsel %vm369, %v368, 0.0
          %371 = vadd.xlane.f32.xlu0 %v370
          %v372 = vpop.xlane.xlu0 %371
          %v373 = vmul.f32 %v372, %v358
          %v374 = vsub.f32 %v368, %v373
          %375 = vst [vmem:[%s137] sm:$0xff] %v374
          %s376 = scalar_lea.vmem %s137, 8 [#allocation1]
          %v377 = vld [vmem:[%s376] sm:$0xff]
          %v378 = vadd.s32 %v361, 8
          %v379 = vstv %s200
          %vm380 = vcmp.gt.s32.totalorder %v378, %v379
          %v381 = vsel %vm380, %v353, 1.0
          %v382 = vrcp.pop %v381
          %v383 = vmul.f32 %v377, %v382
          %vm384 = vmand %vm380, %vm334
          %v385 = vsel %vm384, %v383, 0.0
          %386 = vadd.xlane.f32.xlu0 %v385
          %v387 = vpop.xlane.xlu0 %386
          %v388 = vmul.f32 %v387, %v358
          %v389 = vsub.f32 %v383, %v388
          %390 = vst [vmem:[%s376] sm:$0xff] %v389
          %s391 = scalar_lea.vmem %s137, 16 [#allocation1]
          %v392 = vld [vmem:[%s391] sm:$0xff]
          %v393 = vadd.s32 %v361, 16
          %v394 = vstv %s200
          %vm395 = vcmp.gt.s32.totalorder %v393, %v394
          %v396 = vsel %vm395, %v353, 1.0
          %v397 = vrcp.pop %v396
          %v398 = vmul.f32 %v392, %v397
          %vm399 = vmand %vm395, %vm334
          %v400 = vsel %vm399, %v398, 0.0
          %401 = vadd.xlane.f32.xlu0 %v400
          %v402 = vpop.xlane.xlu0 %401
          %v403 = vmul.f32 %v402, %v358
          %v404 = vsub.f32 %v398, %v403
          %405 = vst [vmem:[%s391] sm:$0xff] %v404
          %s406 = scalar_lea.vmem %s137, 24 [#allocation1]
          %v407 = vld [vmem:[%s406] sm:$0xff]
          %v408 = vadd.s32 %v361, 24
          %v409 = vstv %s200
          %vm410 = vcmp.gt.s32.totalorder %v408, %v409
          %v411 = vsel %vm410, %v353, 1.0
          %v412 = vrcp.pop %v411
          %v413 = vmul.f32 %v407, %v412
          %vm414 = vmand %vm410, %vm334
          %v415 = vsel %vm414, %v413, 0.0
          %416 = vadd.xlane.f32.xlu0 %v415
          %v417 = vpop.xlane.xlu0 %416
          %v418 = vmul.f32 %v417, %v358
          %v419 = vsub.f32 %v413, %v418
          %420 = vst [vmem:[%s406] sm:$0xff] %v419
          %s421 = scalar_lea.vmem %s137, 32 [#allocation1]
          %v422 = vld [vmem:[%s421] sm:$0xff]
          %v423 = vadd.s32 %v361, 32
          %v424 = vstv %s200
          %vm425 = vcmp.gt.s32.totalorder %v423, %v424
          %v426 = vsel %vm425, %v353, 1.0
          %v427 = vrcp.pop %v426
          %v428 = vmul.f32 %v422, %v427
          %vm429 = vmand %vm425, %vm334
          %v430 = vsel %vm429, %v428, 0.0
          %431 = vadd.xlane.f32.xlu0 %v430
          %v432 = vpop.xlane.xlu0 %431
          %v433 = vmul.f32 %v432, %v358
          %v434 = vsub.f32 %v428, %v433
          %435 = vst [vmem:[%s421] sm:$0xff] %v434
          %s436 = scalar_lea.vmem %s137, 40 [#allocation1]
          %v437 = vld [vmem:[%s436] sm:$0xff]
          %v438 = vadd.s32 %v361, 40
          %v439 = vstv %s200
          %vm440 = vcmp.gt.s32.totalorder %v438, %v439
          %v441 = vsel %vm440, %v353, 1.0
          %v442 = vrcp.pop %v441
          %v443 = vmul.f32 %v437, %v442
          %vm444 = vmand %vm440, %vm334
          %v445 = vsel %vm444, %v443, 0.0
          %446 = vadd.xlane.f32.xlu0 %v445
          %v447 = vpop.xlane.xlu0 %446
          %v448 = vmul.f32 %v447, %v358
          %v449 = vsub.f32 %v443, %v448
          %450 = vst [vmem:[%s436] sm:$0xff] %v449
          %s451 = scalar_lea.vmem %s137, 48 [#allocation1]
          %v452 = vld [vmem:[%s451] sm:$0xff]
          %v453 = vadd.s32 %v361, 48
          %v454 = vstv %s200
          %vm455 = vcmp.gt.s32.totalorder %v453, %v454
          %v456 = vsel %vm455, %v353, 1.0
          %v457 = vrcp.pop %v456
          %v458 = vmul.f32 %v452, %v457
          %vm459 = vmand %vm455, %vm334
          %v460 = vsel %vm459, %v458, 0.0
          %461 = vadd.xlane.f32.xlu0 %v460
          %v462 = vpop.xlane.xlu0 %461
          %v463 = vmul.f32 %v462, %v358
          %v464 = vsub.f32 %v458, %v463
          %465 = vst [vmem:[%s451] sm:$0xff] %v464
        $region51: #{custom-call.8} parent=38 // loop_footer
          %s204 = sadd.s32 1, %s200
        $region52: #{custom-call.8} parent=38 // loop_footer_branch
          %199 = sbr.rel target = $region48
        $region53: #{custom-call.8} parent=38 // loop_exit
          _
        %v466 = vld [vmem:[#allocation7] sm:$0xff]
        %s467 = scalar_lea.vmem [#allocation7], 8
        %v468 = vld [vmem:[%s467] sm:$0xff]
        %s469 = scalar_lea.vmem [#allocation7], 16
        %v470 = vld [vmem:[%s469] sm:$0xff]
        %s471 = scalar_lea.vmem [#allocation7], 24
        %v472 = vld [vmem:[%s471] sm:$0xff]
        %s473 = scalar_lea.vmem [#allocation7], 32
        %v474 = vld [vmem:[%s473] sm:$0xff]
        %s475 = scalar_lea.vmem [#allocation7], 40
        %v476 = vld [vmem:[%s475] sm:$0xff]
        %s477 = scalar_lea.vmem [#allocation7], 48
        %v478 = vld [vmem:[%s477] sm:$0xff]
        %s479 = scalar_lea.vmem [#allocation7], 56
        %s480 = scalar_lea.vmem [#allocation7], 64
        %s481 = scalar_lea.vmem [#allocation7], 72
        %s482 = scalar_lea.vmem [#allocation7], 80
        %s483 = scalar_lea.vmem [#allocation7], 88
        %s484 = scalar_lea.vmem [#allocation7], 96
        %s485 = scalar_lea.vmem [#allocation7], 104
        %s486 = scalar_lea.vmem [#allocation7], 112
        %s487 = scalar_lea.vmem [#allocation7], 120
        %488 = vxpose.xlu0.b32.start [1/16] %v466, 128
        %489 = vxpose.xlu0.b32.cont [2/16] %v468, 128
        %490 = vxpose.xlu0.b32.cont [3/16] %v470, 128
        %491 = vxpose.xlu0.b32.cont [4/16] %v472, 128
        %492 = vxpose.xlu0.b32.cont [5/16] %v474, 128
        %493 = vxpose.xlu0.b32.cont [6/16] %v476, 128
        %494 = vxpose.xlu0.b32.cont [7/16] %v478, 128
        %495 = vxpose.xlu0.b32.cont [8/16] 0, 128
        %496 = vxpose.xlu0.b32.cont [9/16] 0, 128
        %497 = vxpose.xlu0.b32.cont [10/16] 0, 128
        %498 = vxpose.xlu0.b32.cont [11/16] 0, 128
        %499 = vxpose.xlu0.b32.cont [12/16] 0, 128
        %500 = vxpose.xlu0.b32.cont [13/16] 0, 128
        %501 = vxpose.xlu0.b32.cont [14/16] 0, 128
        %502 = vxpose.xlu0.b32.cont [15/16] 0, 128
        %503 = vxpose.xlu0.b32.end [16/16] 0, 128
        %v504 = vpop.trf.xlu0
        %v505 = vpop.trf.xlu0
        %v506 = vpop.trf.xlu0
        %v507 = vpop.trf.xlu0
        %v508 = vpop.trf.xlu0
        %v509 = vpop.trf.xlu0
        %v510 = vpop.trf.xlu0
        %v511 = vpop.trf.xlu0
        %v512 = vpop.trf.xlu0
        %v513 = vpop.trf.xlu0
        %v514 = vpop.trf.xlu0
        %v515 = vpop.trf.xlu0
        %v516 = vpop.trf.xlu0
        %v517 = vpop.trf.xlu0
        %v518 = vpop.trf.xlu0
        %v519 = vpop.trf.xlu0
        %520 = vst [vmem:[%s182] sm:$0x1] %v504
        %s522 = sshll.u32 1, 2
        %s523 = ssub.s32 %s522, 1
        %v525 = vld [vmem:[#allocation2] sm:%s523]
        %s526 = sshll.u32 1, 2
        %s527 = ssub.s32 %s526, 1
        %528 = vst [vmem:[%s144] sm:%s527] %v525
        %s530 = sshll.u32 1, 2
        %s531 = ssub.s32 %s530, 1
        %v533 = vld [vmem:[#allocation5] sm:%s531]
        %s534 = sshll.u32 1, 2
        %s535 = ssub.s32 %s534, 1
        %536 = vst [vmem:[%s150] sm:%s535] %v533
        %s537 = sand.u32 %s14, 1
        %s538 = sand.u32 %s14, 1
        %s539 = smul.addr %s538, 56
        %s540 = scalar_lea.vmem [#allocation1], %s539
        %s541 = sand.u32 %s24, 1
        %s542 = scalar_lea.sflag [#allocation4], %s541
        %s543 = sand.u32 %s24, 1
        %s544 = smul.addr %s543, 2
        %s545 = scalar_lea.vmem [#allocation3], %s544
        %s546 = sand.u32 %s52, 1
        %s547 = sand.u32 %s52, 1
        %s548 = smul.addr %s547, 2
        %s549 = scalar_lea.vmem [#allocation6], %s548
        %s550 = smul.addr %s14, 56
        %s551 = scalar_lea.vmem %s1, %s550
        // Predicated region
        $region54: #{custom-call.8} parent=38 // pred_check
          _
        $region55: #{custom-call.8} parent=38 // pred_check_branch
          %553 = sbr.rel (0) target = $region57
        $region56: #{custom-call.8} parent=38 // pred_region
          // Predicated region
          $region58: #{custom-call.8} parent=56 // pred_check
            _
          $region59: #{custom-call.8} parent=56 // pred_check_branch
            %555 = sbr.rel (0) target = $region61
          $region60: #{custom-call.8} parent=56 // pred_region
            loop: start=0, step=1, limit=1
            $region62: #{custom-call.8} parent=60 // loop_pre_header
              _
            $region63: #{custom-call.8} parent=60 // loop_header
              %s557 = sphi 0, %s561
              %p558 = scmp.ge.s32.totalorder %s557, 1
              %s562 = sphi %s540, %s540
              %s563 = sphi %s551, %s551
            $region64: #{custom-call.8} parent=60 // loop_header_branch
              %560 = sbr.rel (%p558) target = $region68
            $region65: #{custom-call.8} parent=60 // loop_body
              %v564 = vld [vmem:[%s562] sm:$0xff]
              %565 = vst [vmem:[%s563] sm:$0xff] %v564
              %v566 = vld [vmem:[%s562 + $0x8] sm:$0xff]
              %567 = vst [vmem:[%s563 + $0x8] sm:$0xff] %v566
              %v568 = vld [vmem:[%s562 + $0x10] sm:$0xff]
              %569 = vst [vmem:[%s563 + $0x10] sm:$0xff] %v568
              %v570 = vld [vmem:[%s562 + $0x18] sm:$0xff]
              %571 = vst [vmem:[%s563 + $0x18] sm:$0xff] %v570
              %v572 = vld [vmem:[%s562 + $0x20] sm:$0xff]
              %573 = vst [vmem:[%s563 + $0x20] sm:$0xff] %v572
              %v574 = vld [vmem:[%s562 + $0x28] sm:$0xff]
              %575 = vst [vmem:[%s563 + $0x28] sm:$0xff] %v574
              %v576 = vld [vmem:[%s562 + $0x30] sm:$0xff]
              %577 = vst [vmem:[%s563 + $0x30] sm:$0xff] %v576
            $region66: #{custom-call.8} parent=60 // loop_footer
              %s561 = sadd.s32 1, %s557
            $region67: #{custom-call.8} parent=60 // loop_footer_branch
              %556 = sbr.rel target = $region63
            $region68: #{custom-call.8} parent=60 // loop_exit
              _
          $region61: #{custom-call.8} parent=56 // pred_fallthru
            _
          // Predicated region
          $region69: #{custom-call.8} parent=56 // pred_check
            _
          $region70: #{custom-call.8} parent=56 // pred_check_branch
            %579 = sbr.rel target = $region72
          $region71: #{custom-call.8} parent=56 // pred_region
            _
          $region72: #{custom-call.8} parent=56 // pred_fallthru
            _
        $region57: #{custom-call.8} parent=38 // pred_fallthru
          _
        %580 = vnop
        // Predicated region
        $region73: #{custom-call.8} parent=38 // pred_check
          %p581 = pneg %p34
        $region74: #{custom-call.8} parent=38 // pred_check_branch
          %583 = sbr.rel (%p581) target = $region76
        $region75: #{custom-call.8} parent=38 // pred_region
          %s584 = sshrl.u32 %s14, 3
          %s586 = ssub.s32 32, 32
          %587 = vsyncadd %s542, %s586
          %s588 = smul.addr %s584, 32
          %s589 = scalar_lea.hbm %s2, %s588
          %s591 = sshll.u32 %s545, 4
          %s592 = int_to_ptr.vmem [resolvable:$true] %s591
          %594 = dma.vmem_to_hbm [thread:$0]  %s592, 32, %s589, %s542
        $region76: #{custom-call.8} parent=38 // pred_fallthru
          _
        // Predicated region
        $region77: #{custom-call.8} parent=38 // pred_check
          %p595 = pneg %p62
        $region78: #{custom-call.8} parent=38 // pred_check_branch
          %597 = sbr.rel (%p595) target = $region80
        $region79: #{custom-call.8} parent=38 // pred_region
          %s598 = sshrl.u32 %s14, 3
          %s599 = smul.addr %s598, 2
          %s600 = scalar_lea.vmem %s3, %s599
          // Predicated region
          $region81: #{custom-call.8} parent=79 // pred_check
            _
          $region82: #{custom-call.8} parent=79 // pred_check_branch
            %602 = sbr.rel (0) target = $region84
          $region83: #{custom-call.8} parent=79 // pred_region
            // Predicated region
            $region85: #{custom-call.8} parent=83 // pred_check
              _
            $region86: #{custom-call.8} parent=83 // pred_check_branch
              %604 = sbr.rel target = $region88
            $region87: #{custom-call.8} parent=83 // pred_region
              // Predicated region
              $region100: #{custom-call.8} parent=87 // pred_check
                _
              $region101: #{custom-call.8} parent=87 // pred_check_branch
                %620 = sbr.rel (0) target = $region103
              $region102: #{custom-call.8} parent=87 // pred_region
                %s622 = ssub.s32 4, 1
                loop: start=0, step=1, limit=1
                $region104: #{custom-call.8} parent=102 // loop_pre_header
                  _
                $region105: #{custom-call.8} parent=102 // loop_header
                  %s624 = sphi 0, %s628
                  %p625 = scmp.ge.s32.totalorder %s624, 1
                  %s629 = sphi %s549, %s549
                  %s630 = sphi %s600, %s600
                $region106: #{custom-call.8} parent=102 // loop_header_branch
                  %627 = sbr.rel (%p625) target = $region110
                $region107: #{custom-call.8} parent=102 // loop_body
                  %v631 = vld [vmem:[%s629] sm:%s622]
                  %632 = vst [vmem:[%s630] sm:%s622] %v631
                $region108: #{custom-call.8} parent=102 // loop_footer
                  %s628 = sadd.s32 1, %s624
                $region109: #{custom-call.8} parent=102 // loop_footer_branch
                  %623 = sbr.rel target = $region105
                $region110: #{custom-call.8} parent=102 // loop_exit
                  _
              $region103: #{custom-call.8} parent=87 // pred_fallthru
                _
            $region88: #{custom-call.8} parent=83 // pred_fallthru
              _
            // Predicated region
            $region89: #{custom-call.8} parent=83 // pred_check
              _
            $region90: #{custom-call.8} parent=83 // pred_check_branch
              %606 = sbr.rel (0) target = $region92
            $region91: #{custom-call.8} parent=83 // pred_region
              %s608 = ssub.s32 4, 1
              loop: start=0, step=1, limit=1
              $region93: #{custom-call.8} parent=91 // loop_pre_header
                _
              $region94: #{custom-call.8} parent=91 // loop_header
                %s610 = sphi 0, %s614
                %p611 = scmp.ge.s32.totalorder %s610, 1
                %s615 = sphi %s549, %s549
                %s616 = sphi %s600, %s600
              $region95: #{custom-call.8} parent=91 // loop_header_branch
                %613 = sbr.rel (%p611) target = $region99
              $region96: #{custom-call.8} parent=91 // loop_body
                %v617 = vld [vmem:[%s615] sm:%s608]
                %618 = vst [vmem:[%s616] sm:%s608] %v617
              $region97: #{custom-call.8} parent=91 // loop_footer
                %s614 = sadd.s32 1, %s610
              $region98: #{custom-call.8} parent=91 // loop_footer_branch
                %609 = sbr.rel target = $region94
              $region99: #{custom-call.8} parent=91 // loop_exit
                _
            $region92: #{custom-call.8} parent=83 // pred_fallthru
              _
          $region84: #{custom-call.8} parent=79 // pred_fallthru
            _
          %633 = vnop
        $region80: #{custom-call.8} parent=38 // pred_fallthru
          _
      $region39: #{custom-call.8} parent=5 // pred_fallthru
        _
      %p634 = scmp.le.s32.totalorder 2, %s9
      // Predicated region
      $region111: #{custom-call.8} parent=5 // pred_check
        %p635 = pneg %p634
      $region112: #{custom-call.8} parent=5 // pred_check_branch
        %637 = sbr.rel (%p635) target = $region114
      $region113: #{custom-call.8} parent=5 // pred_region
        %s638 = ssub.s32 %s9, 2
        %s639 = sand.u32 %s15, 1
        %s640 = sand.u32 %s15, 1
        %s641 = smul.addr %s640, 56
        %s642 = scalar_lea.vmem [#allocation1], %s641
        // Predicated region
        $region115: #{custom-call.8} parent=113 // pred_check
          %p643 = pneg %p40
        $region116: #{custom-call.8} parent=113 // pred_check_branch
          %645 = sbr.rel (%p643) target = $region118
        $region117: #{custom-call.8} parent=113 // pred_region
          %s646 = sand.u32 %s25, 1
          %s647 = scalar_lea.sflag [#allocation4], %s646
          %s648 = sand.u32 %s25, 1
          %s649 = smul.addr %s648, 2
          %s650 = scalar_lea.vmem [#allocation3], %s649
          %651 = dma.done %s647, 32
        $region118: #{custom-call.8} parent=113 // pred_fallthru
          _
        // Predicated region
        $region119: #{custom-call.8} parent=113 // pred_check
          %p652 = pneg %p68
        $region120: #{custom-call.8} parent=113 // pred_check_branch
          %654 = sbr.rel (%p652) target = $region122
        $region121: #{custom-call.8} parent=113 // pred_region
          %s655 = sand.u32 %s53, 1
          %s656 = sand.u32 %s53, 1
          %s657 = smul.addr %s656, 2
          %s658 = scalar_lea.vmem [#allocation6], %s657
        $region122: #{custom-call.8} parent=113 // pred_fallthru
          _
      $region114: #{custom-call.8} parent=5 // pred_fallthru
        _
    $region6: #{custom-call.8} parent=1 // loop_footer
      %s13 = sadd.s32 1, %s9
    $region7: #{custom-call.8} parent=1 // loop_footer_branch
      %8 = sbr.rel target = $region3
    $region8: #{custom-call.8} parent=1 // loop_exit
      _
    %659 = vsyncpa [#allocation4], 1
    %s660 = scalar_lea.sflag [#allocation4], 1
    %661 = vsyncpa %s660, 1

// kernel: neg.3
$region0: #{neg.3}
  #allocation0 [shape = 's32[1]{0}', space=sflag, size = 0x4, scoped, tag = 'scoped memory for neg.3']
  %s0 = inlined_call_operand.vmem [shape: f32[2,25,4], index: 0, kind: input, shape index: {}]
  %s1 = inlined_call_operand.vmem [shape: f32[2,25,4], index: 1, kind: output, shape index: {}]
  %v2 = vld [vmem:[%s0] sm:$0xff]
  %3 = xla_tuple %v2
  %4 = xla_tuple %3
  %v5 = vxor.u32 %v2, 2147483648
  %6 = xla_tuple %v5
  %7 = vst [vmem:[%s1] sm:$0xff] %v5
  %s8 = scalar_lea.vmem %s0, 32
  %v9 = vld [vmem:[%s8] sm:$0xff]
  %10 = xla_tuple %v9
  %11 = xla_tuple %10
  %v12 = vxor.u32 %v9, 2147483648
  %13 = xla_tuple %v12
  %s14 = scalar_lea.vmem %s1, 32
  %15 = vst [vmem:[%s14] sm:$0xff] %v12
  %s16 = scalar_lea.vmem %s0, 8
  %v17 = vld [vmem:[%s16] sm:$0xff]
  %18 = xla_tuple %v17
  %19 = xla_tuple %18
  %v20 = vxor.u32 %v17, 2147483648
  %21 = xla_tuple %v20
  %s22 = scalar_lea.vmem %s1, 8
  %23 = vst [vmem:[%s22] sm:$0xff] %v20
  %s24 = scalar_lea.vmem %s0, 40
  %v25 = vld [vmem:[%s24] sm:$0xff]
  %26 = xla_tuple %v25
  %27 = xla_tuple %26
  %v28 = vxor.u32 %v25, 2147483648
  %29 = xla_tuple %v28
  %s30 = scalar_lea.vmem %s1, 40
  %31 = vst [vmem:[%s30] sm:$0xff] %v28
  %s32 = scalar_lea.vmem %s0, 16
  %v33 = vld [vmem:[%s32] sm:$0xff]
  %34 = xla_tuple %v33
  %35 = xla_tuple %34
  %v36 = vxor.u32 %v33, 2147483648
  %37 = xla_tuple %v36
  %s38 = scalar_lea.vmem %s1, 16
  %39 = vst [vmem:[%s38] sm:$0xff] %v36
  %s40 = scalar_lea.vmem %s0, 48
  %v41 = vld [vmem:[%s40] sm:$0xff]
  %42 = xla_tuple %v41
  %43 = xla_tuple %42
  %v44 = vxor.u32 %v41, 2147483648
  %45 = xla_tuple %v44
  %s46 = scalar_lea.vmem %s1, 48
  %47 = vst [vmem:[%s46] sm:$0xff] %v44
  %s48 = scalar_lea.vmem %s0, 24
  %v49 = vld [vmem:[%s48] sm:$0xff]
  %50 = xla_tuple %v49
  %51 = xla_tuple %50
  %v52 = vxor.u32 %v49, 2147483648
  %53 = xla_tuple %v52
  %s54 = scalar_lea.vmem %s1, 24
  %55 = vst [vmem:[%s54] sm:$0xff] %v52
  %s56 = scalar_lea.vmem %s0, 56
  %v57 = vld [vmem:[%s56] sm:$0xff]
  %58 = xla_tuple %v57
  %59 = xla_tuple %58
  %v60 = vxor.u32 %v57, 2147483648
  %61 = xla_tuple %v60
  %s62 = scalar_lea.vmem %s1, 56
  %63 = vst [vmem:[%s62] sm:$0xff] %v60

// kernel: custom-call.10
$region0: #{custom-call.10}
  %s0 = inlined_call_operand.vmem [shape: f32[2,1,50,50], index: 0, kind: input, shape index: {}]
  %s1 = inlined_call_operand.vmem [shape: f32[2,1,50,50], index: 1, kind: output, shape index: {}]
  $region1: #{custom-call.10} parent=0
    #allocation0 [shape = 'u8[57344]{0}', space=vmem, size = 0xe000, scoped, tag = 'operand span for operand 0']
    #allocation1 [shape = 'u8[57344]{0}', space=vmem, size = 0xe000, scoped, tag = 'operand span for operand 1']
    loop: start=0, step=1, limit=4
    $region2: #{custom-call.10} parent=1 // loop_pre_header
      _
    $region3: #{custom-call.10} parent=1 // loop_header
      %s3 = sphi 0, %s7
      %p4 = scmp.ge.s32.totalorder %s3, 4
      %s10 = sphi 0, %s36
      %s11 = sphi 0, %s32
      %s12 = sphi 0, %s28
      %s13 = sphi 0, %s24
      %s14 = sphi 0, %s10
      %s15 = sphi 0, %s11
      %s16 = sphi 0, %s12
      %s17 = sphi 0, %s13
      %s18 = sphi 0, %s14
      %s19 = sphi 0, %s15
      %s20 = sphi 0, %s16
      %s21 = sphi 0, %s17
    $region4: #{custom-call.10} parent=1 // loop_header_branch
      %6 = sbr.rel (%p4) target = $region8
    $region5: #{custom-call.10} parent=1 // loop_body
      %s8 = ssub.s32 %s3, 1
      %s9 = ssub.s32 %s3, 2
      %s22 = sadd.s32 1, %s13
      %p23 = scmp.ge.s32.totalorder %s22, 1
      %s24 = scalar_select %p23, 0, %s22
      %s25 = sadd.s32 1, %s12
      %s26 = scalar_select %p23, %s25, %s12
      %p27 = scmp.ge.s32.totalorder %s26, 1
      %s28 = scalar_select %p27, 0, %s26
      %s29 = sadd.s32 1, %s11
      %s30 = scalar_select %p27, %s29, %s11
      %p31 = scmp.ge.s32.totalorder %s30, 1
      %s32 = scalar_select %p31, 0, %s30
      %s33 = sadd.s32 1, %s10
      %s34 = scalar_select %p31, %s33, %s10
      %p35 = scmp.ge.s32.totalorder %s34, 2
      %s36 = scalar_select %p35, 0, %s34
      %p37 = scmp.le.s32.totalorder 1, %s3
      %p38 = scmp.lt.s32.totalorder %s3, 3
      %p39 = pnand %p37, %p38
      %p40 = pneg %p39
      // Predicated region
      $region9: #{custom-call.10} parent=5 // pred_check
        _
      $region10: #{custom-call.10} parent=5 // pred_check_branch
        %42 = sbr.rel (%p39) target = $region12
      $region11: #{custom-call.10} parent=5 // pred_region
        %s43 = ssub.s32 %s3, 1
      $region12: #{custom-call.10} parent=5 // pred_fallthru
        _
      %p44 = scmp.lt.s32.totalorder %s3, 2
      // Predicated region
      $region13: #{custom-call.10} parent=5 // pred_check
        %p45 = pneg %p44
      $region14: #{custom-call.10} parent=5 // pred_check_branch
        %47 = sbr.rel (%p45) target = $region16
      $region15: #{custom-call.10} parent=5 // pred_region
        %s48 = sand.u32 %s3, 1
        %s49 = sand.u32 %s3, 1
        %s50 = smul.addr %s49, 56
        %s51 = scalar_lea.vmem [#allocation0], %s50
        %s52 = sadd.s32 %s13, %s12
        %s53 = smul.addr %s11, 7
        %s54 = sadd.s32 %s52, %s53
        %s55 = smul.addr %s10, 7
        %s56 = sadd.s32 %s54, %s55
        %s57 = smul.addr %s56, 8
        %s58 = scalar_lea.vmem %s0, %s57
        // Predicated region
        $region17: #{custom-call.10} parent=15 // pred_check
          _
        $region18: #{custom-call.10} parent=15 // pred_check_branch
          %60 = sbr.rel (0) target = $region20
        $region19: #{custom-call.10} parent=15 // pred_region
          // Predicated region
          $region21: #{custom-call.10} parent=19 // pred_check
            _
          $region22: #{custom-call.10} parent=19 // pred_check_branch
            %62 = sbr.rel (0) target = $region24
          $region23: #{custom-call.10} parent=19 // pred_region
            // Predicated region
            $region36: #{custom-call.10} parent=23 // pred_check
              _
            $region37: #{custom-call.10} parent=23 // pred_check_branch
              %90 = sbr.rel (0) target = $region39
            $region38: #{custom-call.10} parent=23 // pred_region
              loop: start=0, step=1, limit=1
              $region40: #{custom-call.10} parent=38 // loop_pre_header
                _
              $region41: #{custom-call.10} parent=38 // loop_header
                %s92 = sphi 0, %s96
                %p93 = scmp.ge.s32.totalorder %s92, 1
                %s97 = sphi %s58, %s58
                %s98 = sphi %s51, %s51
              $region42: #{custom-call.10} parent=38 // loop_header_branch
                %95 = sbr.rel (%p93) target = $region46
              $region43: #{custom-call.10} parent=38 // loop_body
                %v99 = vld [vmem:[%s97] sm:$0xff]
                %100 = vst [vmem:[%s98] sm:$0xff] %v99
                %v101 = vld [vmem:[%s97 + $0x8] sm:$0xff]
                %102 = vst [vmem:[%s98 + $0x8] sm:$0xff] %v101
                %v103 = vld [vmem:[%s97 + $0x10] sm:$0xff]
                %104 = vst [vmem:[%s98 + $0x10] sm:$0xff] %v103
                %v105 = vld [vmem:[%s97 + $0x18] sm:$0xff]
                %106 = vst [vmem:[%s98 + $0x18] sm:$0xff] %v105
                %v107 = vld [vmem:[%s97 + $0x20] sm:$0xff]
                %108 = vst [vmem:[%s98 + $0x20] sm:$0xff] %v107
                %v109 = vld [vmem:[%s97 + $0x28] sm:$0xff]
                %110 = vst [vmem:[%s98 + $0x28] sm:$0xff] %v109
                %v111 = vld [vmem:[%s97 + $0x30] sm:$0xff]
                %112 = vst [vmem:[%s98 + $0x30] sm:$0xff] %v111
              $region44: #{custom-call.10} parent=38 // loop_footer
                %s96 = sadd.s32 1, %s92
              $region45: #{custom-call.10} parent=38 // loop_footer_branch
                %91 = sbr.rel target = $region41
              $region46: #{custom-call.10} parent=38 // loop_exit
                _
            $region39: #{custom-call.10} parent=23 // pred_fallthru
              _
            // Predicated region
            $region47: #{custom-call.10} parent=23 // pred_check
              _
            $region48: #{custom-call.10} parent=23 // pred_check_branch
              %114 = sbr.rel target = $region50
            $region49: #{custom-call.10} parent=23 // pred_region
              _
            $region50: #{custom-call.10} parent=23 // pred_fallthru
              _
          $region24: #{custom-call.10} parent=19 // pred_fallthru
            _
          // Predicated region
          $region25: #{custom-call.10} parent=19 // pred_check
            _
          $region26: #{custom-call.10} parent=19 // pred_check_branch
            %64 = sbr.rel target = $region28
          $region27: #{custom-call.10} parent=19 // pred_region
            %s66 = ssub.s32 256, 1
            loop: start=0, step=1, limit=1
            $region29: #{custom-call.10} parent=27 // loop_pre_header
              _
            $region30: #{custom-call.10} parent=27 // loop_header
              %s68 = sphi 0, %s72
              %p69 = scmp.ge.s32.totalorder %s68, 1
              %s73 = sphi %s58, %s58
              %s74 = sphi %s51, %s51
            $region31: #{custom-call.10} parent=27 // loop_header_branch
              %71 = sbr.rel (%p69) target = $region35
            $region32: #{custom-call.10} parent=27 // loop_body
              %v75 = vld [vmem:[%s73] sm:%s66]
              %76 = vst [vmem:[%s74] sm:%s66] %v75
              %v77 = vld [vmem:[%s73 + $0x8] sm:%s66]
              %78 = vst [vmem:[%s74 + $0x8] sm:%s66] %v77
              %v79 = vld [vmem:[%s73 + $0x10] sm:%s66]
              %80 = vst [vmem:[%s74 + $0x10] sm:%s66] %v79
              %v81 = vld [vmem:[%s73 + $0x18] sm:%s66]
              %82 = vst [vmem:[%s74 + $0x18] sm:%s66] %v81
              %v83 = vld [vmem:[%s73 + $0x20] sm:%s66]
              %84 = vst [vmem:[%s74 + $0x20] sm:%s66] %v83
              %v85 = vld [vmem:[%s73 + $0x28] sm:%s66]
              %86 = vst [vmem:[%s74 + $0x28] sm:%s66] %v85
              %v87 = vld [vmem:[%s73 + $0x30] sm:%s66]
              %88 = vst [vmem:[%s74 + $0x30] sm:%s66] %v87
            $region33: #{custom-call.10} parent=27 // loop_footer
              %s72 = sadd.s32 1, %s68
            $region34: #{custom-call.10} parent=27 // loop_footer_branch
              %67 = sbr.rel target = $region30
            $region35: #{custom-call.10} parent=27 // loop_exit
              _
          $region28: #{custom-call.10} parent=19 // pred_fallthru
            _
        $region20: #{custom-call.10} parent=15 // pred_fallthru
          _
        %115 = vnop
      $region16: #{custom-call.10} parent=5 // pred_fallthru
        _
      %p116 = scmp.le.s32.totalorder 1, %s3
      %p117 = scmp.lt.s32.totalorder %s3, 3
      %p118 = pnand %p116, %p117
      %p119 = pneg %p118
      // Predicated region
      $region51: #{custom-call.10} parent=5 // pred_check
        _
      $region52: #{custom-call.10} parent=5 // pred_check_branch
        %121 = sbr.rel (%p118) target = $region54
      $region53: #{custom-call.10} parent=5 // pred_region
        #allocation2 [shape = 'f32[50,50]{1,0}', space=vmem, size = 0x7000, scoped, tag = 'rescaled input a']
        %s122 = ssub.s32 %s3, 1
        %s123 = sand.u32 %s8, 1
        %s124 = sand.u32 %s8, 1
        %s125 = smul.addr %s124, 56
        %s126 = scalar_lea.vmem [#allocation0], %s125
        %s127 = sand.u32 %s8, 1
        %s128 = sand.u32 %s8, 1
        %s129 = smul.addr %s128, 56
        %s130 = scalar_lea.vmem [#allocation0], %s129
        %s131 = sand.u32 %s8, 1
        %s132 = sand.u32 %s8, 1
        %s133 = smul.addr %s132, 56
        %s134 = scalar_lea.vmem [#allocation1], %s133
        %v135 = vlaneseq
        %v136 = vand.u32 %v135, 127
        %vm137 = vcmp.lt.s32.totalorder %v136, 50
        %v138 = vlaneseq
        %v139 = vshrl.u32 %v138, 7
        %vm141 = vcmp.eq.s32.totalorder %v139, %v136
        %v142 = vld [vmem:[%s126] sm:$0xff]
        %v143 = vsel %vm141, %v142, 0.0
        %144 = vadd.xlane.f32.xlu0 %v143
        %v145 = vpop.xlane.xlu0 %144
        %vm146 = vcmp.ge.s32.totalorder %v139, %v136
        %vm147 = vmand %vm146, %vm137
        %v148 = vsel %vm147, %v142, 0.0
        %v149 = vrcp.pop %v145
        %v150 = vmul.f32 %v148, %v149
        %151 = vst [vmem:[#allocation2] sm:$0xff] %v150
        %s152 = scalar_lea.vmem %s126, 8 [#allocation0]
        %s153 = scalar_lea.vmem [#allocation2], 8
        %v154 = vlaneseq
        %v155 = vshrl.u32 %v154, 7
        %v156 = vadd.s32 %v155, 8
        %vm157 = vcmp.eq.s32.totalorder %v156, %v136
        %v158 = vld [vmem:[%s152] sm:$0xff]
        %v159 = vsel %vm157, %v158, 0.0
        %160 = vadd.xlane.f32.xlu0 %v159
        %v161 = vpop.xlane.xlu0 %160
        %vm162 = vcmp.ge.s32.totalorder %v156, %v136
        %vm163 = vmand %vm162, %vm137
        %v164 = vsel %vm163, %v158, 0.0
        %v165 = vrcp.pop %v161
        %v166 = vmul.f32 %v164, %v165
        %167 = vst [vmem:[%s153] sm:$0xff] %v166
        %s168 = scalar_lea.vmem %s126, 16 [#allocation0]
        %s169 = scalar_lea.vmem [#allocation2], 16
        %v170 = vlaneseq
        %v171 = vshrl.u32 %v170, 7
        %v172 = vadd.s32 %v171, 16
        %vm173 = vcmp.eq.s32.totalorder %v172, %v136
        %v174 = vld [vmem:[%s168] sm:$0xff]
        %v175 = vsel %vm173, %v174, 0.0
        %176 = vadd.xlane.f32.xlu0 %v175
        %v177 = vpop.xlane.xlu0 %176
        %vm178 = vcmp.ge.s32.totalorder %v172, %v136
        %vm179 = vmand %vm178, %vm137
        %v180 = vsel %vm179, %v174, 0.0
        %v181 = vrcp.pop %v177
        %v182 = vmul.f32 %v180, %v181
        %183 = vst [vmem:[%s169] sm:$0xff] %v182
        %s184 = scalar_lea.vmem %s126, 24 [#allocation0]
        %s185 = scalar_lea.vmem [#allocation2], 24
        %v186 = vlaneseq
        %v187 = vshrl.u32 %v186, 7
        %v188 = vadd.s32 %v187, 24
        %vm189 = vcmp.eq.s32.totalorder %v188, %v136
        %v190 = vld [vmem:[%s184] sm:$0xff]
        %v191 = vsel %vm189, %v190, 0.0
        %192 = vadd.xlane.f32.xlu0 %v191
        %v193 = vpop.xlane.xlu0 %192
        %vm194 = vcmp.ge.s32.totalorder %v188, %v136
        %vm195 = vmand %vm194, %vm137
        %v196 = vsel %vm195, %v190, 0.0
        %v197 = vrcp.pop %v193
        %v198 = vmul.f32 %v196, %v197
        %199 = vst [vmem:[%s185] sm:$0xff] %v198
        %s200 = scalar_lea.vmem %s126, 32 [#allocation0]
        %s201 = scalar_lea.vmem [#allocation2], 32
        %v202 = vlaneseq
        %v203 = vshrl.u32 %v202, 7
        %v204 = vadd.s32 %v203, 32
        %vm205 = vcmp.eq.s32.totalorder %v204, %v136
        %v206 = vld [vmem:[%s200] sm:$0xff]
        %v207 = vsel %vm205, %v206, 0.0
        %208 = vadd.xlane.f32.xlu0 %v207
        %v209 = vpop.xlane.xlu0 %208
        %vm210 = vcmp.ge.s32.totalorder %v204, %v136
        %vm211 = vmand %vm210, %vm137
        %v212 = vsel %vm211, %v206, 0.0
        %v213 = vrcp.pop %v209
        %v214 = vmul.f32 %v212, %v213
        %215 = vst [vmem:[%s201] sm:$0xff] %v214
        %s216 = scalar_lea.vmem %s126, 40 [#allocation0]
        %s217 = scalar_lea.vmem [#allocation2], 40
        %v218 = vlaneseq
        %v219 = vshrl.u32 %v218, 7
        %v220 = vadd.s32 %v219, 40
        %vm221 = vcmp.eq.s32.totalorder %v220, %v136
        %v222 = vld [vmem:[%s216] sm:$0xff]
        %v223 = vsel %vm221, %v222, 0.0
        %224 = vadd.xlane.f32.xlu0 %v223
        %v225 = vpop.xlane.xlu0 %224
        %vm226 = vcmp.ge.s32.totalorder %v220, %v136
        %vm227 = vmand %vm226, %vm137
        %v228 = vsel %vm227, %v222, 0.0
        %v229 = vrcp.pop %v225
        %v230 = vmul.f32 %v228, %v229
        %231 = vst [vmem:[%s217] sm:$0xff] %v230
        %s232 = scalar_lea.vmem %s126, 48 [#allocation0]
        %s233 = scalar_lea.vmem [#allocation2], 48
        %v234 = vlaneseq
        %v235 = vshrl.u32 %v234, 7
        %v236 = vadd.s32 %v235, 48
        %vm237 = vcmp.eq.s32.totalorder %v236, %v136
        %v238 = vld [vmem:[%s232] sm:$0xff]
        %v239 = vsel %vm237, %v238, 0.0
        %240 = vadd.xlane.f32.xlu0 %v239
        %v241 = vpop.xlane.xlu0 %240
        %vm242 = vcmp.ge.s32.totalorder %v236, %v136
        %vm243 = vmand %vm242, %vm137
        %v244 = vsel %vm243, %v238, 0.0
        %v245 = vrcp.pop %v241
        %v246 = vmul.f32 %v244, %v245
        %247 = vst [vmem:[%s233] sm:$0xff] %v246
        %v248 = vlaneseq
        %v249 = vand.u32 %v248, 127
        %v250 = vlaneseq
        %v251 = vshrl.u32 %v250, 7
        %vm253 = vcmp.eq.s32.totalorder %v249, %v251
        %v254 = vlaneseq
        %v255 = vand.u32 %v254, 127
        %vm256 = vcmp.eq.s32.totalorder %v255, 0
        %v257 = vsel %vm256, 1.0, -1.0
        %v258 = vsel %vm253, %v257, 0.0
        %v259 = vlaneseq
        %v260 = vand.u32 %v259, 127
        %v261 = vlaneseq
        %v262 = vshrl.u32 %v261, 7
        %v263 = vadd.s32 %v262, 8
        %vm264 = vcmp.eq.s32.totalorder %v260, %v263
        %v265 = vsel %vm264, -1.0, 0.0
        %v266 = vlaneseq
        %v267 = vand.u32 %v266, 127
        %v268 = vlaneseq
        %v269 = vshrl.u32 %v268, 7
        %v270 = vadd.s32 %v269, 16
        %vm271 = vcmp.eq.s32.totalorder %v267, %v270
        %v272 = vsel %vm271, -1.0, 0.0
        %v273 = vlaneseq
        %v274 = vand.u32 %v273, 127
        %v275 = vlaneseq
        %v276 = vshrl.u32 %v275, 7
        %v277 = vadd.s32 %v276, 24
        %vm278 = vcmp.eq.s32.totalorder %v274, %v277
        %v279 = vsel %vm278, -1.0, 0.0
        %v280 = vlaneseq
        %v281 = vand.u32 %v280, 127
        %v282 = vlaneseq
        %v283 = vshrl.u32 %v282, 7
        %v284 = vadd.s32 %v283, 32
        %vm285 = vcmp.eq.s32.totalorder %v281, %v284
        %v286 = vsel %vm285, -1.0, 0.0
        %v287 = vlaneseq
        %v288 = vand.u32 %v287, 127
        %v289 = vlaneseq
        %v290 = vshrl.u32 %v289, 7
        %v291 = vadd.s32 %v290, 40
        %vm292 = vcmp.eq.s32.totalorder %v288, %v291
        %v293 = vsel %vm292, -1.0, 0.0
        %v294 = vlaneseq
        %v295 = vand.u32 %v294, 127
        %v296 = vlaneseq
        %v297 = vshrl.u32 %v296, 7
        %v298 = vadd.s32 %v297, 48
        %vm299 = vcmp.eq.s32.totalorder %v295, %v298
        %v300 = vsel %vm299, -1.0, 0.0
        %s301 = scalar_lea.vmem [#allocation2], 1
        %v302 = vld [vmem:[%s301] ss:$0 sm:$0xff]
        %v303 = vxor.u32 %v302, 2147483648
        %v304 = vlaneseq
        %v305 = vand.u32 %v304, 127
        %vm306 = vcmp.eq.s32.totalorder %v305, 1
        %v307 = vmul.f32 %v303, %v258
        %308 = vadd.xlane.f32.xlu0 %v307
        %v309 = vpop.xlane.xlu0 %308
        %v310 = vsel %vm306, %v309, %v258
        %s311 = scalar_lea.vmem [#allocation2], 2
        %v312 = vld [vmem:[%s311] ss:$0 sm:$0xff]
        %v313 = vxor.u32 %v312, 2147483648
        %v314 = vlaneseq
        %v315 = vand.u32 %v314, 127
        %vm316 = vcmp.eq.s32.totalorder %v315, 2
        %v317 = vmul.f32 %v313, %v310
        %318 = vadd.xlane.f32.xlu0 %v317
        %v319 = vpop.xlane.xlu0 %318
        %v320 = vsel %vm316, %v319, %v310
        %s321 = scalar_lea.vmem [#allocation2], 3
        %v322 = vld [vmem:[%s321] ss:$0 sm:$0xff]
        %v323 = vxor.u32 %v322, 2147483648
        %v324 = vlaneseq
        %v325 = vand.u32 %v324, 127
        %vm326 = vcmp.eq.s32.totalorder %v325, 3
        %v327 = vmul.f32 %v323, %v320
        %328 = vadd.xlane.f32.xlu0 %v327
        %v329 = vpop.xlane.xlu0 %328
        %v330 = vsel %vm326, %v329, %v320
        %s331 = scalar_lea.vmem [#allocation2], 4
        %v332 = vld [vmem:[%s331] ss:$0 sm:$0xff]
        %v333 = vxor.u32 %v332, 2147483648
        %v334 = vlaneseq
        %v335 = vand.u32 %v334, 127
        %vm336 = vcmp.eq.s32.totalorder %v335, 4
        %v337 = vmul.f32 %v333, %v330
        %338 = vadd.xlane.f32.xlu0 %v337
        %v339 = vpop.xlane.xlu0 %338
        %v340 = vsel %vm336, %v339, %v330
        %s341 = scalar_lea.vmem [#allocation2], 5
        %v342 = vld [vmem:[%s341] ss:$0 sm:$0xff]
        %v343 = vxor.u32 %v342, 2147483648
        %v344 = vlaneseq
        %v345 = vand.u32 %v344, 127
        %vm346 = vcmp.eq.s32.totalorder %v345, 5
        %v347 = vmul.f32 %v343, %v340
        %348 = vadd.xlane.f32.xlu0 %v347
        %v349 = vpop.xlane.xlu0 %348
        %v350 = vsel %vm346, %v349, %v340
        %s351 = scalar_lea.vmem [#allocation2], 6
        %v352 = vld [vmem:[%s351] ss:$0 sm:$0xff]
        %v353 = vxor.u32 %v352, 2147483648
        %v354 = vlaneseq
        %v355 = vand.u32 %v354, 127
        %vm356 = vcmp.eq.s32.totalorder %v355, 6
        %v357 = vmul.f32 %v353, %v350
        %358 = vadd.xlane.f32.xlu0 %v357
        %v359 = vpop.xlane.xlu0 %358
        %v360 = vsel %vm356, %v359, %v350
        %s361 = scalar_lea.vmem [#allocation2], 7
        %v362 = vld [vmem:[%s361] ss:$0 sm:$0xff]
        %v363 = vxor.u32 %v362, 2147483648
        %v364 = vlaneseq
        %v365 = vand.u32 %v364, 127
        %vm366 = vcmp.eq.s32.totalorder %v365, 7
        %v367 = vmul.f32 %v363, %v360
        %368 = vadd.xlane.f32.xlu0 %v367
        %v369 = vpop.xlane.xlu0 %368
        %v370 = vsel %vm366, %v369, %v360
        %s371 = scalar_lea.vmem [#allocation2], 8
        %v372 = vld [vmem:[%s371] ss:$0 sm:$0xff]
        %v373 = vxor.u32 %v372, 2147483648
        %v374 = vlaneseq
        %v375 = vand.u32 %v374, 127
        %vm376 = vcmp.eq.s32.totalorder %v375, 8
        %v377 = vmul.f32 %v373, %v370
        %378 = vadd.xlane.f32.xlu0 %v377
        %v379 = vpop.xlane.xlu0 %378
        %v380 = vsel %vm376, %v379, %v370
        %v381 = vmul.f32 %v373, %v265
        %382 = vadd.xlane.f32.xlu0 %v381
        %v383 = vpop.xlane.xlu0 %382
        %v384 = vsel %vm376, %v383, %v265
        %s385 = scalar_lea.vmem [#allocation2], 9
        %v386 = vld [vmem:[%s385] ss:$0 sm:$0xff]
        %v387 = vxor.u32 %v386, 2147483648
        %v388 = vlaneseq
        %v389 = vand.u32 %v388, 127
        %vm390 = vcmp.eq.s32.totalorder %v389, 9
        %v391 = vmul.f32 %v387, %v380
        %392 = vadd.xlane.f32.xlu0 %v391
        %v393 = vpop.xlane.xlu0 %392
        %v394 = vsel %vm390, %v393, %v380
        %v395 = vmul.f32 %v387, %v384
        %396 = vadd.xlane.f32.xlu0 %v395
        %v397 = vpop.xlane.xlu0 %396
        %v398 = vsel %vm390, %v397, %v384
        %s399 = scalar_lea.vmem [#allocation2], 10
        %v400 = vld [vmem:[%s399] ss:$0 sm:$0xff]
        %v401 = vxor.u32 %v400, 2147483648
        %v402 = vlaneseq
        %v403 = vand.u32 %v402, 127
        %vm404 = vcmp.eq.s32.totalorder %v403, 10
        %v405 = vmul.f32 %v401, %v394
        %406 = vadd.xlane.f32.xlu0 %v405
        %v407 = vpop.xlane.xlu0 %406
        %v408 = vsel %vm404, %v407, %v394
        %v409 = vmul.f32 %v401, %v398
        %410 = vadd.xlane.f32.xlu0 %v409
        %v411 = vpop.xlane.xlu0 %410
        %v412 = vsel %vm404, %v411, %v398
        %s413 = scalar_lea.vmem [#allocation2], 11
        %v414 = vld [vmem:[%s413] ss:$0 sm:$0xff]
        %v415 = vxor.u32 %v414, 2147483648
        %v416 = vlaneseq
        %v417 = vand.u32 %v416, 127
        %vm418 = vcmp.eq.s32.totalorder %v417, 11
        %v419 = vmul.f32 %v415, %v408
        %420 = vadd.xlane.f32.xlu0 %v419
        %v421 = vpop.xlane.xlu0 %420
        %v422 = vsel %vm418, %v421, %v408
        %v423 = vmul.f32 %v415, %v412
        %424 = vadd.xlane.f32.xlu0 %v423
        %v425 = vpop.xlane.xlu0 %424
        %v426 = vsel %vm418, %v425, %v412
        %s427 = scalar_lea.vmem [#allocation2], 12
        %v428 = vld [vmem:[%s427] ss:$0 sm:$0xff]
        %v429 = vxor.u32 %v428, 2147483648
        %v430 = vlaneseq
        %v431 = vand.u32 %v430, 127
        %vm432 = vcmp.eq.s32.totalorder %v431, 12
        %v433 = vmul.f32 %v429, %v422
        %434 = vadd.xlane.f32.xlu0 %v433
        %v435 = vpop.xlane.xlu0 %434
        %v436 = vsel %vm432, %v435, %v422
        %v437 = vmul.f32 %v429, %v426
        %438 = vadd.xlane.f32.xlu0 %v437
        %v439 = vpop.xlane.xlu0 %438
        %v440 = vsel %vm432, %v439, %v426
        %s441 = scalar_lea.vmem [#allocation2], 13
        %v442 = vld [vmem:[%s441] ss:$0 sm:$0xff]
        %v443 = vxor.u32 %v442, 2147483648
        %v444 = vlaneseq
        %v445 = vand.u32 %v444, 127
        %vm446 = vcmp.eq.s32.totalorder %v445, 13
        %v447 = vmul.f32 %v443, %v436
        %448 = vadd.xlane.f32.xlu0 %v447
        %v449 = vpop.xlane.xlu0 %448
        %v450 = vsel %vm446, %v449, %v436
        %v451 = vmul.f32 %v443, %v440
        %452 = vadd.xlane.f32.xlu0 %v451
        %v453 = vpop.xlane.xlu0 %452
        %v454 = vsel %vm446, %v453, %v440
        %s455 = scalar_lea.vmem [#allocation2], 14
        %v456 = vld [vmem:[%s455] ss:$0 sm:$0xff]
        %v457 = vxor.u32 %v456, 2147483648
        %v458 = vlaneseq
        %v459 = vand.u32 %v458, 127
        %vm460 = vcmp.eq.s32.totalorder %v459, 14
        %v461 = vmul.f32 %v457, %v450
        %462 = vadd.xlane.f32.xlu0 %v461
        %v463 = vpop.xlane.xlu0 %462
        %v464 = vsel %vm460, %v463, %v450
        %v465 = vmul.f32 %v457, %v454
        %466 = vadd.xlane.f32.xlu0 %v465
        %v467 = vpop.xlane.xlu0 %466
        %v468 = vsel %vm460, %v467, %v454
        %s469 = scalar_lea.vmem [#allocation2], 15
        %v470 = vld [vmem:[%s469] ss:$0 sm:$0xff]
        %v471 = vxor.u32 %v470, 2147483648
        %v472 = vlaneseq
        %v473 = vand.u32 %v472, 127
        %vm474 = vcmp.eq.s32.totalorder %v473, 15
        %v475 = vmul.f32 %v471, %v464
        %476 = vadd.xlane.f32.xlu0 %v475
        %v477 = vpop.xlane.xlu0 %476
        %v478 = vsel %vm474, %v477, %v464
        %v479 = vmul.f32 %v471, %v468
        %480 = vadd.xlane.f32.xlu0 %v479
        %v481 = vpop.xlane.xlu0 %480
        %v482 = vsel %vm474, %v481, %v468
        %s483 = scalar_lea.vmem [#allocation2], 16
        %v484 = vld [vmem:[%s483] ss:$0 sm:$0xff]
        %v485 = vxor.u32 %v484, 2147483648
        %v486 = vlaneseq
        %v487 = vand.u32 %v486, 127
        %vm488 = vcmp.eq.s32.totalorder %v487, 16
        %v489 = vmul.f32 %v485, %v478
        %490 = vadd.xlane.f32.xlu0 %v489
        %v491 = vpop.xlane.xlu0 %490
        %v492 = vsel %vm488, %v491, %v478
        %v493 = vmul.f32 %v485, %v482
        %494 = vadd.xlane.f32.xlu0 %v493
        %v495 = vpop.xlane.xlu0 %494
        %v496 = vsel %vm488, %v495, %v482
        %v497 = vmul.f32 %v485, %v272
        %498 = vadd.xlane.f32.xlu0 %v497
        %v499 = vpop.xlane.xlu0 %498
        %v500 = vsel %vm488, %v499, %v272
        %s501 = scalar_lea.vmem [#allocation2], 17
        %v502 = vld [vmem:[%s501] ss:$0 sm:$0xff]
        %v503 = vxor.u32 %v502, 2147483648
        %v504 = vlaneseq
        %v505 = vand.u32 %v504, 127
        %vm506 = vcmp.eq.s32.totalorder %v505, 17
        %v507 = vmul.f32 %v503, %v492
        %508 = vadd.xlane.f32.xlu0 %v507
        %v509 = vpop.xlane.xlu0 %508
        %v510 = vsel %vm506, %v509, %v492
        %v511 = vmul.f32 %v503, %v496
        %512 = vadd.xlane.f32.xlu0 %v511
        %v513 = vpop.xlane.xlu0 %512
        %v514 = vsel %vm506, %v513, %v496
        %v515 = vmul.f32 %v503, %v500
        %516 = vadd.xlane.f32.xlu0 %v515
        %v517 = vpop.xlane.xlu0 %516
        %v518 = vsel %vm506, %v517, %v500
        %s519 = scalar_lea.vmem [#allocation2], 18
        %v520 = vld [vmem:[%s519] ss:$0 sm:$0xff]
        %v521 = vxor.u32 %v520, 2147483648
        %v522 = vlaneseq
        %v523 = vand.u32 %v522, 127
        %vm524 = vcmp.eq.s32.totalorder %v523, 18
        %v525 = vmul.f32 %v521, %v510
        %526 = vadd.xlane.f32.xlu0 %v525
        %v527 = vpop.xlane.xlu0 %526
        %v528 = vsel %vm524, %v527, %v510
        %v529 = vmul.f32 %v521, %v514
        %530 = vadd.xlane.f32.xlu0 %v529
        %v531 = vpop.xlane.xlu0 %530
        %v532 = vsel %vm524, %v531, %v514
        %v533 = vmul.f32 %v521, %v518
        %534 = vadd.xlane.f32.xlu0 %v533
        %v535 = vpop.xlane.xlu0 %534
        %v536 = vsel %vm524, %v535, %v518
        %s537 = scalar_lea.vmem [#allocation2], 19
        %v538 = vld [vmem:[%s537] ss:$0 sm:$0xff]
        %v539 = vxor.u32 %v538, 2147483648
        %v540 = vlaneseq
        %v541 = vand.u32 %v540, 127
        %vm542 = vcmp.eq.s32.totalorder %v541, 19
        %v543 = vmul.f32 %v539, %v528
        %544 = vadd.xlane.f32.xlu0 %v543
        %v545 = vpop.xlane.xlu0 %544
        %v546 = vsel %vm542, %v545, %v528
        %v547 = vmul.f32 %v539, %v532
        %548 = vadd.xlane.f32.xlu0 %v547
        %v549 = vpop.xlane.xlu0 %548
        %v550 = vsel %vm542, %v549, %v532
        %v551 = vmul.f32 %v539, %v536
        %552 = vadd.xlane.f32.xlu0 %v551
        %v553 = vpop.xlane.xlu0 %552
        %v554 = vsel %vm542, %v553, %v536
        %s555 = scalar_lea.vmem [#allocation2], 20
        %v556 = vld [vmem:[%s555] ss:$0 sm:$0xff]
        %v557 = vxor.u32 %v556, 2147483648
        %v558 = vlaneseq
        %v559 = vand.u32 %v558, 127
        %vm560 = vcmp.eq.s32.totalorder %v559, 20
        %v561 = vmul.f32 %v557, %v546
        %562 = vadd.xlane.f32.xlu0 %v561
        %v563 = vpop.xlane.xlu0 %562
        %v564 = vsel %vm560, %v563, %v546
        %v565 = vmul.f32 %v557, %v550
        %566 = vadd.xlane.f32.xlu0 %v565
        %v567 = vpop.xlane.xlu0 %566
        %v568 = vsel %vm560, %v567, %v550
        %v569 = vmul.f32 %v557, %v554
        %570 = vadd.xlane.f32.xlu0 %v569
        %v571 = vpop.xlane.xlu0 %570
        %v572 = vsel %vm560, %v571, %v554
        %s573 = scalar_lea.vmem [#allocation2], 21
        %v574 = vld [vmem:[%s573] ss:$0 sm:$0xff]
        %v575 = vxor.u32 %v574, 2147483648
        %v576 = vlaneseq
        %v577 = vand.u32 %v576, 127
        %vm578 = vcmp.eq.s32.totalorder %v577, 21
        %v579 = vmul.f32 %v575, %v564
        %580 = vadd.xlane.f32.xlu0 %v579
        %v581 = vpop.xlane.xlu0 %580
        %v582 = vsel %vm578, %v581, %v564
        %v583 = vmul.f32 %v575, %v568
        %584 = vadd.xlane.f32.xlu0 %v583
        %v585 = vpop.xlane.xlu0 %584
        %v586 = vsel %vm578, %v585, %v568
        %v587 = vmul.f32 %v575, %v572
        %588 = vadd.xlane.f32.xlu0 %v587
        %v589 = vpop.xlane.xlu0 %588
        %v590 = vsel %vm578, %v589, %v572
        %s591 = scalar_lea.vmem [#allocation2], 22
        %v592 = vld [vmem:[%s591] ss:$0 sm:$0xff]
        %v593 = vxor.u32 %v592, 2147483648
        %v594 = vlaneseq
        %v595 = vand.u32 %v594, 127
        %vm596 = vcmp.eq.s32.totalorder %v595, 22
        %v597 = vmul.f32 %v593, %v582
        %598 = vadd.xlane.f32.xlu0 %v597
        %v599 = vpop.xlane.xlu0 %598
        %v600 = vsel %vm596, %v599, %v582
        %v601 = vmul.f32 %v593, %v586
        %602 = vadd.xlane.f32.xlu0 %v601
        %v603 = vpop.xlane.xlu0 %602
        %v604 = vsel %vm596, %v603, %v586
        %v605 = vmul.f32 %v593, %v590
        %606 = vadd.xlane.f32.xlu0 %v605
        %v607 = vpop.xlane.xlu0 %606
        %v608 = vsel %vm596, %v607, %v590
        %s609 = scalar_lea.vmem [#allocation2], 23
        %v610 = vld [vmem:[%s609] ss:$0 sm:$0xff]
        %v611 = vxor.u32 %v610, 2147483648
        %v612 = vlaneseq
        %v613 = vand.u32 %v612, 127
        %vm614 = vcmp.eq.s32.totalorder %v613, 23
        %v615 = vmul.f32 %v611, %v600
        %616 = vadd.xlane.f32.xlu0 %v615
        %v617 = vpop.xlane.xlu0 %616
        %v618 = vsel %vm614, %v617, %v600
        %v619 = vmul.f32 %v611, %v604
        %620 = vadd.xlane.f32.xlu0 %v619
        %v621 = vpop.xlane.xlu0 %620
        %v622 = vsel %vm614, %v621, %v604
        %v623 = vmul.f32 %v611, %v608
        %624 = vadd.xlane.f32.xlu0 %v623
        %v625 = vpop.xlane.xlu0 %624
        %v626 = vsel %vm614, %v625, %v608
        %s627 = scalar_lea.vmem [#allocation2], 24
        %v628 = vld [vmem:[%s627] ss:$0 sm:$0xff]
        %v629 = vxor.u32 %v628, 2147483648
        %v630 = vlaneseq
        %v631 = vand.u32 %v630, 127
        %vm632 = vcmp.eq.s32.totalorder %v631, 24
        %v633 = vmul.f32 %v629, %v618
        %634 = vadd.xlane.f32.xlu0 %v633
        %v635 = vpop.xlane.xlu0 %634
        %v636 = vsel %vm632, %v635, %v618
        %v637 = vmul.f32 %v629, %v622
        %638 = vadd.xlane.f32.xlu0 %v637
        %v639 = vpop.xlane.xlu0 %638
        %v640 = vsel %vm632, %v639, %v622
        %v641 = vmul.f32 %v629, %v626
        %642 = vadd.xlane.f32.xlu0 %v641
        %v643 = vpop.xlane.xlu0 %642
        %v644 = vsel %vm632, %v643, %v626
        %v645 = vmul.f32 %v629, %v279
        %646 = vadd.xlane.f32.xlu0 %v645
        %v647 = vpop.xlane.xlu0 %646
        %v648 = vsel %vm632, %v647, %v279
        %s649 = scalar_lea.vmem [#allocation2], 25
        %v650 = vld [vmem:[%s649] ss:$0 sm:$0xff]
        %v651 = vxor.u32 %v650, 2147483648
        %v652 = vlaneseq
        %v653 = vand.u32 %v652, 127
        %vm654 = vcmp.eq.s32.totalorder %v653, 25
        %v655 = vmul.f32 %v651, %v636
        %656 = vadd.xlane.f32.xlu0 %v655
        %v657 = vpop.xlane.xlu0 %656
        %v658 = vsel %vm654, %v657, %v636
        %v659 = vmul.f32 %v651, %v640
        %660 = vadd.xlane.f32.xlu0 %v659
        %v661 = vpop.xlane.xlu0 %660
        %v662 = vsel %vm654, %v661, %v640
        %v663 = vmul.f32 %v651, %v644
        %664 = vadd.xlane.f32.xlu0 %v663
        %v665 = vpop.xlane.xlu0 %664
        %v666 = vsel %vm654, %v665, %v644
        %v667 = vmul.f32 %v651, %v648
        %668 = vadd.xlane.f32.xlu0 %v667
        %v669 = vpop.xlane.xlu0 %668
        %v670 = vsel %vm654, %v669, %v648
        %s671 = scalar_lea.vmem [#allocation2], 26
        %v672 = vld [vmem:[%s671] ss:$0 sm:$0xff]
        %v673 = vxor.u32 %v672, 2147483648
        %v674 = vlaneseq
        %v675 = vand.u32 %v674, 127
        %vm676 = vcmp.eq.s32.totalorder %v675, 26
        %v677 = vmul.f32 %v673, %v658
        %678 = vadd.xlane.f32.xlu0 %v677
        %v679 = vpop.xlane.xlu0 %678
        %v680 = vsel %vm676, %v679, %v658
        %v681 = vmul.f32 %v673, %v662
        %682 = vadd.xlane.f32.xlu0 %v681
        %v683 = vpop.xlane.xlu0 %682
        %v684 = vsel %vm676, %v683, %v662
        %v685 = vmul.f32 %v673, %v666
        %686 = vadd.xlane.f32.xlu0 %v685
        %v687 = vpop.xlane.xlu0 %686
        %v688 = vsel %vm676, %v687, %v666
        %v689 = vmul.f32 %v673, %v670
        %690 = vadd.xlane.f32.xlu0 %v689
        %v691 = vpop.xlane.xlu0 %690
        %v692 = vsel %vm676, %v691, %v670
        %s693 = scalar_lea.vmem [#allocation2], 27
        %v694 = vld [vmem:[%s693] ss:$0 sm:$0xff]
        %v695 = vxor.u32 %v694, 2147483648
        %v696 = vlaneseq
        %v697 = vand.u32 %v696, 127
        %vm698 = vcmp.eq.s32.totalorder %v697, 27
        %v699 = vmul.f32 %v695, %v680
        %700 = vadd.xlane.f32.xlu0 %v699
        %v701 = vpop.xlane.xlu0 %700
        %v702 = vsel %vm698, %v701, %v680
        %v703 = vmul.f32 %v695, %v684
        %704 = vadd.xlane.f32.xlu0 %v703
        %v705 = vpop.xlane.xlu0 %704
        %v706 = vsel %vm698, %v705, %v684
        %v707 = vmul.f32 %v695, %v688
        %708 = vadd.xlane.f32.xlu0 %v707
        %v709 = vpop.xlane.xlu0 %708
        %v710 = vsel %vm698, %v709, %v688
        %v711 = vmul.f32 %v695, %v692
        %712 = vadd.xlane.f32.xlu0 %v711
        %v713 = vpop.xlane.xlu0 %712
        %v714 = vsel %vm698, %v713, %v692
        %s715 = scalar_lea.vmem [#allocation2], 28
        %v716 = vld [vmem:[%s715] ss:$0 sm:$0xff]
        %v717 = vxor.u32 %v716, 2147483648
        %v718 = vlaneseq
        %v719 = vand.u32 %v718, 127
        %vm720 = vcmp.eq.s32.totalorder %v719, 28
        %v721 = vmul.f32 %v717, %v702
        %722 = vadd.xlane.f32.xlu0 %v721
        %v723 = vpop.xlane.xlu0 %722
        %v724 = vsel %vm720, %v723, %v702
        %v725 = vmul.f32 %v717, %v706
        %726 = vadd.xlane.f32.xlu0 %v725
        %v727 = vpop.xlane.xlu0 %726
        %v728 = vsel %vm720, %v727, %v706
        %v729 = vmul.f32 %v717, %v710
        %730 = vadd.xlane.f32.xlu0 %v729
        %v731 = vpop.xlane.xlu0 %730
        %v732 = vsel %vm720, %v731, %v710
        %v733 = vmul.f32 %v717, %v714
        %734 = vadd.xlane.f32.xlu0 %v733
        %v735 = vpop.xlane.xlu0 %734
        %v736 = vsel %vm720, %v735, %v714
        %s737 = scalar_lea.vmem [#allocation2], 29
        %v738 = vld [vmem:[%s737] ss:$0 sm:$0xff]
        %v739 = vxor.u32 %v738, 2147483648
        %v740 = vlaneseq
        %v741 = vand.u32 %v740, 127
        %vm742 = vcmp.eq.s32.totalorder %v741, 29
        %v743 = vmul.f32 %v739, %v724
        %744 = vadd.xlane.f32.xlu0 %v743
        %v745 = vpop.xlane.xlu0 %744
        %v746 = vsel %vm742, %v745, %v724
        %v747 = vmul.f32 %v739, %v728
        %748 = vadd.xlane.f32.xlu0 %v747
        %v749 = vpop.xlane.xlu0 %748
        %v750 = vsel %vm742, %v749, %v728
        %v751 = vmul.f32 %v739, %v732
        %752 = vadd.xlane.f32.xlu0 %v751
        %v753 = vpop.xlane.xlu0 %752
        %v754 = vsel %vm742, %v753, %v732
        %v755 = vmul.f32 %v739, %v736
        %756 = vadd.xlane.f32.xlu0 %v755
        %v757 = vpop.xlane.xlu0 %756
        %v758 = vsel %vm742, %v757, %v736
        %s759 = scalar_lea.vmem [#allocation2], 30
        %v760 = vld [vmem:[%s759] ss:$0 sm:$0xff]
        %v761 = vxor.u32 %v760, 2147483648
        %v762 = vlaneseq
        %v763 = vand.u32 %v762, 127
        %vm764 = vcmp.eq.s32.totalorder %v763, 30
        %v765 = vmul.f32 %v761, %v746
        %766 = vadd.xlane.f32.xlu0 %v765
        %v767 = vpop.xlane.xlu0 %766
        %v768 = vsel %vm764, %v767, %v746
        %v769 = vmul.f32 %v761, %v750
        %770 = vadd.xlane.f32.xlu0 %v769
        %v771 = vpop.xlane.xlu0 %770
        %v772 = vsel %vm764, %v771, %v750
        %v773 = vmul.f32 %v761, %v754
        %774 = vadd.xlane.f32.xlu0 %v773
        %v775 = vpop.xlane.xlu0 %774
        %v776 = vsel %vm764, %v775, %v754
        %v777 = vmul.f32 %v761, %v758
        %778 = vadd.xlane.f32.xlu0 %v777
        %v779 = vpop.xlane.xlu0 %778
        %v780 = vsel %vm764, %v779, %v758
        %s781 = scalar_lea.vmem [#allocation2], 31
        %v782 = vld [vmem:[%s781] ss:$0 sm:$0xff]
        %v783 = vxor.u32 %v782, 2147483648
        %v784 = vlaneseq
        %v785 = vand.u32 %v784, 127
        %vm786 = vcmp.eq.s32.totalorder %v785, 31
        %v787 = vmul.f32 %v783, %v768
        %788 = vadd.xlane.f32.xlu0 %v787
        %v789 = vpop.xlane.xlu0 %788
        %v790 = vsel %vm786, %v789, %v768
        %v791 = vmul.f32 %v783, %v772
        %792 = vadd.xlane.f32.xlu0 %v791
        %v793 = vpop.xlane.xlu0 %792
        %v794 = vsel %vm786, %v793, %v772
        %v795 = vmul.f32 %v783, %v776
        %796 = vadd.xlane.f32.xlu0 %v795
        %v797 = vpop.xlane.xlu0 %796
        %v798 = vsel %vm786, %v797, %v776
        %v799 = vmul.f32 %v783, %v780
        %800 = vadd.xlane.f32.xlu0 %v799
        %v801 = vpop.xlane.xlu0 %800
        %v802 = vsel %vm786, %v801, %v780
        %s803 = scalar_lea.vmem [#allocation2], 32
        %v804 = vld [vmem:[%s803] ss:$0 sm:$0xff]
        %v805 = vxor.u32 %v804, 2147483648
        %v806 = vlaneseq
        %v807 = vand.u32 %v806, 127
        %vm808 = vcmp.eq.s32.totalorder %v807, 32
        %v809 = vmul.f32 %v805, %v790
        %810 = vadd.xlane.f32.xlu0 %v809
        %v811 = vpop.xlane.xlu0 %810
        %v812 = vsel %vm808, %v811, %v790
        %v813 = vmul.f32 %v805, %v794
        %814 = vadd.xlane.f32.xlu0 %v813
        %v815 = vpop.xlane.xlu0 %814
        %v816 = vsel %vm808, %v815, %v794
        %v817 = vmul.f32 %v805, %v798
        %818 = vadd.xlane.f32.xlu0 %v817
        %v819 = vpop.xlane.xlu0 %818
        %v820 = vsel %vm808, %v819, %v798
        %v821 = vmul.f32 %v805, %v802
        %822 = vadd.xlane.f32.xlu0 %v821
        %v823 = vpop.xlane.xlu0 %822
        %v824 = vsel %vm808, %v823, %v802
        %v825 = vmul.f32 %v805, %v286
        %826 = vadd.xlane.f32.xlu0 %v825
        %v827 = vpop.xlane.xlu0 %826
        %v828 = vsel %vm808, %v827, %v286
        %s829 = scalar_lea.vmem [#allocation2], 33
        %v830 = vld [vmem:[%s829] ss:$0 sm:$0xff]
        %v831 = vxor.u32 %v830, 2147483648
        %v832 = vlaneseq
        %v833 = vand.u32 %v832, 127
        %vm834 = vcmp.eq.s32.totalorder %v833, 33
        %v835 = vmul.f32 %v831, %v812
        %836 = vadd.xlane.f32.xlu0 %v835
        %v837 = vpop.xlane.xlu0 %836
        %v838 = vsel %vm834, %v837, %v812
        %v839 = vmul.f32 %v831, %v816
        %840 = vadd.xlane.f32.xlu0 %v839
        %v841 = vpop.xlane.xlu0 %840
        %v842 = vsel %vm834, %v841, %v816
        %v843 = vmul.f32 %v831, %v820
        %844 = vadd.xlane.f32.xlu0 %v843
        %v845 = vpop.xlane.xlu0 %844
        %v846 = vsel %vm834, %v845, %v820
        %v847 = vmul.f32 %v831, %v824
        %848 = vadd.xlane.f32.xlu0 %v847
        %v849 = vpop.xlane.xlu0 %848
        %v850 = vsel %vm834, %v849, %v824
        %v851 = vmul.f32 %v831, %v828
        %852 = vadd.xlane.f32.xlu0 %v851
        %v853 = vpop.xlane.xlu0 %852
        %v854 = vsel %vm834, %v853, %v828
        %s855 = scalar_lea.vmem [#allocation2], 34
        %v856 = vld [vmem:[%s855] ss:$0 sm:$0xff]
        %v857 = vxor.u32 %v856, 2147483648
        %v858 = vlaneseq
        %v859 = vand.u32 %v858, 127
        %vm860 = vcmp.eq.s32.totalorder %v859, 34
        %v861 = vmul.f32 %v857, %v838
        %862 = vadd.xlane.f32.xlu0 %v861
        %v863 = vpop.xlane.xlu0 %862
        %v864 = vsel %vm860, %v863, %v838
        %v865 = vmul.f32 %v857, %v842
        %866 = vadd.xlane.f32.xlu0 %v865
        %v867 = vpop.xlane.xlu0 %866
        %v868 = vsel %vm860, %v867, %v842
        %v869 = vmul.f32 %v857, %v846
        %870 = vadd.xlane.f32.xlu0 %v869
        %v871 = vpop.xlane.xlu0 %870
        %v872 = vsel %vm860, %v871, %v846
        %v873 = vmul.f32 %v857, %v850
        %874 = vadd.xlane.f32.xlu0 %v873
        %v875 = vpop.xlane.xlu0 %874
        %v876 = vsel %vm860, %v875, %v850
        %v877 = vmul.f32 %v857, %v854
        %878 = vadd.xlane.f32.xlu0 %v877
        %v879 = vpop.xlane.xlu0 %878
        %v880 = vsel %vm860, %v879, %v854
        %s881 = scalar_lea.vmem [#allocation2], 35
        %v882 = vld [vmem:[%s881] ss:$0 sm:$0xff]
        %v883 = vxor.u32 %v882, 2147483648
        %v884 = vlaneseq
        %v885 = vand.u32 %v884, 127
        %vm886 = vcmp.eq.s32.totalorder %v885, 35
        %v887 = vmul.f32 %v883, %v864
        %888 = vadd.xlane.f32.xlu0 %v887
        %v889 = vpop.xlane.xlu0 %888
        %v890 = vsel %vm886, %v889, %v864
        %v891 = vmul.f32 %v883, %v868
        %892 = vadd.xlane.f32.xlu0 %v891
        %v893 = vpop.xlane.xlu0 %892
        %v894 = vsel %vm886, %v893, %v868
        %v895 = vmul.f32 %v883, %v872
        %896 = vadd.xlane.f32.xlu0 %v895
        %v897 = vpop.xlane.xlu0 %896
        %v898 = vsel %vm886, %v897, %v872
        %v899 = vmul.f32 %v883, %v876
        %900 = vadd.xlane.f32.xlu0 %v899
        %v901 = vpop.xlane.xlu0 %900
        %v902 = vsel %vm886, %v901, %v876
        %v903 = vmul.f32 %v883, %v880
        %904 = vadd.xlane.f32.xlu0 %v903
        %v905 = vpop.xlane.xlu0 %904
        %v906 = vsel %vm886, %v905, %v880
        %s907 = scalar_lea.vmem [#allocation2], 36
        %v908 = vld [vmem:[%s907] ss:$0 sm:$0xff]
        %v909 = vxor.u32 %v908, 2147483648
        %v910 = vlaneseq
        %v911 = vand.u32 %v910, 127
        %vm912 = vcmp.eq.s32.totalorder %v911, 36
        %v913 = vmul.f32 %v909, %v890
        %914 = vadd.xlane.f32.xlu0 %v913
        %v915 = vpop.xlane.xlu0 %914
        %v916 = vsel %vm912, %v915, %v890
        %v917 = vmul.f32 %v909, %v894
        %918 = vadd.xlane.f32.xlu0 %v917
        %v919 = vpop.xlane.xlu0 %918
        %v920 = vsel %vm912, %v919, %v894
        %v921 = vmul.f32 %v909, %v898
        %922 = vadd.xlane.f32.xlu0 %v921
        %v923 = vpop.xlane.xlu0 %922
        %v924 = vsel %vm912, %v923, %v898
        %v925 = vmul.f32 %v909, %v902
        %926 = vadd.xlane.f32.xlu0 %v925
        %v927 = vpop.xlane.xlu0 %926
        %v928 = vsel %vm912, %v927, %v902
        %v929 = vmul.f32 %v909, %v906
        %930 = vadd.xlane.f32.xlu0 %v929
        %v931 = vpop.xlane.xlu0 %930
        %v932 = vsel %vm912, %v931, %v906
        %s933 = scalar_lea.vmem [#allocation2], 37
        %v934 = vld [vmem:[%s933] ss:$0 sm:$0xff]
        %v935 = vxor.u32 %v934, 2147483648
        %v936 = vlaneseq
        %v937 = vand.u32 %v936, 127
        %vm938 = vcmp.eq.s32.totalorder %v937, 37
        %v939 = vmul.f32 %v935, %v916
        %940 = vadd.xlane.f32.xlu0 %v939
        %v941 = vpop.xlane.xlu0 %940
        %v942 = vsel %vm938, %v941, %v916
        %v943 = vmul.f32 %v935, %v920
        %944 = vadd.xlane.f32.xlu0 %v943
        %v945 = vpop.xlane.xlu0 %944
        %v946 = vsel %vm938, %v945, %v920
        %v947 = vmul.f32 %v935, %v924
        %948 = vadd.xlane.f32.xlu0 %v947
        %v949 = vpop.xlane.xlu0 %948
        %v950 = vsel %vm938, %v949, %v924
        %v951 = vmul.f32 %v935, %v928
        %952 = vadd.xlane.f32.xlu0 %v951
        %v953 = vpop.xlane.xlu0 %952
        %v954 = vsel %vm938, %v953, %v928
        %v955 = vmul.f32 %v935, %v932
        %956 = vadd.xlane.f32.xlu0 %v955
        %v957 = vpop.xlane.xlu0 %956
        %v958 = vsel %vm938, %v957, %v932
        %s959 = scalar_lea.vmem [#allocation2], 38
        %v960 = vld [vmem:[%s959] ss:$0 sm:$0xff]
        %v961 = vxor.u32 %v960, 2147483648
        %v962 = vlaneseq
        %v963 = vand.u32 %v962, 127
        %vm964 = vcmp.eq.s32.totalorder %v963, 38
        %v965 = vmul.f32 %v961, %v942
        %966 = vadd.xlane.f32.xlu0 %v965
        %v967 = vpop.xlane.xlu0 %966
        %v968 = vsel %vm964, %v967, %v942
        %v969 = vmul.f32 %v961, %v946
        %970 = vadd.xlane.f32.xlu0 %v969
        %v971 = vpop.xlane.xlu0 %970
        %v972 = vsel %vm964, %v971, %v946
        %v973 = vmul.f32 %v961, %v950
        %974 = vadd.xlane.f32.xlu0 %v973
        %v975 = vpop.xlane.xlu0 %974
        %v976 = vsel %vm964, %v975, %v950
        %v977 = vmul.f32 %v961, %v954
        %978 = vadd.xlane.f32.xlu0 %v977
        %v979 = vpop.xlane.xlu0 %978
        %v980 = vsel %vm964, %v979, %v954
        %v981 = vmul.f32 %v961, %v958
        %982 = vadd.xlane.f32.xlu0 %v981
        %v983 = vpop.xlane.xlu0 %982
        %v984 = vsel %vm964, %v983, %v958
        %s985 = scalar_lea.vmem [#allocation2], 39
        %v986 = vld [vmem:[%s985] ss:$0 sm:$0xff]
        %v987 = vxor.u32 %v986, 2147483648
        %v988 = vlaneseq
        %v989 = vand.u32 %v988, 127
        %vm990 = vcmp.eq.s32.totalorder %v989, 39
        %v991 = vmul.f32 %v987, %v968
        %992 = vadd.xlane.f32.xlu0 %v991
        %v993 = vpop.xlane.xlu0 %992
        %v994 = vsel %vm990, %v993, %v968
        %v995 = vmul.f32 %v987, %v972
        %996 = vadd.xlane.f32.xlu0 %v995
        %v997 = vpop.xlane.xlu0 %996
        %v998 = vsel %vm990, %v997, %v972
        %v999 = vmul.f32 %v987, %v976
        %1000 = vadd.xlane.f32.xlu0 %v999
        %v1001 = vpop.xlane.xlu0 %1000
        %v1002 = vsel %vm990, %v1001, %v976
        %v1003 = vmul.f32 %v987, %v980
        %1004 = vadd.xlane.f32.xlu0 %v1003
        %v1005 = vpop.xlane.xlu0 %1004
        %v1006 = vsel %vm990, %v1005, %v980
        %v1007 = vmul.f32 %v987, %v984
        %1008 = vadd.xlane.f32.xlu0 %v1007
        %v1009 = vpop.xlane.xlu0 %1008
        %v1010 = vsel %vm990, %v1009, %v984
        %s1011 = scalar_lea.vmem [#allocation2], 40
        %v1012 = vld [vmem:[%s1011] ss:$0 sm:$0xff]
        %v1013 = vxor.u32 %v1012, 2147483648
        %v1014 = vlaneseq
        %v1015 = vand.u32 %v1014, 127
        %vm1016 = vcmp.eq.s32.totalorder %v1015, 40
        %v1017 = vmul.f32 %v1013, %v994
        %1018 = vadd.xlane.f32.xlu0 %v1017
        %v1019 = vpop.xlane.xlu0 %1018
        %v1020 = vsel %vm1016, %v1019, %v994
        %v1021 = vmul.f32 %v1013, %v998
        %1022 = vadd.xlane.f32.xlu0 %v1021
        %v1023 = vpop.xlane.xlu0 %1022
        %v1024 = vsel %vm1016, %v1023, %v998
        %v1025 = vmul.f32 %v1013, %v1002
        %1026 = vadd.xlane.f32.xlu0 %v1025
        %v1027 = vpop.xlane.xlu0 %1026
        %v1028 = vsel %vm1016, %v1027, %v1002
        %v1029 = vmul.f32 %v1013, %v1006
        %1030 = vadd.xlane.f32.xlu0 %v1029
        %v1031 = vpop.xlane.xlu0 %1030
        %v1032 = vsel %vm1016, %v1031, %v1006
        %v1033 = vmul.f32 %v1013, %v1010
        %1034 = vadd.xlane.f32.xlu0 %v1033
        %v1035 = vpop.xlane.xlu0 %1034
        %v1036 = vsel %vm1016, %v1035, %v1010
        %v1037 = vmul.f32 %v1013, %v293
        %1038 = vadd.xlane.f32.xlu0 %v1037
        %v1039 = vpop.xlane.xlu0 %1038
        %v1040 = vsel %vm1016, %v1039, %v293
        %s1041 = scalar_lea.vmem [#allocation2], 41
        %v1042 = vld [vmem:[%s1041] ss:$0 sm:$0xff]
        %v1043 = vxor.u32 %v1042, 2147483648
        %v1044 = vlaneseq
        %v1045 = vand.u32 %v1044, 127
        %vm1046 = vcmp.eq.s32.totalorder %v1045, 41
        %v1047 = vmul.f32 %v1043, %v1020
        %1048 = vadd.xlane.f32.xlu0 %v1047
        %v1049 = vpop.xlane.xlu0 %1048
        %v1050 = vsel %vm1046, %v1049, %v1020
        %v1051 = vmul.f32 %v1043, %v1024
        %1052 = vadd.xlane.f32.xlu0 %v1051
        %v1053 = vpop.xlane.xlu0 %1052
        %v1054 = vsel %vm1046, %v1053, %v1024
        %v1055 = vmul.f32 %v1043, %v1028
        %1056 = vadd.xlane.f32.xlu0 %v1055
        %v1057 = vpop.xlane.xlu0 %1056
        %v1058 = vsel %vm1046, %v1057, %v1028
        %v1059 = vmul.f32 %v1043, %v1032
        %1060 = vadd.xlane.f32.xlu0 %v1059
        %v1061 = vpop.xlane.xlu0 %1060
        %v1062 = vsel %vm1046, %v1061, %v1032
        %v1063 = vmul.f32 %v1043, %v1036
        %1064 = vadd.xlane.f32.xlu0 %v1063
        %v1065 = vpop.xlane.xlu0 %1064
        %v1066 = vsel %vm1046, %v1065, %v1036
        %v1067 = vmul.f32 %v1043, %v1040
        %1068 = vadd.xlane.f32.xlu0 %v1067
        %v1069 = vpop.xlane.xlu0 %1068
        %v1070 = vsel %vm1046, %v1069, %v1040
        %s1071 = scalar_lea.vmem [#allocation2], 42
        %v1072 = vld [vmem:[%s1071] ss:$0 sm:$0xff]
        %v1073 = vxor.u32 %v1072, 2147483648
        %v1074 = vlaneseq
        %v1075 = vand.u32 %v1074, 127
        %vm1076 = vcmp.eq.s32.totalorder %v1075, 42
        %v1077 = vmul.f32 %v1073, %v1050
        %1078 = vadd.xlane.f32.xlu0 %v1077
        %v1079 = vpop.xlane.xlu0 %1078
        %v1080 = vsel %vm1076, %v1079, %v1050
        %v1081 = vmul.f32 %v1073, %v1054
        %1082 = vadd.xlane.f32.xlu0 %v1081
        %v1083 = vpop.xlane.xlu0 %1082
        %v1084 = vsel %vm1076, %v1083, %v1054
        %v1085 = vmul.f32 %v1073, %v1058
        %1086 = vadd.xlane.f32.xlu0 %v1085
        %v1087 = vpop.xlane.xlu0 %1086
        %v1088 = vsel %vm1076, %v1087, %v1058
        %v1089 = vmul.f32 %v1073, %v1062
        %1090 = vadd.xlane.f32.xlu0 %v1089
        %v1091 = vpop.xlane.xlu0 %1090
        %v1092 = vsel %vm1076, %v1091, %v1062
        %v1093 = vmul.f32 %v1073, %v1066
        %1094 = vadd.xlane.f32.xlu0 %v1093
        %v1095 = vpop.xlane.xlu0 %1094
        %v1096 = vsel %vm1076, %v1095, %v1066
        %v1097 = vmul.f32 %v1073, %v1070
        %1098 = vadd.xlane.f32.xlu0 %v1097
        %v1099 = vpop.xlane.xlu0 %1098
        %v1100 = vsel %vm1076, %v1099, %v1070
        %s1101 = scalar_lea.vmem [#allocation2], 43
        %v1102 = vld [vmem:[%s1101] ss:$0 sm:$0xff]
        %v1103 = vxor.u32 %v1102, 2147483648
        %v1104 = vlaneseq
        %v1105 = vand.u32 %v1104, 127
        %vm1106 = vcmp.eq.s32.totalorder %v1105, 43
        %v1107 = vmul.f32 %v1103, %v1080
        %1108 = vadd.xlane.f32.xlu0 %v1107
        %v1109 = vpop.xlane.xlu0 %1108
        %v1110 = vsel %vm1106, %v1109, %v1080
        %v1111 = vmul.f32 %v1103, %v1084
        %1112 = vadd.xlane.f32.xlu0 %v1111
        %v1113 = vpop.xlane.xlu0 %1112
        %v1114 = vsel %vm1106, %v1113, %v1084
        %v1115 = vmul.f32 %v1103, %v1088
        %1116 = vadd.xlane.f32.xlu0 %v1115
        %v1117 = vpop.xlane.xlu0 %1116
        %v1118 = vsel %vm1106, %v1117, %v1088
        %v1119 = vmul.f32 %v1103, %v1092
        %1120 = vadd.xlane.f32.xlu0 %v1119
        %v1121 = vpop.xlane.xlu0 %1120
        %v1122 = vsel %vm1106, %v1121, %v1092
        %v1123 = vmul.f32 %v1103, %v1096
        %1124 = vadd.xlane.f32.xlu0 %v1123
        %v1125 = vpop.xlane.xlu0 %1124
        %v1126 = vsel %vm1106, %v1125, %v1096
        %v1127 = vmul.f32 %v1103, %v1100
        %1128 = vadd.xlane.f32.xlu0 %v1127
        %v1129 = vpop.xlane.xlu0 %1128
        %v1130 = vsel %vm1106, %v1129, %v1100
        %s1131 = scalar_lea.vmem [#allocation2], 44
        %v1132 = vld [vmem:[%s1131] ss:$0 sm:$0xff]
        %v1133 = vxor.u32 %v1132, 2147483648
        %v1134 = vlaneseq
        %v1135 = vand.u32 %v1134, 127
        %vm1136 = vcmp.eq.s32.totalorder %v1135, 44
        %v1137 = vmul.f32 %v1133, %v1110
        %1138 = vadd.xlane.f32.xlu0 %v1137
        %v1139 = vpop.xlane.xlu0 %1138
        %v1140 = vsel %vm1136, %v1139, %v1110
        %v1141 = vmul.f32 %v1133, %v1114
        %1142 = vadd.xlane.f32.xlu0 %v1141
        %v1143 = vpop.xlane.xlu0 %1142
        %v1144 = vsel %vm1136, %v1143, %v1114
        %v1145 = vmul.f32 %v1133, %v1118
        %1146 = vadd.xlane.f32.xlu0 %v1145
        %v1147 = vpop.xlane.xlu0 %1146
        %v1148 = vsel %vm1136, %v1147, %v1118
        %v1149 = vmul.f32 %v1133, %v1122
        %1150 = vadd.xlane.f32.xlu0 %v1149
        %v1151 = vpop.xlane.xlu0 %1150
        %v1152 = vsel %vm1136, %v1151, %v1122
        %v1153 = vmul.f32 %v1133, %v1126
        %1154 = vadd.xlane.f32.xlu0 %v1153
        %v1155 = vpop.xlane.xlu0 %1154
        %v1156 = vsel %vm1136, %v1155, %v1126
        %v1157 = vmul.f32 %v1133, %v1130
        %1158 = vadd.xlane.f32.xlu0 %v1157
        %v1159 = vpop.xlane.xlu0 %1158
        %v1160 = vsel %vm1136, %v1159, %v1130
        %s1161 = scalar_lea.vmem [#allocation2], 45
        %v1162 = vld [vmem:[%s1161] ss:$0 sm:$0xff]
        %v1163 = vxor.u32 %v1162, 2147483648
        %v1164 = vlaneseq
        %v1165 = vand.u32 %v1164, 127
        %vm1166 = vcmp.eq.s32.totalorder %v1165, 45
        %v1167 = vmul.f32 %v1163, %v1140
        %1168 = vadd.xlane.f32.xlu0 %v1167
        %v1169 = vpop.xlane.xlu0 %1168
        %v1170 = vsel %vm1166, %v1169, %v1140
        %v1171 = vmul.f32 %v1163, %v1144
        %1172 = vadd.xlane.f32.xlu0 %v1171
        %v1173 = vpop.xlane.xlu0 %1172
        %v1174 = vsel %vm1166, %v1173, %v1144
        %v1175 = vmul.f32 %v1163, %v1148
        %1176 = vadd.xlane.f32.xlu0 %v1175
        %v1177 = vpop.xlane.xlu0 %1176
        %v1178 = vsel %vm1166, %v1177, %v1148
        %v1179 = vmul.f32 %v1163, %v1152
        %1180 = vadd.xlane.f32.xlu0 %v1179
        %v1181 = vpop.xlane.xlu0 %1180
        %v1182 = vsel %vm1166, %v1181, %v1152
        %v1183 = vmul.f32 %v1163, %v1156
        %1184 = vadd.xlane.f32.xlu0 %v1183
        %v1185 = vpop.xlane.xlu0 %1184
        %v1186 = vsel %vm1166, %v1185, %v1156
        %v1187 = vmul.f32 %v1163, %v1160
        %1188 = vadd.xlane.f32.xlu0 %v1187
        %v1189 = vpop.xlane.xlu0 %1188
        %v1190 = vsel %vm1166, %v1189, %v1160
        %s1191 = scalar_lea.vmem [#allocation2], 46
        %v1192 = vld [vmem:[%s1191] ss:$0 sm:$0xff]
        %v1193 = vxor.u32 %v1192, 2147483648
        %v1194 = vlaneseq
        %v1195 = vand.u32 %v1194, 127
        %vm1196 = vcmp.eq.s32.totalorder %v1195, 46
        %v1197 = vmul.f32 %v1193, %v1170
        %1198 = vadd.xlane.f32.xlu0 %v1197
        %v1199 = vpop.xlane.xlu0 %1198
        %v1200 = vsel %vm1196, %v1199, %v1170
        %v1201 = vmul.f32 %v1193, %v1174
        %1202 = vadd.xlane.f32.xlu0 %v1201
        %v1203 = vpop.xlane.xlu0 %1202
        %v1204 = vsel %vm1196, %v1203, %v1174
        %v1205 = vmul.f32 %v1193, %v1178
        %1206 = vadd.xlane.f32.xlu0 %v1205
        %v1207 = vpop.xlane.xlu0 %1206
        %v1208 = vsel %vm1196, %v1207, %v1178
        %v1209 = vmul.f32 %v1193, %v1182
        %1210 = vadd.xlane.f32.xlu0 %v1209
        %v1211 = vpop.xlane.xlu0 %1210
        %v1212 = vsel %vm1196, %v1211, %v1182
        %v1213 = vmul.f32 %v1193, %v1186
        %1214 = vadd.xlane.f32.xlu0 %v1213
        %v1215 = vpop.xlane.xlu0 %1214
        %v1216 = vsel %vm1196, %v1215, %v1186
        %v1217 = vmul.f32 %v1193, %v1190
        %1218 = vadd.xlane.f32.xlu0 %v1217
        %v1219 = vpop.xlane.xlu0 %1218
        %v1220 = vsel %vm1196, %v1219, %v1190
        %s1221 = scalar_lea.vmem [#allocation2], 47
        %v1222 = vld [vmem:[%s1221] ss:$0 sm:$0xff]
        %v1223 = vxor.u32 %v1222, 2147483648
        %v1224 = vlaneseq
        %v1225 = vand.u32 %v1224, 127
        %vm1226 = vcmp.eq.s32.totalorder %v1225, 47
        %v1227 = vmul.f32 %v1223, %v1200
        %1228 = vadd.xlane.f32.xlu0 %v1227
        %v1229 = vpop.xlane.xlu0 %1228
        %v1230 = vsel %vm1226, %v1229, %v1200
        %v1231 = vmul.f32 %v1223, %v1204
        %1232 = vadd.xlane.f32.xlu0 %v1231
        %v1233 = vpop.xlane.xlu0 %1232
        %v1234 = vsel %vm1226, %v1233, %v1204
        %v1235 = vmul.f32 %v1223, %v1208
        %1236 = vadd.xlane.f32.xlu0 %v1235
        %v1237 = vpop.xlane.xlu0 %1236
        %v1238 = vsel %vm1226, %v1237, %v1208
        %v1239 = vmul.f32 %v1223, %v1212
        %1240 = vadd.xlane.f32.xlu0 %v1239
        %v1241 = vpop.xlane.xlu0 %1240
        %v1242 = vsel %vm1226, %v1241, %v1212
        %v1243 = vmul.f32 %v1223, %v1216
        %1244 = vadd.xlane.f32.xlu0 %v1243
        %v1245 = vpop.xlane.xlu0 %1244
        %v1246 = vsel %vm1226, %v1245, %v1216
        %v1247 = vmul.f32 %v1223, %v1220
        %1248 = vadd.xlane.f32.xlu0 %v1247
        %v1249 = vpop.xlane.xlu0 %1248
        %v1250 = vsel %vm1226, %v1249, %v1220
        %s1251 = scalar_lea.vmem [#allocation2], 48
        %v1252 = vld [vmem:[%s1251] ss:$0 sm:$0xff]
        %v1253 = vxor.u32 %v1252, 2147483648
        %v1254 = vlaneseq
        %v1255 = vand.u32 %v1254, 127
        %vm1256 = vcmp.eq.s32.totalorder %v1255, 48
        %v1257 = vmul.f32 %v1253, %v1230
        %1258 = vadd.xlane.f32.xlu0 %v1257
        %v1259 = vpop.xlane.xlu0 %1258
        %v1260 = vsel %vm1256, %v1259, %v1230
        %v1261 = vmul.f32 %v1253, %v1234
        %1262 = vadd.xlane.f32.xlu0 %v1261
        %v1263 = vpop.xlane.xlu0 %1262
        %v1264 = vsel %vm1256, %v1263, %v1234
        %v1265 = vmul.f32 %v1253, %v1238
        %1266 = vadd.xlane.f32.xlu0 %v1265
        %v1267 = vpop.xlane.xlu0 %1266
        %v1268 = vsel %vm1256, %v1267, %v1238
        %v1269 = vmul.f32 %v1253, %v1242
        %1270 = vadd.xlane.f32.xlu0 %v1269
        %v1271 = vpop.xlane.xlu0 %1270
        %v1272 = vsel %vm1256, %v1271, %v1242
        %v1273 = vmul.f32 %v1253, %v1246
        %1274 = vadd.xlane.f32.xlu0 %v1273
        %v1275 = vpop.xlane.xlu0 %1274
        %v1276 = vsel %vm1256, %v1275, %v1246
        %v1277 = vmul.f32 %v1253, %v1250
        %1278 = vadd.xlane.f32.xlu0 %v1277
        %v1279 = vpop.xlane.xlu0 %1278
        %v1280 = vsel %vm1256, %v1279, %v1250
        %v1281 = vmul.f32 %v1253, %v300
        %1282 = vadd.xlane.f32.xlu0 %v1281
        %v1283 = vpop.xlane.xlu0 %1282
        %v1284 = vsel %vm1256, %v1283, %v300
        %s1285 = scalar_lea.vmem [#allocation2], 49
        %v1286 = vld [vmem:[%s1285] ss:$0 sm:$0xff]
        %v1287 = vxor.u32 %v1286, 2147483648
        %v1288 = vlaneseq
        %v1289 = vand.u32 %v1288, 127
        %vm1290 = vcmp.eq.s32.totalorder %v1289, 49
        %v1291 = vmul.f32 %v1287, %v1260
        %1292 = vadd.xlane.f32.xlu0 %v1291
        %v1293 = vpop.xlane.xlu0 %1292
        %v1294 = vsel %vm1290, %v1293, %v1260
        %v1295 = vmul.f32 %v1287, %v1264
        %1296 = vadd.xlane.f32.xlu0 %v1295
        %v1297 = vpop.xlane.xlu0 %1296
        %v1298 = vsel %vm1290, %v1297, %v1264
        %v1299 = vmul.f32 %v1287, %v1268
        %1300 = vadd.xlane.f32.xlu0 %v1299
        %v1301 = vpop.xlane.xlu0 %1300
        %v1302 = vsel %vm1290, %v1301, %v1268
        %v1303 = vmul.f32 %v1287, %v1272
        %1304 = vadd.xlane.f32.xlu0 %v1303
        %v1305 = vpop.xlane.xlu0 %1304
        %v1306 = vsel %vm1290, %v1305, %v1272
        %v1307 = vmul.f32 %v1287, %v1276
        %1308 = vadd.xlane.f32.xlu0 %v1307
        %v1309 = vpop.xlane.xlu0 %1308
        %v1310 = vsel %vm1290, %v1309, %v1276
        %v1311 = vmul.f32 %v1287, %v1280
        %1312 = vadd.xlane.f32.xlu0 %v1311
        %v1313 = vpop.xlane.xlu0 %1312
        %v1314 = vsel %vm1290, %v1313, %v1280
        %v1315 = vmul.f32 %v1287, %v1284
        %1316 = vadd.xlane.f32.xlu0 %v1315
        %v1317 = vpop.xlane.xlu0 %1316
        %v1318 = vsel %vm1290, %v1317, %v1284
        %v1319 = vrcp.pop %v145
        %v1320 = vmul.f32 %v1294, %v1319
        %vm1321 = vweird.f32 %v145
        %v1322 = vsel %vm1321, %v1294, %v1320
        %1323 = vst [vmem:[%s134] sm:$0xff] %v1322
        %v1324 = vrcp.pop %v161
        %v1325 = vmul.f32 %v1298, %v1324
        %vm1326 = vweird.f32 %v161
        %v1327 = vsel %vm1326, %v1298, %v1325
        %s1328 = scalar_lea.vmem %s134, 8 [#allocation1]
        %1329 = vst [vmem:[%s1328] sm:$0xff] %v1327
        %v1330 = vrcp.pop %v177
        %v1331 = vmul.f32 %v1302, %v1330
        %vm1332 = vweird.f32 %v177
        %v1333 = vsel %vm1332, %v1302, %v1331
        %s1334 = scalar_lea.vmem %s134, 16 [#allocation1]
        %1335 = vst [vmem:[%s1334] sm:$0xff] %v1333
        %v1336 = vrcp.pop %v193
        %v1337 = vmul.f32 %v1306, %v1336
        %vm1338 = vweird.f32 %v193
        %v1339 = vsel %vm1338, %v1306, %v1337
        %s1340 = scalar_lea.vmem %s134, 24 [#allocation1]
        %1341 = vst [vmem:[%s1340] sm:$0xff] %v1339
        %v1342 = vrcp.pop %v209
        %v1343 = vmul.f32 %v1310, %v1342
        %vm1344 = vweird.f32 %v209
        %v1345 = vsel %vm1344, %v1310, %v1343
        %s1346 = scalar_lea.vmem %s134, 32 [#allocation1]
        %1347 = vst [vmem:[%s1346] sm:$0xff] %v1345
        %v1348 = vrcp.pop %v225
        %v1349 = vmul.f32 %v1314, %v1348
        %vm1350 = vweird.f32 %v225
        %v1351 = vsel %vm1350, %v1314, %v1349
        %s1352 = scalar_lea.vmem %s134, 40 [#allocation1]
        %1353 = vst [vmem:[%s1352] sm:$0xff] %v1351
        %v1354 = vrcp.pop %v241
        %v1355 = vmul.f32 %v1318, %v1354
        %vm1356 = vweird.f32 %v241
        %v1357 = vsel %vm1356, %v1318, %v1355
        %s1358 = scalar_lea.vmem %s134, 48 [#allocation1]
        %1359 = vst [vmem:[%s1358] sm:$0xff] %v1357
        %s1360 = sand.u32 %s8, 1
        %s1361 = sand.u32 %s8, 1
        %s1362 = smul.addr %s1361, 56
        %s1363 = scalar_lea.vmem [#allocation1], %s1362
        %s1364 = sadd.s32 %s17, %s16
        %s1365 = smul.addr %s15, 7
        %s1366 = sadd.s32 %s1364, %s1365
        %s1367 = smul.addr %s14, 7
        %s1368 = sadd.s32 %s1366, %s1367
        %s1369 = smul.addr %s1368, 8
        %s1370 = scalar_lea.vmem %s1, %s1369
        // Predicated region
        $region55: #{custom-call.10} parent=53 // pred_check
          _
        $region56: #{custom-call.10} parent=53 // pred_check_branch
          %1372 = sbr.rel (0) target = $region58
        $region57: #{custom-call.10} parent=53 // pred_region
          // Predicated region
          $region59: #{custom-call.10} parent=57 // pred_check
            _
          $region60: #{custom-call.10} parent=57 // pred_check_branch
            %1374 = sbr.rel (0) target = $region62
          $region61: #{custom-call.10} parent=57 // pred_region
            // Predicated region
            $region74: #{custom-call.10} parent=61 // pred_check
              _
            $region75: #{custom-call.10} parent=61 // pred_check_branch
              %1402 = sbr.rel (0) target = $region77
            $region76: #{custom-call.10} parent=61 // pred_region
              loop: start=0, step=1, limit=1
              $region78: #{custom-call.10} parent=76 // loop_pre_header
                _
              $region79: #{custom-call.10} parent=76 // loop_header
                %s1404 = sphi 0, %s1408
                %p1405 = scmp.ge.s32.totalorder %s1404, 1
                %s1409 = sphi %s1363, %s1363
                %s1410 = sphi %s1370, %s1370
              $region80: #{custom-call.10} parent=76 // loop_header_branch
                %1407 = sbr.rel (%p1405) target = $region84
              $region81: #{custom-call.10} parent=76 // loop_body
                %v1411 = vld [vmem:[%s1409] sm:$0xff]
                %1412 = vst [vmem:[%s1410] sm:$0xff] %v1411
                %v1413 = vld [vmem:[%s1409 + $0x8] sm:$0xff]
                %1414 = vst [vmem:[%s1410 + $0x8] sm:$0xff] %v1413
                %v1415 = vld [vmem:[%s1409 + $0x10] sm:$0xff]
                %1416 = vst [vmem:[%s1410 + $0x10] sm:$0xff] %v1415
                %v1417 = vld [vmem:[%s1409 + $0x18] sm:$0xff]
                %1418 = vst [vmem:[%s1410 + $0x18] sm:$0xff] %v1417
                %v1419 = vld [vmem:[%s1409 + $0x20] sm:$0xff]
                %1420 = vst [vmem:[%s1410 + $0x20] sm:$0xff] %v1419
                %v1421 = vld [vmem:[%s1409 + $0x28] sm:$0xff]
                %1422 = vst [vmem:[%s1410 + $0x28] sm:$0xff] %v1421
                %v1423 = vld [vmem:[%s1409 + $0x30] sm:$0xff]
                %1424 = vst [vmem:[%s1410 + $0x30] sm:$0xff] %v1423
              $region82: #{custom-call.10} parent=76 // loop_footer
                %s1408 = sadd.s32 1, %s1404
              $region83: #{custom-call.10} parent=76 // loop_footer_branch
                %1403 = sbr.rel target = $region79
              $region84: #{custom-call.10} parent=76 // loop_exit
                _
            $region77: #{custom-call.10} parent=61 // pred_fallthru
              _
            // Predicated region
            $region85: #{custom-call.10} parent=61 // pred_check
              _
            $region86: #{custom-call.10} parent=61 // pred_check_branch
              %1426 = sbr.rel target = $region88
            $region87: #{custom-call.10} parent=61 // pred_region
              _
            $region88: #{custom-call.10} parent=61 // pred_fallthru
              _
          $region62: #{custom-call.10} parent=57 // pred_fallthru
            _
          // Predicated region
          $region63: #{custom-call.10} parent=57 // pred_check
            _
          $region64: #{custom-call.10} parent=57 // pred_check_branch
            %1376 = sbr.rel target = $region66
          $region65: #{custom-call.10} parent=57 // pred_region
            %s1378 = ssub.s32 256, 1
            loop: start=0, step=1, limit=1
            $region67: #{custom-call.10} parent=65 // loop_pre_header
              _
            $region68: #{custom-call.10} parent=65 // loop_header
              %s1380 = sphi 0, %s1384
              %p1381 = scmp.ge.s32.totalorder %s1380, 1
              %s1385 = sphi %s1363, %s1363
              %s1386 = sphi %s1370, %s1370
            $region69: #{custom-call.10} parent=65 // loop_header_branch
              %1383 = sbr.rel (%p1381) target = $region73
            $region70: #{custom-call.10} parent=65 // loop_body
              %v1387 = vld [vmem:[%s1385] sm:%s1378]
              %1388 = vst [vmem:[%s1386] sm:%s1378] %v1387
              %v1389 = vld [vmem:[%s1385 + $0x8] sm:%s1378]
              %1390 = vst [vmem:[%s1386 + $0x8] sm:%s1378] %v1389
              %v1391 = vld [vmem:[%s1385 + $0x10] sm:%s1378]
              %1392 = vst [vmem:[%s1386 + $0x10] sm:%s1378] %v1391
              %v1393 = vld [vmem:[%s1385 + $0x18] sm:%s1378]
              %1394 = vst [vmem:[%s1386 + $0x18] sm:%s1378] %v1393
              %v1395 = vld [vmem:[%s1385 + $0x20] sm:%s1378]
              %1396 = vst [vmem:[%s1386 + $0x20] sm:%s1378] %v1395
              %v1397 = vld [vmem:[%s1385 + $0x28] sm:%s1378]
              %1398 = vst [vmem:[%s1386 + $0x28] sm:%s1378] %v1397
              %v1399 = vld [vmem:[%s1385 + $0x30] sm:%s1378]
              %1400 = vst [vmem:[%s1386 + $0x30] sm:%s1378] %v1399
            $region71: #{custom-call.10} parent=65 // loop_footer
              %s1384 = sadd.s32 1, %s1380
            $region72: #{custom-call.10} parent=65 // loop_footer_branch
              %1379 = sbr.rel target = $region68
            $region73: #{custom-call.10} parent=65 // loop_exit
              _
          $region66: #{custom-call.10} parent=57 // pred_fallthru
            _
        $region58: #{custom-call.10} parent=53 // pred_fallthru
          _
        %1427 = vnop
      $region54: #{custom-call.10} parent=5 // pred_fallthru
        _
      %p1428 = scmp.le.s32.totalorder 2, %s3
      // Predicated region
      $region89: #{custom-call.10} parent=5 // pred_check
        %p1429 = pneg %p1428
      $region90: #{custom-call.10} parent=5 // pred_check_branch
        %1431 = sbr.rel (%p1429) target = $region92
      $region91: #{custom-call.10} parent=5 // pred_region
        %s1432 = ssub.s32 %s3, 2
        %s1433 = sand.u32 %s9, 1
        %s1434 = sand.u32 %s9, 1
        %s1435 = smul.addr %s1434, 56
        %s1436 = scalar_lea.vmem [#allocation1], %s1435
      $region92: #{custom-call.10} parent=5 // pred_fallthru
        _
    $region6: #{custom-call.10} parent=1 // loop_footer
      %s7 = sadd.s32 1, %s3
    $region7: #{custom-call.10} parent=1 // loop_footer_branch
      %2 = sbr.rel target = $region3
    $region8: #{custom-call.10} parent=1 // loop_exit
      _

// kernel: _lambda_.2
$region0: #{_lambda_.2}
  #allocation0 [shape = 'u32[]', space=smem, size = 0x4, offset = 0x4, fixed_abs, tag = 'smem constant byte address 0x4 - core index']
  #allocation1 [shape = 'u32[144,128]{1,0:T(1,128)}', space=vmem, size = 0x12000, scoped, tag = 'internal scratch']
  %s0 = inlined_call_operand.vmem [shape: f32[2,2,64], index: 0, kind: input, shape index: {}]
  %s1 = inlined_call_operand.hbm [shape: f32[25,1], index: 1, kind: input, shape index: {}]
  %s2 = inlined_call_operand.hbm [shape: f32[25,1], index: 2, kind: input, shape index: {}]
  %s3 = inlined_call_operand.hbm [shape: f32[2,4,64], index: 3, kind: input, shape index: {}]
  %s4 = inlined_call_operand.vmem [shape: f32[2,25,64], index: 4, kind: output, shape index: {0}]
  %s5 = inlined_call_operand.vmem [shape: f32[2,25,64], index: 5, kind: output, shape index: {1}]
  %s6 = inlined_call_operand.vmem [shape: f32[2,25,25], index: 6, kind: output, shape index: {2}]
  %s7 = inlined_call_operand.vmem [shape: f32[2,25,25], index: 7, kind: output, shape index: {3}]
  %s8 = inlined_call_operand.vmem [shape: f32[2,25,4], index: 8, kind: output, shape index: {4}]
  %s9 = inlined_call_operand.vmem [shape: f32[2,25,4], index: 9, kind: output, shape index: {5}]
  %10 = xla_tuple %s4, %s5, %s6, %s7, %s8, %s9
  %s11 = sld [smem:[#allocation0]]
  $region101: #{_lambda_.2} parent=0
    _
  %s13 = ssub.s32 1, %s11
  %s14 = scalar_select 0, %s13, %s11
  $region1: #{_lambda_.2} parent=0
    #allocation2 [shape = 'u8[16384]{0}', space=vmem, size = 0x4000, scoped, tag = 'input window, operand 1, single buffered']
    #allocation3 [shape = 's32[2]{0}', space=sflag, size = 0x8, scoped, tag = 'scoped memory for _lambda_.2']
    #allocation4 [shape = 'u8[16384]{0}', space=vmem, size = 0x4000, scoped, tag = 'input window, operand 2, single buffered']
    #allocation5 [shape = 's32[1]{0}', space=sflag, size = 0x4, scoped, tag = 'scoped memory for _lambda_.2']
    #allocation6 [shape = 'u8[4096]{0}', space=vmem, size = 0x1000, scoped, tag = 'input window, operand 3']
    %15 = vsyncpa [#allocation3], 0
    %16 = vsyncpa [#allocation5], 0
    loop: start=0, step=1, limit=4
    $region2: #{_lambda_.2} parent=1 // loop_pre_header
      _
    $region3: #{_lambda_.2} parent=1 // loop_header
      %s18 = sphi 0, %s22
      %p19 = scmp.ge.s32.totalorder %s18, 4
      %s28 = sphi 0, %s30
      %s31 = sphi 0, %s28
      %s32 = sphi 0, %s31
      %s48 = sphi 0, %s32
      %s52 = sphi 0, %s52
      %s54 = sphi 0, %s52
      %s55 = sphi 0, %s54
      %s69 = sphi 0, %s55
      %s73 = sphi 0, %s73
      %s75 = sphi 0, %s73
      %s76 = sphi 0, %s75
      %s90 = sphi 0, %s76
      %s96 = sphi 0, %s98
      %s99 = sphi 0, %s96
      %s100 = sphi 0, %s99
      %s116 = sphi 0, %s100
      %s122 = sphi 0, %s124
      %s125 = sphi 0, %s122
      %s126 = sphi 0, %s125
      %s142 = sphi 0, %s126
      %s148 = sphi 0, %s150
      %s151 = sphi 0, %s148
      %s152 = sphi 0, %s151
      %s168 = sphi 0, %s152
      %s174 = sphi 0, %s176
      %s177 = sphi 0, %s174
      %s178 = sphi 0, %s177
      %s194 = sphi 0, %s178
      %s200 = sphi 0, %s202
      %s203 = sphi 0, %s200
      %s204 = sphi 0, %s203
      %s220 = sphi 0, %s204
      %s226 = sphi 0, %s228
      %s229 = sphi 0, %s226
      %s230 = sphi 0, %s229
      %s246 = sphi 0, %s230
      %s252 = sphi 0, %s254
      %s255 = sphi 0, %s252
      %s256 = sphi 0, %s255
      %s272 = sphi 0, %s256
    $region4: #{_lambda_.2} parent=1 // loop_header_branch
      %21 = sbr.rel (%p19) target = $region8
    $region5: #{_lambda_.2} parent=1 // loop_body
      %s23 = ssub.s32 %s18, 1
      %s24 = ssub.s32 %s18, 2
      %s25 = sadd.s32 %s18, 1
      %s26 = ssub.s32 %s18, %s25
      %p27 = scmp.eq.s32.totalorder %s26, 0
      %s29 = sadd.s32 %s28, 1
      %s30 = scalar_select %p27, %s28, %s29
      %p33 = pneg %p27
      %p34 = scmp.eq.s32.totalorder %s18, 1
      %p35 = por %p33, %p34
      %p36 = scmp.ne.s32.totalorder %s28, %s31
      %p37 = scmp.eq.s32.totalorder %s18, 0
      %p38 = por %p36, %p37
      %p39 = scmp.ne.s32.totalorder %s28, %s31
      %p40 = scmp.eq.s32.totalorder %s23, 1
      %p41 = por %p39, %p40
      %p42 = scmp.ne.s32.totalorder %s31, %s32
      %p43 = scmp.eq.s32.totalorder %s23, 0
      %p44 = por %p42, %p43
      %p45 = scmp.ne.s32.totalorder %s31, %s32
      %p46 = scmp.eq.s32.totalorder %s24, 1
      %p47 = por %p45, %p46
      %p49 = scmp.ne.s32.totalorder %s32, %s48
      %p50 = scmp.eq.s32.totalorder %s24, 0
      %p51 = por %p49, %p50
      %s53 = sadd.s32 %s52, 1
      %p56 = scmp.eq.s32.totalorder %s18, 1
      %p57 = scmp.ne.s32.totalorder %s52, %s54
      %p58 = scmp.eq.s32.totalorder %s18, 0
      %p59 = por %p57, %p58
      %p60 = scmp.ne.s32.totalorder %s52, %s54
      %p61 = scmp.eq.s32.totalorder %s23, 1
      %p62 = por %p60, %p61
      %p63 = scmp.ne.s32.totalorder %s54, %s55
      %p64 = scmp.eq.s32.totalorder %s23, 0
      %p65 = por %p63, %p64
      %p66 = scmp.ne.s32.totalorder %s54, %s55
      %p67 = scmp.eq.s32.totalorder %s24, 1
      %p68 = por %p66, %p67
      %p70 = scmp.ne.s32.totalorder %s55, %s69
      %p71 = scmp.eq.s32.totalorder %s24, 0
      %p72 = por %p70, %p71
      %s74 = sadd.s32 %s73, 1
      %p77 = scmp.eq.s32.totalorder %s18, 1
      %p78 = scmp.ne.s32.totalorder %s73, %s75
      %p79 = scmp.eq.s32.totalorder %s18, 0
      %p80 = por %p78, %p79
      %p81 = scmp.ne.s32.totalorder %s73, %s75
      %p82 = scmp.eq.s32.totalorder %s23, 1
      %p83 = por %p81, %p82
      %p84 = scmp.ne.s32.totalorder %s75, %s76
      %p85 = scmp.eq.s32.totalorder %s23, 0
      %p86 = por %p84, %p85
      %p87 = scmp.ne.s32.totalorder %s75, %s76
      %p88 = scmp.eq.s32.totalorder %s24, 1
      %p89 = por %p87, %p88
      %p91 = scmp.ne.s32.totalorder %s76, %s90
      %p92 = scmp.eq.s32.totalorder %s24, 0
      %p93 = por %p91, %p92
      %s94 = ssub.s32 %s18, %s25
      %p95 = scmp.eq.s32.totalorder %s94, 0
      %s97 = sadd.s32 %s96, 1
      %s98 = scalar_select %p95, %s96, %s97
      %p101 = pneg %p95
      %p102 = scmp.eq.s32.totalorder %s18, 1
      %p103 = por %p101, %p102
      %p104 = scmp.ne.s32.totalorder %s96, %s99
      %p105 = scmp.eq.s32.totalorder %s18, 0
      %p106 = por %p104, %p105
      %p107 = scmp.ne.s32.totalorder %s96, %s99
      %p108 = scmp.eq.s32.totalorder %s23, 1
      %p109 = por %p107, %p108
      %p110 = scmp.ne.s32.totalorder %s99, %s100
      %p111 = scmp.eq.s32.totalorder %s23, 0
      %p112 = por %p110, %p111
      %p113 = scmp.ne.s32.totalorder %s99, %s100
      %p114 = scmp.eq.s32.totalorder %s24, 1
      %p115 = por %p113, %p114
      %p117 = scmp.ne.s32.totalorder %s100, %s116
      %p118 = scmp.eq.s32.totalorder %s24, 0
      %p119 = por %p117, %p118
      %s120 = ssub.s32 %s18, %s25
      %p121 = scmp.eq.s32.totalorder %s120, 0
      %s123 = sadd.s32 %s122, 1
      %s124 = scalar_select %p121, %s122, %s123
      %p127 = pneg %p121
      %p128 = scmp.eq.s32.totalorder %s18, 1
      %p129 = por %p127, %p128
      %p130 = scmp.ne.s32.totalorder %s122, %s125
      %p131 = scmp.eq.s32.totalorder %s18, 0
      %p132 = por %p130, %p131
      %p133 = scmp.ne.s32.totalorder %s122, %s125
      %p134 = scmp.eq.s32.totalorder %s23, 1
      %p135 = por %p133, %p134
      %p136 = scmp.ne.s32.totalorder %s125, %s126
      %p137 = scmp.eq.s32.totalorder %s23, 0
      %p138 = por %p136, %p137
      %p139 = scmp.ne.s32.totalorder %s125, %s126
      %p140 = scmp.eq.s32.totalorder %s24, 1
      %p141 = por %p139, %p140
      %p143 = scmp.ne.s32.totalorder %s126, %s142
      %p144 = scmp.eq.s32.totalorder %s24, 0
      %p145 = por %p143, %p144
      %s146 = ssub.s32 %s18, %s25
      %p147 = scmp.eq.s32.totalorder %s146, 0
      %s149 = sadd.s32 %s148, 1
      %s150 = scalar_select %p147, %s148, %s149
      %p153 = pneg %p147
      %p154 = scmp.eq.s32.totalorder %s18, 1
      %p155 = por %p153, %p154
      %p156 = scmp.ne.s32.totalorder %s148, %s151
      %p157 = scmp.eq.s32.totalorder %s18, 0
      %p158 = por %p156, %p157
      %p159 = scmp.ne.s32.totalorder %s148, %s151
      %p160 = scmp.eq.s32.totalorder %s23, 1
      %p161 = por %p159, %p160
      %p162 = scmp.ne.s32.totalorder %s151, %s152
      %p163 = scmp.eq.s32.totalorder %s23, 0
      %p164 = por %p162, %p163
      %p165 = scmp.ne.s32.totalorder %s151, %s152
      %p166 = scmp.eq.s32.totalorder %s24, 1
      %p167 = por %p165, %p166
      %p169 = scmp.ne.s32.totalorder %s152, %s168
      %p170 = scmp.eq.s32.totalorder %s24, 0
      %p171 = por %p169, %p170
      %s172 = ssub.s32 %s18, %s25
      %p173 = scmp.eq.s32.totalorder %s172, 0
      %s175 = sadd.s32 %s174, 1
      %s176 = scalar_select %p173, %s174, %s175
      %p179 = pneg %p173
      %p180 = scmp.eq.s32.totalorder %s18, 1
      %p181 = por %p179, %p180
      %p182 = scmp.ne.s32.totalorder %s174, %s177
      %p183 = scmp.eq.s32.totalorder %s18, 0
      %p184 = por %p182, %p183
      %p185 = scmp.ne.s32.totalorder %s174, %s177
      %p186 = scmp.eq.s32.totalorder %s23, 1
      %p187 = por %p185, %p186
      %p188 = scmp.ne.s32.totalorder %s177, %s178
      %p189 = scmp.eq.s32.totalorder %s23, 0
      %p190 = por %p188, %p189
      %p191 = scmp.ne.s32.totalorder %s177, %s178
      %p192 = scmp.eq.s32.totalorder %s24, 1
      %p193 = por %p191, %p192
      %p195 = scmp.ne.s32.totalorder %s178, %s194
      %p196 = scmp.eq.s32.totalorder %s24, 0
      %p197 = por %p195, %p196
      %s198 = ssub.s32 %s18, %s25
      %p199 = scmp.eq.s32.totalorder %s198, 0
      %s201 = sadd.s32 %s200, 1
      %s202 = scalar_select %p199, %s200, %s201
      %p205 = pneg %p199
      %p206 = scmp.eq.s32.totalorder %s18, 1
      %p207 = por %p205, %p206
      %p208 = scmp.ne.s32.totalorder %s200, %s203
      %p209 = scmp.eq.s32.totalorder %s18, 0
      %p210 = por %p208, %p209
      %p211 = scmp.ne.s32.totalorder %s200, %s203
      %p212 = scmp.eq.s32.totalorder %s23, 1
      %p213 = por %p211, %p212
      %p214 = scmp.ne.s32.totalorder %s203, %s204
      %p215 = scmp.eq.s32.totalorder %s23, 0
      %p216 = por %p214, %p215
      %p217 = scmp.ne.s32.totalorder %s203, %s204
      %p218 = scmp.eq.s32.totalorder %s24, 1
      %p219 = por %p217, %p218
      %p221 = scmp.ne.s32.totalorder %s204, %s220
      %p222 = scmp.eq.s32.totalorder %s24, 0
      %p223 = por %p221, %p222
      %s224 = ssub.s32 %s18, %s25
      %p225 = scmp.eq.s32.totalorder %s224, 0
      %s227 = sadd.s32 %s226, 1
      %s228 = scalar_select %p225, %s226, %s227
      %p231 = pneg %p225
      %p232 = scmp.eq.s32.totalorder %s18, 1
      %p233 = por %p231, %p232
      %p234 = scmp.ne.s32.totalorder %s226, %s229
      %p235 = scmp.eq.s32.totalorder %s18, 0
      %p236 = por %p234, %p235
      %p237 = scmp.ne.s32.totalorder %s226, %s229
      %p238 = scmp.eq.s32.totalorder %s23, 1
      %p239 = por %p237, %p238
      %p240 = scmp.ne.s32.totalorder %s229, %s230
      %p241 = scmp.eq.s32.totalorder %s23, 0
      %p242 = por %p240, %p241
      %p243 = scmp.ne.s32.totalorder %s229, %s230
      %p244 = scmp.eq.s32.totalorder %s24, 1
      %p245 = por %p243, %p244
      %p247 = scmp.ne.s32.totalorder %s230, %s246
      %p248 = scmp.eq.s32.totalorder %s24, 0
      %p249 = por %p247, %p248
      %s250 = ssub.s32 %s18, %s25
      %p251 = scmp.eq.s32.totalorder %s250, 0
      %s253 = sadd.s32 %s252, 1
      %s254 = scalar_select %p251, %s252, %s253
      %p257 = pneg %p251
      %p258 = scmp.eq.s32.totalorder %s18, 1
      %p259 = por %p257, %p258
      %p260 = scmp.ne.s32.totalorder %s252, %s255
      %p261 = scmp.eq.s32.totalorder %s18, 0
      %p262 = por %p260, %p261
      %p263 = scmp.ne.s32.totalorder %s252, %s255
      %p264 = scmp.eq.s32.totalorder %s23, 1
      %p265 = por %p263, %p264
      %p266 = scmp.ne.s32.totalorder %s255, %s256
      %p267 = scmp.eq.s32.totalorder %s23, 0
      %p268 = por %p266, %p267
      %p269 = scmp.ne.s32.totalorder %s255, %s256
      %p270 = scmp.eq.s32.totalorder %s24, 1
      %p271 = por %p269, %p270
      %p273 = scmp.ne.s32.totalorder %s256, %s272
      %p274 = scmp.eq.s32.totalorder %s24, 0
      %p275 = por %p273, %p274
      %p276 = scmp.le.s32.totalorder 1, %s18
      %p277 = scmp.lt.s32.totalorder %s18, 3
      %p278 = pnand %p276, %p277
      %p279 = pneg %p278
      // Predicated region
      $region9: #{_lambda_.2} parent=5 // pred_check
        _
      $region10: #{_lambda_.2} parent=5 // pred_check_branch
        %281 = sbr.rel (%p278) target = $region12
      $region11: #{_lambda_.2} parent=5 // pred_region
        %s282 = ssub.s32 %s18, 1
        // Predicated region
        $region13: #{_lambda_.2} parent=11 // pred_check
          %p283 = pneg %p65
        $region14: #{_lambda_.2} parent=11 // pred_check_branch
          %285 = sbr.rel (%p283) target = $region16
        $region15: #{_lambda_.2} parent=11 // pred_region
          %s287 = ssub.s32 512, 512
          %288 = vsyncadd [#allocation3], %s287
          %s289 = sshll.u32 [#allocation2], 4
          %s290 = int_to_ptr.vmem [resolvable:$true] %s289
          %295 = dma.hbm_to_vmem [thread:$0]  %s1, 512, %s290, [#allocation3], 128, 128, 8
        $region16: #{_lambda_.2} parent=11 // pred_fallthru
          _
        // Predicated region
        $region17: #{_lambda_.2} parent=11 // pred_check
          %p296 = pneg %p86
        $region18: #{_lambda_.2} parent=11 // pred_check_branch
          %298 = sbr.rel (%p296) target = $region20
        $region19: #{_lambda_.2} parent=11 // pred_region
          %s300 = ssub.s32 512, 512
          %301 = vsyncadd [#allocation5], %s300
          %s302 = sshll.u32 [#allocation4], 4
          %s303 = int_to_ptr.vmem [resolvable:$true] %s302
          %308 = dma.hbm_to_vmem [thread:$0]  %s2, 512, %s303, [#allocation5], 128, 128, 8
        $region20: #{_lambda_.2} parent=11 // pred_fallthru
          _
      $region12: #{_lambda_.2} parent=5 // pred_fallthru
        _
      %p309 = scmp.lt.s32.totalorder %s18, 2
      // Predicated region
      $region21: #{_lambda_.2} parent=5 // pred_check
        %p310 = pneg %p309
      $region22: #{_lambda_.2} parent=5 // pred_check_branch
        %312 = sbr.rel (%p310) target = $region24
      $region23: #{_lambda_.2} parent=5 // pred_region
        // Predicated region
        $region25: #{_lambda_.2} parent=23 // pred_check
          %p313 = pneg %p38
        $region26: #{_lambda_.2} parent=23 // pred_check_branch
          %315 = sbr.rel (%p313) target = $region28
        $region27: #{_lambda_.2} parent=23 // pred_region
          %p316 = scmp.lt.s32.totalorder %s18, 1
          %s317 = scalar_select %p316, %s18, 1
          %s318 = smul.addr %s317, 2
          %s319 = scalar_lea.vmem %s0, %s318
        $region28: #{_lambda_.2} parent=23 // pred_fallthru
          _
        // Predicated region
        $region29: #{_lambda_.2} parent=23 // pred_check
          %p320 = pneg %p106
        $region30: #{_lambda_.2} parent=23 // pred_check_branch
          %322 = sbr.rel (%p320) target = $region32
        $region31: #{_lambda_.2} parent=23 // pred_region
          %s323 = sand.u32 %s18, 1
          %s324 = scalar_lea.sflag [#allocation3], %s323
          %s325 = sand.u32 %s96, 1
          %s326 = smul.addr %s325, 4
          %s327 = scalar_lea.vmem [#allocation6], %s326
          %s329 = ssub.s32 64, 64
          %330 = vsyncadd %s324, %s329
          %s331 = smul.addr %s18, 64
          %s332 = scalar_lea.hbm %s3, %s331
          %s334 = sshll.u32 %s327, 4
          %s335 = int_to_ptr.vmem [resolvable:$true] %s334
          %337 = dma.hbm_to_vmem [thread:$0]  %s332, 64, %s335, %s324
        $region32: #{_lambda_.2} parent=23 // pred_fallthru
          _
      $region24: #{_lambda_.2} parent=5 // pred_fallthru
        _
      %p338 = scmp.le.s32.totalorder 1, %s18
      %p339 = scmp.lt.s32.totalorder %s18, 3
      %p340 = pnand %p338, %p339
      %p341 = pneg %p340
      // Predicated region
      $region33: #{_lambda_.2} parent=5 // pred_check
        _
      $region34: #{_lambda_.2} parent=5 // pred_check_branch
        %343 = sbr.rel (%p340) target = $region36
      $region35: #{_lambda_.2} parent=5 // pred_region
        %s344 = ssub.s32 %s18, 1
        // Predicated region
        $region37: #{_lambda_.2} parent=35 // pred_check
          %p345 = pneg %p65
        $region38: #{_lambda_.2} parent=35 // pred_check_branch
          %347 = sbr.rel (%p345) target = $region40
        $region39: #{_lambda_.2} parent=35 // pred_region
          %348 = dma.done [#allocation3], 512
        $region40: #{_lambda_.2} parent=35 // pred_fallthru
          _
        // Predicated region
        $region41: #{_lambda_.2} parent=35 // pred_check
          %p349 = pneg %p86
        $region42: #{_lambda_.2} parent=35 // pred_check_branch
          %351 = sbr.rel (%p349) target = $region44
        $region43: #{_lambda_.2} parent=35 // pred_region
          %352 = dma.done [#allocation5], 512
        $region44: #{_lambda_.2} parent=35 // pred_fallthru
          _
        %s353 = sand.u32 %s23, 1
        %s354 = scalar_lea.sflag [#allocation3], %s353
        %s355 = sand.u32 %s99, 1
        %s356 = smul.addr %s355, 4
        %s357 = scalar_lea.vmem [#allocation6], %s356
        // Predicated region
        $region45: #{_lambda_.2} parent=35 // pred_check
          %p358 = pneg %p112
        $region46: #{_lambda_.2} parent=35 // pred_check_branch
          %360 = sbr.rel (%p358) target = $region48
        $region47: #{_lambda_.2} parent=35 // pred_region
          %361 = dma.done %s354, 64
        $region48: #{_lambda_.2} parent=35 // pred_fallthru
          _
        %p362 = scmp.lt.s32.totalorder %s23, 1
        %s363 = scalar_select %p362, %s23, 1
        %s364 = smul.addr %s363, 2
        %s365 = scalar_lea.vmem %s0, %s364
        %p366 = pneg %p44
        %p367 = pneg %p41
        %p368 = pneg %p65
        %p369 = pneg %p62
        %p370 = pneg %p86
        %p371 = pneg %p83
        %s372 = sand.u32 %s23, 1
        %s373 = scalar_lea.sflag [#allocation3], %s372
        %s374 = sand.u32 %s99, 1
        %s375 = smul.addr %s374, 4
        %s376 = scalar_lea.vmem [#allocation6], %s375
        %p377 = pneg %p112
        %p378 = pneg %p109
        %p379 = pneg %p138
        %p380 = pneg %p135
        %p381 = scmp.lt.s32.totalorder %s23, 1
        %s382 = scalar_select %p381, %s23, 1
        %s383 = smul.addr %s382, 4
        %s384 = smul.addr %s383, 8
        %s385 = scalar_lea.vmem %s4, %s384
        %p386 = pneg %p164
        %p387 = pneg %p161
        %p388 = scmp.lt.s32.totalorder %s23, 1
        %s389 = scalar_select %p388, %s23, 1
        %s390 = smul.addr %s389, 4
        %s391 = smul.addr %s390, 8
        %s392 = scalar_lea.vmem %s5, %s391
        %p393 = pneg %p190
        %p394 = pneg %p187
        %p395 = scmp.lt.s32.totalorder %s23, 1
        %s396 = scalar_select %p395, %s23, 1
        %s397 = smul.addr %s396, 4
        %s398 = smul.addr %s397, 8
        %s399 = scalar_lea.vmem %s6, %s398
        %p400 = pneg %p216
        %p401 = pneg %p213
        %p402 = scmp.lt.s32.totalorder %s23, 1
        %s403 = scalar_select %p402, %s23, 1
        %s404 = smul.addr %s403, 4
        %s405 = smul.addr %s404, 8
        %s406 = scalar_lea.vmem %s7, %s405
        %p407 = pneg %p242
        %p408 = pneg %p239
        %p409 = scmp.lt.s32.totalorder %s23, 1
        %s410 = scalar_select %p409, %s23, 1
        %s411 = smul.addr %s410, 4
        %s412 = smul.addr %s411, 8
        %s413 = scalar_lea.vmem %s8, %s412
        %p414 = pneg %p268
        %p415 = pneg %p265
        %p416 = scmp.lt.s32.totalorder %s23, 1
        %s417 = scalar_select %p416, %s23, 1
        %s418 = smul.addr %s417, 4
        %s419 = smul.addr %s418, 8
        %s420 = scalar_lea.vmem %s9, %s419
        %p421 = scmp.lt.s32.totalorder %s23, 1
        %s422 = scalar_select %p421, %s23, 1
        %s423 = smul.addr %s422, 2
        %s424 = scalar_lea.vmem %s0, %s423
        %p425 = scmp.lt.s32.totalorder %s23, 1
        %s426 = scalar_select %p425, %s23, 1
        %s427 = smul.addr %s426, 4
        %s428 = smul.addr %s427, 8
        %s429 = scalar_lea.vmem %s4, %s428
        %p430 = scmp.lt.s32.totalorder %s23, 1
        %s431 = scalar_select %p430, %s23, 1
        %s432 = smul.addr %s431, 4
        %s433 = smul.addr %s432, 8
        %s434 = scalar_lea.vmem %s5, %s433
        %p435 = scmp.lt.s32.totalorder %s23, 1
        %s436 = scalar_select %p435, %s23, 1
        %s437 = smul.addr %s436, 4
        %s438 = smul.addr %s437, 8
        %s439 = scalar_lea.vmem %s6, %s438
        %p440 = scmp.lt.s32.totalorder %s23, 1
        %s441 = scalar_select %p440, %s23, 1
        %s442 = smul.addr %s441, 4
        %s443 = smul.addr %s442, 8
        %s444 = scalar_lea.vmem %s7, %s443
        %p445 = scmp.lt.s32.totalorder %s23, 1
        %s446 = scalar_select %p445, %s23, 1
        %s447 = smul.addr %s446, 4
        %s448 = smul.addr %s447, 8
        %s449 = scalar_lea.vmem %s8, %s448
        %p450 = scmp.lt.s32.totalorder %s23, 1
        %s451 = scalar_select %p450, %s23, 1
        %s452 = smul.addr %s451, 4
        %s453 = smul.addr %s452, 8
        %s454 = scalar_lea.vmem %s9, %s453
        %v455 = vld [vmem:[%s424] sm:$0x3]
        %v456 = vsub.f32 %v455, 0.5
        %v457 = vmul.f32 %v456, 6.2831855
        %v458 = vld [vmem:[#allocation2] sm:$0xff]
        %v459 = vld [vmem:[#allocation2 + $0x8] sm:$0xff]
        %v460 = vld [vmem:[#allocation2 + $0x10] sm:$0xff]
        %v461 = vld [vmem:[#allocation2 + $0x18] sm:$0x1]
        %463 = vset.pattern.permute.xlu0 0
        %464 = vperm.xlu0 %463, %v458
        %v465 = vpop.permute.xlu0 %464
        %468 = vset.pattern.permute.xlu0 0
        %469 = vperm.xlu0 %468, %v459
        %v470 = vpop.permute.xlu0 %469
        %473 = vset.pattern.permute.xlu0 0
        %474 = vperm.xlu0 %473, %v460
        %v475 = vpop.permute.xlu0 %474
        %478 = vset.pattern.permute.xlu0 0
        %479 = vperm.xlu0 %478, %v461
        %v480 = vpop.permute.xlu0 %479
        %v482 = vlaneseq
        %v483 = vshrl.u32 %v482, 7
        %v484 = vsub.s32 0, %v483
        %v485 = vrot.slane %v457, %v484
        %v486 = vmul.f32 %v465, %v485
        %v487 = vmul.f32 %v470, %v485
        %v488 = vmul.f32 %v475, %v485
        %v489 = vmul.f32 %v480, %v485
        %v490 = vld [vmem:[#allocation4] sm:$0xff]
        %v491 = vld [vmem:[#allocation4 + $0x8] sm:$0xff]
        %v492 = vld [vmem:[#allocation4 + $0x10] sm:$0xff]
        %v493 = vld [vmem:[#allocation4 + $0x18] sm:$0x1]
        %495 = vset.pattern.permute.xlu0 0
        %496 = vperm.xlu0 %495, %v490
        %v497 = vpop.permute.xlu0 %496
        %500 = vset.pattern.permute.xlu0 0
        %501 = vperm.xlu0 %500, %v491
        %v502 = vpop.permute.xlu0 %501
        %505 = vset.pattern.permute.xlu0 0
        %506 = vperm.xlu0 %505, %v492
        %v507 = vpop.permute.xlu0 %506
        %510 = vset.pattern.permute.xlu0 0
        %511 = vperm.xlu0 %510, %v493
        %v512 = vpop.permute.xlu0 %511
        %v514 = vlaneseq
        %v515 = vshrl.u32 %v514, 7
        %v516 = vsub.s32 1, %v515
        %v517 = vrot.slane %v457, %v516
        %v518 = vmul.f32 %v497, %v517
        %v519 = vmul.f32 %v502, %v517
        %v520 = vmul.f32 %v507, %v517
        %v521 = vmul.f32 %v512, %v517
        %v522 = vadd.f32 %v486, %v518
        %v523 = vadd.f32 %v487, %v519
        %v524 = vadd.f32 %v488, %v520
        %v525 = vadd.f32 %v489, %v521
        %v526 = vand.u32 2147483647, %v522
        %vm527 = vcmp.le.f32.partialorder %v526, 0.7853982
        %vm528 = vcmp.lt.s32.totalorder %v522, 0
        %v529 = vand.u32 %v522, 2139095040
        %v530 = vshrl.u32 %v529, 23
        %v531 = vsub.s32 %v530, 127
        %v532 = vand.u32 2147483647, %v522
        %v533 = vand.u32 %v532, 8388607
        %v534 = vor.u32 %v533, 8388608
        %v535 = vsub.s32 0, %v534
        %v536 = vadd.s32 %v531, 1
        %vm537 = vcmp.gt.s32.totalorder %v536, 0
        %v538 = vsel %vm537, %v536, 0
        %v539 = vshrl.u32 %v538, 5
        %v540 = vand.u32 %v538, 31
        %v541 = vsub.s32 32, %v540
        %v542 = vshrl.u32 683565275, %v541
        %v543 = vshll.u32 683565275, %v540
        %v544 = vshrl.u32 2475754826, %v541
        %v545 = vor.u32 %v543, %v544
        %v546 = vshll.u32 2475754826, %v540
        %v547 = vshrl.u32 2131351028, %v541
        %v548 = vor.u32 %v546, %v547
        %v549 = vshll.u32 2131351028, %v540
        %v550 = vshrl.u32 2102212464, %v541
        %v551 = vor.u32 %v549, %v550
        %v552 = vshll.u32 2102212464, %v540
        %v553 = vshrl.u32 920167782, %v541
        %v554 = vor.u32 %v552, %v553
        %v555 = vshll.u32 920167782, %v540
        %v556 = vshrl.u32 1326507024, %v541
        %v557 = vor.u32 %v555, %v556
        %vm558 = vcmp.lt.s32.totalorder %v539, 1
        %vm559 = vcmp.lt.s32.totalorder %v539, 2
        %vm560 = vcmp.lt.s32.totalorder %v539, 3
        %vm561 = vcmp.lt.s32.totalorder %v539, 4
        %v562 = vsel %vm558, %v542, %v545
        %v563 = vsel %vm561, %v551, 2102212464
        %v564 = vsel %vm560, %v548, %v563
        %v565 = vsel %vm559, %v562, %v564
        %v566 = vsel %vm558, %v545, %v548
        %v567 = vsel %vm561, %v554, 920167782
        %v568 = vsel %vm560, %v551, %v567
        %v569 = vsel %vm559, %v566, %v568
        %v570 = vsel %vm558, %v548, %v551
        %v571 = vsel %vm561, %v557, 1326507024
        %v572 = vsel %vm560, %v554, %v571
        %v573 = vsel %vm559, %v570, %v572
        %v574 = vshll.u32 %v534, 8
        %v575 = vmul.u32.u64.compose %v574, %v573
        %v576 = vextract.low.u32 %v575
        %v577 = vextract.high.u32 %v575
        %v578 = vmul.u32.u64.compose %v574, %v569
        %v579 = vextract.low.u32 %v578
        %v580 = vextract.high.u32 %v578
        %v581 = vmul.u32 %v574, %v565
        %v582 = vadd.s32 %v577, %v579
        %vm583 = vc.u32 %v577, %v579
        %v584 = vadd.s32 %v580, 1
        %v585 = vsel %vm583, %v584, %v580
        %v586 = vadd.s32 %v581, %v585
        %v587 = vadd.s32 %v586, 536870912
        %v588 = vshrl.u32 %v587, 30
        %v589 = vshll.u32 %v588, 30
        %v590 = vsub.s32 %v586, %v589
        %vm591 = vcmp.lt.s32.totalorder %v590, 0
        %v592 = vsub.s32 0, %v590
        %v593 = vsel %vm591, %v592, %v590
        %v594 = vclz %v593
        %v595 = vsub.s32 %v594, 2
        %vm596 = vcmp.gt.s32.totalorder 0, %v595
        %v597 = vsel %vm596, 0, %v595
        %v598 = vsub.s32 32, %v597
        %v599 = vshll.u32 %v590, %v597
        %v600 = vshrl.u32 %v582, %v598
        %v601 = vor.u32 %v599, %v600
        %v602 = vsub.s32 4294967266, %v597
        %v603 = vadd.s32 %v602, 127
        %v604 = vshll.u32 %v603, 23
        %v605 = vor.u32 4788187, %v604
        %v606 = vand.u32 2147483647, %v605
        %v608 = vcvt.s32.f32 %v601
        %v609 = vmul.f32 %v608, %v606
        %v610 = vxor.u32 %v609, 2147483648
        %v611 = vsel %vm528, %v610, %v609
        %v612 = vsub.s32 4, %v588
        %v613 = vsel %vm528, %v612, %v588
        %v614 = vsel %vm527, %v522, %v611
        %v615 = vsel %vm527, 0, %v613
        %v616 = vcosq.f32.pop %v614
        %v617 = vsinq.f32.pop %v614
        %vm618 = vweird.f32 %v522
        %v619 = vand.u32 %v615, 3
        %vm620 = vcmp.lt.s32.totalorder %v619, 2
        %vm621 = vcmp.eq.s32.totalorder %v619, 0
        %v622 = vxor.u32 %v617, 2147483648
        %v623 = vsel %vm621, %v616, %v622
        %vm624 = vcmp.eq.s32.totalorder %v619, 2
        %v625 = vxor.u32 %v616, 2147483648
        %v626 = vsel %vm624, %v625, %v617
        %v627 = vsel %vm620, %v623, %v626
        %v628 = vsel %vm618, nan, %v627
        %v629 = vand.u32 2147483647, %v523
        %vm630 = vcmp.le.f32.partialorder %v629, 0.7853982
        %vm631 = vcmp.lt.s32.totalorder %v523, 0
        %v632 = vand.u32 %v523, 2139095040
        %v633 = vshrl.u32 %v632, 23
        %v634 = vsub.s32 %v633, 127
        %v635 = vand.u32 2147483647, %v523
        %v636 = vand.u32 %v635, 8388607
        %v637 = vor.u32 %v636, 8388608
        %v638 = vsub.s32 0, %v637
        %v639 = vadd.s32 %v634, 1
        %vm640 = vcmp.gt.s32.totalorder %v639, 0
        %v641 = vsel %vm640, %v639, 0
        %v642 = vshrl.u32 %v641, 5
        %v643 = vand.u32 %v641, 31
        %v644 = vsub.s32 32, %v643
        %v645 = vshrl.u32 683565275, %v644
        %v646 = vshll.u32 683565275, %v643
        %v647 = vshrl.u32 2475754826, %v644
        %v648 = vor.u32 %v646, %v647
        %v649 = vshll.u32 2475754826, %v643
        %v650 = vshrl.u32 2131351028, %v644
        %v651 = vor.u32 %v649, %v650
        %v652 = vshll.u32 2131351028, %v643
        %v653 = vshrl.u32 2102212464, %v644
        %v654 = vor.u32 %v652, %v653
        %v655 = vshll.u32 2102212464, %v643
        %v656 = vshrl.u32 920167782, %v644
        %v657 = vor.u32 %v655, %v656
        %v658 = vshll.u32 920167782, %v643
        %v659 = vshrl.u32 1326507024, %v644
        %v660 = vor.u32 %v658, %v659
        %vm661 = vcmp.lt.s32.totalorder %v642, 1
        %vm662 = vcmp.lt.s32.totalorder %v642, 2
        %vm663 = vcmp.lt.s32.totalorder %v642, 3
        %vm664 = vcmp.lt.s32.totalorder %v642, 4
        %v665 = vsel %vm661, %v645, %v648
        %v666 = vsel %vm664, %v654, 2102212464
        %v667 = vsel %vm663, %v651, %v666
        %v668 = vsel %vm662, %v665, %v667
        %v669 = vsel %vm661, %v648, %v651
        %v670 = vsel %vm664, %v657, 920167782
        %v671 = vsel %vm663, %v654, %v670
        %v672 = vsel %vm662, %v669, %v671
        %v673 = vsel %vm661, %v651, %v654
        %v674 = vsel %vm664, %v660, 1326507024
        %v675 = vsel %vm663, %v657, %v674
        %v676 = vsel %vm662, %v673, %v675
        %v677 = vshll.u32 %v637, 8
        %v678 = vmul.u32.u64.compose %v677, %v676
        %v679 = vextract.low.u32 %v678
        %v680 = vextract.high.u32 %v678
        %v681 = vmul.u32.u64.compose %v677, %v672
        %v682 = vextract.low.u32 %v681
        %v683 = vextract.high.u32 %v681
        %v684 = vmul.u32 %v677, %v668
        %v685 = vadd.s32 %v680, %v682
        %vm686 = vc.u32 %v680, %v682
        %v687 = vadd.s32 %v683, 1
        %v688 = vsel %vm686, %v687, %v683
        %v689 = vadd.s32 %v684, %v688
        %v690 = vadd.s32 %v689, 536870912
        %v691 = vshrl.u32 %v690, 30
        %v692 = vshll.u32 %v691, 30
        %v693 = vsub.s32 %v689, %v692
        %vm694 = vcmp.lt.s32.totalorder %v693, 0
        %v695 = vsub.s32 0, %v693
        %v696 = vsel %vm694, %v695, %v693
        %v697 = vclz %v696
        %v698 = vsub.s32 %v697, 2
        %vm699 = vcmp.gt.s32.totalorder 0, %v698
        %v700 = vsel %vm699, 0, %v698
        %v701 = vsub.s32 32, %v700
        %v702 = vshll.u32 %v693, %v700
        %v703 = vshrl.u32 %v685, %v701
        %v704 = vor.u32 %v702, %v703
        %v705 = vsub.s32 4294967266, %v700
        %v706 = vadd.s32 %v705, 127
        %v707 = vshll.u32 %v706, 23
        %v708 = vor.u32 4788187, %v707
        %v709 = vand.u32 2147483647, %v708
        %v711 = vcvt.s32.f32 %v704
        %v712 = vmul.f32 %v711, %v709
        %v713 = vxor.u32 %v712, 2147483648
        %v714 = vsel %vm631, %v713, %v712
        %v715 = vsub.s32 4, %v691
        %v716 = vsel %vm631, %v715, %v691
        %v717 = vsel %vm630, %v523, %v714
        %v718 = vsel %vm630, 0, %v716
        %v719 = vcosq.f32.pop %v717
        %v720 = vsinq.f32.pop %v717
        %vm721 = vweird.f32 %v523
        %v722 = vand.u32 %v718, 3
        %vm723 = vcmp.lt.s32.totalorder %v722, 2
        %vm724 = vcmp.eq.s32.totalorder %v722, 0
        %v725 = vxor.u32 %v720, 2147483648
        %v726 = vsel %vm724, %v719, %v725
        %vm727 = vcmp.eq.s32.totalorder %v722, 2
        %v728 = vxor.u32 %v719, 2147483648
        %v729 = vsel %vm727, %v728, %v720
        %v730 = vsel %vm723, %v726, %v729
        %v731 = vsel %vm721, nan, %v730
        %v732 = vand.u32 2147483647, %v524
        %vm733 = vcmp.le.f32.partialorder %v732, 0.7853982
        %vm734 = vcmp.lt.s32.totalorder %v524, 0
        %v735 = vand.u32 %v524, 2139095040
        %v736 = vshrl.u32 %v735, 23
        %v737 = vsub.s32 %v736, 127
        %v738 = vand.u32 2147483647, %v524
        %v739 = vand.u32 %v738, 8388607
        %v740 = vor.u32 %v739, 8388608
        %v741 = vsub.s32 0, %v740
        %v742 = vadd.s32 %v737, 1
        %vm743 = vcmp.gt.s32.totalorder %v742, 0
        %v744 = vsel %vm743, %v742, 0
        %v745 = vshrl.u32 %v744, 5
        %v746 = vand.u32 %v744, 31
        %v747 = vsub.s32 32, %v746
        %v748 = vshrl.u32 683565275, %v747
        %v749 = vshll.u32 683565275, %v746
        %v750 = vshrl.u32 2475754826, %v747
        %v751 = vor.u32 %v749, %v750
        %v752 = vshll.u32 2475754826, %v746
        %v753 = vshrl.u32 2131351028, %v747
        %v754 = vor.u32 %v752, %v753
        %v755 = vshll.u32 2131351028, %v746
        %v756 = vshrl.u32 2102212464, %v747
        %v757 = vor.u32 %v755, %v756
        %v758 = vshll.u32 2102212464, %v746
        %v759 = vshrl.u32 920167782, %v747
        %v760 = vor.u32 %v758, %v759
        %v761 = vshll.u32 920167782, %v746
        %v762 = vshrl.u32 1326507024, %v747
        %v763 = vor.u32 %v761, %v762
        %vm764 = vcmp.lt.s32.totalorder %v745, 1
        %vm765 = vcmp.lt.s32.totalorder %v745, 2
        %vm766 = vcmp.lt.s32.totalorder %v745, 3
        %vm767 = vcmp.lt.s32.totalorder %v745, 4
        %v768 = vsel %vm764, %v748, %v751
        %v769 = vsel %vm767, %v757, 2102212464
        %v770 = vsel %vm766, %v754, %v769
        %v771 = vsel %vm765, %v768, %v770
        %v772 = vsel %vm764, %v751, %v754
        %v773 = vsel %vm767, %v760, 920167782
        %v774 = vsel %vm766, %v757, %v773
        %v775 = vsel %vm765, %v772, %v774
        %v776 = vsel %vm764, %v754, %v757
        %v777 = vsel %vm767, %v763, 1326507024
        %v778 = vsel %vm766, %v760, %v777
        %v779 = vsel %vm765, %v776, %v778
        %v780 = vshll.u32 %v740, 8
        %v781 = vmul.u32.u64.compose %v780, %v779
        %v782 = vextract.low.u32 %v781
        %v783 = vextract.high.u32 %v781
        %v784 = vmul.u32.u64.compose %v780, %v775
        %v785 = vextract.low.u32 %v784
        %v786 = vextract.high.u32 %v784
        %v787 = vmul.u32 %v780, %v771
        %v788 = vadd.s32 %v783, %v785
        %vm789 = vc.u32 %v783, %v785
        %v790 = vadd.s32 %v786, 1
        %v791 = vsel %vm789, %v790, %v786
        %v792 = vadd.s32 %v787, %v791
        %v793 = vadd.s32 %v792, 536870912
        %v794 = vshrl.u32 %v793, 30
        %v795 = vshll.u32 %v794, 30
        %v796 = vsub.s32 %v792, %v795
        %vm797 = vcmp.lt.s32.totalorder %v796, 0
        %v798 = vsub.s32 0, %v796
        %v799 = vsel %vm797, %v798, %v796
        %v800 = vclz %v799
        %v801 = vsub.s32 %v800, 2
        %vm802 = vcmp.gt.s32.totalorder 0, %v801
        %v803 = vsel %vm802, 0, %v801
        %v804 = vsub.s32 32, %v803
        %v805 = vshll.u32 %v796, %v803
        %v806 = vshrl.u32 %v788, %v804
        %v807 = vor.u32 %v805, %v806
        %v808 = vsub.s32 4294967266, %v803
        %v809 = vadd.s32 %v808, 127
        %v810 = vshll.u32 %v809, 23
        %v811 = vor.u32 4788187, %v810
        %v812 = vand.u32 2147483647, %v811
        %v814 = vcvt.s32.f32 %v807
        %v815 = vmul.f32 %v814, %v812
        %v816 = vxor.u32 %v815, 2147483648
        %v817 = vsel %vm734, %v816, %v815
        %v818 = vsub.s32 4, %v794
        %v819 = vsel %vm734, %v818, %v794
        %v820 = vsel %vm733, %v524, %v817
        %v821 = vsel %vm733, 0, %v819
        %v822 = vcosq.f32.pop %v820
        %v823 = vsinq.f32.pop %v820
        %vm824 = vweird.f32 %v524
        %v825 = vand.u32 %v821, 3
        %vm826 = vcmp.lt.s32.totalorder %v825, 2
        %vm827 = vcmp.eq.s32.totalorder %v825, 0
        %v828 = vxor.u32 %v823, 2147483648
        %v829 = vsel %vm827, %v822, %v828
        %vm830 = vcmp.eq.s32.totalorder %v825, 2
        %v831 = vxor.u32 %v822, 2147483648
        %v832 = vsel %vm830, %v831, %v823
        %v833 = vsel %vm826, %v829, %v832
        %v834 = vsel %vm824, nan, %v833
        %v835 = vand.u32 2147483647, %v525
        %vm836 = vcmp.le.f32.partialorder %v835, 0.7853982
        %vm837 = vcmp.lt.s32.totalorder %v525, 0
        %v838 = vand.u32 %v525, 2139095040
        %v839 = vshrl.u32 %v838, 23
        %v840 = vsub.s32 %v839, 127
        %v841 = vand.u32 2147483647, %v525
        %v842 = vand.u32 %v841, 8388607
        %v843 = vor.u32 %v842, 8388608
        %v844 = vsub.s32 0, %v843
        %v845 = vadd.s32 %v840, 1
        %vm846 = vcmp.gt.s32.totalorder %v845, 0
        %v847 = vsel %vm846, %v845, 0
        %v848 = vshrl.u32 %v847, 5
        %v849 = vand.u32 %v847, 31
        %v850 = vsub.s32 32, %v849
        %v851 = vshrl.u32 683565275, %v850
        %v852 = vshll.u32 683565275, %v849
        %v853 = vshrl.u32 2475754826, %v850
        %v854 = vor.u32 %v852, %v853
        %v855 = vshll.u32 2475754826, %v849
        %v856 = vshrl.u32 2131351028, %v850
        %v857 = vor.u32 %v855, %v856
        %v858 = vshll.u32 2131351028, %v849
        %v859 = vshrl.u32 2102212464, %v850
        %v860 = vor.u32 %v858, %v859
        %v861 = vshll.u32 2102212464, %v849
        %v862 = vshrl.u32 920167782, %v850
        %v863 = vor.u32 %v861, %v862
        %v864 = vshll.u32 920167782, %v849
        %v865 = vshrl.u32 1326507024, %v850
        %v866 = vor.u32 %v864, %v865
        %vm867 = vcmp.lt.s32.totalorder %v848, 1
        %vm868 = vcmp.lt.s32.totalorder %v848, 2
        %vm869 = vcmp.lt.s32.totalorder %v848, 3
        %vm870 = vcmp.lt.s32.totalorder %v848, 4
        %v871 = vsel %vm867, %v851, %v854
        %v872 = vsel %vm870, %v860, 2102212464
        %v873 = vsel %vm869, %v857, %v872
        %v874 = vsel %vm868, %v871, %v873
        %v875 = vsel %vm867, %v854, %v857
        %v876 = vsel %vm870, %v863, 920167782
        %v877 = vsel %vm869, %v860, %v876
        %v878 = vsel %vm868, %v875, %v877
        %v879 = vsel %vm867, %v857, %v860
        %v880 = vsel %vm870, %v866, 1326507024
        %v881 = vsel %vm869, %v863, %v880
        %v882 = vsel %vm868, %v879, %v881
        %v883 = vshll.u32 %v843, 8
        %v884 = vmul.u32.u64.compose %v883, %v882
        %v885 = vextract.low.u32 %v884
        %v886 = vextract.high.u32 %v884
        %v887 = vmul.u32.u64.compose %v883, %v878
        %v888 = vextract.low.u32 %v887
        %v889 = vextract.high.u32 %v887
        %v890 = vmul.u32 %v883, %v874
        %v891 = vadd.s32 %v886, %v888
        %vm892 = vc.u32 %v886, %v888
        %v893 = vadd.s32 %v889, 1
        %v894 = vsel %vm892, %v893, %v889
        %v895 = vadd.s32 %v890, %v894
        %v896 = vadd.s32 %v895, 536870912
        %v897 = vshrl.u32 %v896, 30
        %v898 = vshll.u32 %v897, 30
        %v899 = vsub.s32 %v895, %v898
        %vm900 = vcmp.lt.s32.totalorder %v899, 0
        %v901 = vsub.s32 0, %v899
        %v902 = vsel %vm900, %v901, %v899
        %v903 = vclz %v902
        %v904 = vsub.s32 %v903, 2
        %vm905 = vcmp.gt.s32.totalorder 0, %v904
        %v906 = vsel %vm905, 0, %v904
        %v907 = vsub.s32 32, %v906
        %v908 = vshll.u32 %v899, %v906
        %v909 = vshrl.u32 %v891, %v907
        %v910 = vor.u32 %v908, %v909
        %v911 = vsub.s32 4294967266, %v906
        %v912 = vadd.s32 %v911, 127
        %v913 = vshll.u32 %v912, 23
        %v914 = vor.u32 4788187, %v913
        %v915 = vand.u32 2147483647, %v914
        %v917 = vcvt.s32.f32 %v910
        %v918 = vmul.f32 %v917, %v915
        %v919 = vxor.u32 %v918, 2147483648
        %v920 = vsel %vm837, %v919, %v918
        %v921 = vsub.s32 4, %v897
        %v922 = vsel %vm837, %v921, %v897
        %v923 = vsel %vm836, %v525, %v920
        %v924 = vsel %vm836, 0, %v922
        %v925 = vcosq.f32.pop %v923
        %v926 = vsinq.f32.pop %v923
        %vm927 = vweird.f32 %v525
        %v928 = vand.u32 %v924, 3
        %vm929 = vcmp.lt.s32.totalorder %v928, 2
        %vm930 = vcmp.eq.s32.totalorder %v928, 0
        %v931 = vxor.u32 %v926, 2147483648
        %v932 = vsel %vm930, %v925, %v931
        %vm933 = vcmp.eq.s32.totalorder %v928, 2
        %v934 = vxor.u32 %v925, 2147483648
        %v935 = vsel %vm933, %v934, %v926
        %v936 = vsel %vm929, %v932, %v935
        %v937 = vsel %vm927, nan, %v936
        %v938 = vand.u32 2147483647, %v522
        %vm939 = vcmp.le.f32.partialorder %v938, 0.7853982
        %vm940 = vcmp.lt.s32.totalorder %v522, 0
        %v941 = vand.u32 %v522, 2139095040
        %v942 = vshrl.u32 %v941, 23
        %v943 = vsub.s32 %v942, 127
        %v944 = vand.u32 2147483647, %v522
        %v945 = vand.u32 %v944, 8388607
        %v946 = vor.u32 %v945, 8388608
        %v947 = vsub.s32 0, %v946
        %v948 = vadd.s32 %v943, 1
        %vm949 = vcmp.gt.s32.totalorder %v948, 0
        %v950 = vsel %vm949, %v948, 0
        %v951 = vshrl.u32 %v950, 5
        %v952 = vand.u32 %v950, 31
        %v953 = vsub.s32 32, %v952
        %v954 = vshrl.u32 683565275, %v953
        %v955 = vshll.u32 683565275, %v952
        %v956 = vshrl.u32 2475754826, %v953
        %v957 = vor.u32 %v955, %v956
        %v958 = vshll.u32 2475754826, %v952
        %v959 = vshrl.u32 2131351028, %v953
        %v960 = vor.u32 %v958, %v959
        %v961 = vshll.u32 2131351028, %v952
        %v962 = vshrl.u32 2102212464, %v953
        %v963 = vor.u32 %v961, %v962
        %v964 = vshll.u32 2102212464, %v952
        %v965 = vshrl.u32 920167782, %v953
        %v966 = vor.u32 %v964, %v965
        %v967 = vshll.u32 920167782, %v952
        %v968 = vshrl.u32 1326507024, %v953
        %v969 = vor.u32 %v967, %v968
        %vm970 = vcmp.lt.s32.totalorder %v951, 1
        %vm971 = vcmp.lt.s32.totalorder %v951, 2
        %vm972 = vcmp.lt.s32.totalorder %v951, 3
        %vm973 = vcmp.lt.s32.totalorder %v951, 4
        %v974 = vsel %vm970, %v954, %v957
        %v975 = vsel %vm973, %v963, 2102212464
        %v976 = vsel %vm972, %v960, %v975
        %v977 = vsel %vm971, %v974, %v976
        %v978 = vsel %vm970, %v957, %v960
        %v979 = vsel %vm973, %v966, 920167782
        %v980 = vsel %vm972, %v963, %v979
        %v981 = vsel %vm971, %v978, %v980
        %v982 = vsel %vm970, %v960, %v963
        %v983 = vsel %vm973, %v969, 1326507024
        %v984 = vsel %vm972, %v966, %v983
        %v985 = vsel %vm971, %v982, %v984
        %v986 = vshll.u32 %v946, 8
        %v987 = vmul.u32.u64.compose %v986, %v985
        %v988 = vextract.low.u32 %v987
        %v989 = vextract.high.u32 %v987
        %v990 = vmul.u32.u64.compose %v986, %v981
        %v991 = vextract.low.u32 %v990
        %v992 = vextract.high.u32 %v990
        %v993 = vmul.u32 %v986, %v977
        %v994 = vadd.s32 %v989, %v991
        %vm995 = vc.u32 %v989, %v991
        %v996 = vadd.s32 %v992, 1
        %v997 = vsel %vm995, %v996, %v992
        %v998 = vadd.s32 %v993, %v997
        %v999 = vadd.s32 %v998, 536870912
        %v1000 = vshrl.u32 %v999, 30
        %v1001 = vshll.u32 %v1000, 30
        %v1002 = vsub.s32 %v998, %v1001
        %vm1003 = vcmp.lt.s32.totalorder %v1002, 0
        %v1004 = vsub.s32 0, %v1002
        %v1005 = vsel %vm1003, %v1004, %v1002
        %v1006 = vclz %v1005
        %v1007 = vsub.s32 %v1006, 2
        %vm1008 = vcmp.gt.s32.totalorder 0, %v1007
        %v1009 = vsel %vm1008, 0, %v1007
        %v1010 = vsub.s32 32, %v1009
        %v1011 = vshll.u32 %v1002, %v1009
        %v1012 = vshrl.u32 %v994, %v1010
        %v1013 = vor.u32 %v1011, %v1012
        %v1014 = vsub.s32 4294967266, %v1009
        %v1015 = vadd.s32 %v1014, 127
        %v1016 = vshll.u32 %v1015, 23
        %v1017 = vor.u32 4788187, %v1016
        %v1018 = vand.u32 2147483647, %v1017
        %v1020 = vcvt.s32.f32 %v1013
        %v1021 = vmul.f32 %v1020, %v1018
        %v1022 = vxor.u32 %v1021, 2147483648
        %v1023 = vsel %vm940, %v1022, %v1021
        %v1024 = vsub.s32 4, %v1000
        %v1025 = vsel %vm940, %v1024, %v1000
        %v1026 = vsel %vm939, %v522, %v1023
        %v1027 = vsel %vm939, 0, %v1025
        %v1028 = vcosq.f32.pop %v1026
        %v1029 = vsinq.f32.pop %v1026
        %vm1030 = vweird.f32 %v522
        %v1031 = vadd.s32 %v1027, 3
        %v1032 = vand.u32 %v1031, 3
        %vm1033 = vcmp.lt.s32.totalorder %v1032, 2
        %vm1034 = vcmp.eq.s32.totalorder %v1032, 0
        %v1035 = vxor.u32 %v1029, 2147483648
        %v1036 = vsel %vm1034, %v1028, %v1035
        %vm1037 = vcmp.eq.s32.totalorder %v1032, 2
        %v1038 = vxor.u32 %v1028, 2147483648
        %v1039 = vsel %vm1037, %v1038, %v1029
        %v1040 = vsel %vm1033, %v1036, %v1039
        %v1041 = vsel %vm1030, nan, %v1040
        %v1042 = vand.u32 2147483647, %v523
        %vm1043 = vcmp.le.f32.partialorder %v1042, 0.7853982
        %vm1044 = vcmp.lt.s32.totalorder %v523, 0
        %v1045 = vand.u32 %v523, 2139095040
        %v1046 = vshrl.u32 %v1045, 23
        %v1047 = vsub.s32 %v1046, 127
        %v1048 = vand.u32 2147483647, %v523
        %v1049 = vand.u32 %v1048, 8388607
        %v1050 = vor.u32 %v1049, 8388608
        %v1051 = vsub.s32 0, %v1050
        %v1052 = vadd.s32 %v1047, 1
        %vm1053 = vcmp.gt.s32.totalorder %v1052, 0
        %v1054 = vsel %vm1053, %v1052, 0
        %v1055 = vshrl.u32 %v1054, 5
        %v1056 = vand.u32 %v1054, 31
        %v1057 = vsub.s32 32, %v1056
        %v1058 = vshrl.u32 683565275, %v1057
        %v1059 = vshll.u32 683565275, %v1056
        %v1060 = vshrl.u32 2475754826, %v1057
        %v1061 = vor.u32 %v1059, %v1060
        %v1062 = vshll.u32 2475754826, %v1056
        %v1063 = vshrl.u32 2131351028, %v1057
        %v1064 = vor.u32 %v1062, %v1063
        %v1065 = vshll.u32 2131351028, %v1056
        %v1066 = vshrl.u32 2102212464, %v1057
        %v1067 = vor.u32 %v1065, %v1066
        %v1068 = vshll.u32 2102212464, %v1056
        %v1069 = vshrl.u32 920167782, %v1057
        %v1070 = vor.u32 %v1068, %v1069
        %v1071 = vshll.u32 920167782, %v1056
        %v1072 = vshrl.u32 1326507024, %v1057
        %v1073 = vor.u32 %v1071, %v1072
        %vm1074 = vcmp.lt.s32.totalorder %v1055, 1
        %vm1075 = vcmp.lt.s32.totalorder %v1055, 2
        %vm1076 = vcmp.lt.s32.totalorder %v1055, 3
        %vm1077 = vcmp.lt.s32.totalorder %v1055, 4
        %v1078 = vsel %vm1074, %v1058, %v1061
        %v1079 = vsel %vm1077, %v1067, 2102212464
        %v1080 = vsel %vm1076, %v1064, %v1079
        %v1081 = vsel %vm1075, %v1078, %v1080
        %v1082 = vsel %vm1074, %v1061, %v1064
        %v1083 = vsel %vm1077, %v1070, 920167782
        %v1084 = vsel %vm1076, %v1067, %v1083
        %v1085 = vsel %vm1075, %v1082, %v1084
        %v1086 = vsel %vm1074, %v1064, %v1067
        %v1087 = vsel %vm1077, %v1073, 1326507024
        %v1088 = vsel %vm1076, %v1070, %v1087
        %v1089 = vsel %vm1075, %v1086, %v1088
        %v1090 = vshll.u32 %v1050, 8
        %v1091 = vmul.u32.u64.compose %v1090, %v1089
        %v1092 = vextract.low.u32 %v1091
        %v1093 = vextract.high.u32 %v1091
        %v1094 = vmul.u32.u64.compose %v1090, %v1085
        %v1095 = vextract.low.u32 %v1094
        %v1096 = vextract.high.u32 %v1094
        %v1097 = vmul.u32 %v1090, %v1081
        %v1098 = vadd.s32 %v1093, %v1095
        %vm1099 = vc.u32 %v1093, %v1095
        %v1100 = vadd.s32 %v1096, 1
        %v1101 = vsel %vm1099, %v1100, %v1096
        %v1102 = vadd.s32 %v1097, %v1101
        %v1103 = vadd.s32 %v1102, 536870912
        %v1104 = vshrl.u32 %v1103, 30
        %v1105 = vshll.u32 %v1104, 30
        %v1106 = vsub.s32 %v1102, %v1105
        %vm1107 = vcmp.lt.s32.totalorder %v1106, 0
        %v1108 = vsub.s32 0, %v1106
        %v1109 = vsel %vm1107, %v1108, %v1106
        %v1110 = vclz %v1109
        %v1111 = vsub.s32 %v1110, 2
        %vm1112 = vcmp.gt.s32.totalorder 0, %v1111
        %v1113 = vsel %vm1112, 0, %v1111
        %v1114 = vsub.s32 32, %v1113
        %v1115 = vshll.u32 %v1106, %v1113
        %v1116 = vshrl.u32 %v1098, %v1114
        %v1117 = vor.u32 %v1115, %v1116
        %v1118 = vsub.s32 4294967266, %v1113
        %v1119 = vadd.s32 %v1118, 127
        %v1120 = vshll.u32 %v1119, 23
        %v1121 = vor.u32 4788187, %v1120
        %v1122 = vand.u32 2147483647, %v1121
        %v1124 = vcvt.s32.f32 %v1117
        %v1125 = vmul.f32 %v1124, %v1122
        %v1126 = vxor.u32 %v1125, 2147483648
        %v1127 = vsel %vm1044, %v1126, %v1125
        %v1128 = vsub.s32 4, %v1104
        %v1129 = vsel %vm1044, %v1128, %v1104
        %v1130 = vsel %vm1043, %v523, %v1127
        %v1131 = vsel %vm1043, 0, %v1129
        %v1132 = vcosq.f32.pop %v1130
        %v1133 = vsinq.f32.pop %v1130
        %vm1134 = vweird.f32 %v523
        %v1135 = vadd.s32 %v1131, 3
        %v1136 = vand.u32 %v1135, 3
        %vm1137 = vcmp.lt.s32.totalorder %v1136, 2
        %vm1138 = vcmp.eq.s32.totalorder %v1136, 0
        %v1139 = vxor.u32 %v1133, 2147483648
        %v1140 = vsel %vm1138, %v1132, %v1139
        %vm1141 = vcmp.eq.s32.totalorder %v1136, 2
        %v1142 = vxor.u32 %v1132, 2147483648
        %v1143 = vsel %vm1141, %v1142, %v1133
        %v1144 = vsel %vm1137, %v1140, %v1143
        %v1145 = vsel %vm1134, nan, %v1144
        %v1146 = vand.u32 2147483647, %v524
        %vm1147 = vcmp.le.f32.partialorder %v1146, 0.7853982
        %vm1148 = vcmp.lt.s32.totalorder %v524, 0
        %v1149 = vand.u32 %v524, 2139095040
        %v1150 = vshrl.u32 %v1149, 23
        %v1151 = vsub.s32 %v1150, 127
        %v1152 = vand.u32 2147483647, %v524
        %v1153 = vand.u32 %v1152, 8388607
        %v1154 = vor.u32 %v1153, 8388608
        %v1155 = vsub.s32 0, %v1154
        %v1156 = vadd.s32 %v1151, 1
        %vm1157 = vcmp.gt.s32.totalorder %v1156, 0
        %v1158 = vsel %vm1157, %v1156, 0
        %v1159 = vshrl.u32 %v1158, 5
        %v1160 = vand.u32 %v1158, 31
        %v1161 = vsub.s32 32, %v1160
        %v1162 = vshrl.u32 683565275, %v1161
        %v1163 = vshll.u32 683565275, %v1160
        %v1164 = vshrl.u32 2475754826, %v1161
        %v1165 = vor.u32 %v1163, %v1164
        %v1166 = vshll.u32 2475754826, %v1160
        %v1167 = vshrl.u32 2131351028, %v1161
        %v1168 = vor.u32 %v1166, %v1167
        %v1169 = vshll.u32 2131351028, %v1160
        %v1170 = vshrl.u32 2102212464, %v1161
        %v1171 = vor.u32 %v1169, %v1170
        %v1172 = vshll.u32 2102212464, %v1160
        %v1173 = vshrl.u32 920167782, %v1161
        %v1174 = vor.u32 %v1172, %v1173
        %v1175 = vshll.u32 920167782, %v1160
        %v1176 = vshrl.u32 1326507024, %v1161
        %v1177 = vor.u32 %v1175, %v1176
        %vm1178 = vcmp.lt.s32.totalorder %v1159, 1
        %vm1179 = vcmp.lt.s32.totalorder %v1159, 2
        %vm1180 = vcmp.lt.s32.totalorder %v1159, 3
        %vm1181 = vcmp.lt.s32.totalorder %v1159, 4
        %v1182 = vsel %vm1178, %v1162, %v1165
        %v1183 = vsel %vm1181, %v1171, 2102212464
        %v1184 = vsel %vm1180, %v1168, %v1183
        %v1185 = vsel %vm1179, %v1182, %v1184
        %v1186 = vsel %vm1178, %v1165, %v1168
        %v1187 = vsel %vm1181, %v1174, 920167782
        %v1188 = vsel %vm1180, %v1171, %v1187
        %v1189 = vsel %vm1179, %v1186, %v1188
        %v1190 = vsel %vm1178, %v1168, %v1171
        %v1191 = vsel %vm1181, %v1177, 1326507024
        %v1192 = vsel %vm1180, %v1174, %v1191
        %v1193 = vsel %vm1179, %v1190, %v1192
        %v1194 = vshll.u32 %v1154, 8
        %v1195 = vmul.u32.u64.compose %v1194, %v1193
        %v1196 = vextract.low.u32 %v1195
        %v1197 = vextract.high.u32 %v1195
        %v1198 = vmul.u32.u64.compose %v1194, %v1189
        %v1199 = vextract.low.u32 %v1198
        %v1200 = vextract.high.u32 %v1198
        %v1201 = vmul.u32 %v1194, %v1185
        %v1202 = vadd.s32 %v1197, %v1199
        %vm1203 = vc.u32 %v1197, %v1199
        %v1204 = vadd.s32 %v1200, 1
        %v1205 = vsel %vm1203, %v1204, %v1200
        %v1206 = vadd.s32 %v1201, %v1205
        %v1207 = vadd.s32 %v1206, 536870912
        %v1208 = vshrl.u32 %v1207, 30
        %v1209 = vshll.u32 %v1208, 30
        %v1210 = vsub.s32 %v1206, %v1209
        %vm1211 = vcmp.lt.s32.totalorder %v1210, 0
        %v1212 = vsub.s32 0, %v1210
        %v1213 = vsel %vm1211, %v1212, %v1210
        %v1214 = vclz %v1213
        %v1215 = vsub.s32 %v1214, 2
        %vm1216 = vcmp.gt.s32.totalorder 0, %v1215
        %v1217 = vsel %vm1216, 0, %v1215
        %v1218 = vsub.s32 32, %v1217
        %v1219 = vshll.u32 %v1210, %v1217
        %v1220 = vshrl.u32 %v1202, %v1218
        %v1221 = vor.u32 %v1219, %v1220
        %v1222 = vsub.s32 4294967266, %v1217
        %v1223 = vadd.s32 %v1222, 127
        %v1224 = vshll.u32 %v1223, 23
        %v1225 = vor.u32 4788187, %v1224
        %v1226 = vand.u32 2147483647, %v1225
        %v1228 = vcvt.s32.f32 %v1221
        %v1229 = vmul.f32 %v1228, %v1226
        %v1230 = vxor.u32 %v1229, 2147483648
        %v1231 = vsel %vm1148, %v1230, %v1229
        %v1232 = vsub.s32 4, %v1208
        %v1233 = vsel %vm1148, %v1232, %v1208
        %v1234 = vsel %vm1147, %v524, %v1231
        %v1235 = vsel %vm1147, 0, %v1233
        %v1236 = vcosq.f32.pop %v1234
        %v1237 = vsinq.f32.pop %v1234
        %vm1238 = vweird.f32 %v524
        %v1239 = vadd.s32 %v1235, 3
        %v1240 = vand.u32 %v1239, 3
        %vm1241 = vcmp.lt.s32.totalorder %v1240, 2
        %vm1242 = vcmp.eq.s32.totalorder %v1240, 0
        %v1243 = vxor.u32 %v1237, 2147483648
        %v1244 = vsel %vm1242, %v1236, %v1243
        %vm1245 = vcmp.eq.s32.totalorder %v1240, 2
        %v1246 = vxor.u32 %v1236, 2147483648
        %v1247 = vsel %vm1245, %v1246, %v1237
        %v1248 = vsel %vm1241, %v1244, %v1247
        %v1249 = vsel %vm1238, nan, %v1248
        %v1250 = vand.u32 2147483647, %v525
        %vm1251 = vcmp.le.f32.partialorder %v1250, 0.7853982
        %vm1252 = vcmp.lt.s32.totalorder %v525, 0
        %v1253 = vand.u32 %v525, 2139095040
        %v1254 = vshrl.u32 %v1253, 23
        %v1255 = vsub.s32 %v1254, 127
        %v1256 = vand.u32 2147483647, %v525
        %v1257 = vand.u32 %v1256, 8388607
        %v1258 = vor.u32 %v1257, 8388608
        %v1259 = vsub.s32 0, %v1258
        %v1260 = vadd.s32 %v1255, 1
        %vm1261 = vcmp.gt.s32.totalorder %v1260, 0
        %v1262 = vsel %vm1261, %v1260, 0
        %v1263 = vshrl.u32 %v1262, 5
        %v1264 = vand.u32 %v1262, 31
        %v1265 = vsub.s32 32, %v1264
        %v1266 = vshrl.u32 683565275, %v1265
        %v1267 = vshll.u32 683565275, %v1264
        %v1268 = vshrl.u32 2475754826, %v1265
        %v1269 = vor.u32 %v1267, %v1268
        %v1270 = vshll.u32 2475754826, %v1264
        %v1271 = vshrl.u32 2131351028, %v1265
        %v1272 = vor.u32 %v1270, %v1271
        %v1273 = vshll.u32 2131351028, %v1264
        %v1274 = vshrl.u32 2102212464, %v1265
        %v1275 = vor.u32 %v1273, %v1274
        %v1276 = vshll.u32 2102212464, %v1264
        %v1277 = vshrl.u32 920167782, %v1265
        %v1278 = vor.u32 %v1276, %v1277
        %v1279 = vshll.u32 920167782, %v1264
        %v1280 = vshrl.u32 1326507024, %v1265
        %v1281 = vor.u32 %v1279, %v1280
        %vm1282 = vcmp.lt.s32.totalorder %v1263, 1
        %vm1283 = vcmp.lt.s32.totalorder %v1263, 2
        %vm1284 = vcmp.lt.s32.totalorder %v1263, 3
        %vm1285 = vcmp.lt.s32.totalorder %v1263, 4
        %v1286 = vsel %vm1282, %v1266, %v1269
        %v1287 = vsel %vm1285, %v1275, 2102212464
        %v1288 = vsel %vm1284, %v1272, %v1287
        %v1289 = vsel %vm1283, %v1286, %v1288
        %v1290 = vsel %vm1282, %v1269, %v1272
        %v1291 = vsel %vm1285, %v1278, 920167782
        %v1292 = vsel %vm1284, %v1275, %v1291
        %v1293 = vsel %vm1283, %v1290, %v1292
        %v1294 = vsel %vm1282, %v1272, %v1275
        %v1295 = vsel %vm1285, %v1281, 1326507024
        %v1296 = vsel %vm1284, %v1278, %v1295
        %v1297 = vsel %vm1283, %v1294, %v1296
        %v1298 = vshll.u32 %v1258, 8
        %v1299 = vmul.u32.u64.compose %v1298, %v1297
        %v1300 = vextract.low.u32 %v1299
        %v1301 = vextract.high.u32 %v1299
        %v1302 = vmul.u32.u64.compose %v1298, %v1293
        %v1303 = vextract.low.u32 %v1302
        %v1304 = vextract.high.u32 %v1302
        %v1305 = vmul.u32 %v1298, %v1289
        %v1306 = vadd.s32 %v1301, %v1303
        %vm1307 = vc.u32 %v1301, %v1303
        %v1308 = vadd.s32 %v1304, 1
        %v1309 = vsel %vm1307, %v1308, %v1304
        %v1310 = vadd.s32 %v1305, %v1309
        %v1311 = vadd.s32 %v1310, 536870912
        %v1312 = vshrl.u32 %v1311, 30
        %v1313 = vshll.u32 %v1312, 30
        %v1314 = vsub.s32 %v1310, %v1313
        %vm1315 = vcmp.lt.s32.totalorder %v1314, 0
        %v1316 = vsub.s32 0, %v1314
        %v1317 = vsel %vm1315, %v1316, %v1314
        %v1318 = vclz %v1317
        %v1319 = vsub.s32 %v1318, 2
        %vm1320 = vcmp.gt.s32.totalorder 0, %v1319
        %v1321 = vsel %vm1320, 0, %v1319
        %v1322 = vsub.s32 32, %v1321
        %v1323 = vshll.u32 %v1314, %v1321
        %v1324 = vshrl.u32 %v1306, %v1322
        %v1325 = vor.u32 %v1323, %v1324
        %v1326 = vsub.s32 4294967266, %v1321
        %v1327 = vadd.s32 %v1326, 127
        %v1328 = vshll.u32 %v1327, 23
        %v1329 = vor.u32 4788187, %v1328
        %v1330 = vand.u32 2147483647, %v1329
        %v1332 = vcvt.s32.f32 %v1325
        %v1333 = vmul.f32 %v1332, %v1330
        %v1334 = vxor.u32 %v1333, 2147483648
        %v1335 = vsel %vm1252, %v1334, %v1333
        %v1336 = vsub.s32 4, %v1312
        %v1337 = vsel %vm1252, %v1336, %v1312
        %v1338 = vsel %vm1251, %v525, %v1335
        %v1339 = vsel %vm1251, 0, %v1337
        %v1340 = vcosq.f32.pop %v1338
        %v1341 = vsinq.f32.pop %v1338
        %vm1342 = vweird.f32 %v525
        %v1343 = vadd.s32 %v1339, 3
        %v1344 = vand.u32 %v1343, 3
        %vm1345 = vcmp.lt.s32.totalorder %v1344, 2
        %vm1346 = vcmp.eq.s32.totalorder %v1344, 0
        %v1347 = vxor.u32 %v1341, 2147483648
        %v1348 = vsel %vm1346, %v1340, %v1347
        %vm1349 = vcmp.eq.s32.totalorder %v1344, 2
        %v1350 = vxor.u32 %v1340, 2147483648
        %v1351 = vsel %vm1349, %v1350, %v1341
        %v1352 = vsel %vm1345, %v1348, %v1351
        %v1353 = vsel %vm1342, nan, %v1352
        %v1354 = vld [vmem:[%s357] sm:$0xf]
        %vm1355 = vcmask 523264
        %1356 = vst.msk [vmem:[%s429] sm:$0xff] %vm1355, %v628
        %1357 = vst.msk [vmem:[%s429 + $0x8] sm:$0xff] %vm1355, %v731
        %1358 = vst.msk [vmem:[%s429 + $0x10] sm:$0xff] %vm1355, %v834
        %vm1359 = vcmask 516096
        %1360 = vst.msk [vmem:[%s429 + $0x18] sm:$0x1] %vm1359, %v937
        %1361 = vst.msk [vmem:[%s434] sm:$0xff] %vm1355, %v1041
        %1362 = vst.msk [vmem:[%s434 + $0x8] sm:$0xff] %vm1355, %v1145
        %1363 = vst.msk [vmem:[%s434 + $0x10] sm:$0xff] %vm1355, %v1249
        %1364 = vst.msk [vmem:[%s434 + $0x18] sm:$0x1] %vm1359, %v1353
        %v1366 = vsel %vm1355, %v1041, 0
        %v1369 = vsel %vm1355, %v1145, 0
        %v1372 = vsel %vm1355, %v1249, 0
        %v1375 = vsel %vm1355, %v1353, 0
        %1377 = vmatprep.subr.mxu0 0.0
        %1378 = vmatpush1.xpose.msra.mxu0 0.0
        %1379 = vmatprep.subr.mxu0 0.0
        %1380 = vmatpush1.xpose.msra.mxu0 0.0
        %1381 = vmatprep.subr.mxu0 0.0
        %1382 = vmatpush1.xpose.msra.mxu0 0.0
        %1383 = vmatprep.subr.mxu0 0.0
        %1384 = vmatpush1.xpose.msra.mxu0 0.0
        %1385 = vmatprep.subr.mxu0 0.0
        %1386 = vmatpush1.xpose.msra.mxu0 0.0
        %1387 = vmatprep.subr.mxu0 0.0
        %1388 = vmatpush1.xpose.msra.mxu0 0.0
        %1389 = vmatprep.subr.mxu0 0.0
        %1390 = vmatpush1.xpose.msra.mxu0 0.0
        %1391 = vmatprep.subr.mxu0 0.0
        %1392 = vmatpush1.xpose.msra.mxu0 0.0
        %1393 = vmatprep.subr.mxu0 0.0
        %1394 = vmatpush1.xpose.msra.mxu0 0.0
        %1395 = vmatprep.subr.mxu0 0.0
        %1396 = vmatpush1.xpose.msra.mxu0 0.0
        %1397 = vmatprep.subr.mxu0 0.0
        %1398 = vmatpush1.xpose.msra.mxu0 0.0
        %1399 = vmatprep.subr.mxu0 0.0
        %1400 = vmatpush1.xpose.msra.mxu0 0.0
        %1401 = vmatprep.subr.mxu0 0.0
        %1402 = vmatpush1.xpose.msra.mxu0 %v1375
        %1403 = vmatprep.subr.mxu0 0.0
        %1404 = vmatpush1.xpose.msra.mxu0 %v1372
        %1405 = vmatprep.subr.mxu0 0.0
        %1406 = vmatpush1.xpose.msra.mxu0 %v1369
        %1407 = vmatprep.subr.mxu0 0.0
        %1408 = vmatpush1.xpose.msra.mxu0 %v1366
        %1409 = vmatprep.subr.mxu0 0.0
        %1410 = vmatpush2.xpose.msra.mxu0 0.0
        %1411 = vmatprep.subr.mxu0 0.0
        %1412 = vmatpush2.xpose.msra.mxu0 0.0
        %1413 = vmatprep.subr.mxu0 0.0
        %1414 = vmatpush2.xpose.msra.mxu0 0.0
        %1415 = vmatprep.subr.mxu0 0.0
        %1416 = vmatpush2.xpose.msra.mxu0 0.0
        %1417 = vmatprep.subr.mxu0 0.0
        %1418 = vmatpush2.xpose.msra.mxu0 0.0
        %1419 = vmatprep.subr.mxu0 0.0
        %1420 = vmatpush2.xpose.msra.mxu0 0.0
        %1421 = vmatprep.subr.mxu0 0.0
        %1422 = vmatpush2.xpose.msra.mxu0 0.0
        %1423 = vmatprep.subr.mxu0 0.0
        %1424 = vmatpush2.xpose.msra.mxu0 0.0
        %1425 = vmatprep.subr.mxu0 0.0
        %1426 = vmatpush2.xpose.msra.mxu0 0.0
        %1427 = vmatprep.subr.mxu0 0.0
        %1428 = vmatpush2.xpose.msra.mxu0 0.0
        %1429 = vmatprep.subr.mxu0 0.0
        %1430 = vmatpush2.xpose.msra.mxu0 0.0
        %1431 = vmatprep.subr.mxu0 0.0
        %1432 = vmatpush2.xpose.msra.mxu0 0.0
        %1433 = vmatprep.subr.mxu0 0.0
        %1434 = vmatpush2.xpose.msra.mxu0 0.0
        %1435 = vmatprep.subr.mxu0 0.0
        %1436 = vmatpush2.xpose.msra.mxu0 0.0
        %1437 = vmatprep.subr.mxu0 0.0
        %1438 = vmatpush2.xpose.msra.mxu0 0.0
        %1439 = vmatprep.subr.mxu0 0.0
        %1440 = vmatpush2.xpose.msra.mxu0 0.0
        %1441 = vmatprep.mubr.f32.mxu0 0.0
        %1442 = vmatmul.mubr.f32.gmra.mxu0 %v1366
        %v1443 = vpop.f32.mrf.mxu0
        %v1444 = vadd.f32 0.0, %v1443
        %v1445 = vpop.f32.mrf.mxu0
        %1446 = vmatprep.mubr.f32.mxu0 0.0
        %1447 = vmatmul.mubr.f32.gmra.mxu0 %v1369
        %v1448 = vpop.f32.mrf.mxu0
        %v1449 = vadd.f32 0.0, %v1448
        %v1450 = vpop.f32.mrf.mxu0
        %1451 = vmatprep.mubr.f32.mxu0 0.0
        %1452 = vmatmul.mubr.f32.gmra.mxu0 %v1372
        %v1453 = vpop.f32.mrf.mxu0
        %v1454 = vadd.f32 0.0, %v1453
        %v1455 = vpop.f32.mrf.mxu0
        %1456 = vmatprep.mubr.f32.mxu0 0.0
        %1457 = vmatmul.mubr.f32.gmra.mxu0 %v1375
        %v1458 = vpop.f32.mrf.mxu0
        %v1459 = vadd.f32 0.0, %v1458
        %v1460 = vpop.f32.mrf.mxu0
        %1461 = vdwg.mxu0
        %v1463 = vsel %vm1355, %v628, 0
        %v1466 = vsel %vm1355, %v731, 0
        %v1469 = vsel %vm1355, %v834, 0
        %v1472 = vsel %vm1355, %v937, 0
        %1474 = vmatprep.subr.mxu0 0.0
        %1475 = vmatpush1.xpose.msra.mxu0 0.0
        %1476 = vmatprep.subr.mxu0 0.0
        %1477 = vmatpush1.xpose.msra.mxu0 0.0
        %1478 = vmatprep.subr.mxu0 0.0
        %1479 = vmatpush1.xpose.msra.mxu0 0.0
        %1480 = vmatprep.subr.mxu0 0.0
        %1481 = vmatpush1.xpose.msra.mxu0 0.0
        %1482 = vmatprep.subr.mxu0 0.0
        %1483 = vmatpush1.xpose.msra.mxu0 0.0
        %1484 = vmatprep.subr.mxu0 0.0
        %1485 = vmatpush1.xpose.msra.mxu0 0.0
        %1486 = vmatprep.subr.mxu0 0.0
        %1487 = vmatpush1.xpose.msra.mxu0 0.0
        %1488 = vmatprep.subr.mxu0 0.0
        %1489 = vmatpush1.xpose.msra.mxu0 0.0
        %1490 = vmatprep.subr.mxu0 0.0
        %1491 = vmatpush1.xpose.msra.mxu0 0.0
        %1492 = vmatprep.subr.mxu0 0.0
        %1493 = vmatpush1.xpose.msra.mxu0 0.0
        %1494 = vmatprep.subr.mxu0 0.0
        %1495 = vmatpush1.xpose.msra.mxu0 0.0
        %1496 = vmatprep.subr.mxu0 0.0
        %1497 = vmatpush1.xpose.msra.mxu0 0.0
        %1498 = vmatprep.subr.mxu0 0.0
        %1499 = vmatpush1.xpose.msra.mxu0 %v1375
        %1500 = vmatprep.subr.mxu0 0.0
        %1501 = vmatpush1.xpose.msra.mxu0 %v1372
        %1502 = vmatprep.subr.mxu0 0.0
        %1503 = vmatpush1.xpose.msra.mxu0 %v1369
        %1504 = vmatprep.subr.mxu0 0.0
        %1505 = vmatpush1.xpose.msra.mxu0 %v1366
        %1506 = vmatprep.subr.mxu0 0.0
        %1507 = vmatpush2.xpose.msra.mxu0 0.0
        %1508 = vmatprep.subr.mxu0 0.0
        %1509 = vmatpush2.xpose.msra.mxu0 0.0
        %1510 = vmatprep.subr.mxu0 0.0
        %1511 = vmatpush2.xpose.msra.mxu0 0.0
        %1512 = vmatprep.subr.mxu0 0.0
        %1513 = vmatpush2.xpose.msra.mxu0 0.0
        %1514 = vmatprep.subr.mxu0 0.0
        %1515 = vmatpush2.xpose.msra.mxu0 0.0
        %1516 = vmatprep.subr.mxu0 0.0
        %1517 = vmatpush2.xpose.msra.mxu0 0.0
        %1518 = vmatprep.subr.mxu0 0.0
        %1519 = vmatpush2.xpose.msra.mxu0 0.0
        %1520 = vmatprep.subr.mxu0 0.0
        %1521 = vmatpush2.xpose.msra.mxu0 0.0
        %1522 = vmatprep.subr.mxu0 0.0
        %1523 = vmatpush2.xpose.msra.mxu0 0.0
        %1524 = vmatprep.subr.mxu0 0.0
        %1525 = vmatpush2.xpose.msra.mxu0 0.0
        %1526 = vmatprep.subr.mxu0 0.0
        %1527 = vmatpush2.xpose.msra.mxu0 0.0
        %1528 = vmatprep.subr.mxu0 0.0
        %1529 = vmatpush2.xpose.msra.mxu0 0.0
        %1530 = vmatprep.subr.mxu0 0.0
        %1531 = vmatpush2.xpose.msra.mxu0 0.0
        %1532 = vmatprep.subr.mxu0 0.0
        %1533 = vmatpush2.xpose.msra.mxu0 0.0
        %1534 = vmatprep.subr.mxu0 0.0
        %1535 = vmatpush2.xpose.msra.mxu0 0.0
        %1536 = vmatprep.subr.mxu0 0.0
        %1537 = vmatpush2.xpose.msra.mxu0 0.0
        %1538 = vmatprep.mubr.f32.mxu0 0.0
        %1539 = vmatmul.mubr.f32.gmra.mxu0 %v1463
        %v1540 = vpop.f32.mrf.mxu0
        %v1541 = vadd.f32 0.0, %v1540
        %v1542 = vpop.f32.mrf.mxu0
        %1543 = vmatprep.mubr.f32.mxu0 0.0
        %1544 = vmatmul.mubr.f32.gmra.mxu0 %v1466
        %v1545 = vpop.f32.mrf.mxu0
        %v1546 = vadd.f32 0.0, %v1545
        %v1547 = vpop.f32.mrf.mxu0
        %1548 = vmatprep.mubr.f32.mxu0 0.0
        %1549 = vmatmul.mubr.f32.gmra.mxu0 %v1469
        %v1550 = vpop.f32.mrf.mxu0
        %v1551 = vadd.f32 0.0, %v1550
        %v1552 = vpop.f32.mrf.mxu0
        %1553 = vmatprep.mubr.f32.mxu0 0.0
        %1554 = vmatmul.mubr.f32.gmra.mxu0 %v1472
        %v1555 = vpop.f32.mrf.mxu0
        %v1556 = vadd.f32 0.0, %v1555
        %v1557 = vpop.f32.mrf.mxu0
        %1558 = vdwg.mxu0
        %1559 = vmatprep.subr.mxu0 0.0
        %1560 = vmatpush1.xpose.msra.mxu0 0.0
        %1561 = vmatprep.subr.mxu0 0.0
        %1562 = vmatpush1.xpose.msra.mxu0 0.0
        %1563 = vmatprep.subr.mxu0 0.0
        %1564 = vmatpush1.xpose.msra.mxu0 0.0
        %1565 = vmatprep.subr.mxu0 0.0
        %1566 = vmatpush1.xpose.msra.mxu0 0.0
        %1567 = vmatprep.subr.mxu0 0.0
        %1568 = vmatpush1.xpose.msra.mxu0 0.0
        %1569 = vmatprep.subr.mxu0 0.0
        %1570 = vmatpush1.xpose.msra.mxu0 0.0
        %1571 = vmatprep.subr.mxu0 0.0
        %1572 = vmatpush1.xpose.msra.mxu0 0.0
        %1573 = vmatprep.subr.mxu0 0.0
        %1574 = vmatpush1.xpose.msra.mxu0 0.0
        %1575 = vmatprep.subr.mxu0 0.0
        %1576 = vmatpush1.xpose.msra.mxu0 0.0
        %1577 = vmatprep.subr.mxu0 0.0
        %1578 = vmatpush1.xpose.msra.mxu0 0.0
        %1579 = vmatprep.subr.mxu0 0.0
        %1580 = vmatpush1.xpose.msra.mxu0 0.0
        %1581 = vmatprep.subr.mxu0 0.0
        %1582 = vmatpush1.xpose.msra.mxu0 0.0
        %1583 = vmatprep.subr.mxu0 0.0
        %1584 = vmatpush1.xpose.msra.mxu0 %v1472
        %1585 = vmatprep.subr.mxu0 0.0
        %1586 = vmatpush1.xpose.msra.mxu0 %v1469
        %1587 = vmatprep.subr.mxu0 0.0
        %1588 = vmatpush1.xpose.msra.mxu0 %v1466
        %1589 = vmatprep.subr.mxu0 0.0
        %1590 = vmatpush1.xpose.msra.mxu0 %v1463
        %1591 = vmatprep.subr.mxu0 0.0
        %1592 = vmatpush2.xpose.msra.mxu0 0.0
        %1593 = vmatprep.subr.mxu0 0.0
        %1594 = vmatpush2.xpose.msra.mxu0 0.0
        %1595 = vmatprep.subr.mxu0 0.0
        %1596 = vmatpush2.xpose.msra.mxu0 0.0
        %1597 = vmatprep.subr.mxu0 0.0
        %1598 = vmatpush2.xpose.msra.mxu0 0.0
        %1599 = vmatprep.subr.mxu0 0.0
        %1600 = vmatpush2.xpose.msra.mxu0 0.0
        %1601 = vmatprep.subr.mxu0 0.0
        %1602 = vmatpush2.xpose.msra.mxu0 0.0
        %1603 = vmatprep.subr.mxu0 0.0
        %1604 = vmatpush2.xpose.msra.mxu0 0.0
        %1605 = vmatprep.subr.mxu0 0.0
        %1606 = vmatpush2.xpose.msra.mxu0 0.0
        %1607 = vmatprep.subr.mxu0 0.0
        %1608 = vmatpush2.xpose.msra.mxu0 0.0
        %1609 = vmatprep.subr.mxu0 0.0
        %1610 = vmatpush2.xpose.msra.mxu0 0.0
        %1611 = vmatprep.subr.mxu0 0.0
        %1612 = vmatpush2.xpose.msra.mxu0 0.0
        %1613 = vmatprep.subr.mxu0 0.0
        %1614 = vmatpush2.xpose.msra.mxu0 0.0
        %1615 = vmatprep.subr.mxu0 0.0
        %1616 = vmatpush2.xpose.msra.mxu0 0.0
        %1617 = vmatprep.subr.mxu0 0.0
        %1618 = vmatpush2.xpose.msra.mxu0 0.0
        %1619 = vmatprep.subr.mxu0 0.0
        %1620 = vmatpush2.xpose.msra.mxu0 0.0
        %1621 = vmatprep.subr.mxu0 0.0
        %1622 = vmatpush2.xpose.msra.mxu0 0.0
        %1623 = vmatprep.mubr.f32.mxu0 0.0
        %1624 = vmatmul.mubr.f32.gmra.mxu0 %v1366
        %v1625 = vpop.f32.mrf.mxu0
        %v1626 = vadd.f32 0.0, %v1625
        %v1627 = vpop.f32.mrf.mxu0
        %1628 = vmatprep.mubr.f32.mxu0 0.0
        %1629 = vmatmul.mubr.f32.gmra.mxu0 %v1369
        %v1630 = vpop.f32.mrf.mxu0
        %v1631 = vadd.f32 0.0, %v1630
        %v1632 = vpop.f32.mrf.mxu0
        %1633 = vmatprep.mubr.f32.mxu0 0.0
        %1634 = vmatmul.mubr.f32.gmra.mxu0 %v1372
        %v1635 = vpop.f32.mrf.mxu0
        %v1636 = vadd.f32 0.0, %v1635
        %v1637 = vpop.f32.mrf.mxu0
        %1638 = vmatprep.mubr.f32.mxu0 0.0
        %1639 = vmatmul.mubr.f32.gmra.mxu0 %v1375
        %v1640 = vpop.f32.mrf.mxu0
        %v1641 = vadd.f32 0.0, %v1640
        %v1642 = vpop.f32.mrf.mxu0
        %1643 = vdwg.mxu0
        %1644 = vmatprep.subr.mxu0 0.0
        %1645 = vmatpush1.xpose.msra.mxu0 0.0
        %1646 = vmatprep.subr.mxu0 0.0
        %1647 = vmatpush1.xpose.msra.mxu0 0.0
        %1648 = vmatprep.subr.mxu0 0.0
        %1649 = vmatpush1.xpose.msra.mxu0 0.0
        %1650 = vmatprep.subr.mxu0 0.0
        %1651 = vmatpush1.xpose.msra.mxu0 0.0
        %1652 = vmatprep.subr.mxu0 0.0
        %1653 = vmatpush1.xpose.msra.mxu0 0.0
        %1654 = vmatprep.subr.mxu0 0.0
        %1655 = vmatpush1.xpose.msra.mxu0 0.0
        %1656 = vmatprep.subr.mxu0 0.0
        %1657 = vmatpush1.xpose.msra.mxu0 0.0
        %1658 = vmatprep.subr.mxu0 0.0
        %1659 = vmatpush1.xpose.msra.mxu0 0.0
        %1660 = vmatprep.subr.mxu0 0.0
        %1661 = vmatpush1.xpose.msra.mxu0 0.0
        %1662 = vmatprep.subr.mxu0 0.0
        %1663 = vmatpush1.xpose.msra.mxu0 0.0
        %1664 = vmatprep.subr.mxu0 0.0
        %1665 = vmatpush1.xpose.msra.mxu0 0.0
        %1666 = vmatprep.subr.mxu0 0.0
        %1667 = vmatpush1.xpose.msra.mxu0 0.0
        %1668 = vmatprep.subr.mxu0 0.0
        %1669 = vmatpush1.xpose.msra.mxu0 %v1472
        %1670 = vmatprep.subr.mxu0 0.0
        %1671 = vmatpush1.xpose.msra.mxu0 %v1469
        %1672 = vmatprep.subr.mxu0 0.0
        %1673 = vmatpush1.xpose.msra.mxu0 %v1466
        %1674 = vmatprep.subr.mxu0 0.0
        %1675 = vmatpush1.xpose.msra.mxu0 %v1463
        %1676 = vmatprep.subr.mxu0 0.0
        %1677 = vmatpush2.xpose.msra.mxu0 0.0
        %1678 = vmatprep.subr.mxu0 0.0
        %1679 = vmatpush2.xpose.msra.mxu0 0.0
        %1680 = vmatprep.subr.mxu0 0.0
        %1681 = vmatpush2.xpose.msra.mxu0 0.0
        %1682 = vmatprep.subr.mxu0 0.0
        %1683 = vmatpush2.xpose.msra.mxu0 0.0
        %1684 = vmatprep.subr.mxu0 0.0
        %1685 = vmatpush2.xpose.msra.mxu0 0.0
        %1686 = vmatprep.subr.mxu0 0.0
        %1687 = vmatpush2.xpose.msra.mxu0 0.0
        %1688 = vmatprep.subr.mxu0 0.0
        %1689 = vmatpush2.xpose.msra.mxu0 0.0
        %1690 = vmatprep.subr.mxu0 0.0
        %1691 = vmatpush2.xpose.msra.mxu0 0.0
        %1692 = vmatprep.subr.mxu0 0.0
        %1693 = vmatpush2.xpose.msra.mxu0 0.0
        %1694 = vmatprep.subr.mxu0 0.0
        %1695 = vmatpush2.xpose.msra.mxu0 0.0
        %1696 = vmatprep.subr.mxu0 0.0
        %1697 = vmatpush2.xpose.msra.mxu0 0.0
        %1698 = vmatprep.subr.mxu0 0.0
        %1699 = vmatpush2.xpose.msra.mxu0 0.0
        %1700 = vmatprep.subr.mxu0 0.0
        %1701 = vmatpush2.xpose.msra.mxu0 0.0
        %1702 = vmatprep.subr.mxu0 0.0
        %1703 = vmatpush2.xpose.msra.mxu0 0.0
        %1704 = vmatprep.subr.mxu0 0.0
        %1705 = vmatpush2.xpose.msra.mxu0 0.0
        %1706 = vmatprep.subr.mxu0 0.0
        %1707 = vmatpush2.xpose.msra.mxu0 0.0
        %1708 = vmatprep.mubr.f32.mxu0 0.0
        %1709 = vmatmul.mubr.f32.gmra.mxu0 %v1463
        %v1710 = vpop.f32.mrf.mxu0
        %v1711 = vadd.f32 %v1444, %v1710
        %v1712 = vpop.f32.mrf.mxu0
        %1713 = vmatprep.mubr.f32.mxu0 0.0
        %1714 = vmatmul.mubr.f32.gmra.mxu0 %v1466
        %v1715 = vpop.f32.mrf.mxu0
        %v1716 = vadd.f32 %v1449, %v1715
        %v1717 = vpop.f32.mrf.mxu0
        %1718 = vmatprep.mubr.f32.mxu0 0.0
        %1719 = vmatmul.mubr.f32.gmra.mxu0 %v1469
        %v1720 = vpop.f32.mrf.mxu0
        %v1721 = vadd.f32 %v1454, %v1720
        %v1722 = vpop.f32.mrf.mxu0
        %1723 = vmatprep.mubr.f32.mxu0 0.0
        %1724 = vmatmul.mubr.f32.gmra.mxu0 %v1472
        %v1725 = vpop.f32.mrf.mxu0
        %v1726 = vadd.f32 %v1459, %v1725
        %v1727 = vpop.f32.mrf.mxu0
        %1728 = vdwg.mxu0
        %vm1729 = vcmask 203776
        %1730 = vst.msk [vmem:[%s439] sm:$0xff] %vm1729, %v1711
        %1731 = vst.msk [vmem:[%s439 + $0x8] sm:$0xff] %vm1729, %v1716
        %1732 = vst.msk [vmem:[%s439 + $0x10] sm:$0xff] %vm1729, %v1721
        %vm1733 = vcmask 196608
        %1734 = vst.msk [vmem:[%s439 + $0x18] sm:$0x1] %vm1733, %v1726
        %v1735 = vsub.f32 %v1541, %v1626
        %v1736 = vsub.f32 %v1546, %v1631
        %v1737 = vsub.f32 %v1551, %v1636
        %v1738 = vsub.f32 %v1556, %v1641
        %1739 = vst.msk [vmem:[%s444] sm:$0xff] %vm1729, %v1735
        %1740 = vst.msk [vmem:[%s444 + $0x8] sm:$0xff] %vm1729, %v1736
        %1741 = vst.msk [vmem:[%s444 + $0x10] sm:$0xff] %vm1729, %v1737
        %1742 = vst.msk [vmem:[%s444 + $0x18] sm:$0x1] %vm1733, %v1738
        %v1744 = vsel %vm1355, %v1354, 0
        %1746 = vmatprep.subr.mxu0 0.0
        %1747 = vmatpush1.xpose.msra.mxu0 0.0
        %1748 = vmatprep.subr.mxu0 0.0
        %1749 = vmatpush1.xpose.msra.mxu0 0.0
        %1750 = vmatprep.subr.mxu0 0.0
        %1751 = vmatpush1.xpose.msra.mxu0 0.0
        %1752 = vmatprep.subr.mxu0 0.0
        %1753 = vmatpush1.xpose.msra.mxu0 0.0
        %1754 = vmatprep.subr.mxu0 0.0
        %1755 = vmatpush1.xpose.msra.mxu0 0.0
        %1756 = vmatprep.subr.mxu0 0.0
        %1757 = vmatpush1.xpose.msra.mxu0 0.0
        %1758 = vmatprep.subr.mxu0 0.0
        %1759 = vmatpush1.xpose.msra.mxu0 0.0
        %1760 = vmatprep.subr.mxu0 0.0
        %1761 = vmatpush1.xpose.msra.mxu0 0.0
        %1762 = vmatprep.subr.mxu0 0.0
        %1763 = vmatpush1.xpose.msra.mxu0 0.0
        %1764 = vmatprep.subr.mxu0 0.0
        %1765 = vmatpush1.xpose.msra.mxu0 0.0
        %1766 = vmatprep.subr.mxu0 0.0
        %1767 = vmatpush1.xpose.msra.mxu0 0.0
        %1768 = vmatprep.subr.mxu0 0.0
        %1769 = vmatpush1.xpose.msra.mxu0 0.0
        %1770 = vmatprep.subr.mxu0 0.0
        %1771 = vmatpush1.xpose.msra.mxu0 0.0
        %1772 = vmatprep.subr.mxu0 0.0
        %1773 = vmatpush1.xpose.msra.mxu0 0.0
        %1774 = vmatprep.subr.mxu0 0.0
        %1775 = vmatpush1.xpose.msra.mxu0 0.0
        %1776 = vmatprep.subr.mxu0 0.0
        %1777 = vmatpush1.xpose.msra.mxu0 %v1744
        %1778 = vmatprep.subr.mxu0 0.0
        %1779 = vmatpush2.xpose.msra.mxu0 0.0
        %1780 = vmatprep.subr.mxu0 0.0
        %1781 = vmatpush2.xpose.msra.mxu0 0.0
        %1782 = vmatprep.subr.mxu0 0.0
        %1783 = vmatpush2.xpose.msra.mxu0 0.0
        %1784 = vmatprep.subr.mxu0 0.0
        %1785 = vmatpush2.xpose.msra.mxu0 0.0
        %1786 = vmatprep.subr.mxu0 0.0
        %1787 = vmatpush2.xpose.msra.mxu0 0.0
        %1788 = vmatprep.subr.mxu0 0.0
        %1789 = vmatpush2.xpose.msra.mxu0 0.0
        %1790 = vmatprep.subr.mxu0 0.0
        %1791 = vmatpush2.xpose.msra.mxu0 0.0
        %1792 = vmatprep.subr.mxu0 0.0
        %1793 = vmatpush2.xpose.msra.mxu0 0.0
        %1794 = vmatprep.subr.mxu0 0.0
        %1795 = vmatpush2.xpose.msra.mxu0 0.0
        %1796 = vmatprep.subr.mxu0 0.0
        %1797 = vmatpush2.xpose.msra.mxu0 0.0
        %1798 = vmatprep.subr.mxu0 0.0
        %1799 = vmatpush2.xpose.msra.mxu0 0.0
        %1800 = vmatprep.subr.mxu0 0.0
        %1801 = vmatpush2.xpose.msra.mxu0 0.0
        %1802 = vmatprep.subr.mxu0 0.0
        %1803 = vmatpush2.xpose.msra.mxu0 0.0
        %1804 = vmatprep.subr.mxu0 0.0
        %1805 = vmatpush2.xpose.msra.mxu0 0.0
        %1806 = vmatprep.subr.mxu0 0.0
        %1807 = vmatpush2.xpose.msra.mxu0 0.0
        %1808 = vmatprep.subr.mxu0 0.0
        %1809 = vmatpush2.xpose.msra.mxu0 0.0
        %1810 = vmatprep.mubr.f32.mxu0 0.0
        %1811 = vmatmul.mubr.f32.gmra.mxu0 %v1463
        %v1812 = vpop.f32.mrf.mxu0
        %v1813 = vadd.f32 0.0, %v1812
        %v1814 = vpop.f32.mrf.mxu0
        %1815 = vmatprep.mubr.f32.mxu0 0.0
        %1816 = vmatmul.mubr.f32.gmra.mxu0 %v1466
        %v1817 = vpop.f32.mrf.mxu0
        %v1818 = vadd.f32 0.0, %v1817
        %v1819 = vpop.f32.mrf.mxu0
        %1820 = vmatprep.mubr.f32.mxu0 0.0
        %1821 = vmatmul.mubr.f32.gmra.mxu0 %v1469
        %v1822 = vpop.f32.mrf.mxu0
        %v1823 = vadd.f32 0.0, %v1822
        %v1824 = vpop.f32.mrf.mxu0
        %1825 = vmatprep.mubr.f32.mxu0 0.0
        %1826 = vmatmul.mubr.f32.gmra.mxu0 %v1472
        %v1827 = vpop.f32.mrf.mxu0
        %v1828 = vadd.f32 0.0, %v1827
        %v1829 = vpop.f32.mrf.mxu0
        %1830 = vdwg.mxu0
        %vm1831 = vcmask 31744
        %1832 = vst.msk [vmem:[%s449] sm:$0xff] %vm1831, %v1813
        %1833 = vst.msk [vmem:[%s449 + $0x8] sm:$0xff] %vm1831, %v1818
        %1834 = vst.msk [vmem:[%s449 + $0x10] sm:$0xff] %vm1831, %v1823
        %vm1835 = vcmask 24576
        %1836 = vst.msk [vmem:[%s449 + $0x18] sm:$0x1] %vm1835, %v1828
        %1837 = vmatprep.subr.mxu0 0.0
        %1838 = vmatpush1.xpose.msra.mxu0 0.0
        %1839 = vmatprep.subr.mxu0 0.0
        %1840 = vmatpush1.xpose.msra.mxu0 0.0
        %1841 = vmatprep.subr.mxu0 0.0
        %1842 = vmatpush1.xpose.msra.mxu0 0.0
        %1843 = vmatprep.subr.mxu0 0.0
        %1844 = vmatpush1.xpose.msra.mxu0 0.0
        %1845 = vmatprep.subr.mxu0 0.0
        %1846 = vmatpush1.xpose.msra.mxu0 0.0
        %1847 = vmatprep.subr.mxu0 0.0
        %1848 = vmatpush1.xpose.msra.mxu0 0.0
        %1849 = vmatprep.subr.mxu0 0.0
        %1850 = vmatpush1.xpose.msra.mxu0 0.0
        %1851 = vmatprep.subr.mxu0 0.0
        %1852 = vmatpush1.xpose.msra.mxu0 0.0
        %1853 = vmatprep.subr.mxu0 0.0
        %1854 = vmatpush1.xpose.msra.mxu0 0.0
        %1855 = vmatprep.subr.mxu0 0.0
        %1856 = vmatpush1.xpose.msra.mxu0 0.0
        %1857 = vmatprep.subr.mxu0 0.0
        %1858 = vmatpush1.xpose.msra.mxu0 0.0
        %1859 = vmatprep.subr.mxu0 0.0
        %1860 = vmatpush1.xpose.msra.mxu0 0.0
        %1861 = vmatprep.subr.mxu0 0.0
        %1862 = vmatpush1.xpose.msra.mxu0 0.0
        %1863 = vmatprep.subr.mxu0 0.0
        %1864 = vmatpush1.xpose.msra.mxu0 0.0
        %1865 = vmatprep.subr.mxu0 0.0
        %1866 = vmatpush1.xpose.msra.mxu0 0.0
        %1867 = vmatprep.subr.mxu0 0.0
        %1868 = vmatpush1.xpose.msra.mxu0 %v1744
        %1869 = vmatprep.subr.mxu0 0.0
        %1870 = vmatpush2.xpose.msra.mxu0 0.0
        %1871 = vmatprep.subr.mxu0 0.0
        %1872 = vmatpush2.xpose.msra.mxu0 0.0
        %1873 = vmatprep.subr.mxu0 0.0
        %1874 = vmatpush2.xpose.msra.mxu0 0.0
        %1875 = vmatprep.subr.mxu0 0.0
        %1876 = vmatpush2.xpose.msra.mxu0 0.0
        %1877 = vmatprep.subr.mxu0 0.0
        %1878 = vmatpush2.xpose.msra.mxu0 0.0
        %1879 = vmatprep.subr.mxu0 0.0
        %1880 = vmatpush2.xpose.msra.mxu0 0.0
        %1881 = vmatprep.subr.mxu0 0.0
        %1882 = vmatpush2.xpose.msra.mxu0 0.0
        %1883 = vmatprep.subr.mxu0 0.0
        %1884 = vmatpush2.xpose.msra.mxu0 0.0
        %1885 = vmatprep.subr.mxu0 0.0
        %1886 = vmatpush2.xpose.msra.mxu0 0.0
        %1887 = vmatprep.subr.mxu0 0.0
        %1888 = vmatpush2.xpose.msra.mxu0 0.0
        %1889 = vmatprep.subr.mxu0 0.0
        %1890 = vmatpush2.xpose.msra.mxu0 0.0
        %1891 = vmatprep.subr.mxu0 0.0
        %1892 = vmatpush2.xpose.msra.mxu0 0.0
        %1893 = vmatprep.subr.mxu0 0.0
        %1894 = vmatpush2.xpose.msra.mxu0 0.0
        %1895 = vmatprep.subr.mxu0 0.0
        %1896 = vmatpush2.xpose.msra.mxu0 0.0
        %1897 = vmatprep.subr.mxu0 0.0
        %1898 = vmatpush2.xpose.msra.mxu0 0.0
        %1899 = vmatprep.subr.mxu0 0.0
        %1900 = vmatpush2.xpose.msra.mxu0 0.0
        %1901 = vmatprep.mubr.f32.mxu0 0.0
        %1902 = vmatmul.mubr.f32.gmra.mxu0 %v1366
        %v1903 = vpop.f32.mrf.mxu0
        %v1904 = vadd.f32 0.0, %v1903
        %v1905 = vpop.f32.mrf.mxu0
        %1906 = vmatprep.mubr.f32.mxu0 0.0
        %1907 = vmatmul.mubr.f32.gmra.mxu0 %v1369
        %v1908 = vpop.f32.mrf.mxu0
        %v1909 = vadd.f32 0.0, %v1908
        %v1910 = vpop.f32.mrf.mxu0
        %1911 = vmatprep.mubr.f32.mxu0 0.0
        %1912 = vmatmul.mubr.f32.gmra.mxu0 %v1372
        %v1913 = vpop.f32.mrf.mxu0
        %v1914 = vadd.f32 0.0, %v1913
        %v1915 = vpop.f32.mrf.mxu0
        %1916 = vmatprep.mubr.f32.mxu0 0.0
        %1917 = vmatmul.mubr.f32.gmra.mxu0 %v1375
        %v1918 = vpop.f32.mrf.mxu0
        %v1919 = vadd.f32 0.0, %v1918
        %v1920 = vpop.f32.mrf.mxu0
        %1921 = vdwg.mxu0
        %1922 = vst.msk [vmem:[%s454] sm:$0xff] %vm1831, %v1904
        %1923 = vst.msk [vmem:[%s454 + $0x8] sm:$0xff] %vm1831, %v1909
        %1924 = vst.msk [vmem:[%s454 + $0x10] sm:$0xff] %vm1831, %v1914
        %1925 = vst.msk [vmem:[%s454 + $0x18] sm:$0x1] %vm1835, %v1919
        %p1926 = scmp.lt.s32.totalorder %s23, 1
        %s1927 = scalar_select %p1926, %s23, 1
        %s1928 = smul.addr %s1927, 4
        %s1929 = smul.addr %s1928, 8
        %s1930 = scalar_lea.vmem %s4, %s1929
        %p1931 = scmp.lt.s32.totalorder %s23, 1
        %s1932 = scalar_select %p1931, %s23, 1
        %s1933 = smul.addr %s1932, 4
        %s1934 = smul.addr %s1933, 8
        %s1935 = scalar_lea.vmem %s5, %s1934
        %p1936 = scmp.lt.s32.totalorder %s23, 1
        %s1937 = scalar_select %p1936, %s23, 1
        %s1938 = smul.addr %s1937, 4
        %s1939 = smul.addr %s1938, 8
        %s1940 = scalar_lea.vmem %s6, %s1939
        %p1941 = scmp.lt.s32.totalorder %s23, 1
        %s1942 = scalar_select %p1941, %s23, 1
        %s1943 = smul.addr %s1942, 4
        %s1944 = smul.addr %s1943, 8
        %s1945 = scalar_lea.vmem %s7, %s1944
        %p1946 = scmp.lt.s32.totalorder %s23, 1
        %s1947 = scalar_select %p1946, %s23, 1
        %s1948 = smul.addr %s1947, 4
        %s1949 = smul.addr %s1948, 8
        %s1950 = scalar_lea.vmem %s8, %s1949
        %p1951 = scmp.lt.s32.totalorder %s23, 1
        %s1952 = scalar_select %p1951, %s23, 1
        %s1953 = smul.addr %s1952, 4
        %s1954 = smul.addr %s1953, 8
        %s1955 = scalar_lea.vmem %s9, %s1954
        // Predicated region
        $region49: #{_lambda_.2} parent=35 // pred_check
          %p1956 = pneg %p135
        $region50: #{_lambda_.2} parent=35 // pred_check_branch
          %1958 = sbr.rel (%p1956) target = $region52
        $region51: #{_lambda_.2} parent=35 // pred_region
          _
        $region52: #{_lambda_.2} parent=35 // pred_fallthru
          _
        // Predicated region
        $region53: #{_lambda_.2} parent=35 // pred_check
          %p1959 = pneg %p161
        $region54: #{_lambda_.2} parent=35 // pred_check_branch
          %1961 = sbr.rel (%p1959) target = $region56
        $region55: #{_lambda_.2} parent=35 // pred_region
          _
        $region56: #{_lambda_.2} parent=35 // pred_fallthru
          _
        // Predicated region
        $region57: #{_lambda_.2} parent=35 // pred_check
          %p1962 = pneg %p187
        $region58: #{_lambda_.2} parent=35 // pred_check_branch
          %1964 = sbr.rel (%p1962) target = $region60
        $region59: #{_lambda_.2} parent=35 // pred_region
          _
        $region60: #{_lambda_.2} parent=35 // pred_fallthru
          _
        // Predicated region
        $region61: #{_lambda_.2} parent=35 // pred_check
          %p1965 = pneg %p213
        $region62: #{_lambda_.2} parent=35 // pred_check_branch
          %1967 = sbr.rel (%p1965) target = $region64
        $region63: #{_lambda_.2} parent=35 // pred_region
          _
        $region64: #{_lambda_.2} parent=35 // pred_fallthru
          _
        // Predicated region
        $region65: #{_lambda_.2} parent=35 // pred_check
          %p1968 = pneg %p239
        $region66: #{_lambda_.2} parent=35 // pred_check_branch
          %1970 = sbr.rel (%p1968) target = $region68
        $region67: #{_lambda_.2} parent=35 // pred_region
          _
        $region68: #{_lambda_.2} parent=35 // pred_fallthru
          _
        // Predicated region
        $region69: #{_lambda_.2} parent=35 // pred_check
          %p1971 = pneg %p265
        $region70: #{_lambda_.2} parent=35 // pred_check_branch
          %1973 = sbr.rel (%p1971) target = $region72
        $region71: #{_lambda_.2} parent=35 // pred_region
          _
        $region72: #{_lambda_.2} parent=35 // pred_fallthru
          _
      $region36: #{_lambda_.2} parent=5 // pred_fallthru
        _
      %p1974 = scmp.le.s32.totalorder 2, %s18
      // Predicated region
      $region73: #{_lambda_.2} parent=5 // pred_check
        %p1975 = pneg %p1974
      $region74: #{_lambda_.2} parent=5 // pred_check_branch
        %1977 = sbr.rel (%p1975) target = $region76
      $region75: #{_lambda_.2} parent=5 // pred_region
        %s1978 = ssub.s32 %s18, 2
        // Predicated region
        $region77: #{_lambda_.2} parent=75 // pred_check
          %p1979 = pneg %p141
        $region78: #{_lambda_.2} parent=75 // pred_check_branch
          %1981 = sbr.rel (%p1979) target = $region80
        $region79: #{_lambda_.2} parent=75 // pred_region
          %p1982 = scmp.lt.s32.totalorder %s24, 1
          %s1983 = scalar_select %p1982, %s24, 1
          %s1984 = smul.addr %s1983, 4
          %s1985 = smul.addr %s1984, 8
          %s1986 = scalar_lea.vmem %s4, %s1985
        $region80: #{_lambda_.2} parent=75 // pred_fallthru
          _
        // Predicated region
        $region81: #{_lambda_.2} parent=75 // pred_check
          %p1987 = pneg %p167
        $region82: #{_lambda_.2} parent=75 // pred_check_branch
          %1989 = sbr.rel (%p1987) target = $region84
        $region83: #{_lambda_.2} parent=75 // pred_region
          %p1990 = scmp.lt.s32.totalorder %s24, 1
          %s1991 = scalar_select %p1990, %s24, 1
          %s1992 = smul.addr %s1991, 4
          %s1993 = smul.addr %s1992, 8
          %s1994 = scalar_lea.vmem %s5, %s1993
        $region84: #{_lambda_.2} parent=75 // pred_fallthru
          _
        // Predicated region
        $region85: #{_lambda_.2} parent=75 // pred_check
          %p1995 = pneg %p193
        $region86: #{_lambda_.2} parent=75 // pred_check_branch
          %1997 = sbr.rel (%p1995) target = $region88
        $region87: #{_lambda_.2} parent=75 // pred_region
          %p1998 = scmp.lt.s32.totalorder %s24, 1
          %s1999 = scalar_select %p1998, %s24, 1
          %s2000 = smul.addr %s1999, 4
          %s2001 = smul.addr %s2000, 8
          %s2002 = scalar_lea.vmem %s6, %s2001
        $region88: #{_lambda_.2} parent=75 // pred_fallthru
          _
        // Predicated region
        $region89: #{_lambda_.2} parent=75 // pred_check
          %p2003 = pneg %p219
        $region90: #{_lambda_.2} parent=75 // pred_check_branch
          %2005 = sbr.rel (%p2003) target = $region92
        $region91: #{_lambda_.2} parent=75 // pred_region
          %p2006 = scmp.lt.s32.totalorder %s24, 1
          %s2007 = scalar_select %p2006, %s24, 1
          %s2008 = smul.addr %s2007, 4
          %s2009 = smul.addr %s2008, 8
          %s2010 = scalar_lea.vmem %s7, %s2009
        $region92: #{_lambda_.2} parent=75 // pred_fallthru
          _
        // Predicated region
        $region93: #{_lambda_.2} parent=75 // pred_check
          %p2011 = pneg %p245
        $region94: #{_lambda_.2} parent=75 // pred_check_branch
          %2013 = sbr.rel (%p2011) target = $region96
        $region95: #{_lambda_.2} parent=75 // pred_region
          %p2014 = scmp.lt.s32.totalorder %s24, 1
          %s2015 = scalar_select %p2014, %s24, 1
          %s2016 = smul.addr %s2015, 4
          %s2017 = smul.addr %s2016, 8
          %s2018 = scalar_lea.vmem %s8, %s2017
        $region96: #{_lambda_.2} parent=75 // pred_fallthru
          _
        // Predicated region
        $region97: #{_lambda_.2} parent=75 // pred_check
          %p2019 = pneg %p271
        $region98: #{_lambda_.2} parent=75 // pred_check_branch
          %2021 = sbr.rel (%p2019) target = $region100
        $region99: #{_lambda_.2} parent=75 // pred_region
          %p2022 = scmp.lt.s32.totalorder %s24, 1
          %s2023 = scalar_select %p2022, %s24, 1
          %s2024 = smul.addr %s2023, 4
          %s2025 = smul.addr %s2024, 8
          %s2026 = scalar_lea.vmem %s9, %s2025
        $region100: #{_lambda_.2} parent=75 // pred_fallthru
          _
      $region76: #{_lambda_.2} parent=5 // pred_fallthru
        _
    $region6: #{_lambda_.2} parent=1 // loop_footer
      %s22 = sadd.s32 1, %s18
    $region7: #{_lambda_.2} parent=1 // loop_footer_branch
      %17 = sbr.rel target = $region3
    $region8: #{_lambda_.2} parent=1 // loop_exit
      _
    %2027 = vsyncpa [#allocation3], 1
    %s2028 = scalar_lea.sflag [#allocation3], 1
    %2029 = vsyncpa %s2028, 1
    %2030 = vsyncpa [#allocation5], 1

// kernel: custom-call.9
$region0: #{custom-call.9}
  %s0 = inlined_call_operand.vmem [shape: f32[2,1,50,50], index: 0, kind: input, shape index: {}]
  %s1 = inlined_call_operand.vmem [shape: f32[2,1,50,50], index: 1, kind: output, shape index: {}]
  $region1: #{custom-call.9} parent=0
    #allocation0 [shape = 'u8[57344]{0}', space=vmem, size = 0xe000, scoped, tag = 'operand span for operand 0']
    #allocation1 [shape = 'u8[57344]{0}', space=vmem, size = 0xe000, scoped, tag = 'operand span for operand 1']
    loop: start=0, step=1, limit=4
    $region2: #{custom-call.9} parent=1 // loop_pre_header
      _
    $region3: #{custom-call.9} parent=1 // loop_header
      %s3 = sphi 0, %s7
      %p4 = scmp.ge.s32.totalorder %s3, 4
      %s10 = sphi 0, %s36
      %s11 = sphi 0, %s32
      %s12 = sphi 0, %s28
      %s13 = sphi 0, %s24
      %s14 = sphi 0, %s10
      %s15 = sphi 0, %s11
      %s16 = sphi 0, %s12
      %s17 = sphi 0, %s13
      %s18 = sphi 0, %s14
      %s19 = sphi 0, %s15
      %s20 = sphi 0, %s16
      %s21 = sphi 0, %s17
    $region4: #{custom-call.9} parent=1 // loop_header_branch
      %6 = sbr.rel (%p4) target = $region8
    $region5: #{custom-call.9} parent=1 // loop_body
      %s8 = ssub.s32 %s3, 1
      %s9 = ssub.s32 %s3, 2
      %s22 = sadd.s32 1, %s13
      %p23 = scmp.ge.s32.totalorder %s22, 1
      %s24 = scalar_select %p23, 0, %s22
      %s25 = sadd.s32 1, %s12
      %s26 = scalar_select %p23, %s25, %s12
      %p27 = scmp.ge.s32.totalorder %s26, 1
      %s28 = scalar_select %p27, 0, %s26
      %s29 = sadd.s32 1, %s11
      %s30 = scalar_select %p27, %s29, %s11
      %p31 = scmp.ge.s32.totalorder %s30, 1
      %s32 = scalar_select %p31, 0, %s30
      %s33 = sadd.s32 1, %s10
      %s34 = scalar_select %p31, %s33, %s10
      %p35 = scmp.ge.s32.totalorder %s34, 2
      %s36 = scalar_select %p35, 0, %s34
      %p37 = scmp.le.s32.totalorder 1, %s3
      %p38 = scmp.lt.s32.totalorder %s3, 3
      %p39 = pnand %p37, %p38
      %p40 = pneg %p39
      // Predicated region
      $region9: #{custom-call.9} parent=5 // pred_check
        _
      $region10: #{custom-call.9} parent=5 // pred_check_branch
        %42 = sbr.rel (%p39) target = $region12
      $region11: #{custom-call.9} parent=5 // pred_region
        %s43 = ssub.s32 %s3, 1
      $region12: #{custom-call.9} parent=5 // pred_fallthru
        _
      %p44 = scmp.lt.s32.totalorder %s3, 2
      // Predicated region
      $region13: #{custom-call.9} parent=5 // pred_check
        %p45 = pneg %p44
      $region14: #{custom-call.9} parent=5 // pred_check_branch
        %47 = sbr.rel (%p45) target = $region16
      $region15: #{custom-call.9} parent=5 // pred_region
        %s48 = sand.u32 %s3, 1
        %s49 = sand.u32 %s3, 1
        %s50 = smul.addr %s49, 56
        %s51 = scalar_lea.vmem [#allocation0], %s50
        %s52 = sadd.s32 %s13, %s12
        %s53 = smul.addr %s11, 7
        %s54 = sadd.s32 %s52, %s53
        %s55 = smul.addr %s10, 7
        %s56 = sadd.s32 %s54, %s55
        %s57 = smul.addr %s56, 8
        %s58 = scalar_lea.vmem %s0, %s57
        // Predicated region
        $region17: #{custom-call.9} parent=15 // pred_check
          _
        $region18: #{custom-call.9} parent=15 // pred_check_branch
          %60 = sbr.rel (0) target = $region20
        $region19: #{custom-call.9} parent=15 // pred_region
          // Predicated region
          $region21: #{custom-call.9} parent=19 // pred_check
            _
          $region22: #{custom-call.9} parent=19 // pred_check_branch
            %62 = sbr.rel (0) target = $region24
          $region23: #{custom-call.9} parent=19 // pred_region
            // Predicated region
            $region36: #{custom-call.9} parent=23 // pred_check
              _
            $region37: #{custom-call.9} parent=23 // pred_check_branch
              %90 = sbr.rel (0) target = $region39
            $region38: #{custom-call.9} parent=23 // pred_region
              loop: start=0, step=1, limit=1
              $region40: #{custom-call.9} parent=38 // loop_pre_header
                _
              $region41: #{custom-call.9} parent=38 // loop_header
                %s92 = sphi 0, %s96
                %p93 = scmp.ge.s32.totalorder %s92, 1
                %s97 = sphi %s58, %s58
                %s98 = sphi %s51, %s51
              $region42: #{custom-call.9} parent=38 // loop_header_branch
                %95 = sbr.rel (%p93) target = $region46
              $region43: #{custom-call.9} parent=38 // loop_body
                %v99 = vld [vmem:[%s97] sm:$0xff]
                %100 = vst [vmem:[%s98] sm:$0xff] %v99
                %v101 = vld [vmem:[%s97 + $0x8] sm:$0xff]
                %102 = vst [vmem:[%s98 + $0x8] sm:$0xff] %v101
                %v103 = vld [vmem:[%s97 + $0x10] sm:$0xff]
                %104 = vst [vmem:[%s98 + $0x10] sm:$0xff] %v103
                %v105 = vld [vmem:[%s97 + $0x18] sm:$0xff]
                %106 = vst [vmem:[%s98 + $0x18] sm:$0xff] %v105
                %v107 = vld [vmem:[%s97 + $0x20] sm:$0xff]
                %108 = vst [vmem:[%s98 + $0x20] sm:$0xff] %v107
                %v109 = vld [vmem:[%s97 + $0x28] sm:$0xff]
                %110 = vst [vmem:[%s98 + $0x28] sm:$0xff] %v109
                %v111 = vld [vmem:[%s97 + $0x30] sm:$0xff]
                %112 = vst [vmem:[%s98 + $0x30] sm:$0xff] %v111
              $region44: #{custom-call.9} parent=38 // loop_footer
                %s96 = sadd.s32 1, %s92
              $region45: #{custom-call.9} parent=38 // loop_footer_branch
                %91 = sbr.rel target = $region41
              $region46: #{custom-call.9} parent=38 // loop_exit
                _
            $region39: #{custom-call.9} parent=23 // pred_fallthru
              _
            // Predicated region
            $region47: #{custom-call.9} parent=23 // pred_check
              _
            $region48: #{custom-call.9} parent=23 // pred_check_branch
              %114 = sbr.rel target = $region50
            $region49: #{custom-call.9} parent=23 // pred_region
              _
            $region50: #{custom-call.9} parent=23 // pred_fallthru
              _
          $region24: #{custom-call.9} parent=19 // pred_fallthru
            _
          // Predicated region
          $region25: #{custom-call.9} parent=19 // pred_check
            _
          $region26: #{custom-call.9} parent=19 // pred_check_branch
            %64 = sbr.rel target = $region28
          $region27: #{custom-call.9} parent=19 // pred_region
            %s66 = ssub.s32 256, 1
            loop: start=0, step=1, limit=1
            $region29: #{custom-call.9} parent=27 // loop_pre_header
              _
            $region30: #{custom-call.9} parent=27 // loop_header
              %s68 = sphi 0, %s72
              %p69 = scmp.ge.s32.totalorder %s68, 1
              %s73 = sphi %s58, %s58
              %s74 = sphi %s51, %s51
            $region31: #{custom-call.9} parent=27 // loop_header_branch
              %71 = sbr.rel (%p69) target = $region35
            $region32: #{custom-call.9} parent=27 // loop_body
              %v75 = vld [vmem:[%s73] sm:%s66]
              %76 = vst [vmem:[%s74] sm:%s66] %v75
              %v77 = vld [vmem:[%s73 + $0x8] sm:%s66]
              %78 = vst [vmem:[%s74 + $0x8] sm:%s66] %v77
              %v79 = vld [vmem:[%s73 + $0x10] sm:%s66]
              %80 = vst [vmem:[%s74 + $0x10] sm:%s66] %v79
              %v81 = vld [vmem:[%s73 + $0x18] sm:%s66]
              %82 = vst [vmem:[%s74 + $0x18] sm:%s66] %v81
              %v83 = vld [vmem:[%s73 + $0x20] sm:%s66]
              %84 = vst [vmem:[%s74 + $0x20] sm:%s66] %v83
              %v85 = vld [vmem:[%s73 + $0x28] sm:%s66]
              %86 = vst [vmem:[%s74 + $0x28] sm:%s66] %v85
              %v87 = vld [vmem:[%s73 + $0x30] sm:%s66]
              %88 = vst [vmem:[%s74 + $0x30] sm:%s66] %v87
            $region33: #{custom-call.9} parent=27 // loop_footer
              %s72 = sadd.s32 1, %s68
            $region34: #{custom-call.9} parent=27 // loop_footer_branch
              %67 = sbr.rel target = $region30
            $region35: #{custom-call.9} parent=27 // loop_exit
              _
          $region28: #{custom-call.9} parent=19 // pred_fallthru
            _
        $region20: #{custom-call.9} parent=15 // pred_fallthru
          _
        %115 = vnop
      $region16: #{custom-call.9} parent=5 // pred_fallthru
        _
      %p116 = scmp.le.s32.totalorder 1, %s3
      %p117 = scmp.lt.s32.totalorder %s3, 3
      %p118 = pnand %p116, %p117
      %p119 = pneg %p118
      // Predicated region
      $region51: #{custom-call.9} parent=5 // pred_check
        _
      $region52: #{custom-call.9} parent=5 // pred_check_branch
        %121 = sbr.rel (%p118) target = $region54
      $region53: #{custom-call.9} parent=5 // pred_region
        #allocation2 [shape = 'f32[50,50]{1,0}', space=vmem, size = 0x7000, scoped, tag = 'rescaled input a']
        %s122 = ssub.s32 %s3, 1
        %s123 = sand.u32 %s8, 1
        %s124 = sand.u32 %s8, 1
        %s125 = smul.addr %s124, 56
        %s126 = scalar_lea.vmem [#allocation0], %s125
        %s127 = sand.u32 %s8, 1
        %s128 = sand.u32 %s8, 1
        %s129 = smul.addr %s128, 56
        %s130 = scalar_lea.vmem [#allocation0], %s129
        %s131 = sand.u32 %s8, 1
        %s132 = sand.u32 %s8, 1
        %s133 = smul.addr %s132, 56
        %s134 = scalar_lea.vmem [#allocation1], %s133
        %v135 = vlaneseq
        %v136 = vand.u32 %v135, 127
        %vm137 = vcmp.lt.s32.totalorder %v136, 50
        %v138 = vlaneseq
        %v139 = vshrl.u32 %v138, 7
        %vm141 = vcmp.eq.s32.totalorder %v139, %v136
        %v142 = vld [vmem:[%s126] sm:$0xff]
        %v143 = vsel %vm141, %v142, 0.0
        %144 = vadd.xlane.f32.xlu0 %v143
        %v145 = vpop.xlane.xlu0 %144
        %vm146 = vcmp.le.s32.totalorder %v139, %v136
        %vm147 = vmand %vm146, %vm137
        %v148 = vsel %vm147, %v142, 0.0
        %v149 = vrcp.pop %v145
        %v150 = vmul.f32 %v148, %v149
        %151 = vst [vmem:[#allocation2] sm:$0xff] %v150
        %s152 = scalar_lea.vmem %s126, 8 [#allocation0]
        %s153 = scalar_lea.vmem [#allocation2], 8
        %v154 = vlaneseq
        %v155 = vshrl.u32 %v154, 7
        %v156 = vadd.s32 %v155, 8
        %vm157 = vcmp.eq.s32.totalorder %v156, %v136
        %v158 = vld [vmem:[%s152] sm:$0xff]
        %v159 = vsel %vm157, %v158, 0.0
        %160 = vadd.xlane.f32.xlu0 %v159
        %v161 = vpop.xlane.xlu0 %160
        %vm162 = vcmp.le.s32.totalorder %v156, %v136
        %vm163 = vmand %vm162, %vm137
        %v164 = vsel %vm163, %v158, 0.0
        %v165 = vrcp.pop %v161
        %v166 = vmul.f32 %v164, %v165
        %167 = vst [vmem:[%s153] sm:$0xff] %v166
        %s168 = scalar_lea.vmem %s126, 16 [#allocation0]
        %s169 = scalar_lea.vmem [#allocation2], 16
        %v170 = vlaneseq
        %v171 = vshrl.u32 %v170, 7
        %v172 = vadd.s32 %v171, 16
        %vm173 = vcmp.eq.s32.totalorder %v172, %v136
        %v174 = vld [vmem:[%s168] sm:$0xff]
        %v175 = vsel %vm173, %v174, 0.0
        %176 = vadd.xlane.f32.xlu0 %v175
        %v177 = vpop.xlane.xlu0 %176
        %vm178 = vcmp.le.s32.totalorder %v172, %v136
        %vm179 = vmand %vm178, %vm137
        %v180 = vsel %vm179, %v174, 0.0
        %v181 = vrcp.pop %v177
        %v182 = vmul.f32 %v180, %v181
        %183 = vst [vmem:[%s169] sm:$0xff] %v182
        %s184 = scalar_lea.vmem %s126, 24 [#allocation0]
        %s185 = scalar_lea.vmem [#allocation2], 24
        %v186 = vlaneseq
        %v187 = vshrl.u32 %v186, 7
        %v188 = vadd.s32 %v187, 24
        %vm189 = vcmp.eq.s32.totalorder %v188, %v136
        %v190 = vld [vmem:[%s184] sm:$0xff]
        %v191 = vsel %vm189, %v190, 0.0
        %192 = vadd.xlane.f32.xlu0 %v191
        %v193 = vpop.xlane.xlu0 %192
        %vm194 = vcmp.le.s32.totalorder %v188, %v136
        %vm195 = vmand %vm194, %vm137
        %v196 = vsel %vm195, %v190, 0.0
        %v197 = vrcp.pop %v193
        %v198 = vmul.f32 %v196, %v197
        %199 = vst [vmem:[%s185] sm:$0xff] %v198
        %s200 = scalar_lea.vmem %s126, 32 [#allocation0]
        %s201 = scalar_lea.vmem [#allocation2], 32
        %v202 = vlaneseq
        %v203 = vshrl.u32 %v202, 7
        %v204 = vadd.s32 %v203, 32
        %vm205 = vcmp.eq.s32.totalorder %v204, %v136
        %v206 = vld [vmem:[%s200] sm:$0xff]
        %v207 = vsel %vm205, %v206, 0.0
        %208 = vadd.xlane.f32.xlu0 %v207
        %v209 = vpop.xlane.xlu0 %208
        %vm210 = vcmp.le.s32.totalorder %v204, %v136
        %vm211 = vmand %vm210, %vm137
        %v212 = vsel %vm211, %v206, 0.0
        %v213 = vrcp.pop %v209
        %v214 = vmul.f32 %v212, %v213
        %215 = vst [vmem:[%s201] sm:$0xff] %v214
        %s216 = scalar_lea.vmem %s126, 40 [#allocation0]
        %s217 = scalar_lea.vmem [#allocation2], 40
        %v218 = vlaneseq
        %v219 = vshrl.u32 %v218, 7
        %v220 = vadd.s32 %v219, 40
        %vm221 = vcmp.eq.s32.totalorder %v220, %v136
        %v222 = vld [vmem:[%s216] sm:$0xff]
        %v223 = vsel %vm221, %v222, 0.0
        %224 = vadd.xlane.f32.xlu0 %v223
        %v225 = vpop.xlane.xlu0 %224
        %vm226 = vcmp.le.s32.totalorder %v220, %v136
        %vm227 = vmand %vm226, %vm137
        %v228 = vsel %vm227, %v222, 0.0
        %v229 = vrcp.pop %v225
        %v230 = vmul.f32 %v228, %v229
        %231 = vst [vmem:[%s217] sm:$0xff] %v230
        %s232 = scalar_lea.vmem %s126, 48 [#allocation0]
        %s233 = scalar_lea.vmem [#allocation2], 48
        %v234 = vlaneseq
        %v235 = vshrl.u32 %v234, 7
        %v236 = vadd.s32 %v235, 48
        %vm237 = vcmp.eq.s32.totalorder %v236, %v136
        %v238 = vld [vmem:[%s232] sm:$0xff]
        %v239 = vsel %vm237, %v238, 0.0
        %240 = vadd.xlane.f32.xlu0 %v239
        %v241 = vpop.xlane.xlu0 %240
        %vm242 = vcmp.le.s32.totalorder %v236, %v136
        %vm243 = vmand %vm242, %vm137
        %v244 = vsel %vm243, %v238, 0.0
        %v245 = vrcp.pop %v241
        %v246 = vmul.f32 %v244, %v245
        %247 = vst [vmem:[%s233] sm:$0xff] %v246
        %v248 = vlaneseq
        %v249 = vand.u32 %v248, 127
        %v250 = vlaneseq
        %v251 = vshrl.u32 %v250, 7
        %vm253 = vcmp.eq.s32.totalorder %v249, %v251
        %v254 = vsel %vm253, -1.0, 0.0
        %v255 = vlaneseq
        %v256 = vand.u32 %v255, 127
        %v257 = vlaneseq
        %v258 = vshrl.u32 %v257, 7
        %v259 = vadd.s32 %v258, 8
        %vm260 = vcmp.eq.s32.totalorder %v256, %v259
        %v261 = vsel %vm260, -1.0, 0.0
        %v262 = vlaneseq
        %v263 = vand.u32 %v262, 127
        %v264 = vlaneseq
        %v265 = vshrl.u32 %v264, 7
        %v266 = vadd.s32 %v265, 16
        %vm267 = vcmp.eq.s32.totalorder %v263, %v266
        %v268 = vsel %vm267, -1.0, 0.0
        %v269 = vlaneseq
        %v270 = vand.u32 %v269, 127
        %v271 = vlaneseq
        %v272 = vshrl.u32 %v271, 7
        %v273 = vadd.s32 %v272, 24
        %vm274 = vcmp.eq.s32.totalorder %v270, %v273
        %v275 = vsel %vm274, -1.0, 0.0
        %v276 = vlaneseq
        %v277 = vand.u32 %v276, 127
        %v278 = vlaneseq
        %v279 = vshrl.u32 %v278, 7
        %v280 = vadd.s32 %v279, 32
        %vm281 = vcmp.eq.s32.totalorder %v277, %v280
        %v282 = vsel %vm281, -1.0, 0.0
        %v283 = vlaneseq
        %v284 = vand.u32 %v283, 127
        %v285 = vlaneseq
        %v286 = vshrl.u32 %v285, 7
        %v287 = vadd.s32 %v286, 40
        %vm288 = vcmp.eq.s32.totalorder %v284, %v287
        %v289 = vsel %vm288, -1.0, 0.0
        %v290 = vlaneseq
        %v291 = vand.u32 %v290, 127
        %v292 = vlaneseq
        %v293 = vshrl.u32 %v292, 7
        %v294 = vadd.s32 %v293, 48
        %vm295 = vcmp.eq.s32.totalorder %v291, %v294
        %v296 = vlaneseq
        %v297 = vand.u32 %v296, 127
        %vm298 = vcmp.eq.s32.totalorder %v297, 49
        %v299 = vsel %vm298, 1.0, -1.0
        %v300 = vsel %vm295, %v299, 0.0
        %s301 = scalar_lea.vmem [#allocation2], 48
        %v302 = vld [vmem:[%s301] ss:$0 sm:$0xff]
        %v303 = vxor.u32 %v302, 2147483648
        %v304 = vlaneseq
        %v305 = vand.u32 %v304, 127
        %vm306 = vcmp.eq.s32.totalorder %v305, 48
        %v307 = vmul.f32 %v303, %v300
        %308 = vadd.xlane.f32.xlu0 %v307
        %v309 = vpop.xlane.xlu0 %308
        %v310 = vsel %vm306, %v309, %v300
        %s311 = scalar_lea.vmem [#allocation2], 47
        %v312 = vld [vmem:[%s311] ss:$0 sm:$0xff]
        %v313 = vxor.u32 %v312, 2147483648
        %v314 = vlaneseq
        %v315 = vand.u32 %v314, 127
        %vm316 = vcmp.eq.s32.totalorder %v315, 47
        %v317 = vmul.f32 %v313, %v289
        %318 = vadd.xlane.f32.xlu0 %v317
        %v319 = vpop.xlane.xlu0 %318
        %v320 = vsel %vm316, %v319, %v289
        %v321 = vmul.f32 %v313, %v310
        %322 = vadd.xlane.f32.xlu0 %v321
        %v323 = vpop.xlane.xlu0 %322
        %v324 = vsel %vm316, %v323, %v310
        %s325 = scalar_lea.vmem [#allocation2], 46
        %v326 = vld [vmem:[%s325] ss:$0 sm:$0xff]
        %v327 = vxor.u32 %v326, 2147483648
        %v328 = vlaneseq
        %v329 = vand.u32 %v328, 127
        %vm330 = vcmp.eq.s32.totalorder %v329, 46
        %v331 = vmul.f32 %v327, %v320
        %332 = vadd.xlane.f32.xlu0 %v331
        %v333 = vpop.xlane.xlu0 %332
        %v334 = vsel %vm330, %v333, %v320
        %v335 = vmul.f32 %v327, %v324
        %336 = vadd.xlane.f32.xlu0 %v335
        %v337 = vpop.xlane.xlu0 %336
        %v338 = vsel %vm330, %v337, %v324
        %s339 = scalar_lea.vmem [#allocation2], 45
        %v340 = vld [vmem:[%s339] ss:$0 sm:$0xff]
        %v341 = vxor.u32 %v340, 2147483648
        %v342 = vlaneseq
        %v343 = vand.u32 %v342, 127
        %vm344 = vcmp.eq.s32.totalorder %v343, 45
        %v345 = vmul.f32 %v341, %v334
        %346 = vadd.xlane.f32.xlu0 %v345
        %v347 = vpop.xlane.xlu0 %346
        %v348 = vsel %vm344, %v347, %v334
        %v349 = vmul.f32 %v341, %v338
        %350 = vadd.xlane.f32.xlu0 %v349
        %v351 = vpop.xlane.xlu0 %350
        %v352 = vsel %vm344, %v351, %v338
        %s353 = scalar_lea.vmem [#allocation2], 44
        %v354 = vld [vmem:[%s353] ss:$0 sm:$0xff]
        %v355 = vxor.u32 %v354, 2147483648
        %v356 = vlaneseq
        %v357 = vand.u32 %v356, 127
        %vm358 = vcmp.eq.s32.totalorder %v357, 44
        %v359 = vmul.f32 %v355, %v348
        %360 = vadd.xlane.f32.xlu0 %v359
        %v361 = vpop.xlane.xlu0 %360
        %v362 = vsel %vm358, %v361, %v348
        %v363 = vmul.f32 %v355, %v352
        %364 = vadd.xlane.f32.xlu0 %v363
        %v365 = vpop.xlane.xlu0 %364
        %v366 = vsel %vm358, %v365, %v352
        %s367 = scalar_lea.vmem [#allocation2], 43
        %v368 = vld [vmem:[%s367] ss:$0 sm:$0xff]
        %v369 = vxor.u32 %v368, 2147483648
        %v370 = vlaneseq
        %v371 = vand.u32 %v370, 127
        %vm372 = vcmp.eq.s32.totalorder %v371, 43
        %v373 = vmul.f32 %v369, %v362
        %374 = vadd.xlane.f32.xlu0 %v373
        %v375 = vpop.xlane.xlu0 %374
        %v376 = vsel %vm372, %v375, %v362
        %v377 = vmul.f32 %v369, %v366
        %378 = vadd.xlane.f32.xlu0 %v377
        %v379 = vpop.xlane.xlu0 %378
        %v380 = vsel %vm372, %v379, %v366
        %s381 = scalar_lea.vmem [#allocation2], 42
        %v382 = vld [vmem:[%s381] ss:$0 sm:$0xff]
        %v383 = vxor.u32 %v382, 2147483648
        %v384 = vlaneseq
        %v385 = vand.u32 %v384, 127
        %vm386 = vcmp.eq.s32.totalorder %v385, 42
        %v387 = vmul.f32 %v383, %v376
        %388 = vadd.xlane.f32.xlu0 %v387
        %v389 = vpop.xlane.xlu0 %388
        %v390 = vsel %vm386, %v389, %v376
        %v391 = vmul.f32 %v383, %v380
        %392 = vadd.xlane.f32.xlu0 %v391
        %v393 = vpop.xlane.xlu0 %392
        %v394 = vsel %vm386, %v393, %v380
        %s395 = scalar_lea.vmem [#allocation2], 41
        %v396 = vld [vmem:[%s395] ss:$0 sm:$0xff]
        %v397 = vxor.u32 %v396, 2147483648
        %v398 = vlaneseq
        %v399 = vand.u32 %v398, 127
        %vm400 = vcmp.eq.s32.totalorder %v399, 41
        %v401 = vmul.f32 %v397, %v390
        %402 = vadd.xlane.f32.xlu0 %v401
        %v403 = vpop.xlane.xlu0 %402
        %v404 = vsel %vm400, %v403, %v390
        %v405 = vmul.f32 %v397, %v394
        %406 = vadd.xlane.f32.xlu0 %v405
        %v407 = vpop.xlane.xlu0 %406
        %v408 = vsel %vm400, %v407, %v394
        %s409 = scalar_lea.vmem [#allocation2], 40
        %v410 = vld [vmem:[%s409] ss:$0 sm:$0xff]
        %v411 = vxor.u32 %v410, 2147483648
        %v412 = vlaneseq
        %v413 = vand.u32 %v412, 127
        %vm414 = vcmp.eq.s32.totalorder %v413, 40
        %v415 = vmul.f32 %v411, %v404
        %416 = vadd.xlane.f32.xlu0 %v415
        %v417 = vpop.xlane.xlu0 %416
        %v418 = vsel %vm414, %v417, %v404
        %v419 = vmul.f32 %v411, %v408
        %420 = vadd.xlane.f32.xlu0 %v419
        %v421 = vpop.xlane.xlu0 %420
        %v422 = vsel %vm414, %v421, %v408
        %s423 = scalar_lea.vmem [#allocation2], 39
        %v424 = vld [vmem:[%s423] ss:$0 sm:$0xff]
        %v425 = vxor.u32 %v424, 2147483648
        %v426 = vlaneseq
        %v427 = vand.u32 %v426, 127
        %vm428 = vcmp.eq.s32.totalorder %v427, 39
        %v429 = vmul.f32 %v425, %v282
        %430 = vadd.xlane.f32.xlu0 %v429
        %v431 = vpop.xlane.xlu0 %430
        %v432 = vsel %vm428, %v431, %v282
        %v433 = vmul.f32 %v425, %v418
        %434 = vadd.xlane.f32.xlu0 %v433
        %v435 = vpop.xlane.xlu0 %434
        %v436 = vsel %vm428, %v435, %v418
        %v437 = vmul.f32 %v425, %v422
        %438 = vadd.xlane.f32.xlu0 %v437
        %v439 = vpop.xlane.xlu0 %438
        %v440 = vsel %vm428, %v439, %v422
        %s441 = scalar_lea.vmem [#allocation2], 38
        %v442 = vld [vmem:[%s441] ss:$0 sm:$0xff]
        %v443 = vxor.u32 %v442, 2147483648
        %v444 = vlaneseq
        %v445 = vand.u32 %v444, 127
        %vm446 = vcmp.eq.s32.totalorder %v445, 38
        %v447 = vmul.f32 %v443, %v432
        %448 = vadd.xlane.f32.xlu0 %v447
        %v449 = vpop.xlane.xlu0 %448
        %v450 = vsel %vm446, %v449, %v432
        %v451 = vmul.f32 %v443, %v436
        %452 = vadd.xlane.f32.xlu0 %v451
        %v453 = vpop.xlane.xlu0 %452
        %v454 = vsel %vm446, %v453, %v436
        %v455 = vmul.f32 %v443, %v440
        %456 = vadd.xlane.f32.xlu0 %v455
        %v457 = vpop.xlane.xlu0 %456
        %v458 = vsel %vm446, %v457, %v440
        %s459 = scalar_lea.vmem [#allocation2], 37
        %v460 = vld [vmem:[%s459] ss:$0 sm:$0xff]
        %v461 = vxor.u32 %v460, 2147483648
        %v462 = vlaneseq
        %v463 = vand.u32 %v462, 127
        %vm464 = vcmp.eq.s32.totalorder %v463, 37
        %v465 = vmul.f32 %v461, %v450
        %466 = vadd.xlane.f32.xlu0 %v465
        %v467 = vpop.xlane.xlu0 %466
        %v468 = vsel %vm464, %v467, %v450
        %v469 = vmul.f32 %v461, %v454
        %470 = vadd.xlane.f32.xlu0 %v469
        %v471 = vpop.xlane.xlu0 %470
        %v472 = vsel %vm464, %v471, %v454
        %v473 = vmul.f32 %v461, %v458
        %474 = vadd.xlane.f32.xlu0 %v473
        %v475 = vpop.xlane.xlu0 %474
        %v476 = vsel %vm464, %v475, %v458
        %s477 = scalar_lea.vmem [#allocation2], 36
        %v478 = vld [vmem:[%s477] ss:$0 sm:$0xff]
        %v479 = vxor.u32 %v478, 2147483648
        %v480 = vlaneseq
        %v481 = vand.u32 %v480, 127
        %vm482 = vcmp.eq.s32.totalorder %v481, 36
        %v483 = vmul.f32 %v479, %v468
        %484 = vadd.xlane.f32.xlu0 %v483
        %v485 = vpop.xlane.xlu0 %484
        %v486 = vsel %vm482, %v485, %v468
        %v487 = vmul.f32 %v479, %v472
        %488 = vadd.xlane.f32.xlu0 %v487
        %v489 = vpop.xlane.xlu0 %488
        %v490 = vsel %vm482, %v489, %v472
        %v491 = vmul.f32 %v479, %v476
        %492 = vadd.xlane.f32.xlu0 %v491
        %v493 = vpop.xlane.xlu0 %492
        %v494 = vsel %vm482, %v493, %v476
        %s495 = scalar_lea.vmem [#allocation2], 35
        %v496 = vld [vmem:[%s495] ss:$0 sm:$0xff]
        %v497 = vxor.u32 %v496, 2147483648
        %v498 = vlaneseq
        %v499 = vand.u32 %v498, 127
        %vm500 = vcmp.eq.s32.totalorder %v499, 35
        %v501 = vmul.f32 %v497, %v486
        %502 = vadd.xlane.f32.xlu0 %v501
        %v503 = vpop.xlane.xlu0 %502
        %v504 = vsel %vm500, %v503, %v486
        %v505 = vmul.f32 %v497, %v490
        %506 = vadd.xlane.f32.xlu0 %v505
        %v507 = vpop.xlane.xlu0 %506
        %v508 = vsel %vm500, %v507, %v490
        %v509 = vmul.f32 %v497, %v494
        %510 = vadd.xlane.f32.xlu0 %v509
        %v511 = vpop.xlane.xlu0 %510
        %v512 = vsel %vm500, %v511, %v494
        %s513 = scalar_lea.vmem [#allocation2], 34
        %v514 = vld [vmem:[%s513] ss:$0 sm:$0xff]
        %v515 = vxor.u32 %v514, 2147483648
        %v516 = vlaneseq
        %v517 = vand.u32 %v516, 127
        %vm518 = vcmp.eq.s32.totalorder %v517, 34
        %v519 = vmul.f32 %v515, %v504
        %520 = vadd.xlane.f32.xlu0 %v519
        %v521 = vpop.xlane.xlu0 %520
        %v522 = vsel %vm518, %v521, %v504
        %v523 = vmul.f32 %v515, %v508
        %524 = vadd.xlane.f32.xlu0 %v523
        %v525 = vpop.xlane.xlu0 %524
        %v526 = vsel %vm518, %v525, %v508
        %v527 = vmul.f32 %v515, %v512
        %528 = vadd.xlane.f32.xlu0 %v527
        %v529 = vpop.xlane.xlu0 %528
        %v530 = vsel %vm518, %v529, %v512
        %s531 = scalar_lea.vmem [#allocation2], 33
        %v532 = vld [vmem:[%s531] ss:$0 sm:$0xff]
        %v533 = vxor.u32 %v532, 2147483648
        %v534 = vlaneseq
        %v535 = vand.u32 %v534, 127
        %vm536 = vcmp.eq.s32.totalorder %v535, 33
        %v537 = vmul.f32 %v533, %v522
        %538 = vadd.xlane.f32.xlu0 %v537
        %v539 = vpop.xlane.xlu0 %538
        %v540 = vsel %vm536, %v539, %v522
        %v541 = vmul.f32 %v533, %v526
        %542 = vadd.xlane.f32.xlu0 %v541
        %v543 = vpop.xlane.xlu0 %542
        %v544 = vsel %vm536, %v543, %v526
        %v545 = vmul.f32 %v533, %v530
        %546 = vadd.xlane.f32.xlu0 %v545
        %v547 = vpop.xlane.xlu0 %546
        %v548 = vsel %vm536, %v547, %v530
        %s549 = scalar_lea.vmem [#allocation2], 32
        %v550 = vld [vmem:[%s549] ss:$0 sm:$0xff]
        %v551 = vxor.u32 %v550, 2147483648
        %v552 = vlaneseq
        %v553 = vand.u32 %v552, 127
        %vm554 = vcmp.eq.s32.totalorder %v553, 32
        %v555 = vmul.f32 %v551, %v540
        %556 = vadd.xlane.f32.xlu0 %v555
        %v557 = vpop.xlane.xlu0 %556
        %v558 = vsel %vm554, %v557, %v540
        %v559 = vmul.f32 %v551, %v544
        %560 = vadd.xlane.f32.xlu0 %v559
        %v561 = vpop.xlane.xlu0 %560
        %v562 = vsel %vm554, %v561, %v544
        %v563 = vmul.f32 %v551, %v548
        %564 = vadd.xlane.f32.xlu0 %v563
        %v565 = vpop.xlane.xlu0 %564
        %v566 = vsel %vm554, %v565, %v548
        %s567 = scalar_lea.vmem [#allocation2], 31
        %v568 = vld [vmem:[%s567] ss:$0 sm:$0xff]
        %v569 = vxor.u32 %v568, 2147483648
        %v570 = vlaneseq
        %v571 = vand.u32 %v570, 127
        %vm572 = vcmp.eq.s32.totalorder %v571, 31
        %v573 = vmul.f32 %v569, %v275
        %574 = vadd.xlane.f32.xlu0 %v573
        %v575 = vpop.xlane.xlu0 %574
        %v576 = vsel %vm572, %v575, %v275
        %v577 = vmul.f32 %v569, %v558
        %578 = vadd.xlane.f32.xlu0 %v577
        %v579 = vpop.xlane.xlu0 %578
        %v580 = vsel %vm572, %v579, %v558
        %v581 = vmul.f32 %v569, %v562
        %582 = vadd.xlane.f32.xlu0 %v581
        %v583 = vpop.xlane.xlu0 %582
        %v584 = vsel %vm572, %v583, %v562
        %v585 = vmul.f32 %v569, %v566
        %586 = vadd.xlane.f32.xlu0 %v585
        %v587 = vpop.xlane.xlu0 %586
        %v588 = vsel %vm572, %v587, %v566
        %s589 = scalar_lea.vmem [#allocation2], 30
        %v590 = vld [vmem:[%s589] ss:$0 sm:$0xff]
        %v591 = vxor.u32 %v590, 2147483648
        %v592 = vlaneseq
        %v593 = vand.u32 %v592, 127
        %vm594 = vcmp.eq.s32.totalorder %v593, 30
        %v595 = vmul.f32 %v591, %v576
        %596 = vadd.xlane.f32.xlu0 %v595
        %v597 = vpop.xlane.xlu0 %596
        %v598 = vsel %vm594, %v597, %v576
        %v599 = vmul.f32 %v591, %v580
        %600 = vadd.xlane.f32.xlu0 %v599
        %v601 = vpop.xlane.xlu0 %600
        %v602 = vsel %vm594, %v601, %v580
        %v603 = vmul.f32 %v591, %v584
        %604 = vadd.xlane.f32.xlu0 %v603
        %v605 = vpop.xlane.xlu0 %604
        %v606 = vsel %vm594, %v605, %v584
        %v607 = vmul.f32 %v591, %v588
        %608 = vadd.xlane.f32.xlu0 %v607
        %v609 = vpop.xlane.xlu0 %608
        %v610 = vsel %vm594, %v609, %v588
        %s611 = scalar_lea.vmem [#allocation2], 29
        %v612 = vld [vmem:[%s611] ss:$0 sm:$0xff]
        %v613 = vxor.u32 %v612, 2147483648
        %v614 = vlaneseq
        %v615 = vand.u32 %v614, 127
        %vm616 = vcmp.eq.s32.totalorder %v615, 29
        %v617 = vmul.f32 %v613, %v598
        %618 = vadd.xlane.f32.xlu0 %v617
        %v619 = vpop.xlane.xlu0 %618
        %v620 = vsel %vm616, %v619, %v598
        %v621 = vmul.f32 %v613, %v602
        %622 = vadd.xlane.f32.xlu0 %v621
        %v623 = vpop.xlane.xlu0 %622
        %v624 = vsel %vm616, %v623, %v602
        %v625 = vmul.f32 %v613, %v606
        %626 = vadd.xlane.f32.xlu0 %v625
        %v627 = vpop.xlane.xlu0 %626
        %v628 = vsel %vm616, %v627, %v606
        %v629 = vmul.f32 %v613, %v610
        %630 = vadd.xlane.f32.xlu0 %v629
        %v631 = vpop.xlane.xlu0 %630
        %v632 = vsel %vm616, %v631, %v610
        %s633 = scalar_lea.vmem [#allocation2], 28
        %v634 = vld [vmem:[%s633] ss:$0 sm:$0xff]
        %v635 = vxor.u32 %v634, 2147483648
        %v636 = vlaneseq
        %v637 = vand.u32 %v636, 127
        %vm638 = vcmp.eq.s32.totalorder %v637, 28
        %v639 = vmul.f32 %v635, %v620
        %640 = vadd.xlane.f32.xlu0 %v639
        %v641 = vpop.xlane.xlu0 %640
        %v642 = vsel %vm638, %v641, %v620
        %v643 = vmul.f32 %v635, %v624
        %644 = vadd.xlane.f32.xlu0 %v643
        %v645 = vpop.xlane.xlu0 %644
        %v646 = vsel %vm638, %v645, %v624
        %v647 = vmul.f32 %v635, %v628
        %648 = vadd.xlane.f32.xlu0 %v647
        %v649 = vpop.xlane.xlu0 %648
        %v650 = vsel %vm638, %v649, %v628
        %v651 = vmul.f32 %v635, %v632
        %652 = vadd.xlane.f32.xlu0 %v651
        %v653 = vpop.xlane.xlu0 %652
        %v654 = vsel %vm638, %v653, %v632
        %s655 = scalar_lea.vmem [#allocation2], 27
        %v656 = vld [vmem:[%s655] ss:$0 sm:$0xff]
        %v657 = vxor.u32 %v656, 2147483648
        %v658 = vlaneseq
        %v659 = vand.u32 %v658, 127
        %vm660 = vcmp.eq.s32.totalorder %v659, 27
        %v661 = vmul.f32 %v657, %v642
        %662 = vadd.xlane.f32.xlu0 %v661
        %v663 = vpop.xlane.xlu0 %662
        %v664 = vsel %vm660, %v663, %v642
        %v665 = vmul.f32 %v657, %v646
        %666 = vadd.xlane.f32.xlu0 %v665
        %v667 = vpop.xlane.xlu0 %666
        %v668 = vsel %vm660, %v667, %v646
        %v669 = vmul.f32 %v657, %v650
        %670 = vadd.xlane.f32.xlu0 %v669
        %v671 = vpop.xlane.xlu0 %670
        %v672 = vsel %vm660, %v671, %v650
        %v673 = vmul.f32 %v657, %v654
        %674 = vadd.xlane.f32.xlu0 %v673
        %v675 = vpop.xlane.xlu0 %674
        %v676 = vsel %vm660, %v675, %v654
        %s677 = scalar_lea.vmem [#allocation2], 26
        %v678 = vld [vmem:[%s677] ss:$0 sm:$0xff]
        %v679 = vxor.u32 %v678, 2147483648
        %v680 = vlaneseq
        %v681 = vand.u32 %v680, 127
        %vm682 = vcmp.eq.s32.totalorder %v681, 26
        %v683 = vmul.f32 %v679, %v664
        %684 = vadd.xlane.f32.xlu0 %v683
        %v685 = vpop.xlane.xlu0 %684
        %v686 = vsel %vm682, %v685, %v664
        %v687 = vmul.f32 %v679, %v668
        %688 = vadd.xlane.f32.xlu0 %v687
        %v689 = vpop.xlane.xlu0 %688
        %v690 = vsel %vm682, %v689, %v668
        %v691 = vmul.f32 %v679, %v672
        %692 = vadd.xlane.f32.xlu0 %v691
        %v693 = vpop.xlane.xlu0 %692
        %v694 = vsel %vm682, %v693, %v672
        %v695 = vmul.f32 %v679, %v676
        %696 = vadd.xlane.f32.xlu0 %v695
        %v697 = vpop.xlane.xlu0 %696
        %v698 = vsel %vm682, %v697, %v676
        %s699 = scalar_lea.vmem [#allocation2], 25
        %v700 = vld [vmem:[%s699] ss:$0 sm:$0xff]
        %v701 = vxor.u32 %v700, 2147483648
        %v702 = vlaneseq
        %v703 = vand.u32 %v702, 127
        %vm704 = vcmp.eq.s32.totalorder %v703, 25
        %v705 = vmul.f32 %v701, %v686
        %706 = vadd.xlane.f32.xlu0 %v705
        %v707 = vpop.xlane.xlu0 %706
        %v708 = vsel %vm704, %v707, %v686
        %v709 = vmul.f32 %v701, %v690
        %710 = vadd.xlane.f32.xlu0 %v709
        %v711 = vpop.xlane.xlu0 %710
        %v712 = vsel %vm704, %v711, %v690
        %v713 = vmul.f32 %v701, %v694
        %714 = vadd.xlane.f32.xlu0 %v713
        %v715 = vpop.xlane.xlu0 %714
        %v716 = vsel %vm704, %v715, %v694
        %v717 = vmul.f32 %v701, %v698
        %718 = vadd.xlane.f32.xlu0 %v717
        %v719 = vpop.xlane.xlu0 %718
        %v720 = vsel %vm704, %v719, %v698
        %s721 = scalar_lea.vmem [#allocation2], 24
        %v722 = vld [vmem:[%s721] ss:$0 sm:$0xff]
        %v723 = vxor.u32 %v722, 2147483648
        %v724 = vlaneseq
        %v725 = vand.u32 %v724, 127
        %vm726 = vcmp.eq.s32.totalorder %v725, 24
        %v727 = vmul.f32 %v723, %v708
        %728 = vadd.xlane.f32.xlu0 %v727
        %v729 = vpop.xlane.xlu0 %728
        %v730 = vsel %vm726, %v729, %v708
        %v731 = vmul.f32 %v723, %v712
        %732 = vadd.xlane.f32.xlu0 %v731
        %v733 = vpop.xlane.xlu0 %732
        %v734 = vsel %vm726, %v733, %v712
        %v735 = vmul.f32 %v723, %v716
        %736 = vadd.xlane.f32.xlu0 %v735
        %v737 = vpop.xlane.xlu0 %736
        %v738 = vsel %vm726, %v737, %v716
        %v739 = vmul.f32 %v723, %v720
        %740 = vadd.xlane.f32.xlu0 %v739
        %v741 = vpop.xlane.xlu0 %740
        %v742 = vsel %vm726, %v741, %v720
        %s743 = scalar_lea.vmem [#allocation2], 23
        %v744 = vld [vmem:[%s743] ss:$0 sm:$0xff]
        %v745 = vxor.u32 %v744, 2147483648
        %v746 = vlaneseq
        %v747 = vand.u32 %v746, 127
        %vm748 = vcmp.eq.s32.totalorder %v747, 23
        %v749 = vmul.f32 %v745, %v268
        %750 = vadd.xlane.f32.xlu0 %v749
        %v751 = vpop.xlane.xlu0 %750
        %v752 = vsel %vm748, %v751, %v268
        %v753 = vmul.f32 %v745, %v730
        %754 = vadd.xlane.f32.xlu0 %v753
        %v755 = vpop.xlane.xlu0 %754
        %v756 = vsel %vm748, %v755, %v730
        %v757 = vmul.f32 %v745, %v734
        %758 = vadd.xlane.f32.xlu0 %v757
        %v759 = vpop.xlane.xlu0 %758
        %v760 = vsel %vm748, %v759, %v734
        %v761 = vmul.f32 %v745, %v738
        %762 = vadd.xlane.f32.xlu0 %v761
        %v763 = vpop.xlane.xlu0 %762
        %v764 = vsel %vm748, %v763, %v738
        %v765 = vmul.f32 %v745, %v742
        %766 = vadd.xlane.f32.xlu0 %v765
        %v767 = vpop.xlane.xlu0 %766
        %v768 = vsel %vm748, %v767, %v742
        %s769 = scalar_lea.vmem [#allocation2], 22
        %v770 = vld [vmem:[%s769] ss:$0 sm:$0xff]
        %v771 = vxor.u32 %v770, 2147483648
        %v772 = vlaneseq
        %v773 = vand.u32 %v772, 127
        %vm774 = vcmp.eq.s32.totalorder %v773, 22
        %v775 = vmul.f32 %v771, %v752
        %776 = vadd.xlane.f32.xlu0 %v775
        %v777 = vpop.xlane.xlu0 %776
        %v778 = vsel %vm774, %v777, %v752
        %v779 = vmul.f32 %v771, %v756
        %780 = vadd.xlane.f32.xlu0 %v779
        %v781 = vpop.xlane.xlu0 %780
        %v782 = vsel %vm774, %v781, %v756
        %v783 = vmul.f32 %v771, %v760
        %784 = vadd.xlane.f32.xlu0 %v783
        %v785 = vpop.xlane.xlu0 %784
        %v786 = vsel %vm774, %v785, %v760
        %v787 = vmul.f32 %v771, %v764
        %788 = vadd.xlane.f32.xlu0 %v787
        %v789 = vpop.xlane.xlu0 %788
        %v790 = vsel %vm774, %v789, %v764
        %v791 = vmul.f32 %v771, %v768
        %792 = vadd.xlane.f32.xlu0 %v791
        %v793 = vpop.xlane.xlu0 %792
        %v794 = vsel %vm774, %v793, %v768
        %s795 = scalar_lea.vmem [#allocation2], 21
        %v796 = vld [vmem:[%s795] ss:$0 sm:$0xff]
        %v797 = vxor.u32 %v796, 2147483648
        %v798 = vlaneseq
        %v799 = vand.u32 %v798, 127
        %vm800 = vcmp.eq.s32.totalorder %v799, 21
        %v801 = vmul.f32 %v797, %v778
        %802 = vadd.xlane.f32.xlu0 %v801
        %v803 = vpop.xlane.xlu0 %802
        %v804 = vsel %vm800, %v803, %v778
        %v805 = vmul.f32 %v797, %v782
        %806 = vadd.xlane.f32.xlu0 %v805
        %v807 = vpop.xlane.xlu0 %806
        %v808 = vsel %vm800, %v807, %v782
        %v809 = vmul.f32 %v797, %v786
        %810 = vadd.xlane.f32.xlu0 %v809
        %v811 = vpop.xlane.xlu0 %810
        %v812 = vsel %vm800, %v811, %v786
        %v813 = vmul.f32 %v797, %v790
        %814 = vadd.xlane.f32.xlu0 %v813
        %v815 = vpop.xlane.xlu0 %814
        %v816 = vsel %vm800, %v815, %v790
        %v817 = vmul.f32 %v797, %v794
        %818 = vadd.xlane.f32.xlu0 %v817
        %v819 = vpop.xlane.xlu0 %818
        %v820 = vsel %vm800, %v819, %v794
        %s821 = scalar_lea.vmem [#allocation2], 20
        %v822 = vld [vmem:[%s821] ss:$0 sm:$0xff]
        %v823 = vxor.u32 %v822, 2147483648
        %v824 = vlaneseq
        %v825 = vand.u32 %v824, 127
        %vm826 = vcmp.eq.s32.totalorder %v825, 20
        %v827 = vmul.f32 %v823, %v804
        %828 = vadd.xlane.f32.xlu0 %v827
        %v829 = vpop.xlane.xlu0 %828
        %v830 = vsel %vm826, %v829, %v804
        %v831 = vmul.f32 %v823, %v808
        %832 = vadd.xlane.f32.xlu0 %v831
        %v833 = vpop.xlane.xlu0 %832
        %v834 = vsel %vm826, %v833, %v808
        %v835 = vmul.f32 %v823, %v812
        %836 = vadd.xlane.f32.xlu0 %v835
        %v837 = vpop.xlane.xlu0 %836
        %v838 = vsel %vm826, %v837, %v812
        %v839 = vmul.f32 %v823, %v816
        %840 = vadd.xlane.f32.xlu0 %v839
        %v841 = vpop.xlane.xlu0 %840
        %v842 = vsel %vm826, %v841, %v816
        %v843 = vmul.f32 %v823, %v820
        %844 = vadd.xlane.f32.xlu0 %v843
        %v845 = vpop.xlane.xlu0 %844
        %v846 = vsel %vm826, %v845, %v820
        %s847 = scalar_lea.vmem [#allocation2], 19
        %v848 = vld [vmem:[%s847] ss:$0 sm:$0xff]
        %v849 = vxor.u32 %v848, 2147483648
        %v850 = vlaneseq
        %v851 = vand.u32 %v850, 127
        %vm852 = vcmp.eq.s32.totalorder %v851, 19
        %v853 = vmul.f32 %v849, %v830
        %854 = vadd.xlane.f32.xlu0 %v853
        %v855 = vpop.xlane.xlu0 %854
        %v856 = vsel %vm852, %v855, %v830
        %v857 = vmul.f32 %v849, %v834
        %858 = vadd.xlane.f32.xlu0 %v857
        %v859 = vpop.xlane.xlu0 %858
        %v860 = vsel %vm852, %v859, %v834
        %v861 = vmul.f32 %v849, %v838
        %862 = vadd.xlane.f32.xlu0 %v861
        %v863 = vpop.xlane.xlu0 %862
        %v864 = vsel %vm852, %v863, %v838
        %v865 = vmul.f32 %v849, %v842
        %866 = vadd.xlane.f32.xlu0 %v865
        %v867 = vpop.xlane.xlu0 %866
        %v868 = vsel %vm852, %v867, %v842
        %v869 = vmul.f32 %v849, %v846
        %870 = vadd.xlane.f32.xlu0 %v869
        %v871 = vpop.xlane.xlu0 %870
        %v872 = vsel %vm852, %v871, %v846
        %s873 = scalar_lea.vmem [#allocation2], 18
        %v874 = vld [vmem:[%s873] ss:$0 sm:$0xff]
        %v875 = vxor.u32 %v874, 2147483648
        %v876 = vlaneseq
        %v877 = vand.u32 %v876, 127
        %vm878 = vcmp.eq.s32.totalorder %v877, 18
        %v879 = vmul.f32 %v875, %v856
        %880 = vadd.xlane.f32.xlu0 %v879
        %v881 = vpop.xlane.xlu0 %880
        %v882 = vsel %vm878, %v881, %v856
        %v883 = vmul.f32 %v875, %v860
        %884 = vadd.xlane.f32.xlu0 %v883
        %v885 = vpop.xlane.xlu0 %884
        %v886 = vsel %vm878, %v885, %v860
        %v887 = vmul.f32 %v875, %v864
        %888 = vadd.xlane.f32.xlu0 %v887
        %v889 = vpop.xlane.xlu0 %888
        %v890 = vsel %vm878, %v889, %v864
        %v891 = vmul.f32 %v875, %v868
        %892 = vadd.xlane.f32.xlu0 %v891
        %v893 = vpop.xlane.xlu0 %892
        %v894 = vsel %vm878, %v893, %v868
        %v895 = vmul.f32 %v875, %v872
        %896 = vadd.xlane.f32.xlu0 %v895
        %v897 = vpop.xlane.xlu0 %896
        %v898 = vsel %vm878, %v897, %v872
        %s899 = scalar_lea.vmem [#allocation2], 17
        %v900 = vld [vmem:[%s899] ss:$0 sm:$0xff]
        %v901 = vxor.u32 %v900, 2147483648
        %v902 = vlaneseq
        %v903 = vand.u32 %v902, 127
        %vm904 = vcmp.eq.s32.totalorder %v903, 17
        %v905 = vmul.f32 %v901, %v882
        %906 = vadd.xlane.f32.xlu0 %v905
        %v907 = vpop.xlane.xlu0 %906
        %v908 = vsel %vm904, %v907, %v882
        %v909 = vmul.f32 %v901, %v886
        %910 = vadd.xlane.f32.xlu0 %v909
        %v911 = vpop.xlane.xlu0 %910
        %v912 = vsel %vm904, %v911, %v886
        %v913 = vmul.f32 %v901, %v890
        %914 = vadd.xlane.f32.xlu0 %v913
        %v915 = vpop.xlane.xlu0 %914
        %v916 = vsel %vm904, %v915, %v890
        %v917 = vmul.f32 %v901, %v894
        %918 = vadd.xlane.f32.xlu0 %v917
        %v919 = vpop.xlane.xlu0 %918
        %v920 = vsel %vm904, %v919, %v894
        %v921 = vmul.f32 %v901, %v898
        %922 = vadd.xlane.f32.xlu0 %v921
        %v923 = vpop.xlane.xlu0 %922
        %v924 = vsel %vm904, %v923, %v898
        %s925 = scalar_lea.vmem [#allocation2], 16
        %v926 = vld [vmem:[%s925] ss:$0 sm:$0xff]
        %v927 = vxor.u32 %v926, 2147483648
        %v928 = vlaneseq
        %v929 = vand.u32 %v928, 127
        %vm930 = vcmp.eq.s32.totalorder %v929, 16
        %v931 = vmul.f32 %v927, %v908
        %932 = vadd.xlane.f32.xlu0 %v931
        %v933 = vpop.xlane.xlu0 %932
        %v934 = vsel %vm930, %v933, %v908
        %v935 = vmul.f32 %v927, %v912
        %936 = vadd.xlane.f32.xlu0 %v935
        %v937 = vpop.xlane.xlu0 %936
        %v938 = vsel %vm930, %v937, %v912
        %v939 = vmul.f32 %v927, %v916
        %940 = vadd.xlane.f32.xlu0 %v939
        %v941 = vpop.xlane.xlu0 %940
        %v942 = vsel %vm930, %v941, %v916
        %v943 = vmul.f32 %v927, %v920
        %944 = vadd.xlane.f32.xlu0 %v943
        %v945 = vpop.xlane.xlu0 %944
        %v946 = vsel %vm930, %v945, %v920
        %v947 = vmul.f32 %v927, %v924
        %948 = vadd.xlane.f32.xlu0 %v947
        %v949 = vpop.xlane.xlu0 %948
        %v950 = vsel %vm930, %v949, %v924
        %s951 = scalar_lea.vmem [#allocation2], 15
        %v952 = vld [vmem:[%s951] ss:$0 sm:$0xff]
        %v953 = vxor.u32 %v952, 2147483648
        %v954 = vlaneseq
        %v955 = vand.u32 %v954, 127
        %vm956 = vcmp.eq.s32.totalorder %v955, 15
        %v957 = vmul.f32 %v953, %v261
        %958 = vadd.xlane.f32.xlu0 %v957
        %v959 = vpop.xlane.xlu0 %958
        %v960 = vsel %vm956, %v959, %v261
        %v961 = vmul.f32 %v953, %v934
        %962 = vadd.xlane.f32.xlu0 %v961
        %v963 = vpop.xlane.xlu0 %962
        %v964 = vsel %vm956, %v963, %v934
        %v965 = vmul.f32 %v953, %v938
        %966 = vadd.xlane.f32.xlu0 %v965
        %v967 = vpop.xlane.xlu0 %966
        %v968 = vsel %vm956, %v967, %v938
        %v969 = vmul.f32 %v953, %v942
        %970 = vadd.xlane.f32.xlu0 %v969
        %v971 = vpop.xlane.xlu0 %970
        %v972 = vsel %vm956, %v971, %v942
        %v973 = vmul.f32 %v953, %v946
        %974 = vadd.xlane.f32.xlu0 %v973
        %v975 = vpop.xlane.xlu0 %974
        %v976 = vsel %vm956, %v975, %v946
        %v977 = vmul.f32 %v953, %v950
        %978 = vadd.xlane.f32.xlu0 %v977
        %v979 = vpop.xlane.xlu0 %978
        %v980 = vsel %vm956, %v979, %v950
        %s981 = scalar_lea.vmem [#allocation2], 14
        %v982 = vld [vmem:[%s981] ss:$0 sm:$0xff]
        %v983 = vxor.u32 %v982, 2147483648
        %v984 = vlaneseq
        %v985 = vand.u32 %v984, 127
        %vm986 = vcmp.eq.s32.totalorder %v985, 14
        %v987 = vmul.f32 %v983, %v960
        %988 = vadd.xlane.f32.xlu0 %v987
        %v989 = vpop.xlane.xlu0 %988
        %v990 = vsel %vm986, %v989, %v960
        %v991 = vmul.f32 %v983, %v964
        %992 = vadd.xlane.f32.xlu0 %v991
        %v993 = vpop.xlane.xlu0 %992
        %v994 = vsel %vm986, %v993, %v964
        %v995 = vmul.f32 %v983, %v968
        %996 = vadd.xlane.f32.xlu0 %v995
        %v997 = vpop.xlane.xlu0 %996
        %v998 = vsel %vm986, %v997, %v968
        %v999 = vmul.f32 %v983, %v972
        %1000 = vadd.xlane.f32.xlu0 %v999
        %v1001 = vpop.xlane.xlu0 %1000
        %v1002 = vsel %vm986, %v1001, %v972
        %v1003 = vmul.f32 %v983, %v976
        %1004 = vadd.xlane.f32.xlu0 %v1003
        %v1005 = vpop.xlane.xlu0 %1004
        %v1006 = vsel %vm986, %v1005, %v976
        %v1007 = vmul.f32 %v983, %v980
        %1008 = vadd.xlane.f32.xlu0 %v1007
        %v1009 = vpop.xlane.xlu0 %1008
        %v1010 = vsel %vm986, %v1009, %v980
        %s1011 = scalar_lea.vmem [#allocation2], 13
        %v1012 = vld [vmem:[%s1011] ss:$0 sm:$0xff]
        %v1013 = vxor.u32 %v1012, 2147483648
        %v1014 = vlaneseq
        %v1015 = vand.u32 %v1014, 127
        %vm1016 = vcmp.eq.s32.totalorder %v1015, 13
        %v1017 = vmul.f32 %v1013, %v990
        %1018 = vadd.xlane.f32.xlu0 %v1017
        %v1019 = vpop.xlane.xlu0 %1018
        %v1020 = vsel %vm1016, %v1019, %v990
        %v1021 = vmul.f32 %v1013, %v994
        %1022 = vadd.xlane.f32.xlu0 %v1021
        %v1023 = vpop.xlane.xlu0 %1022
        %v1024 = vsel %vm1016, %v1023, %v994
        %v1025 = vmul.f32 %v1013, %v998
        %1026 = vadd.xlane.f32.xlu0 %v1025
        %v1027 = vpop.xlane.xlu0 %1026
        %v1028 = vsel %vm1016, %v1027, %v998
        %v1029 = vmul.f32 %v1013, %v1002
        %1030 = vadd.xlane.f32.xlu0 %v1029
        %v1031 = vpop.xlane.xlu0 %1030
        %v1032 = vsel %vm1016, %v1031, %v1002
        %v1033 = vmul.f32 %v1013, %v1006
        %1034 = vadd.xlane.f32.xlu0 %v1033
        %v1035 = vpop.xlane.xlu0 %1034
        %v1036 = vsel %vm1016, %v1035, %v1006
        %v1037 = vmul.f32 %v1013, %v1010
        %1038 = vadd.xlane.f32.xlu0 %v1037
        %v1039 = vpop.xlane.xlu0 %1038
        %v1040 = vsel %vm1016, %v1039, %v1010
        %s1041 = scalar_lea.vmem [#allocation2], 12
        %v1042 = vld [vmem:[%s1041] ss:$0 sm:$0xff]
        %v1043 = vxor.u32 %v1042, 2147483648
        %v1044 = vlaneseq
        %v1045 = vand.u32 %v1044, 127
        %vm1046 = vcmp.eq.s32.totalorder %v1045, 12
        %v1047 = vmul.f32 %v1043, %v1020
        %1048 = vadd.xlane.f32.xlu0 %v1047
        %v1049 = vpop.xlane.xlu0 %1048
        %v1050 = vsel %vm1046, %v1049, %v1020
        %v1051 = vmul.f32 %v1043, %v1024
        %1052 = vadd.xlane.f32.xlu0 %v1051
        %v1053 = vpop.xlane.xlu0 %1052
        %v1054 = vsel %vm1046, %v1053, %v1024
        %v1055 = vmul.f32 %v1043, %v1028
        %1056 = vadd.xlane.f32.xlu0 %v1055
        %v1057 = vpop.xlane.xlu0 %1056
        %v1058 = vsel %vm1046, %v1057, %v1028
        %v1059 = vmul.f32 %v1043, %v1032
        %1060 = vadd.xlane.f32.xlu0 %v1059
        %v1061 = vpop.xlane.xlu0 %1060
        %v1062 = vsel %vm1046, %v1061, %v1032
        %v1063 = vmul.f32 %v1043, %v1036
        %1064 = vadd.xlane.f32.xlu0 %v1063
        %v1065 = vpop.xlane.xlu0 %1064
        %v1066 = vsel %vm1046, %v1065, %v1036
        %v1067 = vmul.f32 %v1043, %v1040
        %1068 = vadd.xlane.f32.xlu0 %v1067
        %v1069 = vpop.xlane.xlu0 %1068
        %v1070 = vsel %vm1046, %v1069, %v1040
        %s1071 = scalar_lea.vmem [#allocation2], 11
        %v1072 = vld [vmem:[%s1071] ss:$0 sm:$0xff]
        %v1073 = vxor.u32 %v1072, 2147483648
        %v1074 = vlaneseq
        %v1075 = vand.u32 %v1074, 127
        %vm1076 = vcmp.eq.s32.totalorder %v1075, 11
        %v1077 = vmul.f32 %v1073, %v1050
        %1078 = vadd.xlane.f32.xlu0 %v1077
        %v1079 = vpop.xlane.xlu0 %1078
        %v1080 = vsel %vm1076, %v1079, %v1050
        %v1081 = vmul.f32 %v1073, %v1054
        %1082 = vadd.xlane.f32.xlu0 %v1081
        %v1083 = vpop.xlane.xlu0 %1082
        %v1084 = vsel %vm1076, %v1083, %v1054
        %v1085 = vmul.f32 %v1073, %v1058
        %1086 = vadd.xlane.f32.xlu0 %v1085
        %v1087 = vpop.xlane.xlu0 %1086
        %v1088 = vsel %vm1076, %v1087, %v1058
        %v1089 = vmul.f32 %v1073, %v1062
        %1090 = vadd.xlane.f32.xlu0 %v1089
        %v1091 = vpop.xlane.xlu0 %1090
        %v1092 = vsel %vm1076, %v1091, %v1062
        %v1093 = vmul.f32 %v1073, %v1066
        %1094 = vadd.xlane.f32.xlu0 %v1093
        %v1095 = vpop.xlane.xlu0 %1094
        %v1096 = vsel %vm1076, %v1095, %v1066
        %v1097 = vmul.f32 %v1073, %v1070
        %1098 = vadd.xlane.f32.xlu0 %v1097
        %v1099 = vpop.xlane.xlu0 %1098
        %v1100 = vsel %vm1076, %v1099, %v1070
        %s1101 = scalar_lea.vmem [#allocation2], 10
        %v1102 = vld [vmem:[%s1101] ss:$0 sm:$0xff]
        %v1103 = vxor.u32 %v1102, 2147483648
        %v1104 = vlaneseq
        %v1105 = vand.u32 %v1104, 127
        %vm1106 = vcmp.eq.s32.totalorder %v1105, 10
        %v1107 = vmul.f32 %v1103, %v1080
        %1108 = vadd.xlane.f32.xlu0 %v1107
        %v1109 = vpop.xlane.xlu0 %1108
        %v1110 = vsel %vm1106, %v1109, %v1080
        %v1111 = vmul.f32 %v1103, %v1084
        %1112 = vadd.xlane.f32.xlu0 %v1111
        %v1113 = vpop.xlane.xlu0 %1112
        %v1114 = vsel %vm1106, %v1113, %v1084
        %v1115 = vmul.f32 %v1103, %v1088
        %1116 = vadd.xlane.f32.xlu0 %v1115
        %v1117 = vpop.xlane.xlu0 %1116
        %v1118 = vsel %vm1106, %v1117, %v1088
        %v1119 = vmul.f32 %v1103, %v1092
        %1120 = vadd.xlane.f32.xlu0 %v1119
        %v1121 = vpop.xlane.xlu0 %1120
        %v1122 = vsel %vm1106, %v1121, %v1092
        %v1123 = vmul.f32 %v1103, %v1096
        %1124 = vadd.xlane.f32.xlu0 %v1123
        %v1125 = vpop.xlane.xlu0 %1124
        %v1126 = vsel %vm1106, %v1125, %v1096
        %v1127 = vmul.f32 %v1103, %v1100
        %1128 = vadd.xlane.f32.xlu0 %v1127
        %v1129 = vpop.xlane.xlu0 %1128
        %v1130 = vsel %vm1106, %v1129, %v1100
        %s1131 = scalar_lea.vmem [#allocation2], 9
        %v1132 = vld [vmem:[%s1131] ss:$0 sm:$0xff]
        %v1133 = vxor.u32 %v1132, 2147483648
        %v1134 = vlaneseq
        %v1135 = vand.u32 %v1134, 127
        %vm1136 = vcmp.eq.s32.totalorder %v1135, 9
        %v1137 = vmul.f32 %v1133, %v1110
        %1138 = vadd.xlane.f32.xlu0 %v1137
        %v1139 = vpop.xlane.xlu0 %1138
        %v1140 = vsel %vm1136, %v1139, %v1110
        %v1141 = vmul.f32 %v1133, %v1114
        %1142 = vadd.xlane.f32.xlu0 %v1141
        %v1143 = vpop.xlane.xlu0 %1142
        %v1144 = vsel %vm1136, %v1143, %v1114
        %v1145 = vmul.f32 %v1133, %v1118
        %1146 = vadd.xlane.f32.xlu0 %v1145
        %v1147 = vpop.xlane.xlu0 %1146
        %v1148 = vsel %vm1136, %v1147, %v1118
        %v1149 = vmul.f32 %v1133, %v1122
        %1150 = vadd.xlane.f32.xlu0 %v1149
        %v1151 = vpop.xlane.xlu0 %1150
        %v1152 = vsel %vm1136, %v1151, %v1122
        %v1153 = vmul.f32 %v1133, %v1126
        %1154 = vadd.xlane.f32.xlu0 %v1153
        %v1155 = vpop.xlane.xlu0 %1154
        %v1156 = vsel %vm1136, %v1155, %v1126
        %v1157 = vmul.f32 %v1133, %v1130
        %1158 = vadd.xlane.f32.xlu0 %v1157
        %v1159 = vpop.xlane.xlu0 %1158
        %v1160 = vsel %vm1136, %v1159, %v1130
        %s1161 = scalar_lea.vmem [#allocation2], 8
        %v1162 = vld [vmem:[%s1161] ss:$0 sm:$0xff]
        %v1163 = vxor.u32 %v1162, 2147483648
        %v1164 = vlaneseq
        %v1165 = vand.u32 %v1164, 127
        %vm1166 = vcmp.eq.s32.totalorder %v1165, 8
        %v1167 = vmul.f32 %v1163, %v1140
        %1168 = vadd.xlane.f32.xlu0 %v1167
        %v1169 = vpop.xlane.xlu0 %1168
        %v1170 = vsel %vm1166, %v1169, %v1140
        %v1171 = vmul.f32 %v1163, %v1144
        %1172 = vadd.xlane.f32.xlu0 %v1171
        %v1173 = vpop.xlane.xlu0 %1172
        %v1174 = vsel %vm1166, %v1173, %v1144
        %v1175 = vmul.f32 %v1163, %v1148
        %1176 = vadd.xlane.f32.xlu0 %v1175
        %v1177 = vpop.xlane.xlu0 %1176
        %v1178 = vsel %vm1166, %v1177, %v1148
        %v1179 = vmul.f32 %v1163, %v1152
        %1180 = vadd.xlane.f32.xlu0 %v1179
        %v1181 = vpop.xlane.xlu0 %1180
        %v1182 = vsel %vm1166, %v1181, %v1152
        %v1183 = vmul.f32 %v1163, %v1156
        %1184 = vadd.xlane.f32.xlu0 %v1183
        %v1185 = vpop.xlane.xlu0 %1184
        %v1186 = vsel %vm1166, %v1185, %v1156
        %v1187 = vmul.f32 %v1163, %v1160
        %1188 = vadd.xlane.f32.xlu0 %v1187
        %v1189 = vpop.xlane.xlu0 %1188
        %v1190 = vsel %vm1166, %v1189, %v1160
        %s1191 = scalar_lea.vmem [#allocation2], 7
        %v1192 = vld [vmem:[%s1191] ss:$0 sm:$0xff]
        %v1193 = vxor.u32 %v1192, 2147483648
        %v1194 = vlaneseq
        %v1195 = vand.u32 %v1194, 127
        %vm1196 = vcmp.eq.s32.totalorder %v1195, 7
        %v1197 = vmul.f32 %v1193, %v254
        %1198 = vadd.xlane.f32.xlu0 %v1197
        %v1199 = vpop.xlane.xlu0 %1198
        %v1200 = vsel %vm1196, %v1199, %v254
        %v1201 = vmul.f32 %v1193, %v1170
        %1202 = vadd.xlane.f32.xlu0 %v1201
        %v1203 = vpop.xlane.xlu0 %1202
        %v1204 = vsel %vm1196, %v1203, %v1170
        %v1205 = vmul.f32 %v1193, %v1174
        %1206 = vadd.xlane.f32.xlu0 %v1205
        %v1207 = vpop.xlane.xlu0 %1206
        %v1208 = vsel %vm1196, %v1207, %v1174
        %v1209 = vmul.f32 %v1193, %v1178
        %1210 = vadd.xlane.f32.xlu0 %v1209
        %v1211 = vpop.xlane.xlu0 %1210
        %v1212 = vsel %vm1196, %v1211, %v1178
        %v1213 = vmul.f32 %v1193, %v1182
        %1214 = vadd.xlane.f32.xlu0 %v1213
        %v1215 = vpop.xlane.xlu0 %1214
        %v1216 = vsel %vm1196, %v1215, %v1182
        %v1217 = vmul.f32 %v1193, %v1186
        %1218 = vadd.xlane.f32.xlu0 %v1217
        %v1219 = vpop.xlane.xlu0 %1218
        %v1220 = vsel %vm1196, %v1219, %v1186
        %v1221 = vmul.f32 %v1193, %v1190
        %1222 = vadd.xlane.f32.xlu0 %v1221
        %v1223 = vpop.xlane.xlu0 %1222
        %v1224 = vsel %vm1196, %v1223, %v1190
        %s1225 = scalar_lea.vmem [#allocation2], 6
        %v1226 = vld [vmem:[%s1225] ss:$0 sm:$0xff]
        %v1227 = vxor.u32 %v1226, 2147483648
        %v1228 = vlaneseq
        %v1229 = vand.u32 %v1228, 127
        %vm1230 = vcmp.eq.s32.totalorder %v1229, 6
        %v1231 = vmul.f32 %v1227, %v1200
        %1232 = vadd.xlane.f32.xlu0 %v1231
        %v1233 = vpop.xlane.xlu0 %1232
        %v1234 = vsel %vm1230, %v1233, %v1200
        %v1235 = vmul.f32 %v1227, %v1204
        %1236 = vadd.xlane.f32.xlu0 %v1235
        %v1237 = vpop.xlane.xlu0 %1236
        %v1238 = vsel %vm1230, %v1237, %v1204
        %v1239 = vmul.f32 %v1227, %v1208
        %1240 = vadd.xlane.f32.xlu0 %v1239
        %v1241 = vpop.xlane.xlu0 %1240
        %v1242 = vsel %vm1230, %v1241, %v1208
        %v1243 = vmul.f32 %v1227, %v1212
        %1244 = vadd.xlane.f32.xlu0 %v1243
        %v1245 = vpop.xlane.xlu0 %1244
        %v1246 = vsel %vm1230, %v1245, %v1212
        %v1247 = vmul.f32 %v1227, %v1216
        %1248 = vadd.xlane.f32.xlu0 %v1247
        %v1249 = vpop.xlane.xlu0 %1248
        %v1250 = vsel %vm1230, %v1249, %v1216
        %v1251 = vmul.f32 %v1227, %v1220
        %1252 = vadd.xlane.f32.xlu0 %v1251
        %v1253 = vpop.xlane.xlu0 %1252
        %v1254 = vsel %vm1230, %v1253, %v1220
        %v1255 = vmul.f32 %v1227, %v1224
        %1256 = vadd.xlane.f32.xlu0 %v1255
        %v1257 = vpop.xlane.xlu0 %1256
        %v1258 = vsel %vm1230, %v1257, %v1224
        %s1259 = scalar_lea.vmem [#allocation2], 5
        %v1260 = vld [vmem:[%s1259] ss:$0 sm:$0xff]
        %v1261 = vxor.u32 %v1260, 2147483648
        %v1262 = vlaneseq
        %v1263 = vand.u32 %v1262, 127
        %vm1264 = vcmp.eq.s32.totalorder %v1263, 5
        %v1265 = vmul.f32 %v1261, %v1234
        %1266 = vadd.xlane.f32.xlu0 %v1265
        %v1267 = vpop.xlane.xlu0 %1266
        %v1268 = vsel %vm1264, %v1267, %v1234
        %v1269 = vmul.f32 %v1261, %v1238
        %1270 = vadd.xlane.f32.xlu0 %v1269
        %v1271 = vpop.xlane.xlu0 %1270
        %v1272 = vsel %vm1264, %v1271, %v1238
        %v1273 = vmul.f32 %v1261, %v1242
        %1274 = vadd.xlane.f32.xlu0 %v1273
        %v1275 = vpop.xlane.xlu0 %1274
        %v1276 = vsel %vm1264, %v1275, %v1242
        %v1277 = vmul.f32 %v1261, %v1246
        %1278 = vadd.xlane.f32.xlu0 %v1277
        %v1279 = vpop.xlane.xlu0 %1278
        %v1280 = vsel %vm1264, %v1279, %v1246
        %v1281 = vmul.f32 %v1261, %v1250
        %1282 = vadd.xlane.f32.xlu0 %v1281
        %v1283 = vpop.xlane.xlu0 %1282
        %v1284 = vsel %vm1264, %v1283, %v1250
        %v1285 = vmul.f32 %v1261, %v1254
        %1286 = vadd.xlane.f32.xlu0 %v1285
        %v1287 = vpop.xlane.xlu0 %1286
        %v1288 = vsel %vm1264, %v1287, %v1254
        %v1289 = vmul.f32 %v1261, %v1258
        %1290 = vadd.xlane.f32.xlu0 %v1289
        %v1291 = vpop.xlane.xlu0 %1290
        %v1292 = vsel %vm1264, %v1291, %v1258
        %s1293 = scalar_lea.vmem [#allocation2], 4
        %v1294 = vld [vmem:[%s1293] ss:$0 sm:$0xff]
        %v1295 = vxor.u32 %v1294, 2147483648
        %v1296 = vlaneseq
        %v1297 = vand.u32 %v1296, 127
        %vm1298 = vcmp.eq.s32.totalorder %v1297, 4
        %v1299 = vmul.f32 %v1295, %v1268
        %1300 = vadd.xlane.f32.xlu0 %v1299
        %v1301 = vpop.xlane.xlu0 %1300
        %v1302 = vsel %vm1298, %v1301, %v1268
        %v1303 = vmul.f32 %v1295, %v1272
        %1304 = vadd.xlane.f32.xlu0 %v1303
        %v1305 = vpop.xlane.xlu0 %1304
        %v1306 = vsel %vm1298, %v1305, %v1272
        %v1307 = vmul.f32 %v1295, %v1276
        %1308 = vadd.xlane.f32.xlu0 %v1307
        %v1309 = vpop.xlane.xlu0 %1308
        %v1310 = vsel %vm1298, %v1309, %v1276
        %v1311 = vmul.f32 %v1295, %v1280
        %1312 = vadd.xlane.f32.xlu0 %v1311
        %v1313 = vpop.xlane.xlu0 %1312
        %v1314 = vsel %vm1298, %v1313, %v1280
        %v1315 = vmul.f32 %v1295, %v1284
        %1316 = vadd.xlane.f32.xlu0 %v1315
        %v1317 = vpop.xlane.xlu0 %1316
        %v1318 = vsel %vm1298, %v1317, %v1284
        %v1319 = vmul.f32 %v1295, %v1288
        %1320 = vadd.xlane.f32.xlu0 %v1319
        %v1321 = vpop.xlane.xlu0 %1320
        %v1322 = vsel %vm1298, %v1321, %v1288
        %v1323 = vmul.f32 %v1295, %v1292
        %1324 = vadd.xlane.f32.xlu0 %v1323
        %v1325 = vpop.xlane.xlu0 %1324
        %v1326 = vsel %vm1298, %v1325, %v1292
        %s1327 = scalar_lea.vmem [#allocation2], 3
        %v1328 = vld [vmem:[%s1327] ss:$0 sm:$0xff]
        %v1329 = vxor.u32 %v1328, 2147483648
        %v1330 = vlaneseq
        %v1331 = vand.u32 %v1330, 127
        %vm1332 = vcmp.eq.s32.totalorder %v1331, 3
        %v1333 = vmul.f32 %v1329, %v1302
        %1334 = vadd.xlane.f32.xlu0 %v1333
        %v1335 = vpop.xlane.xlu0 %1334
        %v1336 = vsel %vm1332, %v1335, %v1302
        %v1337 = vmul.f32 %v1329, %v1306
        %1338 = vadd.xlane.f32.xlu0 %v1337
        %v1339 = vpop.xlane.xlu0 %1338
        %v1340 = vsel %vm1332, %v1339, %v1306
        %v1341 = vmul.f32 %v1329, %v1310
        %1342 = vadd.xlane.f32.xlu0 %v1341
        %v1343 = vpop.xlane.xlu0 %1342
        %v1344 = vsel %vm1332, %v1343, %v1310
        %v1345 = vmul.f32 %v1329, %v1314
        %1346 = vadd.xlane.f32.xlu0 %v1345
        %v1347 = vpop.xlane.xlu0 %1346
        %v1348 = vsel %vm1332, %v1347, %v1314
        %v1349 = vmul.f32 %v1329, %v1318
        %1350 = vadd.xlane.f32.xlu0 %v1349
        %v1351 = vpop.xlane.xlu0 %1350
        %v1352 = vsel %vm1332, %v1351, %v1318
        %v1353 = vmul.f32 %v1329, %v1322
        %1354 = vadd.xlane.f32.xlu0 %v1353
        %v1355 = vpop.xlane.xlu0 %1354
        %v1356 = vsel %vm1332, %v1355, %v1322
        %v1357 = vmul.f32 %v1329, %v1326
        %1358 = vadd.xlane.f32.xlu0 %v1357
        %v1359 = vpop.xlane.xlu0 %1358
        %v1360 = vsel %vm1332, %v1359, %v1326
        %s1361 = scalar_lea.vmem [#allocation2], 2
        %v1362 = vld [vmem:[%s1361] ss:$0 sm:$0xff]
        %v1363 = vxor.u32 %v1362, 2147483648
        %v1364 = vlaneseq
        %v1365 = vand.u32 %v1364, 127
        %vm1366 = vcmp.eq.s32.totalorder %v1365, 2
        %v1367 = vmul.f32 %v1363, %v1336
        %1368 = vadd.xlane.f32.xlu0 %v1367
        %v1369 = vpop.xlane.xlu0 %1368
        %v1370 = vsel %vm1366, %v1369, %v1336
        %v1371 = vmul.f32 %v1363, %v1340
        %1372 = vadd.xlane.f32.xlu0 %v1371
        %v1373 = vpop.xlane.xlu0 %1372
        %v1374 = vsel %vm1366, %v1373, %v1340
        %v1375 = vmul.f32 %v1363, %v1344
        %1376 = vadd.xlane.f32.xlu0 %v1375
        %v1377 = vpop.xlane.xlu0 %1376
        %v1378 = vsel %vm1366, %v1377, %v1344
        %v1379 = vmul.f32 %v1363, %v1348
        %1380 = vadd.xlane.f32.xlu0 %v1379
        %v1381 = vpop.xlane.xlu0 %1380
        %v1382 = vsel %vm1366, %v1381, %v1348
        %v1383 = vmul.f32 %v1363, %v1352
        %1384 = vadd.xlane.f32.xlu0 %v1383
        %v1385 = vpop.xlane.xlu0 %1384
        %v1386 = vsel %vm1366, %v1385, %v1352
        %v1387 = vmul.f32 %v1363, %v1356
        %1388 = vadd.xlane.f32.xlu0 %v1387
        %v1389 = vpop.xlane.xlu0 %1388
        %v1390 = vsel %vm1366, %v1389, %v1356
        %v1391 = vmul.f32 %v1363, %v1360
        %1392 = vadd.xlane.f32.xlu0 %v1391
        %v1393 = vpop.xlane.xlu0 %1392
        %v1394 = vsel %vm1366, %v1393, %v1360
        %s1395 = scalar_lea.vmem [#allocation2], 1
        %v1396 = vld [vmem:[%s1395] ss:$0 sm:$0xff]
        %v1397 = vxor.u32 %v1396, 2147483648
        %v1398 = vlaneseq
        %v1399 = vand.u32 %v1398, 127
        %vm1400 = vcmp.eq.s32.totalorder %v1399, 1
        %v1401 = vmul.f32 %v1397, %v1370
        %1402 = vadd.xlane.f32.xlu0 %v1401
        %v1403 = vpop.xlane.xlu0 %1402
        %v1404 = vsel %vm1400, %v1403, %v1370
        %v1405 = vmul.f32 %v1397, %v1374
        %1406 = vadd.xlane.f32.xlu0 %v1405
        %v1407 = vpop.xlane.xlu0 %1406
        %v1408 = vsel %vm1400, %v1407, %v1374
        %v1409 = vmul.f32 %v1397, %v1378
        %1410 = vadd.xlane.f32.xlu0 %v1409
        %v1411 = vpop.xlane.xlu0 %1410
        %v1412 = vsel %vm1400, %v1411, %v1378
        %v1413 = vmul.f32 %v1397, %v1382
        %1414 = vadd.xlane.f32.xlu0 %v1413
        %v1415 = vpop.xlane.xlu0 %1414
        %v1416 = vsel %vm1400, %v1415, %v1382
        %v1417 = vmul.f32 %v1397, %v1386
        %1418 = vadd.xlane.f32.xlu0 %v1417
        %v1419 = vpop.xlane.xlu0 %1418
        %v1420 = vsel %vm1400, %v1419, %v1386
        %v1421 = vmul.f32 %v1397, %v1390
        %1422 = vadd.xlane.f32.xlu0 %v1421
        %v1423 = vpop.xlane.xlu0 %1422
        %v1424 = vsel %vm1400, %v1423, %v1390
        %v1425 = vmul.f32 %v1397, %v1394
        %1426 = vadd.xlane.f32.xlu0 %v1425
        %v1427 = vpop.xlane.xlu0 %1426
        %v1428 = vsel %vm1400, %v1427, %v1394
        %v1429 = vld [vmem:[#allocation2] ss:$0 sm:$0xff]
        %v1430 = vxor.u32 %v1429, 2147483648
        %v1431 = vlaneseq
        %v1432 = vand.u32 %v1431, 127
        %vm1433 = vcmp.eq.s32.totalorder %v1432, 0
        %v1434 = vmul.f32 %v1430, %v1404
        %1435 = vadd.xlane.f32.xlu0 %v1434
        %v1436 = vpop.xlane.xlu0 %1435
        %v1437 = vsel %vm1433, %v1436, %v1404
        %v1438 = vmul.f32 %v1430, %v1408
        %1439 = vadd.xlane.f32.xlu0 %v1438
        %v1440 = vpop.xlane.xlu0 %1439
        %v1441 = vsel %vm1433, %v1440, %v1408
        %v1442 = vmul.f32 %v1430, %v1412
        %1443 = vadd.xlane.f32.xlu0 %v1442
        %v1444 = vpop.xlane.xlu0 %1443
        %v1445 = vsel %vm1433, %v1444, %v1412
        %v1446 = vmul.f32 %v1430, %v1416
        %1447 = vadd.xlane.f32.xlu0 %v1446
        %v1448 = vpop.xlane.xlu0 %1447
        %v1449 = vsel %vm1433, %v1448, %v1416
        %v1450 = vmul.f32 %v1430, %v1420
        %1451 = vadd.xlane.f32.xlu0 %v1450
        %v1452 = vpop.xlane.xlu0 %1451
        %v1453 = vsel %vm1433, %v1452, %v1420
        %v1454 = vmul.f32 %v1430, %v1424
        %1455 = vadd.xlane.f32.xlu0 %v1454
        %v1456 = vpop.xlane.xlu0 %1455
        %v1457 = vsel %vm1433, %v1456, %v1424
        %v1458 = vmul.f32 %v1430, %v1428
        %1459 = vadd.xlane.f32.xlu0 %v1458
        %v1460 = vpop.xlane.xlu0 %1459
        %v1461 = vsel %vm1433, %v1460, %v1428
        %v1462 = vrcp.pop %v145
        %v1463 = vmul.f32 %v1437, %v1462
        %vm1464 = vweird.f32 %v145
        %v1465 = vsel %vm1464, %v1437, %v1463
        %1466 = vst [vmem:[%s134] sm:$0xff] %v1465
        %v1467 = vrcp.pop %v161
        %v1468 = vmul.f32 %v1441, %v1467
        %vm1469 = vweird.f32 %v161
        %v1470 = vsel %vm1469, %v1441, %v1468
        %s1471 = scalar_lea.vmem %s134, 8 [#allocation1]
        %1472 = vst [vmem:[%s1471] sm:$0xff] %v1470
        %v1473 = vrcp.pop %v177
        %v1474 = vmul.f32 %v1445, %v1473
        %vm1475 = vweird.f32 %v177
        %v1476 = vsel %vm1475, %v1445, %v1474
        %s1477 = scalar_lea.vmem %s134, 16 [#allocation1]
        %1478 = vst [vmem:[%s1477] sm:$0xff] %v1476
        %v1479 = vrcp.pop %v193
        %v1480 = vmul.f32 %v1449, %v1479
        %vm1481 = vweird.f32 %v193
        %v1482 = vsel %vm1481, %v1449, %v1480
        %s1483 = scalar_lea.vmem %s134, 24 [#allocation1]
        %1484 = vst [vmem:[%s1483] sm:$0xff] %v1482
        %v1485 = vrcp.pop %v209
        %v1486 = vmul.f32 %v1453, %v1485
        %vm1487 = vweird.f32 %v209
        %v1488 = vsel %vm1487, %v1453, %v1486
        %s1489 = scalar_lea.vmem %s134, 32 [#allocation1]
        %1490 = vst [vmem:[%s1489] sm:$0xff] %v1488
        %v1491 = vrcp.pop %v225
        %v1492 = vmul.f32 %v1457, %v1491
        %vm1493 = vweird.f32 %v225
        %v1494 = vsel %vm1493, %v1457, %v1492
        %s1495 = scalar_lea.vmem %s134, 40 [#allocation1]
        %1496 = vst [vmem:[%s1495] sm:$0xff] %v1494
        %v1497 = vrcp.pop %v241
        %v1498 = vmul.f32 %v1461, %v1497
        %vm1499 = vweird.f32 %v241
        %v1500 = vsel %vm1499, %v1461, %v1498
        %s1501 = scalar_lea.vmem %s134, 48 [#allocation1]
        %1502 = vst [vmem:[%s1501] sm:$0xff] %v1500
        %s1503 = sand.u32 %s8, 1
        %s1504 = sand.u32 %s8, 1
        %s1505 = smul.addr %s1504, 56
        %s1506 = scalar_lea.vmem [#allocation1], %s1505
        %s1507 = sadd.s32 %s17, %s16
        %s1508 = smul.addr %s15, 7
        %s1509 = sadd.s32 %s1507, %s1508
        %s1510 = smul.addr %s14, 7
        %s1511 = sadd.s32 %s1509, %s1510
        %s1512 = smul.addr %s1511, 8
        %s1513 = scalar_lea.vmem %s1, %s1512
        // Predicated region
        $region55: #{custom-call.9} parent=53 // pred_check
          _
        $region56: #{custom-call.9} parent=53 // pred_check_branch
          %1515 = sbr.rel (0) target = $region58
        $region57: #{custom-call.9} parent=53 // pred_region
          // Predicated region
          $region59: #{custom-call.9} parent=57 // pred_check
            _
          $region60: #{custom-call.9} parent=57 // pred_check_branch
            %1517 = sbr.rel (0) target = $region62
          $region61: #{custom-call.9} parent=57 // pred_region
            // Predicated region
            $region74: #{custom-call.9} parent=61 // pred_check
              _
            $region75: #{custom-call.9} parent=61 // pred_check_branch
              %1545 = sbr.rel (0) target = $region77
            $region76: #{custom-call.9} parent=61 // pred_region
              loop: start=0, step=1, limit=1
              $region78: #{custom-call.9} parent=76 // loop_pre_header
                _
              $region79: #{custom-call.9} parent=76 // loop_header
                %s1547 = sphi 0, %s1551
                %p1548 = scmp.ge.s32.totalorder %s1547, 1
                %s1552 = sphi %s1506, %s1506
                %s1553 = sphi %s1513, %s1513
              $region80: #{custom-call.9} parent=76 // loop_header_branch
                %1550 = sbr.rel (%p1548) target = $region84
              $region81: #{custom-call.9} parent=76 // loop_body
                %v1554 = vld [vmem:[%s1552] sm:$0xff]
                %1555 = vst [vmem:[%s1553] sm:$0xff] %v1554
                %v1556 = vld [vmem:[%s1552 + $0x8] sm:$0xff]
                %1557 = vst [vmem:[%s1553 + $0x8] sm:$0xff] %v1556
                %v1558 = vld [vmem:[%s1552 + $0x10] sm:$0xff]
                %1559 = vst [vmem:[%s1553 + $0x10] sm:$0xff] %v1558
                %v1560 = vld [vmem:[%s1552 + $0x18] sm:$0xff]
                %1561 = vst [vmem:[%s1553 + $0x18] sm:$0xff] %v1560
                %v1562 = vld [vmem:[%s1552 + $0x20] sm:$0xff]
                %1563 = vst [vmem:[%s1553 + $0x20] sm:$0xff] %v1562
                %v1564 = vld [vmem:[%s1552 + $0x28] sm:$0xff]
                %1565 = vst [vmem:[%s1553 + $0x28] sm:$0xff] %v1564
                %v1566 = vld [vmem:[%s1552 + $0x30] sm:$0xff]
                %1567 = vst [vmem:[%s1553 + $0x30] sm:$0xff] %v1566
              $region82: #{custom-call.9} parent=76 // loop_footer
                %s1551 = sadd.s32 1, %s1547
              $region83: #{custom-call.9} parent=76 // loop_footer_branch
                %1546 = sbr.rel target = $region79
              $region84: #{custom-call.9} parent=76 // loop_exit
                _
            $region77: #{custom-call.9} parent=61 // pred_fallthru
              _
            // Predicated region
            $region85: #{custom-call.9} parent=61 // pred_check
              _
            $region86: #{custom-call.9} parent=61 // pred_check_branch
              %1569 = sbr.rel target = $region88
            $region87: #{custom-call.9} parent=61 // pred_region
              _
            $region88: #{custom-call.9} parent=61 // pred_fallthru
              _
          $region62: #{custom-call.9} parent=57 // pred_fallthru
            _
          // Predicated region
          $region63: #{custom-call.9} parent=57 // pred_check
            _
          $region64: #{custom-call.9} parent=57 // pred_check_branch
            %1519 = sbr.rel target = $region66
          $region65: #{custom-call.9} parent=57 // pred_region
            %s1521 = ssub.s32 256, 1
            loop: start=0, step=1, limit=1
            $region67: #{custom-call.9} parent=65 // loop_pre_header
              _
            $region68: #{custom-call.9} parent=65 // loop_header
              %s1523 = sphi 0, %s1527
              %p1524 = scmp.ge.s32.totalorder %s1523, 1
              %s1528 = sphi %s1506, %s1506
              %s1529 = sphi %s1513, %s1513
            $region69: #{custom-call.9} parent=65 // loop_header_branch
              %1526 = sbr.rel (%p1524) target = $region73
            $region70: #{custom-call.9} parent=65 // loop_body
              %v1530 = vld [vmem:[%s1528] sm:%s1521]
              %1531 = vst [vmem:[%s1529] sm:%s1521] %v1530
              %v1532 = vld [vmem:[%s1528 + $0x8] sm:%s1521]
              %1533 = vst [vmem:[%s1529 + $0x8] sm:%s1521] %v1532
              %v1534 = vld [vmem:[%s1528 + $0x10] sm:%s1521]
              %1535 = vst [vmem:[%s1529 + $0x10] sm:%s1521] %v1534
              %v1536 = vld [vmem:[%s1528 + $0x18] sm:%s1521]
              %1537 = vst [vmem:[%s1529 + $0x18] sm:%s1521] %v1536
              %v1538 = vld [vmem:[%s1528 + $0x20] sm:%s1521]
              %1539 = vst [vmem:[%s1529 + $0x20] sm:%s1521] %v1538
              %v1540 = vld [vmem:[%s1528 + $0x28] sm:%s1521]
              %1541 = vst [vmem:[%s1529 + $0x28] sm:%s1521] %v1540
              %v1542 = vld [vmem:[%s1528 + $0x30] sm:%s1521]
              %1543 = vst [vmem:[%s1529 + $0x30] sm:%s1521] %v1542
            $region71: #{custom-call.9} parent=65 // loop_footer
              %s1527 = sadd.s32 1, %s1523
            $region72: #{custom-call.9} parent=65 // loop_footer_branch
              %1522 = sbr.rel target = $region68
            $region73: #{custom-call.9} parent=65 // loop_exit
              _
          $region66: #{custom-call.9} parent=57 // pred_fallthru
            _
        $region58: #{custom-call.9} parent=53 // pred_fallthru
          _
        %1570 = vnop
      $region54: #{custom-call.9} parent=5 // pred_fallthru
        _
      %p1571 = scmp.le.s32.totalorder 2, %s3
      // Predicated region
      $region89: #{custom-call.9} parent=5 // pred_check
        %p1572 = pneg %p1571
      $region90: #{custom-call.9} parent=5 // pred_check_branch
        %1574 = sbr.rel (%p1572) target = $region92
      $region91: #{custom-call.9} parent=5 // pred_region
        %s1575 = ssub.s32 %s3, 2
        %s1576 = sand.u32 %s9, 1
        %s1577 = sand.u32 %s9, 1
        %s1578 = smul.addr %s1577, 56
        %s1579 = scalar_lea.vmem [#allocation1], %s1578
      $region92: #{custom-call.9} parent=5 // pred_fallthru
        _
    $region6: #{custom-call.9} parent=1 // loop_footer
      %s7 = sadd.s32 1, %s3
    $region7: #{custom-call.9} parent=1 // loop_footer_branch
      %2 = sbr.rel target = $region3
    $region8: #{custom-call.9} parent=1 // loop_exit
      _

// kernel: _lambda_.3
$region0: #{_lambda_.3}
  #allocation0 [shape = 'u32[]', space=smem, size = 0x4, offset = 0x4, fixed_abs, tag = 'smem constant byte address 0x4 - core index']
  #allocation1 [shape = 'u32[144,128]{1,0:T(1,128)}', space=vmem, size = 0x12000, scoped, tag = 'internal scratch']
  %s0 = inlined_call_operand.vmem [shape: f32[2,4,25], index: 0, kind: input, shape index: {}]
  %s1 = inlined_call_operand.vmem [shape: f32[2,4,25], index: 1, kind: input, shape index: {}]
  %s2 = inlined_call_operand.vmem [shape: f32[25,256], index: 2, kind: input, shape index: {}]
  %s3 = inlined_call_operand.vmem [shape: f32[25,256], index: 3, kind: input, shape index: {}]
  %s4 = inlined_call_operand.vmem [shape: f32[256,25], index: 4, kind: input, shape index: {}]
  %s5 = inlined_call_operand.vmem [shape: f32[256,25], index: 5, kind: input, shape index: {}]
  %s6 = inlined_call_operand.vmem [shape: f32[2,25,64], index: 6, kind: input, shape index: {}]
  %s7 = inlined_call_operand.vmem [shape: f32[2,25,64], index: 7, kind: input, shape index: {}]
  %s8 = inlined_call_operand.vmem [shape: f32[9,8,4], index: 8, kind: input, shape index: {}]
  %s9 = inlined_call_operand.vmem [shape: f32[8,1], index: 9, kind: input, shape index: {}]
  %s10 = inlined_call_operand.vmem [shape: f32[9,4,8], index: 10, kind: input, shape index: {}]
  %s11 = inlined_call_operand.vmem [shape: f32[4,1], index: 11, kind: input, shape index: {}]
  %s12 = inlined_call_operand.hbm [shape: f32[2,1,4,64], index: 12, kind: output, shape index: {}]
  %s13 = sld [smem:[#allocation0]]
  $region88: #{_lambda_.3} parent=0
    _
  %s15 = ssub.s32 1, %s13
  %s16 = scalar_select 0, %s15, %s13
  $region1: #{_lambda_.3} parent=0
    #allocation2 [shape = 'u8[4096]{0}', space=vmem, size = 0x1000, scoped, tag = 'output window, operand 0']
    #allocation3 [shape = 's32[2]{0}', space=sflag, size = 0x8, scoped, tag = 'scoped memory for _lambda_.3']
    %17 = vsyncpa [#allocation3], 0
    %s18 = scalar_lea.sflag [#allocation3], 1
    %19 = vsyncpa %s18, 0
    loop: start=0, step=1, limit=4
    $region2: #{_lambda_.3} parent=1 // loop_pre_header
      _
    $region3: #{_lambda_.3} parent=1 // loop_header
      %s21 = sphi 0, %s25
      %p22 = scmp.ge.s32.totalorder %s21, 4
      %s31 = sphi 0, %s33
      %s34 = sphi 0, %s31
      %s35 = sphi 0, %s34
      %s51 = sphi 0, %s35
      %s57 = sphi 0, %s59
      %s60 = sphi 0, %s57
      %s61 = sphi 0, %s60
      %s77 = sphi 0, %s61
      %s81 = sphi 0, %s81
      %s83 = sphi 0, %s81
      %s84 = sphi 0, %s83
      %s98 = sphi 0, %s84
      %s102 = sphi 0, %s102
      %s104 = sphi 0, %s102
      %s105 = sphi 0, %s104
      %s119 = sphi 0, %s105
      %s123 = sphi 0, %s123
      %s125 = sphi 0, %s123
      %s126 = sphi 0, %s125
      %s140 = sphi 0, %s126
      %s144 = sphi 0, %s144
      %s146 = sphi 0, %s144
      %s147 = sphi 0, %s146
      %s161 = sphi 0, %s147
      %s167 = sphi 0, %s169
      %s170 = sphi 0, %s167
      %s171 = sphi 0, %s170
      %s187 = sphi 0, %s171
      %s193 = sphi 0, %s195
      %s196 = sphi 0, %s193
      %s197 = sphi 0, %s196
      %s213 = sphi 0, %s197
      %s217 = sphi 0, %s217
      %s219 = sphi 0, %s217
      %s220 = sphi 0, %s219
      %s234 = sphi 0, %s220
      %s238 = sphi 0, %s238
      %s240 = sphi 0, %s238
      %s241 = sphi 0, %s240
      %s255 = sphi 0, %s241
      %s259 = sphi 0, %s259
      %s261 = sphi 0, %s259
      %s262 = sphi 0, %s261
      %s276 = sphi 0, %s262
      %s280 = sphi 0, %s280
      %s282 = sphi 0, %s280
      %s283 = sphi 0, %s282
      %s297 = sphi 0, %s283
      %s303 = sphi 0, %s305
      %s306 = sphi 0, %s303
      %s307 = sphi 0, %s306
      %s323 = sphi 0, %s307
    $region4: #{_lambda_.3} parent=1 // loop_header_branch
      %24 = sbr.rel (%p22) target = $region8
    $region5: #{_lambda_.3} parent=1 // loop_body
      %s26 = ssub.s32 %s21, 1
      %s27 = ssub.s32 %s21, 2
      %s28 = sadd.s32 %s21, 1
      %s29 = ssub.s32 %s21, %s28
      %p30 = scmp.eq.s32.totalorder %s29, 0
      %s32 = sadd.s32 %s31, 1
      %s33 = scalar_select %p30, %s31, %s32
      %p36 = pneg %p30
      %p37 = scmp.eq.s32.totalorder %s21, 1
      %p38 = por %p36, %p37
      %p39 = scmp.ne.s32.totalorder %s31, %s34
      %p40 = scmp.eq.s32.totalorder %s21, 0
      %p41 = por %p39, %p40
      %p42 = scmp.ne.s32.totalorder %s31, %s34
      %p43 = scmp.eq.s32.totalorder %s26, 1
      %p44 = por %p42, %p43
      %p45 = scmp.ne.s32.totalorder %s34, %s35
      %p46 = scmp.eq.s32.totalorder %s26, 0
      %p47 = por %p45, %p46
      %p48 = scmp.ne.s32.totalorder %s34, %s35
      %p49 = scmp.eq.s32.totalorder %s27, 1
      %p50 = por %p48, %p49
      %p52 = scmp.ne.s32.totalorder %s35, %s51
      %p53 = scmp.eq.s32.totalorder %s27, 0
      %p54 = por %p52, %p53
      %s55 = ssub.s32 %s21, %s28
      %p56 = scmp.eq.s32.totalorder %s55, 0
      %s58 = sadd.s32 %s57, 1
      %s59 = scalar_select %p56, %s57, %s58
      %p62 = pneg %p56
      %p63 = scmp.eq.s32.totalorder %s21, 1
      %p64 = por %p62, %p63
      %p65 = scmp.ne.s32.totalorder %s57, %s60
      %p66 = scmp.eq.s32.totalorder %s21, 0
      %p67 = por %p65, %p66
      %p68 = scmp.ne.s32.totalorder %s57, %s60
      %p69 = scmp.eq.s32.totalorder %s26, 1
      %p70 = por %p68, %p69
      %p71 = scmp.ne.s32.totalorder %s60, %s61
      %p72 = scmp.eq.s32.totalorder %s26, 0
      %p73 = por %p71, %p72
      %p74 = scmp.ne.s32.totalorder %s60, %s61
      %p75 = scmp.eq.s32.totalorder %s27, 1
      %p76 = por %p74, %p75
      %p78 = scmp.ne.s32.totalorder %s61, %s77
      %p79 = scmp.eq.s32.totalorder %s27, 0
      %p80 = por %p78, %p79
      %s82 = sadd.s32 %s81, 1
      %p85 = scmp.eq.s32.totalorder %s21, 1
      %p86 = scmp.ne.s32.totalorder %s81, %s83
      %p87 = scmp.eq.s32.totalorder %s21, 0
      %p88 = por %p86, %p87
      %p89 = scmp.ne.s32.totalorder %s81, %s83
      %p90 = scmp.eq.s32.totalorder %s26, 1
      %p91 = por %p89, %p90
      %p92 = scmp.ne.s32.totalorder %s83, %s84
      %p93 = scmp.eq.s32.totalorder %s26, 0
      %p94 = por %p92, %p93
      %p95 = scmp.ne.s32.totalorder %s83, %s84
      %p96 = scmp.eq.s32.totalorder %s27, 1
      %p97 = por %p95, %p96
      %p99 = scmp.ne.s32.totalorder %s84, %s98
      %p100 = scmp.eq.s32.totalorder %s27, 0
      %p101 = por %p99, %p100
      %s103 = sadd.s32 %s102, 1
      %p106 = scmp.eq.s32.totalorder %s21, 1
      %p107 = scmp.ne.s32.totalorder %s102, %s104
      %p108 = scmp.eq.s32.totalorder %s21, 0
      %p109 = por %p107, %p108
      %p110 = scmp.ne.s32.totalorder %s102, %s104
      %p111 = scmp.eq.s32.totalorder %s26, 1
      %p112 = por %p110, %p111
      %p113 = scmp.ne.s32.totalorder %s104, %s105
      %p114 = scmp.eq.s32.totalorder %s26, 0
      %p115 = por %p113, %p114
      %p116 = scmp.ne.s32.totalorder %s104, %s105
      %p117 = scmp.eq.s32.totalorder %s27, 1
      %p118 = por %p116, %p117
      %p120 = scmp.ne.s32.totalorder %s105, %s119
      %p121 = scmp.eq.s32.totalorder %s27, 0
      %p122 = por %p120, %p121
      %s124 = sadd.s32 %s123, 1
      %p127 = scmp.eq.s32.totalorder %s21, 1
      %p128 = scmp.ne.s32.totalorder %s123, %s125
      %p129 = scmp.eq.s32.totalorder %s21, 0
      %p130 = por %p128, %p129
      %p131 = scmp.ne.s32.totalorder %s123, %s125
      %p132 = scmp.eq.s32.totalorder %s26, 1
      %p133 = por %p131, %p132
      %p134 = scmp.ne.s32.totalorder %s125, %s126
      %p135 = scmp.eq.s32.totalorder %s26, 0
      %p136 = por %p134, %p135
      %p137 = scmp.ne.s32.totalorder %s125, %s126
      %p138 = scmp.eq.s32.totalorder %s27, 1
      %p139 = por %p137, %p138
      %p141 = scmp.ne.s32.totalorder %s126, %s140
      %p142 = scmp.eq.s32.totalorder %s27, 0
      %p143 = por %p141, %p142
      %s145 = sadd.s32 %s144, 1
      %p148 = scmp.eq.s32.totalorder %s21, 1
      %p149 = scmp.ne.s32.totalorder %s144, %s146
      %p150 = scmp.eq.s32.totalorder %s21, 0
      %p151 = por %p149, %p150
      %p152 = scmp.ne.s32.totalorder %s144, %s146
      %p153 = scmp.eq.s32.totalorder %s26, 1
      %p154 = por %p152, %p153
      %p155 = scmp.ne.s32.totalorder %s146, %s147
      %p156 = scmp.eq.s32.totalorder %s26, 0
      %p157 = por %p155, %p156
      %p158 = scmp.ne.s32.totalorder %s146, %s147
      %p159 = scmp.eq.s32.totalorder %s27, 1
      %p160 = por %p158, %p159
      %p162 = scmp.ne.s32.totalorder %s147, %s161
      %p163 = scmp.eq.s32.totalorder %s27, 0
      %p164 = por %p162, %p163
      %s165 = ssub.s32 %s21, %s28
      %p166 = scmp.eq.s32.totalorder %s165, 0
      %s168 = sadd.s32 %s167, 1
      %s169 = scalar_select %p166, %s167, %s168
      %p172 = pneg %p166
      %p173 = scmp.eq.s32.totalorder %s21, 1
      %p174 = por %p172, %p173
      %p175 = scmp.ne.s32.totalorder %s167, %s170
      %p176 = scmp.eq.s32.totalorder %s21, 0
      %p177 = por %p175, %p176
      %p178 = scmp.ne.s32.totalorder %s167, %s170
      %p179 = scmp.eq.s32.totalorder %s26, 1
      %p180 = por %p178, %p179
      %p181 = scmp.ne.s32.totalorder %s170, %s171
      %p182 = scmp.eq.s32.totalorder %s26, 0
      %p183 = por %p181, %p182
      %p184 = scmp.ne.s32.totalorder %s170, %s171
      %p185 = scmp.eq.s32.totalorder %s27, 1
      %p186 = por %p184, %p185
      %p188 = scmp.ne.s32.totalorder %s171, %s187
      %p189 = scmp.eq.s32.totalorder %s27, 0
      %p190 = por %p188, %p189
      %s191 = ssub.s32 %s21, %s28
      %p192 = scmp.eq.s32.totalorder %s191, 0
      %s194 = sadd.s32 %s193, 1
      %s195 = scalar_select %p192, %s193, %s194
      %p198 = pneg %p192
      %p199 = scmp.eq.s32.totalorder %s21, 1
      %p200 = por %p198, %p199
      %p201 = scmp.ne.s32.totalorder %s193, %s196
      %p202 = scmp.eq.s32.totalorder %s21, 0
      %p203 = por %p201, %p202
      %p204 = scmp.ne.s32.totalorder %s193, %s196
      %p205 = scmp.eq.s32.totalorder %s26, 1
      %p206 = por %p204, %p205
      %p207 = scmp.ne.s32.totalorder %s196, %s197
      %p208 = scmp.eq.s32.totalorder %s26, 0
      %p209 = por %p207, %p208
      %p210 = scmp.ne.s32.totalorder %s196, %s197
      %p211 = scmp.eq.s32.totalorder %s27, 1
      %p212 = por %p210, %p211
      %p214 = scmp.ne.s32.totalorder %s197, %s213
      %p215 = scmp.eq.s32.totalorder %s27, 0
      %p216 = por %p214, %p215
      %s218 = sadd.s32 %s217, 1
      %p221 = scmp.eq.s32.totalorder %s21, 1
      %p222 = scmp.ne.s32.totalorder %s217, %s219
      %p223 = scmp.eq.s32.totalorder %s21, 0
      %p224 = por %p222, %p223
      %p225 = scmp.ne.s32.totalorder %s217, %s219
      %p226 = scmp.eq.s32.totalorder %s26, 1
      %p227 = por %p225, %p226
      %p228 = scmp.ne.s32.totalorder %s219, %s220
      %p229 = scmp.eq.s32.totalorder %s26, 0
      %p230 = por %p228, %p229
      %p231 = scmp.ne.s32.totalorder %s219, %s220
      %p232 = scmp.eq.s32.totalorder %s27, 1
      %p233 = por %p231, %p232
      %p235 = scmp.ne.s32.totalorder %s220, %s234
      %p236 = scmp.eq.s32.totalorder %s27, 0
      %p237 = por %p235, %p236
      %s239 = sadd.s32 %s238, 1
      %p242 = scmp.eq.s32.totalorder %s21, 1
      %p243 = scmp.ne.s32.totalorder %s238, %s240
      %p244 = scmp.eq.s32.totalorder %s21, 0
      %p245 = por %p243, %p244
      %p246 = scmp.ne.s32.totalorder %s238, %s240
      %p247 = scmp.eq.s32.totalorder %s26, 1
      %p248 = por %p246, %p247
      %p249 = scmp.ne.s32.totalorder %s240, %s241
      %p250 = scmp.eq.s32.totalorder %s26, 0
      %p251 = por %p249, %p250
      %p252 = scmp.ne.s32.totalorder %s240, %s241
      %p253 = scmp.eq.s32.totalorder %s27, 1
      %p254 = por %p252, %p253
      %p256 = scmp.ne.s32.totalorder %s241, %s255
      %p257 = scmp.eq.s32.totalorder %s27, 0
      %p258 = por %p256, %p257
      %s260 = sadd.s32 %s259, 1
      %p263 = scmp.eq.s32.totalorder %s21, 1
      %p264 = scmp.ne.s32.totalorder %s259, %s261
      %p265 = scmp.eq.s32.totalorder %s21, 0
      %p266 = por %p264, %p265
      %p267 = scmp.ne.s32.totalorder %s259, %s261
      %p268 = scmp.eq.s32.totalorder %s26, 1
      %p269 = por %p267, %p268
      %p270 = scmp.ne.s32.totalorder %s261, %s262
      %p271 = scmp.eq.s32.totalorder %s26, 0
      %p272 = por %p270, %p271
      %p273 = scmp.ne.s32.totalorder %s261, %s262
      %p274 = scmp.eq.s32.totalorder %s27, 1
      %p275 = por %p273, %p274
      %p277 = scmp.ne.s32.totalorder %s262, %s276
      %p278 = scmp.eq.s32.totalorder %s27, 0
      %p279 = por %p277, %p278
      %s281 = sadd.s32 %s280, 1
      %p284 = scmp.eq.s32.totalorder %s21, 1
      %p285 = scmp.ne.s32.totalorder %s280, %s282
      %p286 = scmp.eq.s32.totalorder %s21, 0
      %p287 = por %p285, %p286
      %p288 = scmp.ne.s32.totalorder %s280, %s282
      %p289 = scmp.eq.s32.totalorder %s26, 1
      %p290 = por %p288, %p289
      %p291 = scmp.ne.s32.totalorder %s282, %s283
      %p292 = scmp.eq.s32.totalorder %s26, 0
      %p293 = por %p291, %p292
      %p294 = scmp.ne.s32.totalorder %s282, %s283
      %p295 = scmp.eq.s32.totalorder %s27, 1
      %p296 = por %p294, %p295
      %p298 = scmp.ne.s32.totalorder %s283, %s297
      %p299 = scmp.eq.s32.totalorder %s27, 0
      %p300 = por %p298, %p299
      %s301 = ssub.s32 %s21, %s28
      %p302 = scmp.eq.s32.totalorder %s301, 0
      %s304 = sadd.s32 %s303, 1
      %s305 = scalar_select %p302, %s303, %s304
      %p308 = pneg %p302
      %p309 = scmp.eq.s32.totalorder %s21, 1
      %p310 = por %p308, %p309
      %p311 = scmp.ne.s32.totalorder %s303, %s306
      %p312 = scmp.eq.s32.totalorder %s21, 0
      %p313 = por %p311, %p312
      %p314 = scmp.ne.s32.totalorder %s303, %s306
      %p315 = scmp.eq.s32.totalorder %s26, 1
      %p316 = por %p314, %p315
      %p317 = scmp.ne.s32.totalorder %s306, %s307
      %p318 = scmp.eq.s32.totalorder %s26, 0
      %p319 = por %p317, %p318
      %p320 = scmp.ne.s32.totalorder %s306, %s307
      %p321 = scmp.eq.s32.totalorder %s27, 1
      %p322 = por %p320, %p321
      %p324 = scmp.ne.s32.totalorder %s307, %s323
      %p325 = scmp.eq.s32.totalorder %s27, 0
      %p326 = por %p324, %p325
      %p327 = scmp.le.s32.totalorder 1, %s21
      %p328 = scmp.lt.s32.totalorder %s21, 3
      %p329 = pnand %p327, %p328
      %p330 = pneg %p329
      // Predicated region
      $region9: #{_lambda_.3} parent=5 // pred_check
        _
      $region10: #{_lambda_.3} parent=5 // pred_check_branch
        %332 = sbr.rel (%p329) target = $region12
      $region11: #{_lambda_.3} parent=5 // pred_region
        %s333 = ssub.s32 %s21, 1
        // Predicated region
        $region13: #{_lambda_.3} parent=11 // pred_check
          %p334 = pneg %p94
        $region14: #{_lambda_.3} parent=11 // pred_check_branch
          %336 = sbr.rel (%p334) target = $region16
        $region15: #{_lambda_.3} parent=11 // pred_region
          _
        $region16: #{_lambda_.3} parent=11 // pred_fallthru
          _
        // Predicated region
        $region17: #{_lambda_.3} parent=11 // pred_check
          %p337 = pneg %p115
        $region18: #{_lambda_.3} parent=11 // pred_check_branch
          %339 = sbr.rel (%p337) target = $region20
        $region19: #{_lambda_.3} parent=11 // pred_region
          _
        $region20: #{_lambda_.3} parent=11 // pred_fallthru
          _
        // Predicated region
        $region21: #{_lambda_.3} parent=11 // pred_check
          %p340 = pneg %p136
        $region22: #{_lambda_.3} parent=11 // pred_check_branch
          %342 = sbr.rel (%p340) target = $region24
        $region23: #{_lambda_.3} parent=11 // pred_region
          _
        $region24: #{_lambda_.3} parent=11 // pred_fallthru
          _
        // Predicated region
        $region25: #{_lambda_.3} parent=11 // pred_check
          %p343 = pneg %p157
        $region26: #{_lambda_.3} parent=11 // pred_check_branch
          %345 = sbr.rel (%p343) target = $region28
        $region27: #{_lambda_.3} parent=11 // pred_region
          _
        $region28: #{_lambda_.3} parent=11 // pred_fallthru
          _
        // Predicated region
        $region29: #{_lambda_.3} parent=11 // pred_check
          %p346 = pneg %p230
        $region30: #{_lambda_.3} parent=11 // pred_check_branch
          %348 = sbr.rel (%p346) target = $region32
        $region31: #{_lambda_.3} parent=11 // pred_region
          _
        $region32: #{_lambda_.3} parent=11 // pred_fallthru
          _
        // Predicated region
        $region33: #{_lambda_.3} parent=11 // pred_check
          %p349 = pneg %p251
        $region34: #{_lambda_.3} parent=11 // pred_check_branch
          %351 = sbr.rel (%p349) target = $region36
        $region35: #{_lambda_.3} parent=11 // pred_region
          _
        $region36: #{_lambda_.3} parent=11 // pred_fallthru
          _
        // Predicated region
        $region37: #{_lambda_.3} parent=11 // pred_check
          %p352 = pneg %p272
        $region38: #{_lambda_.3} parent=11 // pred_check_branch
          %354 = sbr.rel (%p352) target = $region40
        $region39: #{_lambda_.3} parent=11 // pred_region
          _
        $region40: #{_lambda_.3} parent=11 // pred_fallthru
          _
        // Predicated region
        $region41: #{_lambda_.3} parent=11 // pred_check
          %p355 = pneg %p293
        $region42: #{_lambda_.3} parent=11 // pred_check_branch
          %357 = sbr.rel (%p355) target = $region44
        $region43: #{_lambda_.3} parent=11 // pred_region
          _
        $region44: #{_lambda_.3} parent=11 // pred_fallthru
          _
      $region12: #{_lambda_.3} parent=5 // pred_fallthru
        _
      %p358 = scmp.lt.s32.totalorder %s21, 2
      // Predicated region
      $region45: #{_lambda_.3} parent=5 // pred_check
        %p359 = pneg %p358
      $region46: #{_lambda_.3} parent=5 // pred_check_branch
        %361 = sbr.rel (%p359) target = $region48
      $region47: #{_lambda_.3} parent=5 // pred_region
        // Predicated region
        $region49: #{_lambda_.3} parent=47 // pred_check
          %p362 = pneg %p41
        $region50: #{_lambda_.3} parent=47 // pred_check_branch
          %364 = sbr.rel (%p362) target = $region52
        $region51: #{_lambda_.3} parent=47 // pred_region
          %p365 = scmp.lt.s32.totalorder %s21, 1
          %s366 = scalar_select %p365, %s21, 1
          %s367 = smul.addr %s366, 4
          %s368 = scalar_lea.vmem %s0, %s367
        $region52: #{_lambda_.3} parent=47 // pred_fallthru
          _
        // Predicated region
        $region53: #{_lambda_.3} parent=47 // pred_check
          %p369 = pneg %p67
        $region54: #{_lambda_.3} parent=47 // pred_check_branch
          %371 = sbr.rel (%p369) target = $region56
        $region55: #{_lambda_.3} parent=47 // pred_region
          %p372 = scmp.lt.s32.totalorder %s21, 1
          %s373 = scalar_select %p372, %s21, 1
          %s374 = smul.addr %s373, 4
          %s375 = scalar_lea.vmem %s1, %s374
        $region56: #{_lambda_.3} parent=47 // pred_fallthru
          _
        // Predicated region
        $region57: #{_lambda_.3} parent=47 // pred_check
          %p376 = pneg %p177
        $region58: #{_lambda_.3} parent=47 // pred_check_branch
          %378 = sbr.rel (%p376) target = $region60
        $region59: #{_lambda_.3} parent=47 // pred_region
          %p379 = scmp.lt.s32.totalorder %s21, 1
          %s380 = scalar_select %p379, %s21, 1
          %s381 = smul.addr %s380, 4
          %s382 = smul.addr %s381, 8
          %s383 = scalar_lea.vmem %s6, %s382
        $region60: #{_lambda_.3} parent=47 // pred_fallthru
          _
        // Predicated region
        $region61: #{_lambda_.3} parent=47 // pred_check
          %p384 = pneg %p203
        $region62: #{_lambda_.3} parent=47 // pred_check_branch
          %386 = sbr.rel (%p384) target = $region64
        $region63: #{_lambda_.3} parent=47 // pred_region
          %p387 = scmp.lt.s32.totalorder %s21, 1
          %s388 = scalar_select %p387, %s21, 1
          %s389 = smul.addr %s388, 4
          %s390 = smul.addr %s389, 8
          %s391 = scalar_lea.vmem %s7, %s390
        $region64: #{_lambda_.3} parent=47 // pred_fallthru
          _
      $region48: #{_lambda_.3} parent=5 // pred_fallthru
        _
      %p392 = scmp.le.s32.totalorder 1, %s21
      %p393 = scmp.lt.s32.totalorder %s21, 3
      %p394 = pnand %p392, %p393
      %p395 = pneg %p394
      // Predicated region
      $region65: #{_lambda_.3} parent=5 // pred_check
        _
      $region66: #{_lambda_.3} parent=5 // pred_check_branch
        %397 = sbr.rel (%p394) target = $region68
      $region67: #{_lambda_.3} parent=5 // pred_region
        %s398 = ssub.s32 %s21, 1
        %p399 = scmp.lt.s32.totalorder %s26, 1
        %s400 = scalar_select %p399, %s26, 1
        %s401 = smul.addr %s400, 4
        %s402 = scalar_lea.vmem %s0, %s401
        %p403 = pneg %p47
        %p404 = pneg %p44
        %p405 = scmp.lt.s32.totalorder %s26, 1
        %s406 = scalar_select %p405, %s26, 1
        %s407 = smul.addr %s406, 4
        %s408 = scalar_lea.vmem %s1, %s407
        %p409 = pneg %p73
        %p410 = pneg %p70
        %p411 = pneg %p94
        %p412 = pneg %p91
        %p413 = pneg %p115
        %p414 = pneg %p112
        %p415 = pneg %p136
        %p416 = pneg %p133
        %p417 = pneg %p157
        %p418 = pneg %p154
        %p419 = scmp.lt.s32.totalorder %s26, 1
        %s420 = scalar_select %p419, %s26, 1
        %s421 = smul.addr %s420, 4
        %s422 = smul.addr %s421, 8
        %s423 = scalar_lea.vmem %s6, %s422
        %p424 = pneg %p183
        %p425 = pneg %p180
        %p426 = scmp.lt.s32.totalorder %s26, 1
        %s427 = scalar_select %p426, %s26, 1
        %s428 = smul.addr %s427, 4
        %s429 = smul.addr %s428, 8
        %s430 = scalar_lea.vmem %s7, %s429
        %p431 = pneg %p209
        %p432 = pneg %p206
        %p433 = pneg %p230
        %p434 = pneg %p227
        %p435 = pneg %p251
        %p436 = pneg %p248
        %p437 = pneg %p272
        %p438 = pneg %p269
        %p439 = pneg %p293
        %p440 = pneg %p290
        %p441 = pneg %p319
        %p442 = pneg %p316
        %s443 = sand.u32 %s306, 1
        %s444 = scalar_lea.sflag [#allocation3], %s443
        %s445 = sand.u32 %s306, 1
        %s446 = smul.addr %s445, 4
        %s447 = scalar_lea.vmem [#allocation2], %s446
        %p448 = scmp.lt.s32.totalorder %s26, 1
        %s449 = scalar_select %p448, %s26, 1
        %s450 = smul.addr %s449, 4
        %s451 = scalar_lea.vmem %s0, %s450
        %p452 = scmp.lt.s32.totalorder %s26, 1
        %s453 = scalar_select %p452, %s26, 1
        %s454 = smul.addr %s453, 4
        %s455 = scalar_lea.vmem %s1, %s454
        %p456 = scmp.lt.s32.totalorder %s26, 1
        %s457 = scalar_select %p456, %s26, 1
        %s458 = smul.addr %s457, 4
        %s459 = smul.addr %s458, 8
        %s460 = scalar_lea.vmem %s6, %s459
        %p461 = scmp.lt.s32.totalorder %s26, 1
        %s462 = scalar_select %p461, %s26, 1
        %s463 = smul.addr %s462, 4
        %s464 = smul.addr %s463, 8
        %s465 = scalar_lea.vmem %s7, %s464
        %v466 = vld [vmem:[%s451] sm:$0xf]
        %v467 = vld [vmem:[%s2] sm:$0xff]
        %v468 = vld [vmem:[%s2 + $0x8] sm:$0xff]
        %v469 = vld [vmem:[%s2 + $0x10] sm:$0xff]
        %v470 = vld [vmem:[%s2 + $0x18] sm:$0xff]
        %v471 = vld [vmem:[%s2 + $0x20] sm:$0xff]
        %v472 = vld [vmem:[%s2 + $0x28] sm:$0xff]
        %v473 = vld [vmem:[%s2 + $0x30] sm:$0x1]
        %v474 = vld [vmem:[%s2 + $0x38] sm:$0x1]
        %vm475 = vcmask 203776
        %v477 = vsel %vm475, %v466, 0
        %vm479 = vcmask 1040384
        %v481 = vsel %vm479, %v473, 0
        %v484 = vsel %vm479, %v474, 0
        %486 = vmatprep.subr.mxu0 0.0
        %487 = vmatpush1.msra.mxu0 0.0
        %488 = vmatprep.subr.mxu0 0.0
        %489 = vmatpush1.msra.mxu0 0.0
        %490 = vmatprep.subr.mxu0 0.0
        %491 = vmatpush1.msra.mxu0 0.0
        %492 = vmatprep.subr.mxu0 0.0
        %493 = vmatpush1.msra.mxu0 0.0
        %494 = vmatprep.subr.mxu0 0.0
        %495 = vmatpush1.msra.mxu0 0.0
        %496 = vmatprep.subr.mxu0 0.0
        %497 = vmatpush1.msra.mxu0 0.0
        %498 = vmatprep.subr.mxu0 0.0
        %499 = vmatpush1.msra.mxu0 0.0
        %500 = vmatprep.subr.mxu0 0.0
        %501 = vmatpush1.msra.mxu0 0.0
        %502 = vmatprep.subr.mxu0 0.0
        %503 = vmatpush1.msra.mxu0 0.0
        %504 = vmatprep.subr.mxu0 0.0
        %505 = vmatpush1.msra.mxu0 0.0
        %506 = vmatprep.subr.mxu0 0.0
        %507 = vmatpush1.msra.mxu0 0.0
        %508 = vmatprep.subr.mxu0 0.0
        %509 = vmatpush1.msra.mxu0 0.0
        %510 = vmatprep.subr.mxu0 %v484
        %511 = vmatpush1.msra.mxu0 %v481
        %512 = vmatprep.subr.mxu0 %v472
        %513 = vmatpush1.msra.mxu0 %v471
        %514 = vmatprep.subr.mxu0 %v470
        %515 = vmatpush1.msra.mxu0 %v469
        %516 = vmatprep.subr.mxu0 %v468
        %517 = vmatpush1.msra.mxu0 %v467
        %518 = vmatprep.subr.mxu0 0.0
        %519 = vmatpush2.msra.mxu0 0.0
        %520 = vmatprep.subr.mxu0 0.0
        %521 = vmatpush2.msra.mxu0 0.0
        %522 = vmatprep.subr.mxu0 0.0
        %523 = vmatpush2.msra.mxu0 0.0
        %524 = vmatprep.subr.mxu0 0.0
        %525 = vmatpush2.msra.mxu0 0.0
        %526 = vmatprep.subr.mxu0 0.0
        %527 = vmatpush2.msra.mxu0 0.0
        %528 = vmatprep.subr.mxu0 0.0
        %529 = vmatpush2.msra.mxu0 0.0
        %530 = vmatprep.subr.mxu0 0.0
        %531 = vmatpush2.msra.mxu0 0.0
        %532 = vmatprep.subr.mxu0 0.0
        %533 = vmatpush2.msra.mxu0 0.0
        %534 = vmatprep.subr.mxu0 0.0
        %535 = vmatpush2.msra.mxu0 0.0
        %536 = vmatprep.subr.mxu0 0.0
        %537 = vmatpush2.msra.mxu0 0.0
        %538 = vmatprep.subr.mxu0 0.0
        %539 = vmatpush2.msra.mxu0 0.0
        %540 = vmatprep.subr.mxu0 0.0
        %541 = vmatpush2.msra.mxu0 0.0
        %542 = vmatprep.subr.mxu0 0.0
        %543 = vmatpush2.msra.mxu0 0.0
        %544 = vmatprep.subr.mxu0 0.0
        %545 = vmatpush2.msra.mxu0 0.0
        %546 = vmatprep.subr.mxu0 0.0
        %547 = vmatpush2.msra.mxu0 0.0
        %548 = vmatprep.subr.mxu0 0.0
        %549 = vmatpush2.msra.mxu0 0.0
        %550 = vmatprep.mubr.f32.mxu0 0.0
        %551 = vmatmul.mubr.f32.gmra.mxu0 %v477
        %v552 = vpop.f32.mrf.mxu0
        %v553 = vadd.f32 0.0, %v552
        %v554 = vpop.f32.mrf.mxu0
        %v555 = vadd.f32 0.0, %v554
        %556 = vdwg.mxu0
        %v557 = vld [vmem:[%s455] sm:$0xf]
        %v558 = vld [vmem:[%s3] sm:$0xff]
        %v559 = vld [vmem:[%s3 + $0x8] sm:$0xff]
        %v560 = vld [vmem:[%s3 + $0x10] sm:$0xff]
        %v561 = vld [vmem:[%s3 + $0x18] sm:$0xff]
        %v562 = vld [vmem:[%s3 + $0x20] sm:$0xff]
        %v563 = vld [vmem:[%s3 + $0x28] sm:$0xff]
        %v564 = vld [vmem:[%s3 + $0x30] sm:$0x1]
        %v565 = vld [vmem:[%s3 + $0x38] sm:$0x1]
        %v567 = vsel %vm475, %v557, 0
        %v570 = vsel %vm479, %v564, 0
        %v573 = vsel %vm479, %v565, 0
        %575 = vmatprep.subr.mxu0 0.0
        %576 = vmatpush1.msra.mxu0 0.0
        %577 = vmatprep.subr.mxu0 0.0
        %578 = vmatpush1.msra.mxu0 0.0
        %579 = vmatprep.subr.mxu0 0.0
        %580 = vmatpush1.msra.mxu0 0.0
        %581 = vmatprep.subr.mxu0 0.0
        %582 = vmatpush1.msra.mxu0 0.0
        %583 = vmatprep.subr.mxu0 0.0
        %584 = vmatpush1.msra.mxu0 0.0
        %585 = vmatprep.subr.mxu0 0.0
        %586 = vmatpush1.msra.mxu0 0.0
        %587 = vmatprep.subr.mxu0 0.0
        %588 = vmatpush1.msra.mxu0 0.0
        %589 = vmatprep.subr.mxu0 0.0
        %590 = vmatpush1.msra.mxu0 0.0
        %591 = vmatprep.subr.mxu0 0.0
        %592 = vmatpush1.msra.mxu0 0.0
        %593 = vmatprep.subr.mxu0 0.0
        %594 = vmatpush1.msra.mxu0 0.0
        %595 = vmatprep.subr.mxu0 0.0
        %596 = vmatpush1.msra.mxu0 0.0
        %597 = vmatprep.subr.mxu0 0.0
        %598 = vmatpush1.msra.mxu0 0.0
        %599 = vmatprep.subr.mxu0 %v573
        %600 = vmatpush1.msra.mxu0 %v570
        %601 = vmatprep.subr.mxu0 %v563
        %602 = vmatpush1.msra.mxu0 %v562
        %603 = vmatprep.subr.mxu0 %v561
        %604 = vmatpush1.msra.mxu0 %v560
        %605 = vmatprep.subr.mxu0 %v559
        %606 = vmatpush1.msra.mxu0 %v558
        %607 = vmatprep.subr.mxu0 0.0
        %608 = vmatpush2.msra.mxu0 0.0
        %609 = vmatprep.subr.mxu0 0.0
        %610 = vmatpush2.msra.mxu0 0.0
        %611 = vmatprep.subr.mxu0 0.0
        %612 = vmatpush2.msra.mxu0 0.0
        %613 = vmatprep.subr.mxu0 0.0
        %614 = vmatpush2.msra.mxu0 0.0
        %615 = vmatprep.subr.mxu0 0.0
        %616 = vmatpush2.msra.mxu0 0.0
        %617 = vmatprep.subr.mxu0 0.0
        %618 = vmatpush2.msra.mxu0 0.0
        %619 = vmatprep.subr.mxu0 0.0
        %620 = vmatpush2.msra.mxu0 0.0
        %621 = vmatprep.subr.mxu0 0.0
        %622 = vmatpush2.msra.mxu0 0.0
        %623 = vmatprep.subr.mxu0 0.0
        %624 = vmatpush2.msra.mxu0 0.0
        %625 = vmatprep.subr.mxu0 0.0
        %626 = vmatpush2.msra.mxu0 0.0
        %627 = vmatprep.subr.mxu0 0.0
        %628 = vmatpush2.msra.mxu0 0.0
        %629 = vmatprep.subr.mxu0 0.0
        %630 = vmatpush2.msra.mxu0 0.0
        %631 = vmatprep.subr.mxu0 0.0
        %632 = vmatpush2.msra.mxu0 0.0
        %633 = vmatprep.subr.mxu0 0.0
        %634 = vmatpush2.msra.mxu0 0.0
        %635 = vmatprep.subr.mxu0 0.0
        %636 = vmatpush2.msra.mxu0 0.0
        %637 = vmatprep.subr.mxu0 0.0
        %638 = vmatpush2.msra.mxu0 0.0
        %639 = vmatprep.mubr.f32.mxu0 0.0
        %640 = vmatmul.mubr.f32.gmra.mxu0 %v567
        %v641 = vpop.f32.mrf.mxu0
        %v642 = vadd.f32 0.0, %v641
        %v643 = vpop.f32.mrf.mxu0
        %v644 = vadd.f32 0.0, %v643
        %645 = vdwg.mxu0
        %v646 = vsub.f32 %v553, %v642
        %v647 = vsub.f32 %v555, %v644
        %v648 = vlaneseq
        %v649 = vand.u32 %v648, 127
        %v650 = vadd.s32 %v649, 128
        %vm651 = vcmp.lt.s32.totalorder %v649, 0
        %v652 = vsub.s32 0, %v649
        %v653 = vsel %vm651, %v652, %v649
        %v654 = vshrl.u32 %v653, 4
        %v655 = vand.u32 %v653, 15
        %v656 = vsub.s32 0, %v655
        %v657 = vsel %vm651, %v656, %v655
        %vm658 = vcmp.lt.s32.totalorder %v650, 0
        %v659 = vsub.s32 0, %v650
        %v660 = vsel %vm658, %v659, %v650
        %v661 = vshrl.u32 %v660, 4
        %v662 = vand.u32 %v660, 15
        %v663 = vsub.s32 0, %v662
        %v664 = vsel %vm658, %v663, %v662
        %vm665 = vcmp.ne.s32.totalorder %v657, 0
        %vm666 = vcmp.ne.s32.totalorder %v664, 0
        %vm667 = vcmp.lt.s32.totalorder %v657, 0
        %vm668 = vcmp.lt.s32.totalorder %v664, 0
        %vm669 = vmand %vm667, %vm665
        %vm670 = vmand %vm668, %vm666
        %v671 = vadd.s32 %v657, 16
        %v672 = vadd.s32 %v664, 16
        %v673 = vsel %vm669, %v671, %v657
        %v674 = vsel %vm670, %v672, %v664
        %vm675 = vcmp.eq.s32.totalorder %v673, 0
        %vm676 = vcmp.eq.s32.totalorder %v674, 0
        %vm677 = vcmp.eq.s32.totalorder %v673, 15
        %vm678 = vcmp.eq.s32.totalorder %v674, 15
        %v679 = vld [vmem:[%s8] sm:$0xff]
        %s680 = scalar_lea.vmem %s8, 8
        %v681 = vld [vmem:[%s680] sm:$0xff]
        %s682 = scalar_lea.vmem %s8, 16
        %v683 = vld [vmem:[%s682] sm:$0xff]
        %s684 = scalar_lea.vmem %s8, 24
        %v685 = vld [vmem:[%s684] sm:$0xff]
        %s686 = scalar_lea.vmem %s8, 32
        %v687 = vld [vmem:[%s686] sm:$0xff]
        %s688 = scalar_lea.vmem %s8, 40
        %v689 = vld [vmem:[%s688] sm:$0xff]
        %s690 = scalar_lea.vmem %s8, 48
        %v691 = vld [vmem:[%s690] sm:$0xff]
        %s692 = scalar_lea.vmem %s8, 56
        %v693 = vld [vmem:[%s692] sm:$0xff]
        %s694 = scalar_lea.vmem %s8, 64
        %v695 = vld [vmem:[%s694] sm:$0xff]
        %v696 = vld [vmem:[%s10] sm:$0xf]
        %s697 = scalar_lea.vmem %s10, 4
        %v698 = vld [vmem:[%s697] sm:$0xf]
        %s699 = scalar_lea.vmem %s10, 8
        %v700 = vld [vmem:[%s699] sm:$0xf]
        %s701 = scalar_lea.vmem %s10, 12
        %v702 = vld [vmem:[%s701] sm:$0xf]
        %s703 = scalar_lea.vmem %s10, 16
        %v704 = vld [vmem:[%s703] sm:$0xf]
        %s705 = scalar_lea.vmem %s10, 20
        %v706 = vld [vmem:[%s705] sm:$0xf]
        %s707 = scalar_lea.vmem %s10, 24
        %v708 = vld [vmem:[%s707] sm:$0xf]
        %s709 = scalar_lea.vmem %s10, 28
        %v710 = vld [vmem:[%s709] sm:$0xf]
        %s711 = scalar_lea.vmem %s10, 32
        %v712 = vld [vmem:[%s711] sm:$0xf]
        %v713 = vld [vmem:[%s9] sm:$0xff]
        %v714 = vld [vmem:[%s11] sm:$0xf]
        loop: start=0, step=1, limit=4
        $region69: #{_lambda_.3} parent=67 // loop_pre_header
          _
        $region70: #{_lambda_.3} parent=67 // loop_header
          %s716 = sphi 0, %s720
          %p717 = scmp.ge.s32.totalorder %s716, 4
          %v721 = vphi %v646, %v2370
          %v722 = vphi %v647, %v2371
        $region71: #{_lambda_.3} parent=67 // loop_header_branch
          %719 = sbr.rel (%p717) target = $region75
        $region72: #{_lambda_.3} parent=67 // loop_body
          %724 = vset.pattern.permute.xlu0 0
          %725 = vperm.xlu0 %724, %v713
          %v726 = vpop.permute.xlu0 %725
          %v728 = vadd.f32 %v726, 0.0
          %729 = vrot.lane.b32.xlu0 %v721, 16
          %v730 = vpop.permute.xlu0 %729
          %731 = vrot.lane.b32.xlu0 %v722, 16
          %v732 = vpop.permute.xlu0 %731
          %vm733 = vcmp.lt.s32.totalorder %v649, 16
          %v734 = vsel %vm733, %v730, %v732
          %v735 = vsel %vm733, %v732, %v730
          %736 = vrot.lane.b32.xlu0 %v735, 1
          %v737 = vpop.permute.xlu0 %736
          %738 = vrot.lane.b32.xlu0 %v734, 1
          %v739 = vpop.permute.xlu0 %738
          %vm740 = vcmp.lt.s32.totalorder %v649, 1
          %v741 = vsel %vm740, %v737, %v739
          %v742 = vsel %vm740, %v739, %v737
          %743 = vrot.lane.b32.xlu0 %v735, 113
          %v744 = vpop.permute.xlu0 %743
          %745 = vrot.lane.b32.xlu0 %v734, 113
          %v746 = vpop.permute.xlu0 %745
          %vm747 = vcmp.lt.s32.totalorder %v649, 113
          %v748 = vsel %vm747, %v744, %v746
          %v749 = vsel %vm747, %v746, %v744
          %v750 = vsel %vm675, 1, 0
          %v751 = vsel %vm676, 1, 0
          %vm752 = vcmp.eq.s32.totalorder %v750, 1
          %vm753 = vcmp.eq.s32.totalorder %v751, 1
          %v754 = vsel %vm752, %v748, %v742
          %v755 = vsel %vm753, %v749, %v741
          %vm756 = vcmask 31744
          %v758 = vsel %vm756, %v679, 0
          %vm760 = vcmask 1043456
          %v762 = vsel %vm760, %v754, 0
          %v765 = vsel %vm760, %v755, 0
          %767 = vmatprep.subr.mxu0 0.0
          %768 = vmatpush1.msra.mxu0 0.0
          %769 = vmatprep.subr.mxu0 0.0
          %770 = vmatpush1.msra.mxu0 0.0
          %771 = vmatprep.subr.mxu0 0.0
          %772 = vmatpush1.msra.mxu0 0.0
          %773 = vmatprep.subr.mxu0 0.0
          %774 = vmatpush1.msra.mxu0 0.0
          %775 = vmatprep.subr.mxu0 0.0
          %776 = vmatpush1.msra.mxu0 0.0
          %777 = vmatprep.subr.mxu0 0.0
          %778 = vmatpush1.msra.mxu0 0.0
          %779 = vmatprep.subr.mxu0 0.0
          %780 = vmatpush1.msra.mxu0 0.0
          %781 = vmatprep.subr.mxu0 0.0
          %782 = vmatpush1.msra.mxu0 0.0
          %783 = vmatprep.subr.mxu0 0.0
          %784 = vmatpush1.msra.mxu0 0.0
          %785 = vmatprep.subr.mxu0 0.0
          %786 = vmatpush1.msra.mxu0 0.0
          %787 = vmatprep.subr.mxu0 0.0
          %788 = vmatpush1.msra.mxu0 0.0
          %789 = vmatprep.subr.mxu0 0.0
          %790 = vmatpush1.msra.mxu0 0.0
          %791 = vmatprep.subr.mxu0 0.0
          %792 = vmatpush1.msra.mxu0 0.0
          %793 = vmatprep.subr.mxu0 0.0
          %794 = vmatpush1.msra.mxu0 0.0
          %795 = vmatprep.subr.mxu0 0.0
          %796 = vmatpush1.msra.mxu0 0.0
          %797 = vmatprep.subr.mxu0 %v765
          %798 = vmatpush1.msra.mxu0 %v762
          %799 = vmatprep.subr.mxu0 0.0
          %800 = vmatpush2.msra.mxu0 0.0
          %801 = vmatprep.subr.mxu0 0.0
          %802 = vmatpush2.msra.mxu0 0.0
          %803 = vmatprep.subr.mxu0 0.0
          %804 = vmatpush2.msra.mxu0 0.0
          %805 = vmatprep.subr.mxu0 0.0
          %806 = vmatpush2.msra.mxu0 0.0
          %807 = vmatprep.subr.mxu0 0.0
          %808 = vmatpush2.msra.mxu0 0.0
          %809 = vmatprep.subr.mxu0 0.0
          %810 = vmatpush2.msra.mxu0 0.0
          %811 = vmatprep.subr.mxu0 0.0
          %812 = vmatpush2.msra.mxu0 0.0
          %813 = vmatprep.subr.mxu0 0.0
          %814 = vmatpush2.msra.mxu0 0.0
          %815 = vmatprep.subr.mxu0 0.0
          %816 = vmatpush2.msra.mxu0 0.0
          %817 = vmatprep.subr.mxu0 0.0
          %818 = vmatpush2.msra.mxu0 0.0
          %819 = vmatprep.subr.mxu0 0.0
          %820 = vmatpush2.msra.mxu0 0.0
          %821 = vmatprep.subr.mxu0 0.0
          %822 = vmatpush2.msra.mxu0 0.0
          %823 = vmatprep.subr.mxu0 0.0
          %824 = vmatpush2.msra.mxu0 0.0
          %825 = vmatprep.subr.mxu0 0.0
          %826 = vmatpush2.msra.mxu0 0.0
          %827 = vmatprep.subr.mxu0 0.0
          %828 = vmatpush2.msra.mxu0 0.0
          %829 = vmatprep.subr.mxu0 0.0
          %830 = vmatpush2.msra.mxu0 0.0
          %831 = vmatprep.mubr.f32.mxu0 0.0
          %832 = vmatmul.mubr.f32.gmra.mxu0 %v758
          %v833 = vpop.f32.mrf.mxu0
          %v834 = vadd.f32 0.0, %v833
          %v835 = vpop.f32.mrf.mxu0
          %v836 = vadd.f32 0.0, %v835
          %837 = vdwg.mxu0
          %v838 = vadd.f32 %v728, %v834
          %v839 = vadd.f32 %v728, %v836
          %v841 = vsel %vm756, %v681, 0
          %v844 = vsel %vm760, %v735, 0
          %v847 = vsel %vm760, %v734, 0
          %849 = vmatprep.subr.mxu0 0.0
          %850 = vmatpush1.msra.mxu0 0.0
          %851 = vmatprep.subr.mxu0 0.0
          %852 = vmatpush1.msra.mxu0 0.0
          %853 = vmatprep.subr.mxu0 0.0
          %854 = vmatpush1.msra.mxu0 0.0
          %855 = vmatprep.subr.mxu0 0.0
          %856 = vmatpush1.msra.mxu0 0.0
          %857 = vmatprep.subr.mxu0 0.0
          %858 = vmatpush1.msra.mxu0 0.0
          %859 = vmatprep.subr.mxu0 0.0
          %860 = vmatpush1.msra.mxu0 0.0
          %861 = vmatprep.subr.mxu0 0.0
          %862 = vmatpush1.msra.mxu0 0.0
          %863 = vmatprep.subr.mxu0 0.0
          %864 = vmatpush1.msra.mxu0 0.0
          %865 = vmatprep.subr.mxu0 0.0
          %866 = vmatpush1.msra.mxu0 0.0
          %867 = vmatprep.subr.mxu0 0.0
          %868 = vmatpush1.msra.mxu0 0.0
          %869 = vmatprep.subr.mxu0 0.0
          %870 = vmatpush1.msra.mxu0 0.0
          %871 = vmatprep.subr.mxu0 0.0
          %872 = vmatpush1.msra.mxu0 0.0
          %873 = vmatprep.subr.mxu0 0.0
          %874 = vmatpush1.msra.mxu0 0.0
          %875 = vmatprep.subr.mxu0 0.0
          %876 = vmatpush1.msra.mxu0 0.0
          %877 = vmatprep.subr.mxu0 0.0
          %878 = vmatpush1.msra.mxu0 0.0
          %879 = vmatprep.subr.mxu0 %v847
          %880 = vmatpush1.msra.mxu0 %v844
          %881 = vmatprep.subr.mxu0 0.0
          %882 = vmatpush2.msra.mxu0 0.0
          %883 = vmatprep.subr.mxu0 0.0
          %884 = vmatpush2.msra.mxu0 0.0
          %885 = vmatprep.subr.mxu0 0.0
          %886 = vmatpush2.msra.mxu0 0.0
          %887 = vmatprep.subr.mxu0 0.0
          %888 = vmatpush2.msra.mxu0 0.0
          %889 = vmatprep.subr.mxu0 0.0
          %890 = vmatpush2.msra.mxu0 0.0
          %891 = vmatprep.subr.mxu0 0.0
          %892 = vmatpush2.msra.mxu0 0.0
          %893 = vmatprep.subr.mxu0 0.0
          %894 = vmatpush2.msra.mxu0 0.0
          %895 = vmatprep.subr.mxu0 0.0
          %896 = vmatpush2.msra.mxu0 0.0
          %897 = vmatprep.subr.mxu0 0.0
          %898 = vmatpush2.msra.mxu0 0.0
          %899 = vmatprep.subr.mxu0 0.0
          %900 = vmatpush2.msra.mxu0 0.0
          %901 = vmatprep.subr.mxu0 0.0
          %902 = vmatpush2.msra.mxu0 0.0
          %903 = vmatprep.subr.mxu0 0.0
          %904 = vmatpush2.msra.mxu0 0.0
          %905 = vmatprep.subr.mxu0 0.0
          %906 = vmatpush2.msra.mxu0 0.0
          %907 = vmatprep.subr.mxu0 0.0
          %908 = vmatpush2.msra.mxu0 0.0
          %909 = vmatprep.subr.mxu0 0.0
          %910 = vmatpush2.msra.mxu0 0.0
          %911 = vmatprep.subr.mxu0 0.0
          %912 = vmatpush2.msra.mxu0 0.0
          %913 = vmatprep.mubr.f32.mxu0 0.0
          %914 = vmatmul.mubr.f32.gmra.mxu0 %v841
          %v915 = vpop.f32.mrf.mxu0
          %v916 = vadd.f32 0.0, %v915
          %v917 = vpop.f32.mrf.mxu0
          %v918 = vadd.f32 0.0, %v917
          %919 = vdwg.mxu0
          %v920 = vadd.f32 %v838, %v916
          %v921 = vadd.f32 %v839, %v918
          %922 = vrot.lane.b32.xlu0 %v735, 127
          %v923 = vpop.permute.xlu0 %922
          %924 = vrot.lane.b32.xlu0 %v734, 127
          %v925 = vpop.permute.xlu0 %924
          %vm926 = vcmp.lt.s32.totalorder %v649, 127
          %v927 = vsel %vm926, %v923, %v925
          %v928 = vsel %vm926, %v925, %v923
          %929 = vrot.lane.b32.xlu0 %v735, 15
          %v930 = vpop.permute.xlu0 %929
          %931 = vrot.lane.b32.xlu0 %v734, 15
          %v932 = vpop.permute.xlu0 %931
          %vm933 = vcmp.lt.s32.totalorder %v649, 15
          %v934 = vsel %vm933, %v930, %v932
          %v935 = vsel %vm933, %v932, %v930
          %v936 = vsel %vm677, 1, 0
          %v937 = vsel %vm678, 1, 0
          %vm938 = vcmp.eq.s32.totalorder %v936, 1
          %vm939 = vcmp.eq.s32.totalorder %v937, 1
          %v940 = vsel %vm938, %v935, %v927
          %v941 = vsel %vm939, %v934, %v928
          %v943 = vsel %vm756, %v683, 0
          %v946 = vsel %vm760, %v940, 0
          %v949 = vsel %vm760, %v941, 0
          %951 = vmatprep.subr.mxu0 0.0
          %952 = vmatpush1.msra.mxu0 0.0
          %953 = vmatprep.subr.mxu0 0.0
          %954 = vmatpush1.msra.mxu0 0.0
          %955 = vmatprep.subr.mxu0 0.0
          %956 = vmatpush1.msra.mxu0 0.0
          %957 = vmatprep.subr.mxu0 0.0
          %958 = vmatpush1.msra.mxu0 0.0
          %959 = vmatprep.subr.mxu0 0.0
          %960 = vmatpush1.msra.mxu0 0.0
          %961 = vmatprep.subr.mxu0 0.0
          %962 = vmatpush1.msra.mxu0 0.0
          %963 = vmatprep.subr.mxu0 0.0
          %964 = vmatpush1.msra.mxu0 0.0
          %965 = vmatprep.subr.mxu0 0.0
          %966 = vmatpush1.msra.mxu0 0.0
          %967 = vmatprep.subr.mxu0 0.0
          %968 = vmatpush1.msra.mxu0 0.0
          %969 = vmatprep.subr.mxu0 0.0
          %970 = vmatpush1.msra.mxu0 0.0
          %971 = vmatprep.subr.mxu0 0.0
          %972 = vmatpush1.msra.mxu0 0.0
          %973 = vmatprep.subr.mxu0 0.0
          %974 = vmatpush1.msra.mxu0 0.0
          %975 = vmatprep.subr.mxu0 0.0
          %976 = vmatpush1.msra.mxu0 0.0
          %977 = vmatprep.subr.mxu0 0.0
          %978 = vmatpush1.msra.mxu0 0.0
          %979 = vmatprep.subr.mxu0 0.0
          %980 = vmatpush1.msra.mxu0 0.0
          %981 = vmatprep.subr.mxu0 %v949
          %982 = vmatpush1.msra.mxu0 %v946
          %983 = vmatprep.subr.mxu0 0.0
          %984 = vmatpush2.msra.mxu0 0.0
          %985 = vmatprep.subr.mxu0 0.0
          %986 = vmatpush2.msra.mxu0 0.0
          %987 = vmatprep.subr.mxu0 0.0
          %988 = vmatpush2.msra.mxu0 0.0
          %989 = vmatprep.subr.mxu0 0.0
          %990 = vmatpush2.msra.mxu0 0.0
          %991 = vmatprep.subr.mxu0 0.0
          %992 = vmatpush2.msra.mxu0 0.0
          %993 = vmatprep.subr.mxu0 0.0
          %994 = vmatpush2.msra.mxu0 0.0
          %995 = vmatprep.subr.mxu0 0.0
          %996 = vmatpush2.msra.mxu0 0.0
          %997 = vmatprep.subr.mxu0 0.0
          %998 = vmatpush2.msra.mxu0 0.0
          %999 = vmatprep.subr.mxu0 0.0
          %1000 = vmatpush2.msra.mxu0 0.0
          %1001 = vmatprep.subr.mxu0 0.0
          %1002 = vmatpush2.msra.mxu0 0.0
          %1003 = vmatprep.subr.mxu0 0.0
          %1004 = vmatpush2.msra.mxu0 0.0
          %1005 = vmatprep.subr.mxu0 0.0
          %1006 = vmatpush2.msra.mxu0 0.0
          %1007 = vmatprep.subr.mxu0 0.0
          %1008 = vmatpush2.msra.mxu0 0.0
          %1009 = vmatprep.subr.mxu0 0.0
          %1010 = vmatpush2.msra.mxu0 0.0
          %1011 = vmatprep.subr.mxu0 0.0
          %1012 = vmatpush2.msra.mxu0 0.0
          %1013 = vmatprep.subr.mxu0 0.0
          %1014 = vmatpush2.msra.mxu0 0.0
          %1015 = vmatprep.mubr.f32.mxu0 0.0
          %1016 = vmatmul.mubr.f32.gmra.mxu0 %v943
          %v1017 = vpop.f32.mrf.mxu0
          %v1018 = vadd.f32 0.0, %v1017
          %v1019 = vpop.f32.mrf.mxu0
          %v1020 = vadd.f32 0.0, %v1019
          %1021 = vdwg.mxu0
          %v1022 = vadd.f32 %v920, %v1018
          %v1023 = vadd.f32 %v921, %v1020
          %1024 = vrot.lane.b32.xlu0 %v721, 1
          %v1025 = vpop.permute.xlu0 %1024
          %1026 = vrot.lane.b32.xlu0 %v722, 1
          %v1027 = vpop.permute.xlu0 %1026
          %v1028 = vsel %vm740, %v1025, %v1027
          %v1029 = vsel %vm740, %v1027, %v1025
          %1030 = vrot.lane.b32.xlu0 %v721, 113
          %v1031 = vpop.permute.xlu0 %1030
          %1032 = vrot.lane.b32.xlu0 %v722, 113
          %v1033 = vpop.permute.xlu0 %1032
          %v1034 = vsel %vm747, %v1031, %v1033
          %v1035 = vsel %vm747, %v1033, %v1031
          %v1036 = vsel %vm752, %v1034, %v1029
          %v1037 = vsel %vm753, %v1035, %v1028
          %v1039 = vsel %vm756, %v685, 0
          %v1042 = vsel %vm760, %v1036, 0
          %v1045 = vsel %vm760, %v1037, 0
          %1047 = vmatprep.subr.mxu0 0.0
          %1048 = vmatpush1.msra.mxu0 0.0
          %1049 = vmatprep.subr.mxu0 0.0
          %1050 = vmatpush1.msra.mxu0 0.0
          %1051 = vmatprep.subr.mxu0 0.0
          %1052 = vmatpush1.msra.mxu0 0.0
          %1053 = vmatprep.subr.mxu0 0.0
          %1054 = vmatpush1.msra.mxu0 0.0
          %1055 = vmatprep.subr.mxu0 0.0
          %1056 = vmatpush1.msra.mxu0 0.0
          %1057 = vmatprep.subr.mxu0 0.0
          %1058 = vmatpush1.msra.mxu0 0.0
          %1059 = vmatprep.subr.mxu0 0.0
          %1060 = vmatpush1.msra.mxu0 0.0
          %1061 = vmatprep.subr.mxu0 0.0
          %1062 = vmatpush1.msra.mxu0 0.0
          %1063 = vmatprep.subr.mxu0 0.0
          %1064 = vmatpush1.msra.mxu0 0.0
          %1065 = vmatprep.subr.mxu0 0.0
          %1066 = vmatpush1.msra.mxu0 0.0
          %1067 = vmatprep.subr.mxu0 0.0
          %1068 = vmatpush1.msra.mxu0 0.0
          %1069 = vmatprep.subr.mxu0 0.0
          %1070 = vmatpush1.msra.mxu0 0.0
          %1071 = vmatprep.subr.mxu0 0.0
          %1072 = vmatpush1.msra.mxu0 0.0
          %1073 = vmatprep.subr.mxu0 0.0
          %1074 = vmatpush1.msra.mxu0 0.0
          %1075 = vmatprep.subr.mxu0 0.0
          %1076 = vmatpush1.msra.mxu0 0.0
          %1077 = vmatprep.subr.mxu0 %v1045
          %1078 = vmatpush1.msra.mxu0 %v1042
          %1079 = vmatprep.subr.mxu0 0.0
          %1080 = vmatpush2.msra.mxu0 0.0
          %1081 = vmatprep.subr.mxu0 0.0
          %1082 = vmatpush2.msra.mxu0 0.0
          %1083 = vmatprep.subr.mxu0 0.0
          %1084 = vmatpush2.msra.mxu0 0.0
          %1085 = vmatprep.subr.mxu0 0.0
          %1086 = vmatpush2.msra.mxu0 0.0
          %1087 = vmatprep.subr.mxu0 0.0
          %1088 = vmatpush2.msra.mxu0 0.0
          %1089 = vmatprep.subr.mxu0 0.0
          %1090 = vmatpush2.msra.mxu0 0.0
          %1091 = vmatprep.subr.mxu0 0.0
          %1092 = vmatpush2.msra.mxu0 0.0
          %1093 = vmatprep.subr.mxu0 0.0
          %1094 = vmatpush2.msra.mxu0 0.0
          %1095 = vmatprep.subr.mxu0 0.0
          %1096 = vmatpush2.msra.mxu0 0.0
          %1097 = vmatprep.subr.mxu0 0.0
          %1098 = vmatpush2.msra.mxu0 0.0
          %1099 = vmatprep.subr.mxu0 0.0
          %1100 = vmatpush2.msra.mxu0 0.0
          %1101 = vmatprep.subr.mxu0 0.0
          %1102 = vmatpush2.msra.mxu0 0.0
          %1103 = vmatprep.subr.mxu0 0.0
          %1104 = vmatpush2.msra.mxu0 0.0
          %1105 = vmatprep.subr.mxu0 0.0
          %1106 = vmatpush2.msra.mxu0 0.0
          %1107 = vmatprep.subr.mxu0 0.0
          %1108 = vmatpush2.msra.mxu0 0.0
          %1109 = vmatprep.subr.mxu0 0.0
          %1110 = vmatpush2.msra.mxu0 0.0
          %1111 = vmatprep.mubr.f32.mxu0 0.0
          %1112 = vmatmul.mubr.f32.gmra.mxu0 %v1039
          %v1113 = vpop.f32.mrf.mxu0
          %v1114 = vadd.f32 0.0, %v1113
          %v1115 = vpop.f32.mrf.mxu0
          %v1116 = vadd.f32 0.0, %v1115
          %1117 = vdwg.mxu0
          %v1118 = vadd.f32 %v1022, %v1114
          %v1119 = vadd.f32 %v1023, %v1116
          %v1121 = vsel %vm756, %v687, 0
          %v1124 = vsel %vm760, %v721, 0
          %v1127 = vsel %vm760, %v722, 0
          %1129 = vmatprep.subr.mxu0 0.0
          %1130 = vmatpush1.msra.mxu0 0.0
          %1131 = vmatprep.subr.mxu0 0.0
          %1132 = vmatpush1.msra.mxu0 0.0
          %1133 = vmatprep.subr.mxu0 0.0
          %1134 = vmatpush1.msra.mxu0 0.0
          %1135 = vmatprep.subr.mxu0 0.0
          %1136 = vmatpush1.msra.mxu0 0.0
          %1137 = vmatprep.subr.mxu0 0.0
          %1138 = vmatpush1.msra.mxu0 0.0
          %1139 = vmatprep.subr.mxu0 0.0
          %1140 = vmatpush1.msra.mxu0 0.0
          %1141 = vmatprep.subr.mxu0 0.0
          %1142 = vmatpush1.msra.mxu0 0.0
          %1143 = vmatprep.subr.mxu0 0.0
          %1144 = vmatpush1.msra.mxu0 0.0
          %1145 = vmatprep.subr.mxu0 0.0
          %1146 = vmatpush1.msra.mxu0 0.0
          %1147 = vmatprep.subr.mxu0 0.0
          %1148 = vmatpush1.msra.mxu0 0.0
          %1149 = vmatprep.subr.mxu0 0.0
          %1150 = vmatpush1.msra.mxu0 0.0
          %1151 = vmatprep.subr.mxu0 0.0
          %1152 = vmatpush1.msra.mxu0 0.0
          %1153 = vmatprep.subr.mxu0 0.0
          %1154 = vmatpush1.msra.mxu0 0.0
          %1155 = vmatprep.subr.mxu0 0.0
          %1156 = vmatpush1.msra.mxu0 0.0
          %1157 = vmatprep.subr.mxu0 0.0
          %1158 = vmatpush1.msra.mxu0 0.0
          %1159 = vmatprep.subr.mxu0 %v1127
          %1160 = vmatpush1.msra.mxu0 %v1124
          %1161 = vmatprep.subr.mxu0 0.0
          %1162 = vmatpush2.msra.mxu0 0.0
          %1163 = vmatprep.subr.mxu0 0.0
          %1164 = vmatpush2.msra.mxu0 0.0
          %1165 = vmatprep.subr.mxu0 0.0
          %1166 = vmatpush2.msra.mxu0 0.0
          %1167 = vmatprep.subr.mxu0 0.0
          %1168 = vmatpush2.msra.mxu0 0.0
          %1169 = vmatprep.subr.mxu0 0.0
          %1170 = vmatpush2.msra.mxu0 0.0
          %1171 = vmatprep.subr.mxu0 0.0
          %1172 = vmatpush2.msra.mxu0 0.0
          %1173 = vmatprep.subr.mxu0 0.0
          %1174 = vmatpush2.msra.mxu0 0.0
          %1175 = vmatprep.subr.mxu0 0.0
          %1176 = vmatpush2.msra.mxu0 0.0
          %1177 = vmatprep.subr.mxu0 0.0
          %1178 = vmatpush2.msra.mxu0 0.0
          %1179 = vmatprep.subr.mxu0 0.0
          %1180 = vmatpush2.msra.mxu0 0.0
          %1181 = vmatprep.subr.mxu0 0.0
          %1182 = vmatpush2.msra.mxu0 0.0
          %1183 = vmatprep.subr.mxu0 0.0
          %1184 = vmatpush2.msra.mxu0 0.0
          %1185 = vmatprep.subr.mxu0 0.0
          %1186 = vmatpush2.msra.mxu0 0.0
          %1187 = vmatprep.subr.mxu0 0.0
          %1188 = vmatpush2.msra.mxu0 0.0
          %1189 = vmatprep.subr.mxu0 0.0
          %1190 = vmatpush2.msra.mxu0 0.0
          %1191 = vmatprep.subr.mxu0 0.0
          %1192 = vmatpush2.msra.mxu0 0.0
          %1193 = vmatprep.mubr.f32.mxu0 0.0
          %1194 = vmatmul.mubr.f32.gmra.mxu0 %v1121
          %v1195 = vpop.f32.mrf.mxu0
          %v1196 = vadd.f32 0.0, %v1195
          %v1197 = vpop.f32.mrf.mxu0
          %v1198 = vadd.f32 0.0, %v1197
          %1199 = vdwg.mxu0
          %v1200 = vadd.f32 %v1118, %v1196
          %v1201 = vadd.f32 %v1119, %v1198
          %1202 = vrot.lane.b32.xlu0 %v721, 127
          %v1203 = vpop.permute.xlu0 %1202
          %1204 = vrot.lane.b32.xlu0 %v722, 127
          %v1205 = vpop.permute.xlu0 %1204
          %v1206 = vsel %vm926, %v1203, %v1205
          %v1207 = vsel %vm926, %v1205, %v1203
          %1208 = vrot.lane.b32.xlu0 %v721, 15
          %v1209 = vpop.permute.xlu0 %1208
          %1210 = vrot.lane.b32.xlu0 %v722, 15
          %v1211 = vpop.permute.xlu0 %1210
          %v1212 = vsel %vm933, %v1209, %v1211
          %v1213 = vsel %vm933, %v1211, %v1209
          %v1214 = vsel %vm938, %v1213, %v1206
          %v1215 = vsel %vm939, %v1212, %v1207
          %v1217 = vsel %vm756, %v689, 0
          %v1220 = vsel %vm760, %v1214, 0
          %v1223 = vsel %vm760, %v1215, 0
          %1225 = vmatprep.subr.mxu0 0.0
          %1226 = vmatpush1.msra.mxu0 0.0
          %1227 = vmatprep.subr.mxu0 0.0
          %1228 = vmatpush1.msra.mxu0 0.0
          %1229 = vmatprep.subr.mxu0 0.0
          %1230 = vmatpush1.msra.mxu0 0.0
          %1231 = vmatprep.subr.mxu0 0.0
          %1232 = vmatpush1.msra.mxu0 0.0
          %1233 = vmatprep.subr.mxu0 0.0
          %1234 = vmatpush1.msra.mxu0 0.0
          %1235 = vmatprep.subr.mxu0 0.0
          %1236 = vmatpush1.msra.mxu0 0.0
          %1237 = vmatprep.subr.mxu0 0.0
          %1238 = vmatpush1.msra.mxu0 0.0
          %1239 = vmatprep.subr.mxu0 0.0
          %1240 = vmatpush1.msra.mxu0 0.0
          %1241 = vmatprep.subr.mxu0 0.0
          %1242 = vmatpush1.msra.mxu0 0.0
          %1243 = vmatprep.subr.mxu0 0.0
          %1244 = vmatpush1.msra.mxu0 0.0
          %1245 = vmatprep.subr.mxu0 0.0
          %1246 = vmatpush1.msra.mxu0 0.0
          %1247 = vmatprep.subr.mxu0 0.0
          %1248 = vmatpush1.msra.mxu0 0.0
          %1249 = vmatprep.subr.mxu0 0.0
          %1250 = vmatpush1.msra.mxu0 0.0
          %1251 = vmatprep.subr.mxu0 0.0
          %1252 = vmatpush1.msra.mxu0 0.0
          %1253 = vmatprep.subr.mxu0 0.0
          %1254 = vmatpush1.msra.mxu0 0.0
          %1255 = vmatprep.subr.mxu0 %v1223
          %1256 = vmatpush1.msra.mxu0 %v1220
          %1257 = vmatprep.subr.mxu0 0.0
          %1258 = vmatpush2.msra.mxu0 0.0
          %1259 = vmatprep.subr.mxu0 0.0
          %1260 = vmatpush2.msra.mxu0 0.0
          %1261 = vmatprep.subr.mxu0 0.0
          %1262 = vmatpush2.msra.mxu0 0.0
          %1263 = vmatprep.subr.mxu0 0.0
          %1264 = vmatpush2.msra.mxu0 0.0
          %1265 = vmatprep.subr.mxu0 0.0
          %1266 = vmatpush2.msra.mxu0 0.0
          %1267 = vmatprep.subr.mxu0 0.0
          %1268 = vmatpush2.msra.mxu0 0.0
          %1269 = vmatprep.subr.mxu0 0.0
          %1270 = vmatpush2.msra.mxu0 0.0
          %1271 = vmatprep.subr.mxu0 0.0
          %1272 = vmatpush2.msra.mxu0 0.0
          %1273 = vmatprep.subr.mxu0 0.0
          %1274 = vmatpush2.msra.mxu0 0.0
          %1275 = vmatprep.subr.mxu0 0.0
          %1276 = vmatpush2.msra.mxu0 0.0
          %1277 = vmatprep.subr.mxu0 0.0
          %1278 = vmatpush2.msra.mxu0 0.0
          %1279 = vmatprep.subr.mxu0 0.0
          %1280 = vmatpush2.msra.mxu0 0.0
          %1281 = vmatprep.subr.mxu0 0.0
          %1282 = vmatpush2.msra.mxu0 0.0
          %1283 = vmatprep.subr.mxu0 0.0
          %1284 = vmatpush2.msra.mxu0 0.0
          %1285 = vmatprep.subr.mxu0 0.0
          %1286 = vmatpush2.msra.mxu0 0.0
          %1287 = vmatprep.subr.mxu0 0.0
          %1288 = vmatpush2.msra.mxu0 0.0
          %1289 = vmatprep.mubr.f32.mxu0 0.0
          %1290 = vmatmul.mubr.f32.gmra.mxu0 %v1217
          %v1291 = vpop.f32.mrf.mxu0
          %v1292 = vadd.f32 0.0, %v1291
          %v1293 = vpop.f32.mrf.mxu0
          %v1294 = vadd.f32 0.0, %v1293
          %1295 = vdwg.mxu0
          %v1296 = vadd.f32 %v1200, %v1292
          %v1297 = vadd.f32 %v1201, %v1294
          %1298 = vrot.lane.b32.xlu0 %v721, 112
          %v1299 = vpop.permute.xlu0 %1298
          %1300 = vrot.lane.b32.xlu0 %v722, 112
          %v1301 = vpop.permute.xlu0 %1300
          %vm1302 = vcmp.lt.s32.totalorder %v649, 112
          %v1303 = vsel %vm1302, %v1299, %v1301
          %v1304 = vsel %vm1302, %v1301, %v1299
          %1305 = vrot.lane.b32.xlu0 %v1303, 1
          %v1306 = vpop.permute.xlu0 %1305
          %1307 = vrot.lane.b32.xlu0 %v1304, 1
          %v1308 = vpop.permute.xlu0 %1307
          %v1309 = vsel %vm740, %v1306, %v1308
          %v1310 = vsel %vm740, %v1308, %v1306
          %1311 = vrot.lane.b32.xlu0 %v1303, 113
          %v1312 = vpop.permute.xlu0 %1311
          %1313 = vrot.lane.b32.xlu0 %v1304, 113
          %v1314 = vpop.permute.xlu0 %1313
          %v1315 = vsel %vm747, %v1312, %v1314
          %v1316 = vsel %vm747, %v1314, %v1312
          %v1317 = vsel %vm752, %v1315, %v1310
          %v1318 = vsel %vm753, %v1316, %v1309
          %v1320 = vsel %vm756, %v691, 0
          %v1323 = vsel %vm760, %v1317, 0
          %v1326 = vsel %vm760, %v1318, 0
          %1328 = vmatprep.subr.mxu0 0.0
          %1329 = vmatpush1.msra.mxu0 0.0
          %1330 = vmatprep.subr.mxu0 0.0
          %1331 = vmatpush1.msra.mxu0 0.0
          %1332 = vmatprep.subr.mxu0 0.0
          %1333 = vmatpush1.msra.mxu0 0.0
          %1334 = vmatprep.subr.mxu0 0.0
          %1335 = vmatpush1.msra.mxu0 0.0
          %1336 = vmatprep.subr.mxu0 0.0
          %1337 = vmatpush1.msra.mxu0 0.0
          %1338 = vmatprep.subr.mxu0 0.0
          %1339 = vmatpush1.msra.mxu0 0.0
          %1340 = vmatprep.subr.mxu0 0.0
          %1341 = vmatpush1.msra.mxu0 0.0
          %1342 = vmatprep.subr.mxu0 0.0
          %1343 = vmatpush1.msra.mxu0 0.0
          %1344 = vmatprep.subr.mxu0 0.0
          %1345 = vmatpush1.msra.mxu0 0.0
          %1346 = vmatprep.subr.mxu0 0.0
          %1347 = vmatpush1.msra.mxu0 0.0
          %1348 = vmatprep.subr.mxu0 0.0
          %1349 = vmatpush1.msra.mxu0 0.0
          %1350 = vmatprep.subr.mxu0 0.0
          %1351 = vmatpush1.msra.mxu0 0.0
          %1352 = vmatprep.subr.mxu0 0.0
          %1353 = vmatpush1.msra.mxu0 0.0
          %1354 = vmatprep.subr.mxu0 0.0
          %1355 = vmatpush1.msra.mxu0 0.0
          %1356 = vmatprep.subr.mxu0 0.0
          %1357 = vmatpush1.msra.mxu0 0.0
          %1358 = vmatprep.subr.mxu0 %v1326
          %1359 = vmatpush1.msra.mxu0 %v1323
          %1360 = vmatprep.subr.mxu0 0.0
          %1361 = vmatpush2.msra.mxu0 0.0
          %1362 = vmatprep.subr.mxu0 0.0
          %1363 = vmatpush2.msra.mxu0 0.0
          %1364 = vmatprep.subr.mxu0 0.0
          %1365 = vmatpush2.msra.mxu0 0.0
          %1366 = vmatprep.subr.mxu0 0.0
          %1367 = vmatpush2.msra.mxu0 0.0
          %1368 = vmatprep.subr.mxu0 0.0
          %1369 = vmatpush2.msra.mxu0 0.0
          %1370 = vmatprep.subr.mxu0 0.0
          %1371 = vmatpush2.msra.mxu0 0.0
          %1372 = vmatprep.subr.mxu0 0.0
          %1373 = vmatpush2.msra.mxu0 0.0
          %1374 = vmatprep.subr.mxu0 0.0
          %1375 = vmatpush2.msra.mxu0 0.0
          %1376 = vmatprep.subr.mxu0 0.0
          %1377 = vmatpush2.msra.mxu0 0.0
          %1378 = vmatprep.subr.mxu0 0.0
          %1379 = vmatpush2.msra.mxu0 0.0
          %1380 = vmatprep.subr.mxu0 0.0
          %1381 = vmatpush2.msra.mxu0 0.0
          %1382 = vmatprep.subr.mxu0 0.0
          %1383 = vmatpush2.msra.mxu0 0.0
          %1384 = vmatprep.subr.mxu0 0.0
          %1385 = vmatpush2.msra.mxu0 0.0
          %1386 = vmatprep.subr.mxu0 0.0
          %1387 = vmatpush2.msra.mxu0 0.0
          %1388 = vmatprep.subr.mxu0 0.0
          %1389 = vmatpush2.msra.mxu0 0.0
          %1390 = vmatprep.subr.mxu0 0.0
          %1391 = vmatpush2.msra.mxu0 0.0
          %1392 = vmatprep.mubr.f32.mxu0 0.0
          %1393 = vmatmul.mubr.f32.gmra.mxu0 %v1320
          %v1394 = vpop.f32.mrf.mxu0
          %v1395 = vadd.f32 0.0, %v1394
          %v1396 = vpop.f32.mrf.mxu0
          %v1397 = vadd.f32 0.0, %v1396
          %1398 = vdwg.mxu0
          %v1399 = vadd.f32 %v1296, %v1395
          %v1400 = vadd.f32 %v1297, %v1397
          %v1402 = vsel %vm756, %v693, 0
          %v1405 = vsel %vm760, %v1303, 0
          %v1408 = vsel %vm760, %v1304, 0
          %1410 = vmatprep.subr.mxu0 0.0
          %1411 = vmatpush1.msra.mxu0 0.0
          %1412 = vmatprep.subr.mxu0 0.0
          %1413 = vmatpush1.msra.mxu0 0.0
          %1414 = vmatprep.subr.mxu0 0.0
          %1415 = vmatpush1.msra.mxu0 0.0
          %1416 = vmatprep.subr.mxu0 0.0
          %1417 = vmatpush1.msra.mxu0 0.0
          %1418 = vmatprep.subr.mxu0 0.0
          %1419 = vmatpush1.msra.mxu0 0.0
          %1420 = vmatprep.subr.mxu0 0.0
          %1421 = vmatpush1.msra.mxu0 0.0
          %1422 = vmatprep.subr.mxu0 0.0
          %1423 = vmatpush1.msra.mxu0 0.0
          %1424 = vmatprep.subr.mxu0 0.0
          %1425 = vmatpush1.msra.mxu0 0.0
          %1426 = vmatprep.subr.mxu0 0.0
          %1427 = vmatpush1.msra.mxu0 0.0
          %1428 = vmatprep.subr.mxu0 0.0
          %1429 = vmatpush1.msra.mxu0 0.0
          %1430 = vmatprep.subr.mxu0 0.0
          %1431 = vmatpush1.msra.mxu0 0.0
          %1432 = vmatprep.subr.mxu0 0.0
          %1433 = vmatpush1.msra.mxu0 0.0
          %1434 = vmatprep.subr.mxu0 0.0
          %1435 = vmatpush1.msra.mxu0 0.0
          %1436 = vmatprep.subr.mxu0 0.0
          %1437 = vmatpush1.msra.mxu0 0.0
          %1438 = vmatprep.subr.mxu0 0.0
          %1439 = vmatpush1.msra.mxu0 0.0
          %1440 = vmatprep.subr.mxu0 %v1408
          %1441 = vmatpush1.msra.mxu0 %v1405
          %1442 = vmatprep.subr.mxu0 0.0
          %1443 = vmatpush2.msra.mxu0 0.0
          %1444 = vmatprep.subr.mxu0 0.0
          %1445 = vmatpush2.msra.mxu0 0.0
          %1446 = vmatprep.subr.mxu0 0.0
          %1447 = vmatpush2.msra.mxu0 0.0
          %1448 = vmatprep.subr.mxu0 0.0
          %1449 = vmatpush2.msra.mxu0 0.0
          %1450 = vmatprep.subr.mxu0 0.0
          %1451 = vmatpush2.msra.mxu0 0.0
          %1452 = vmatprep.subr.mxu0 0.0
          %1453 = vmatpush2.msra.mxu0 0.0
          %1454 = vmatprep.subr.mxu0 0.0
          %1455 = vmatpush2.msra.mxu0 0.0
          %1456 = vmatprep.subr.mxu0 0.0
          %1457 = vmatpush2.msra.mxu0 0.0
          %1458 = vmatprep.subr.mxu0 0.0
          %1459 = vmatpush2.msra.mxu0 0.0
          %1460 = vmatprep.subr.mxu0 0.0
          %1461 = vmatpush2.msra.mxu0 0.0
          %1462 = vmatprep.subr.mxu0 0.0
          %1463 = vmatpush2.msra.mxu0 0.0
          %1464 = vmatprep.subr.mxu0 0.0
          %1465 = vmatpush2.msra.mxu0 0.0
          %1466 = vmatprep.subr.mxu0 0.0
          %1467 = vmatpush2.msra.mxu0 0.0
          %1468 = vmatprep.subr.mxu0 0.0
          %1469 = vmatpush2.msra.mxu0 0.0
          %1470 = vmatprep.subr.mxu0 0.0
          %1471 = vmatpush2.msra.mxu0 0.0
          %1472 = vmatprep.subr.mxu0 0.0
          %1473 = vmatpush2.msra.mxu0 0.0
          %1474 = vmatprep.mubr.f32.mxu0 0.0
          %1475 = vmatmul.mubr.f32.gmra.mxu0 %v1402
          %v1476 = vpop.f32.mrf.mxu0
          %v1477 = vadd.f32 0.0, %v1476
          %v1478 = vpop.f32.mrf.mxu0
          %v1479 = vadd.f32 0.0, %v1478
          %1480 = vdwg.mxu0
          %v1481 = vadd.f32 %v1399, %v1477
          %v1482 = vadd.f32 %v1400, %v1479
          %1483 = vrot.lane.b32.xlu0 %v1303, 127
          %v1484 = vpop.permute.xlu0 %1483
          %1485 = vrot.lane.b32.xlu0 %v1304, 127
          %v1486 = vpop.permute.xlu0 %1485
          %v1487 = vsel %vm926, %v1484, %v1486
          %v1488 = vsel %vm926, %v1486, %v1484
          %1489 = vrot.lane.b32.xlu0 %v1303, 15
          %v1490 = vpop.permute.xlu0 %1489
          %1491 = vrot.lane.b32.xlu0 %v1304, 15
          %v1492 = vpop.permute.xlu0 %1491
          %v1493 = vsel %vm933, %v1490, %v1492
          %v1494 = vsel %vm933, %v1492, %v1490
          %v1495 = vsel %vm938, %v1494, %v1487
          %v1496 = vsel %vm939, %v1493, %v1488
          %v1498 = vsel %vm756, %v695, 0
          %v1501 = vsel %vm760, %v1495, 0
          %v1504 = vsel %vm760, %v1496, 0
          %1506 = vmatprep.subr.mxu0 0.0
          %1507 = vmatpush1.msra.mxu0 0.0
          %1508 = vmatprep.subr.mxu0 0.0
          %1509 = vmatpush1.msra.mxu0 0.0
          %1510 = vmatprep.subr.mxu0 0.0
          %1511 = vmatpush1.msra.mxu0 0.0
          %1512 = vmatprep.subr.mxu0 0.0
          %1513 = vmatpush1.msra.mxu0 0.0
          %1514 = vmatprep.subr.mxu0 0.0
          %1515 = vmatpush1.msra.mxu0 0.0
          %1516 = vmatprep.subr.mxu0 0.0
          %1517 = vmatpush1.msra.mxu0 0.0
          %1518 = vmatprep.subr.mxu0 0.0
          %1519 = vmatpush1.msra.mxu0 0.0
          %1520 = vmatprep.subr.mxu0 0.0
          %1521 = vmatpush1.msra.mxu0 0.0
          %1522 = vmatprep.subr.mxu0 0.0
          %1523 = vmatpush1.msra.mxu0 0.0
          %1524 = vmatprep.subr.mxu0 0.0
          %1525 = vmatpush1.msra.mxu0 0.0
          %1526 = vmatprep.subr.mxu0 0.0
          %1527 = vmatpush1.msra.mxu0 0.0
          %1528 = vmatprep.subr.mxu0 0.0
          %1529 = vmatpush1.msra.mxu0 0.0
          %1530 = vmatprep.subr.mxu0 0.0
          %1531 = vmatpush1.msra.mxu0 0.0
          %1532 = vmatprep.subr.mxu0 0.0
          %1533 = vmatpush1.msra.mxu0 0.0
          %1534 = vmatprep.subr.mxu0 0.0
          %1535 = vmatpush1.msra.mxu0 0.0
          %1536 = vmatprep.subr.mxu0 %v1504
          %1537 = vmatpush1.msra.mxu0 %v1501
          %1538 = vmatprep.subr.mxu0 0.0
          %1539 = vmatpush2.msra.mxu0 0.0
          %1540 = vmatprep.subr.mxu0 0.0
          %1541 = vmatpush2.msra.mxu0 0.0
          %1542 = vmatprep.subr.mxu0 0.0
          %1543 = vmatpush2.msra.mxu0 0.0
          %1544 = vmatprep.subr.mxu0 0.0
          %1545 = vmatpush2.msra.mxu0 0.0
          %1546 = vmatprep.subr.mxu0 0.0
          %1547 = vmatpush2.msra.mxu0 0.0
          %1548 = vmatprep.subr.mxu0 0.0
          %1549 = vmatpush2.msra.mxu0 0.0
          %1550 = vmatprep.subr.mxu0 0.0
          %1551 = vmatpush2.msra.mxu0 0.0
          %1552 = vmatprep.subr.mxu0 0.0
          %1553 = vmatpush2.msra.mxu0 0.0
          %1554 = vmatprep.subr.mxu0 0.0
          %1555 = vmatpush2.msra.mxu0 0.0
          %1556 = vmatprep.subr.mxu0 0.0
          %1557 = vmatpush2.msra.mxu0 0.0
          %1558 = vmatprep.subr.mxu0 0.0
          %1559 = vmatpush2.msra.mxu0 0.0
          %1560 = vmatprep.subr.mxu0 0.0
          %1561 = vmatpush2.msra.mxu0 0.0
          %1562 = vmatprep.subr.mxu0 0.0
          %1563 = vmatpush2.msra.mxu0 0.0
          %1564 = vmatprep.subr.mxu0 0.0
          %1565 = vmatpush2.msra.mxu0 0.0
          %1566 = vmatprep.subr.mxu0 0.0
          %1567 = vmatpush2.msra.mxu0 0.0
          %1568 = vmatprep.subr.mxu0 0.0
          %1569 = vmatpush2.msra.mxu0 0.0
          %1570 = vmatprep.mubr.f32.mxu0 0.0
          %1571 = vmatmul.mubr.f32.gmra.mxu0 %v1498
          %v1572 = vpop.f32.mrf.mxu0
          %v1573 = vadd.f32 0.0, %v1572
          %v1574 = vpop.f32.mrf.mxu0
          %v1575 = vadd.f32 0.0, %v1574
          %1576 = vdwg.mxu0
          %v1577 = vadd.f32 %v1481, %v1573
          %v1578 = vadd.f32 %v1482, %v1575
          %v1579 = vtanh.pop %v1577
          %v1580 = vtanh.pop %v1578
          %1582 = vset.pattern.permute.xlu0 0
          %1583 = vperm.xlu0 %1582, %v714
          %v1584 = vpop.permute.xlu0 %1583
          %v1586 = vadd.f32 %v1584, 0.0
          %1587 = vrot.lane.b32.xlu0 %v1579, 16
          %v1588 = vpop.permute.xlu0 %1587
          %1589 = vrot.lane.b32.xlu0 %v1580, 16
          %v1590 = vpop.permute.xlu0 %1589
          %v1591 = vsel %vm733, %v1588, %v1590
          %v1592 = vsel %vm733, %v1590, %v1588
          %1593 = vrot.lane.b32.xlu0 %v1592, 1
          %v1594 = vpop.permute.xlu0 %1593
          %1595 = vrot.lane.b32.xlu0 %v1591, 1
          %v1596 = vpop.permute.xlu0 %1595
          %v1597 = vsel %vm740, %v1594, %v1596
          %v1598 = vsel %vm740, %v1596, %v1594
          %1599 = vrot.lane.b32.xlu0 %v1592, 113
          %v1600 = vpop.permute.xlu0 %1599
          %1601 = vrot.lane.b32.xlu0 %v1591, 113
          %v1602 = vpop.permute.xlu0 %1601
          %v1603 = vsel %vm747, %v1600, %v1602
          %v1604 = vsel %vm747, %v1602, %v1600
          %v1605 = vsel %vm752, %v1603, %v1598
          %v1606 = vsel %vm753, %v1604, %v1597
          %vm1607 = vcmask 64512
          %v1609 = vsel %vm1607, %v696, 0
          %1611 = vmatprep.subr.mxu0 0.0
          %1612 = vmatpush1.msra.mxu0 0.0
          %1613 = vmatprep.subr.mxu0 0.0
          %1614 = vmatpush1.msra.mxu0 0.0
          %1615 = vmatprep.subr.mxu0 0.0
          %1616 = vmatpush1.msra.mxu0 0.0
          %1617 = vmatprep.subr.mxu0 0.0
          %1618 = vmatpush1.msra.mxu0 0.0
          %1619 = vmatprep.subr.mxu0 0.0
          %1620 = vmatpush1.msra.mxu0 0.0
          %1621 = vmatprep.subr.mxu0 0.0
          %1622 = vmatpush1.msra.mxu0 0.0
          %1623 = vmatprep.subr.mxu0 0.0
          %1624 = vmatpush1.msra.mxu0 0.0
          %1625 = vmatprep.subr.mxu0 0.0
          %1626 = vmatpush1.msra.mxu0 0.0
          %1627 = vmatprep.subr.mxu0 0.0
          %1628 = vmatpush1.msra.mxu0 0.0
          %1629 = vmatprep.subr.mxu0 0.0
          %1630 = vmatpush1.msra.mxu0 0.0
          %1631 = vmatprep.subr.mxu0 0.0
          %1632 = vmatpush1.msra.mxu0 0.0
          %1633 = vmatprep.subr.mxu0 0.0
          %1634 = vmatpush1.msra.mxu0 0.0
          %1635 = vmatprep.subr.mxu0 0.0
          %1636 = vmatpush1.msra.mxu0 0.0
          %1637 = vmatprep.subr.mxu0 0.0
          %1638 = vmatpush1.msra.mxu0 0.0
          %1639 = vmatprep.subr.mxu0 0.0
          %1640 = vmatpush1.msra.mxu0 0.0
          %1641 = vmatprep.subr.mxu0 %v1606
          %1642 = vmatpush1.msra.mxu0 %v1605
          %1643 = vmatprep.subr.mxu0 0.0
          %1644 = vmatpush2.msra.mxu0 0.0
          %1645 = vmatprep.subr.mxu0 0.0
          %1646 = vmatpush2.msra.mxu0 0.0
          %1647 = vmatprep.subr.mxu0 0.0
          %1648 = vmatpush2.msra.mxu0 0.0
          %1649 = vmatprep.subr.mxu0 0.0
          %1650 = vmatpush2.msra.mxu0 0.0
          %1651 = vmatprep.subr.mxu0 0.0
          %1652 = vmatpush2.msra.mxu0 0.0
          %1653 = vmatprep.subr.mxu0 0.0
          %1654 = vmatpush2.msra.mxu0 0.0
          %1655 = vmatprep.subr.mxu0 0.0
          %1656 = vmatpush2.msra.mxu0 0.0
          %1657 = vmatprep.subr.mxu0 0.0
          %1658 = vmatpush2.msra.mxu0 0.0
          %1659 = vmatprep.subr.mxu0 0.0
          %1660 = vmatpush2.msra.mxu0 0.0
          %1661 = vmatprep.subr.mxu0 0.0
          %1662 = vmatpush2.msra.mxu0 0.0
          %1663 = vmatprep.subr.mxu0 0.0
          %1664 = vmatpush2.msra.mxu0 0.0
          %1665 = vmatprep.subr.mxu0 0.0
          %1666 = vmatpush2.msra.mxu0 0.0
          %1667 = vmatprep.subr.mxu0 0.0
          %1668 = vmatpush2.msra.mxu0 0.0
          %1669 = vmatprep.subr.mxu0 0.0
          %1670 = vmatpush2.msra.mxu0 0.0
          %1671 = vmatprep.subr.mxu0 0.0
          %1672 = vmatpush2.msra.mxu0 0.0
          %1673 = vmatprep.subr.mxu0 0.0
          %1674 = vmatpush2.msra.mxu0 0.0
          %1675 = vmatprep.mubr.f32.mxu0 0.0
          %1676 = vmatmul.mubr.f32.gmra.mxu0 %v1609
          %v1677 = vpop.f32.mrf.mxu0
          %v1678 = vadd.f32 0.0, %v1677
          %v1679 = vpop.f32.mrf.mxu0
          %v1680 = vadd.f32 0.0, %v1679
          %1681 = vdwg.mxu0
          %v1682 = vadd.f32 %v1586, %v1678
          %v1683 = vadd.f32 %v1586, %v1680
          %v1685 = vsel %vm1607, %v698, 0
          %1687 = vmatprep.subr.mxu0 0.0
          %1688 = vmatpush1.msra.mxu0 0.0
          %1689 = vmatprep.subr.mxu0 0.0
          %1690 = vmatpush1.msra.mxu0 0.0
          %1691 = vmatprep.subr.mxu0 0.0
          %1692 = vmatpush1.msra.mxu0 0.0
          %1693 = vmatprep.subr.mxu0 0.0
          %1694 = vmatpush1.msra.mxu0 0.0
          %1695 = vmatprep.subr.mxu0 0.0
          %1696 = vmatpush1.msra.mxu0 0.0
          %1697 = vmatprep.subr.mxu0 0.0
          %1698 = vmatpush1.msra.mxu0 0.0
          %1699 = vmatprep.subr.mxu0 0.0
          %1700 = vmatpush1.msra.mxu0 0.0
          %1701 = vmatprep.subr.mxu0 0.0
          %1702 = vmatpush1.msra.mxu0 0.0
          %1703 = vmatprep.subr.mxu0 0.0
          %1704 = vmatpush1.msra.mxu0 0.0
          %1705 = vmatprep.subr.mxu0 0.0
          %1706 = vmatpush1.msra.mxu0 0.0
          %1707 = vmatprep.subr.mxu0 0.0
          %1708 = vmatpush1.msra.mxu0 0.0
          %1709 = vmatprep.subr.mxu0 0.0
          %1710 = vmatpush1.msra.mxu0 0.0
          %1711 = vmatprep.subr.mxu0 0.0
          %1712 = vmatpush1.msra.mxu0 0.0
          %1713 = vmatprep.subr.mxu0 0.0
          %1714 = vmatpush1.msra.mxu0 0.0
          %1715 = vmatprep.subr.mxu0 0.0
          %1716 = vmatpush1.msra.mxu0 0.0
          %1717 = vmatprep.subr.mxu0 %v1591
          %1718 = vmatpush1.msra.mxu0 %v1592
          %1719 = vmatprep.subr.mxu0 0.0
          %1720 = vmatpush2.msra.mxu0 0.0
          %1721 = vmatprep.subr.mxu0 0.0
          %1722 = vmatpush2.msra.mxu0 0.0
          %1723 = vmatprep.subr.mxu0 0.0
          %1724 = vmatpush2.msra.mxu0 0.0
          %1725 = vmatprep.subr.mxu0 0.0
          %1726 = vmatpush2.msra.mxu0 0.0
          %1727 = vmatprep.subr.mxu0 0.0
          %1728 = vmatpush2.msra.mxu0 0.0
          %1729 = vmatprep.subr.mxu0 0.0
          %1730 = vmatpush2.msra.mxu0 0.0
          %1731 = vmatprep.subr.mxu0 0.0
          %1732 = vmatpush2.msra.mxu0 0.0
          %1733 = vmatprep.subr.mxu0 0.0
          %1734 = vmatpush2.msra.mxu0 0.0
          %1735 = vmatprep.subr.mxu0 0.0
          %1736 = vmatpush2.msra.mxu0 0.0
          %1737 = vmatprep.subr.mxu0 0.0
          %1738 = vmatpush2.msra.mxu0 0.0
          %1739 = vmatprep.subr.mxu0 0.0
          %1740 = vmatpush2.msra.mxu0 0.0
          %1741 = vmatprep.subr.mxu0 0.0
          %1742 = vmatpush2.msra.mxu0 0.0
          %1743 = vmatprep.subr.mxu0 0.0
          %1744 = vmatpush2.msra.mxu0 0.0
          %1745 = vmatprep.subr.mxu0 0.0
          %1746 = vmatpush2.msra.mxu0 0.0
          %1747 = vmatprep.subr.mxu0 0.0
          %1748 = vmatpush2.msra.mxu0 0.0
          %1749 = vmatprep.subr.mxu0 0.0
          %1750 = vmatpush2.msra.mxu0 0.0
          %1751 = vmatprep.mubr.f32.mxu0 0.0
          %1752 = vmatmul.mubr.f32.gmra.mxu0 %v1685
          %v1753 = vpop.f32.mrf.mxu0
          %v1754 = vadd.f32 0.0, %v1753
          %v1755 = vpop.f32.mrf.mxu0
          %v1756 = vadd.f32 0.0, %v1755
          %1757 = vdwg.mxu0
          %v1758 = vadd.f32 %v1682, %v1754
          %v1759 = vadd.f32 %v1683, %v1756
          %1760 = vrot.lane.b32.xlu0 %v1592, 127
          %v1761 = vpop.permute.xlu0 %1760
          %1762 = vrot.lane.b32.xlu0 %v1591, 127
          %v1763 = vpop.permute.xlu0 %1762
          %v1764 = vsel %vm926, %v1761, %v1763
          %v1765 = vsel %vm926, %v1763, %v1761
          %1766 = vrot.lane.b32.xlu0 %v1592, 15
          %v1767 = vpop.permute.xlu0 %1766
          %1768 = vrot.lane.b32.xlu0 %v1591, 15
          %v1769 = vpop.permute.xlu0 %1768
          %v1770 = vsel %vm933, %v1767, %v1769
          %v1771 = vsel %vm933, %v1769, %v1767
          %v1772 = vsel %vm938, %v1771, %v1764
          %v1773 = vsel %vm939, %v1770, %v1765
          %v1775 = vsel %vm1607, %v700, 0
          %1777 = vmatprep.subr.mxu0 0.0
          %1778 = vmatpush1.msra.mxu0 0.0
          %1779 = vmatprep.subr.mxu0 0.0
          %1780 = vmatpush1.msra.mxu0 0.0
          %1781 = vmatprep.subr.mxu0 0.0
          %1782 = vmatpush1.msra.mxu0 0.0
          %1783 = vmatprep.subr.mxu0 0.0
          %1784 = vmatpush1.msra.mxu0 0.0
          %1785 = vmatprep.subr.mxu0 0.0
          %1786 = vmatpush1.msra.mxu0 0.0
          %1787 = vmatprep.subr.mxu0 0.0
          %1788 = vmatpush1.msra.mxu0 0.0
          %1789 = vmatprep.subr.mxu0 0.0
          %1790 = vmatpush1.msra.mxu0 0.0
          %1791 = vmatprep.subr.mxu0 0.0
          %1792 = vmatpush1.msra.mxu0 0.0
          %1793 = vmatprep.subr.mxu0 0.0
          %1794 = vmatpush1.msra.mxu0 0.0
          %1795 = vmatprep.subr.mxu0 0.0
          %1796 = vmatpush1.msra.mxu0 0.0
          %1797 = vmatprep.subr.mxu0 0.0
          %1798 = vmatpush1.msra.mxu0 0.0
          %1799 = vmatprep.subr.mxu0 0.0
          %1800 = vmatpush1.msra.mxu0 0.0
          %1801 = vmatprep.subr.mxu0 0.0
          %1802 = vmatpush1.msra.mxu0 0.0
          %1803 = vmatprep.subr.mxu0 0.0
          %1804 = vmatpush1.msra.mxu0 0.0
          %1805 = vmatprep.subr.mxu0 0.0
          %1806 = vmatpush1.msra.mxu0 0.0
          %1807 = vmatprep.subr.mxu0 %v1773
          %1808 = vmatpush1.msra.mxu0 %v1772
          %1809 = vmatprep.subr.mxu0 0.0
          %1810 = vmatpush2.msra.mxu0 0.0
          %1811 = vmatprep.subr.mxu0 0.0
          %1812 = vmatpush2.msra.mxu0 0.0
          %1813 = vmatprep.subr.mxu0 0.0
          %1814 = vmatpush2.msra.mxu0 0.0
          %1815 = vmatprep.subr.mxu0 0.0
          %1816 = vmatpush2.msra.mxu0 0.0
          %1817 = vmatprep.subr.mxu0 0.0
          %1818 = vmatpush2.msra.mxu0 0.0
          %1819 = vmatprep.subr.mxu0 0.0
          %1820 = vmatpush2.msra.mxu0 0.0
          %1821 = vmatprep.subr.mxu0 0.0
          %1822 = vmatpush2.msra.mxu0 0.0
          %1823 = vmatprep.subr.mxu0 0.0
          %1824 = vmatpush2.msra.mxu0 0.0
          %1825 = vmatprep.subr.mxu0 0.0
          %1826 = vmatpush2.msra.mxu0 0.0
          %1827 = vmatprep.subr.mxu0 0.0
          %1828 = vmatpush2.msra.mxu0 0.0
          %1829 = vmatprep.subr.mxu0 0.0
          %1830 = vmatpush2.msra.mxu0 0.0
          %1831 = vmatprep.subr.mxu0 0.0
          %1832 = vmatpush2.msra.mxu0 0.0
          %1833 = vmatprep.subr.mxu0 0.0
          %1834 = vmatpush2.msra.mxu0 0.0
          %1835 = vmatprep.subr.mxu0 0.0
          %1836 = vmatpush2.msra.mxu0 0.0
          %1837 = vmatprep.subr.mxu0 0.0
          %1838 = vmatpush2.msra.mxu0 0.0
          %1839 = vmatprep.subr.mxu0 0.0
          %1840 = vmatpush2.msra.mxu0 0.0
          %1841 = vmatprep.mubr.f32.mxu0 0.0
          %1842 = vmatmul.mubr.f32.gmra.mxu0 %v1775
          %v1843 = vpop.f32.mrf.mxu0
          %v1844 = vadd.f32 0.0, %v1843
          %v1845 = vpop.f32.mrf.mxu0
          %v1846 = vadd.f32 0.0, %v1845
          %1847 = vdwg.mxu0
          %v1848 = vadd.f32 %v1758, %v1844
          %v1849 = vadd.f32 %v1759, %v1846
          %1850 = vrot.lane.b32.xlu0 %v1579, 1
          %v1851 = vpop.permute.xlu0 %1850
          %1852 = vrot.lane.b32.xlu0 %v1580, 1
          %v1853 = vpop.permute.xlu0 %1852
          %v1854 = vsel %vm740, %v1851, %v1853
          %v1855 = vsel %vm740, %v1853, %v1851
          %1856 = vrot.lane.b32.xlu0 %v1579, 113
          %v1857 = vpop.permute.xlu0 %1856
          %1858 = vrot.lane.b32.xlu0 %v1580, 113
          %v1859 = vpop.permute.xlu0 %1858
          %v1860 = vsel %vm747, %v1857, %v1859
          %v1861 = vsel %vm747, %v1859, %v1857
          %v1862 = vsel %vm752, %v1860, %v1855
          %v1863 = vsel %vm753, %v1861, %v1854
          %v1865 = vsel %vm1607, %v702, 0
          %1867 = vmatprep.subr.mxu0 0.0
          %1868 = vmatpush1.msra.mxu0 0.0
          %1869 = vmatprep.subr.mxu0 0.0
          %1870 = vmatpush1.msra.mxu0 0.0
          %1871 = vmatprep.subr.mxu0 0.0
          %1872 = vmatpush1.msra.mxu0 0.0
          %1873 = vmatprep.subr.mxu0 0.0
          %1874 = vmatpush1.msra.mxu0 0.0
          %1875 = vmatprep.subr.mxu0 0.0
          %1876 = vmatpush1.msra.mxu0 0.0
          %1877 = vmatprep.subr.mxu0 0.0
          %1878 = vmatpush1.msra.mxu0 0.0
          %1879 = vmatprep.subr.mxu0 0.0
          %1880 = vmatpush1.msra.mxu0 0.0
          %1881 = vmatprep.subr.mxu0 0.0
          %1882 = vmatpush1.msra.mxu0 0.0
          %1883 = vmatprep.subr.mxu0 0.0
          %1884 = vmatpush1.msra.mxu0 0.0
          %1885 = vmatprep.subr.mxu0 0.0
          %1886 = vmatpush1.msra.mxu0 0.0
          %1887 = vmatprep.subr.mxu0 0.0
          %1888 = vmatpush1.msra.mxu0 0.0
          %1889 = vmatprep.subr.mxu0 0.0
          %1890 = vmatpush1.msra.mxu0 0.0
          %1891 = vmatprep.subr.mxu0 0.0
          %1892 = vmatpush1.msra.mxu0 0.0
          %1893 = vmatprep.subr.mxu0 0.0
          %1894 = vmatpush1.msra.mxu0 0.0
          %1895 = vmatprep.subr.mxu0 0.0
          %1896 = vmatpush1.msra.mxu0 0.0
          %1897 = vmatprep.subr.mxu0 %v1863
          %1898 = vmatpush1.msra.mxu0 %v1862
          %1899 = vmatprep.subr.mxu0 0.0
          %1900 = vmatpush2.msra.mxu0 0.0
          %1901 = vmatprep.subr.mxu0 0.0
          %1902 = vmatpush2.msra.mxu0 0.0
          %1903 = vmatprep.subr.mxu0 0.0
          %1904 = vmatpush2.msra.mxu0 0.0
          %1905 = vmatprep.subr.mxu0 0.0
          %1906 = vmatpush2.msra.mxu0 0.0
          %1907 = vmatprep.subr.mxu0 0.0
          %1908 = vmatpush2.msra.mxu0 0.0
          %1909 = vmatprep.subr.mxu0 0.0
          %1910 = vmatpush2.msra.mxu0 0.0
          %1911 = vmatprep.subr.mxu0 0.0
          %1912 = vmatpush2.msra.mxu0 0.0
          %1913 = vmatprep.subr.mxu0 0.0
          %1914 = vmatpush2.msra.mxu0 0.0
          %1915 = vmatprep.subr.mxu0 0.0
          %1916 = vmatpush2.msra.mxu0 0.0
          %1917 = vmatprep.subr.mxu0 0.0
          %1918 = vmatpush2.msra.mxu0 0.0
          %1919 = vmatprep.subr.mxu0 0.0
          %1920 = vmatpush2.msra.mxu0 0.0
          %1921 = vmatprep.subr.mxu0 0.0
          %1922 = vmatpush2.msra.mxu0 0.0
          %1923 = vmatprep.subr.mxu0 0.0
          %1924 = vmatpush2.msra.mxu0 0.0
          %1925 = vmatprep.subr.mxu0 0.0
          %1926 = vmatpush2.msra.mxu0 0.0
          %1927 = vmatprep.subr.mxu0 0.0
          %1928 = vmatpush2.msra.mxu0 0.0
          %1929 = vmatprep.subr.mxu0 0.0
          %1930 = vmatpush2.msra.mxu0 0.0
          %1931 = vmatprep.mubr.f32.mxu0 0.0
          %1932 = vmatmul.mubr.f32.gmra.mxu0 %v1865
          %v1933 = vpop.f32.mrf.mxu0
          %v1934 = vadd.f32 0.0, %v1933
          %v1935 = vpop.f32.mrf.mxu0
          %v1936 = vadd.f32 0.0, %v1935
          %1937 = vdwg.mxu0
          %v1938 = vadd.f32 %v1848, %v1934
          %v1939 = vadd.f32 %v1849, %v1936
          %v1941 = vsel %vm1607, %v704, 0
          %1943 = vmatprep.subr.mxu0 0.0
          %1944 = vmatpush1.msra.mxu0 0.0
          %1945 = vmatprep.subr.mxu0 0.0
          %1946 = vmatpush1.msra.mxu0 0.0
          %1947 = vmatprep.subr.mxu0 0.0
          %1948 = vmatpush1.msra.mxu0 0.0
          %1949 = vmatprep.subr.mxu0 0.0
          %1950 = vmatpush1.msra.mxu0 0.0
          %1951 = vmatprep.subr.mxu0 0.0
          %1952 = vmatpush1.msra.mxu0 0.0
          %1953 = vmatprep.subr.mxu0 0.0
          %1954 = vmatpush1.msra.mxu0 0.0
          %1955 = vmatprep.subr.mxu0 0.0
          %1956 = vmatpush1.msra.mxu0 0.0
          %1957 = vmatprep.subr.mxu0 0.0
          %1958 = vmatpush1.msra.mxu0 0.0
          %1959 = vmatprep.subr.mxu0 0.0
          %1960 = vmatpush1.msra.mxu0 0.0
          %1961 = vmatprep.subr.mxu0 0.0
          %1962 = vmatpush1.msra.mxu0 0.0
          %1963 = vmatprep.subr.mxu0 0.0
          %1964 = vmatpush1.msra.mxu0 0.0
          %1965 = vmatprep.subr.mxu0 0.0
          %1966 = vmatpush1.msra.mxu0 0.0
          %1967 = vmatprep.subr.mxu0 0.0
          %1968 = vmatpush1.msra.mxu0 0.0
          %1969 = vmatprep.subr.mxu0 0.0
          %1970 = vmatpush1.msra.mxu0 0.0
          %1971 = vmatprep.subr.mxu0 0.0
          %1972 = vmatpush1.msra.mxu0 0.0
          %1973 = vmatprep.subr.mxu0 %v1580
          %1974 = vmatpush1.msra.mxu0 %v1579
          %1975 = vmatprep.subr.mxu0 0.0
          %1976 = vmatpush2.msra.mxu0 0.0
          %1977 = vmatprep.subr.mxu0 0.0
          %1978 = vmatpush2.msra.mxu0 0.0
          %1979 = vmatprep.subr.mxu0 0.0
          %1980 = vmatpush2.msra.mxu0 0.0
          %1981 = vmatprep.subr.mxu0 0.0
          %1982 = vmatpush2.msra.mxu0 0.0
          %1983 = vmatprep.subr.mxu0 0.0
          %1984 = vmatpush2.msra.mxu0 0.0
          %1985 = vmatprep.subr.mxu0 0.0
          %1986 = vmatpush2.msra.mxu0 0.0
          %1987 = vmatprep.subr.mxu0 0.0
          %1988 = vmatpush2.msra.mxu0 0.0
          %1989 = vmatprep.subr.mxu0 0.0
          %1990 = vmatpush2.msra.mxu0 0.0
          %1991 = vmatprep.subr.mxu0 0.0
          %1992 = vmatpush2.msra.mxu0 0.0
          %1993 = vmatprep.subr.mxu0 0.0
          %1994 = vmatpush2.msra.mxu0 0.0
          %1995 = vmatprep.subr.mxu0 0.0
          %1996 = vmatpush2.msra.mxu0 0.0
          %1997 = vmatprep.subr.mxu0 0.0
          %1998 = vmatpush2.msra.mxu0 0.0
          %1999 = vmatprep.subr.mxu0 0.0
          %2000 = vmatpush2.msra.mxu0 0.0
          %2001 = vmatprep.subr.mxu0 0.0
          %2002 = vmatpush2.msra.mxu0 0.0
          %2003 = vmatprep.subr.mxu0 0.0
          %2004 = vmatpush2.msra.mxu0 0.0
          %2005 = vmatprep.subr.mxu0 0.0
          %2006 = vmatpush2.msra.mxu0 0.0
          %2007 = vmatprep.mubr.f32.mxu0 0.0
          %2008 = vmatmul.mubr.f32.gmra.mxu0 %v1941
          %v2009 = vpop.f32.mrf.mxu0
          %v2010 = vadd.f32 0.0, %v2009
          %v2011 = vpop.f32.mrf.mxu0
          %v2012 = vadd.f32 0.0, %v2011
          %2013 = vdwg.mxu0
          %v2014 = vadd.f32 %v1938, %v2010
          %v2015 = vadd.f32 %v1939, %v2012
          %2016 = vrot.lane.b32.xlu0 %v1579, 127
          %v2017 = vpop.permute.xlu0 %2016
          %2018 = vrot.lane.b32.xlu0 %v1580, 127
          %v2019 = vpop.permute.xlu0 %2018
          %v2020 = vsel %vm926, %v2017, %v2019
          %v2021 = vsel %vm926, %v2019, %v2017
          %2022 = vrot.lane.b32.xlu0 %v1579, 15
          %v2023 = vpop.permute.xlu0 %2022
          %2024 = vrot.lane.b32.xlu0 %v1580, 15
          %v2025 = vpop.permute.xlu0 %2024
          %v2026 = vsel %vm933, %v2023, %v2025
          %v2027 = vsel %vm933, %v2025, %v2023
          %v2028 = vsel %vm938, %v2027, %v2020
          %v2029 = vsel %vm939, %v2026, %v2021
          %v2031 = vsel %vm1607, %v706, 0
          %2033 = vmatprep.subr.mxu0 0.0
          %2034 = vmatpush1.msra.mxu0 0.0
          %2035 = vmatprep.subr.mxu0 0.0
          %2036 = vmatpush1.msra.mxu0 0.0
          %2037 = vmatprep.subr.mxu0 0.0
          %2038 = vmatpush1.msra.mxu0 0.0
          %2039 = vmatprep.subr.mxu0 0.0
          %2040 = vmatpush1.msra.mxu0 0.0
          %2041 = vmatprep.subr.mxu0 0.0
          %2042 = vmatpush1.msra.mxu0 0.0
          %2043 = vmatprep.subr.mxu0 0.0
          %2044 = vmatpush1.msra.mxu0 0.0
          %2045 = vmatprep.subr.mxu0 0.0
          %2046 = vmatpush1.msra.mxu0 0.0
          %2047 = vmatprep.subr.mxu0 0.0
          %2048 = vmatpush1.msra.mxu0 0.0
          %2049 = vmatprep.subr.mxu0 0.0
          %2050 = vmatpush1.msra.mxu0 0.0
          %2051 = vmatprep.subr.mxu0 0.0
          %2052 = vmatpush1.msra.mxu0 0.0
          %2053 = vmatprep.subr.mxu0 0.0
          %2054 = vmatpush1.msra.mxu0 0.0
          %2055 = vmatprep.subr.mxu0 0.0
          %2056 = vmatpush1.msra.mxu0 0.0
          %2057 = vmatprep.subr.mxu0 0.0
          %2058 = vmatpush1.msra.mxu0 0.0
          %2059 = vmatprep.subr.mxu0 0.0
          %2060 = vmatpush1.msra.mxu0 0.0
          %2061 = vmatprep.subr.mxu0 0.0
          %2062 = vmatpush1.msra.mxu0 0.0
          %2063 = vmatprep.subr.mxu0 %v2029
          %2064 = vmatpush1.msra.mxu0 %v2028
          %2065 = vmatprep.subr.mxu0 0.0
          %2066 = vmatpush2.msra.mxu0 0.0
          %2067 = vmatprep.subr.mxu0 0.0
          %2068 = vmatpush2.msra.mxu0 0.0
          %2069 = vmatprep.subr.mxu0 0.0
          %2070 = vmatpush2.msra.mxu0 0.0
          %2071 = vmatprep.subr.mxu0 0.0
          %2072 = vmatpush2.msra.mxu0 0.0
          %2073 = vmatprep.subr.mxu0 0.0
          %2074 = vmatpush2.msra.mxu0 0.0
          %2075 = vmatprep.subr.mxu0 0.0
          %2076 = vmatpush2.msra.mxu0 0.0
          %2077 = vmatprep.subr.mxu0 0.0
          %2078 = vmatpush2.msra.mxu0 0.0
          %2079 = vmatprep.subr.mxu0 0.0
          %2080 = vmatpush2.msra.mxu0 0.0
          %2081 = vmatprep.subr.mxu0 0.0
          %2082 = vmatpush2.msra.mxu0 0.0
          %2083 = vmatprep.subr.mxu0 0.0
          %2084 = vmatpush2.msra.mxu0 0.0
          %2085 = vmatprep.subr.mxu0 0.0
          %2086 = vmatpush2.msra.mxu0 0.0
          %2087 = vmatprep.subr.mxu0 0.0
          %2088 = vmatpush2.msra.mxu0 0.0
          %2089 = vmatprep.subr.mxu0 0.0
          %2090 = vmatpush2.msra.mxu0 0.0
          %2091 = vmatprep.subr.mxu0 0.0
          %2092 = vmatpush2.msra.mxu0 0.0
          %2093 = vmatprep.subr.mxu0 0.0
          %2094 = vmatpush2.msra.mxu0 0.0
          %2095 = vmatprep.subr.mxu0 0.0
          %2096 = vmatpush2.msra.mxu0 0.0
          %2097 = vmatprep.mubr.f32.mxu0 0.0
          %2098 = vmatmul.mubr.f32.gmra.mxu0 %v2031
          %v2099 = vpop.f32.mrf.mxu0
          %v2100 = vadd.f32 0.0, %v2099
          %v2101 = vpop.f32.mrf.mxu0
          %v2102 = vadd.f32 0.0, %v2101
          %2103 = vdwg.mxu0
          %v2104 = vadd.f32 %v2014, %v2100
          %v2105 = vadd.f32 %v2015, %v2102
          %2106 = vrot.lane.b32.xlu0 %v1579, 112
          %v2107 = vpop.permute.xlu0 %2106
          %2108 = vrot.lane.b32.xlu0 %v1580, 112
          %v2109 = vpop.permute.xlu0 %2108
          %v2110 = vsel %vm1302, %v2107, %v2109
          %v2111 = vsel %vm1302, %v2109, %v2107
          %2112 = vrot.lane.b32.xlu0 %v2110, 1
          %v2113 = vpop.permute.xlu0 %2112
          %2114 = vrot.lane.b32.xlu0 %v2111, 1
          %v2115 = vpop.permute.xlu0 %2114
          %v2116 = vsel %vm740, %v2113, %v2115
          %v2117 = vsel %vm740, %v2115, %v2113
          %2118 = vrot.lane.b32.xlu0 %v2110, 113
          %v2119 = vpop.permute.xlu0 %2118
          %2120 = vrot.lane.b32.xlu0 %v2111, 113
          %v2121 = vpop.permute.xlu0 %2120
          %v2122 = vsel %vm747, %v2119, %v2121
          %v2123 = vsel %vm747, %v2121, %v2119
          %v2124 = vsel %vm752, %v2122, %v2117
          %v2125 = vsel %vm753, %v2123, %v2116
          %v2127 = vsel %vm1607, %v708, 0
          %2129 = vmatprep.subr.mxu0 0.0
          %2130 = vmatpush1.msra.mxu0 0.0
          %2131 = vmatprep.subr.mxu0 0.0
          %2132 = vmatpush1.msra.mxu0 0.0
          %2133 = vmatprep.subr.mxu0 0.0
          %2134 = vmatpush1.msra.mxu0 0.0
          %2135 = vmatprep.subr.mxu0 0.0
          %2136 = vmatpush1.msra.mxu0 0.0
          %2137 = vmatprep.subr.mxu0 0.0
          %2138 = vmatpush1.msra.mxu0 0.0
          %2139 = vmatprep.subr.mxu0 0.0
          %2140 = vmatpush1.msra.mxu0 0.0
          %2141 = vmatprep.subr.mxu0 0.0
          %2142 = vmatpush1.msra.mxu0 0.0
          %2143 = vmatprep.subr.mxu0 0.0
          %2144 = vmatpush1.msra.mxu0 0.0
          %2145 = vmatprep.subr.mxu0 0.0
          %2146 = vmatpush1.msra.mxu0 0.0
          %2147 = vmatprep.subr.mxu0 0.0
          %2148 = vmatpush1.msra.mxu0 0.0
          %2149 = vmatprep.subr.mxu0 0.0
          %2150 = vmatpush1.msra.mxu0 0.0
          %2151 = vmatprep.subr.mxu0 0.0
          %2152 = vmatpush1.msra.mxu0 0.0
          %2153 = vmatprep.subr.mxu0 0.0
          %2154 = vmatpush1.msra.mxu0 0.0
          %2155 = vmatprep.subr.mxu0 0.0
          %2156 = vmatpush1.msra.mxu0 0.0
          %2157 = vmatprep.subr.mxu0 0.0
          %2158 = vmatpush1.msra.mxu0 0.0
          %2159 = vmatprep.subr.mxu0 %v2125
          %2160 = vmatpush1.msra.mxu0 %v2124
          %2161 = vmatprep.subr.mxu0 0.0
          %2162 = vmatpush2.msra.mxu0 0.0
          %2163 = vmatprep.subr.mxu0 0.0
          %2164 = vmatpush2.msra.mxu0 0.0
          %2165 = vmatprep.subr.mxu0 0.0
          %2166 = vmatpush2.msra.mxu0 0.0
          %2167 = vmatprep.subr.mxu0 0.0
          %2168 = vmatpush2.msra.mxu0 0.0
          %2169 = vmatprep.subr.mxu0 0.0
          %2170 = vmatpush2.msra.mxu0 0.0
          %2171 = vmatprep.subr.mxu0 0.0
          %2172 = vmatpush2.msra.mxu0 0.0
          %2173 = vmatprep.subr.mxu0 0.0
          %2174 = vmatpush2.msra.mxu0 0.0
          %2175 = vmatprep.subr.mxu0 0.0
          %2176 = vmatpush2.msra.mxu0 0.0
          %2177 = vmatprep.subr.mxu0 0.0
          %2178 = vmatpush2.msra.mxu0 0.0
          %2179 = vmatprep.subr.mxu0 0.0
          %2180 = vmatpush2.msra.mxu0 0.0
          %2181 = vmatprep.subr.mxu0 0.0
          %2182 = vmatpush2.msra.mxu0 0.0
          %2183 = vmatprep.subr.mxu0 0.0
          %2184 = vmatpush2.msra.mxu0 0.0
          %2185 = vmatprep.subr.mxu0 0.0
          %2186 = vmatpush2.msra.mxu0 0.0
          %2187 = vmatprep.subr.mxu0 0.0
          %2188 = vmatpush2.msra.mxu0 0.0
          %2189 = vmatprep.subr.mxu0 0.0
          %2190 = vmatpush2.msra.mxu0 0.0
          %2191 = vmatprep.subr.mxu0 0.0
          %2192 = vmatpush2.msra.mxu0 0.0
          %2193 = vmatprep.mubr.f32.mxu0 0.0
          %2194 = vmatmul.mubr.f32.gmra.mxu0 %v2127
          %v2195 = vpop.f32.mrf.mxu0
          %v2196 = vadd.f32 0.0, %v2195
          %v2197 = vpop.f32.mrf.mxu0
          %v2198 = vadd.f32 0.0, %v2197
          %2199 = vdwg.mxu0
          %v2200 = vadd.f32 %v2104, %v2196
          %v2201 = vadd.f32 %v2105, %v2198
          %v2203 = vsel %vm1607, %v710, 0
          %2205 = vmatprep.subr.mxu0 0.0
          %2206 = vmatpush1.msra.mxu0 0.0
          %2207 = vmatprep.subr.mxu0 0.0
          %2208 = vmatpush1.msra.mxu0 0.0
          %2209 = vmatprep.subr.mxu0 0.0
          %2210 = vmatpush1.msra.mxu0 0.0
          %2211 = vmatprep.subr.mxu0 0.0
          %2212 = vmatpush1.msra.mxu0 0.0
          %2213 = vmatprep.subr.mxu0 0.0
          %2214 = vmatpush1.msra.mxu0 0.0
          %2215 = vmatprep.subr.mxu0 0.0
          %2216 = vmatpush1.msra.mxu0 0.0
          %2217 = vmatprep.subr.mxu0 0.0
          %2218 = vmatpush1.msra.mxu0 0.0
          %2219 = vmatprep.subr.mxu0 0.0
          %2220 = vmatpush1.msra.mxu0 0.0
          %2221 = vmatprep.subr.mxu0 0.0
          %2222 = vmatpush1.msra.mxu0 0.0
          %2223 = vmatprep.subr.mxu0 0.0
          %2224 = vmatpush1.msra.mxu0 0.0
          %2225 = vmatprep.subr.mxu0 0.0
          %2226 = vmatpush1.msra.mxu0 0.0
          %2227 = vmatprep.subr.mxu0 0.0
          %2228 = vmatpush1.msra.mxu0 0.0
          %2229 = vmatprep.subr.mxu0 0.0
          %2230 = vmatpush1.msra.mxu0 0.0
          %2231 = vmatprep.subr.mxu0 0.0
          %2232 = vmatpush1.msra.mxu0 0.0
          %2233 = vmatprep.subr.mxu0 0.0
          %2234 = vmatpush1.msra.mxu0 0.0
          %2235 = vmatprep.subr.mxu0 %v2111
          %2236 = vmatpush1.msra.mxu0 %v2110
          %2237 = vmatprep.subr.mxu0 0.0
          %2238 = vmatpush2.msra.mxu0 0.0
          %2239 = vmatprep.subr.mxu0 0.0
          %2240 = vmatpush2.msra.mxu0 0.0
          %2241 = vmatprep.subr.mxu0 0.0
          %2242 = vmatpush2.msra.mxu0 0.0
          %2243 = vmatprep.subr.mxu0 0.0
          %2244 = vmatpush2.msra.mxu0 0.0
          %2245 = vmatprep.subr.mxu0 0.0
          %2246 = vmatpush2.msra.mxu0 0.0
          %2247 = vmatprep.subr.mxu0 0.0
          %2248 = vmatpush2.msra.mxu0 0.0
          %2249 = vmatprep.subr.mxu0 0.0
          %2250 = vmatpush2.msra.mxu0 0.0
          %2251 = vmatprep.subr.mxu0 0.0
          %2252 = vmatpush2.msra.mxu0 0.0
          %2253 = vmatprep.subr.mxu0 0.0
          %2254 = vmatpush2.msra.mxu0 0.0
          %2255 = vmatprep.subr.mxu0 0.0
          %2256 = vmatpush2.msra.mxu0 0.0
          %2257 = vmatprep.subr.mxu0 0.0
          %2258 = vmatpush2.msra.mxu0 0.0
          %2259 = vmatprep.subr.mxu0 0.0
          %2260 = vmatpush2.msra.mxu0 0.0
          %2261 = vmatprep.subr.mxu0 0.0
          %2262 = vmatpush2.msra.mxu0 0.0
          %2263 = vmatprep.subr.mxu0 0.0
          %2264 = vmatpush2.msra.mxu0 0.0
          %2265 = vmatprep.subr.mxu0 0.0
          %2266 = vmatpush2.msra.mxu0 0.0
          %2267 = vmatprep.subr.mxu0 0.0
          %2268 = vmatpush2.msra.mxu0 0.0
          %2269 = vmatprep.mubr.f32.mxu0 0.0
          %2270 = vmatmul.mubr.f32.gmra.mxu0 %v2203
          %v2271 = vpop.f32.mrf.mxu0
          %v2272 = vadd.f32 0.0, %v2271
          %v2273 = vpop.f32.mrf.mxu0
          %v2274 = vadd.f32 0.0, %v2273
          %2275 = vdwg.mxu0
          %v2276 = vadd.f32 %v2200, %v2272
          %v2277 = vadd.f32 %v2201, %v2274
          %2278 = vrot.lane.b32.xlu0 %v2110, 127
          %v2279 = vpop.permute.xlu0 %2278
          %2280 = vrot.lane.b32.xlu0 %v2111, 127
          %v2281 = vpop.permute.xlu0 %2280
          %v2282 = vsel %vm926, %v2279, %v2281
          %v2283 = vsel %vm926, %v2281, %v2279
          %2284 = vrot.lane.b32.xlu0 %v2110, 15
          %v2285 = vpop.permute.xlu0 %2284
          %2286 = vrot.lane.b32.xlu0 %v2111, 15
          %v2287 = vpop.permute.xlu0 %2286
          %v2288 = vsel %vm933, %v2285, %v2287
          %v2289 = vsel %vm933, %v2287, %v2285
          %v2290 = vsel %vm938, %v2289, %v2282
          %v2291 = vsel %vm939, %v2288, %v2283
          %v2293 = vsel %vm1607, %v712, 0
          %2295 = vmatprep.subr.mxu0 0.0
          %2296 = vmatpush1.msra.mxu0 0.0
          %2297 = vmatprep.subr.mxu0 0.0
          %2298 = vmatpush1.msra.mxu0 0.0
          %2299 = vmatprep.subr.mxu0 0.0
          %2300 = vmatpush1.msra.mxu0 0.0
          %2301 = vmatprep.subr.mxu0 0.0
          %2302 = vmatpush1.msra.mxu0 0.0
          %2303 = vmatprep.subr.mxu0 0.0
          %2304 = vmatpush1.msra.mxu0 0.0
          %2305 = vmatprep.subr.mxu0 0.0
          %2306 = vmatpush1.msra.mxu0 0.0
          %2307 = vmatprep.subr.mxu0 0.0
          %2308 = vmatpush1.msra.mxu0 0.0
          %2309 = vmatprep.subr.mxu0 0.0
          %2310 = vmatpush1.msra.mxu0 0.0
          %2311 = vmatprep.subr.mxu0 0.0
          %2312 = vmatpush1.msra.mxu0 0.0
          %2313 = vmatprep.subr.mxu0 0.0
          %2314 = vmatpush1.msra.mxu0 0.0
          %2315 = vmatprep.subr.mxu0 0.0
          %2316 = vmatpush1.msra.mxu0 0.0
          %2317 = vmatprep.subr.mxu0 0.0
          %2318 = vmatpush1.msra.mxu0 0.0
          %2319 = vmatprep.subr.mxu0 0.0
          %2320 = vmatpush1.msra.mxu0 0.0
          %2321 = vmatprep.subr.mxu0 0.0
          %2322 = vmatpush1.msra.mxu0 0.0
          %2323 = vmatprep.subr.mxu0 0.0
          %2324 = vmatpush1.msra.mxu0 0.0
          %2325 = vmatprep.subr.mxu0 %v2291
          %2326 = vmatpush1.msra.mxu0 %v2290
          %2327 = vmatprep.subr.mxu0 0.0
          %2328 = vmatpush2.msra.mxu0 0.0
          %2329 = vmatprep.subr.mxu0 0.0
          %2330 = vmatpush2.msra.mxu0 0.0
          %2331 = vmatprep.subr.mxu0 0.0
          %2332 = vmatpush2.msra.mxu0 0.0
          %2333 = vmatprep.subr.mxu0 0.0
          %2334 = vmatpush2.msra.mxu0 0.0
          %2335 = vmatprep.subr.mxu0 0.0
          %2336 = vmatpush2.msra.mxu0 0.0
          %2337 = vmatprep.subr.mxu0 0.0
          %2338 = vmatpush2.msra.mxu0 0.0
          %2339 = vmatprep.subr.mxu0 0.0
          %2340 = vmatpush2.msra.mxu0 0.0
          %2341 = vmatprep.subr.mxu0 0.0
          %2342 = vmatpush2.msra.mxu0 0.0
          %2343 = vmatprep.subr.mxu0 0.0
          %2344 = vmatpush2.msra.mxu0 0.0
          %2345 = vmatprep.subr.mxu0 0.0
          %2346 = vmatpush2.msra.mxu0 0.0
          %2347 = vmatprep.subr.mxu0 0.0
          %2348 = vmatpush2.msra.mxu0 0.0
          %2349 = vmatprep.subr.mxu0 0.0
          %2350 = vmatpush2.msra.mxu0 0.0
          %2351 = vmatprep.subr.mxu0 0.0
          %2352 = vmatpush2.msra.mxu0 0.0
          %2353 = vmatprep.subr.mxu0 0.0
          %2354 = vmatpush2.msra.mxu0 0.0
          %2355 = vmatprep.subr.mxu0 0.0
          %2356 = vmatpush2.msra.mxu0 0.0
          %2357 = vmatprep.subr.mxu0 0.0
          %2358 = vmatpush2.msra.mxu0 0.0
          %2359 = vmatprep.mubr.f32.mxu0 0.0
          %2360 = vmatmul.mubr.f32.gmra.mxu0 %v2293
          %v2361 = vpop.f32.mrf.mxu0
          %v2362 = vadd.f32 0.0, %v2361
          %v2363 = vpop.f32.mrf.mxu0
          %v2364 = vadd.f32 0.0, %v2363
          %2365 = vdwg.mxu0
          %v2366 = vadd.f32 %v2276, %v2362
          %v2367 = vadd.f32 %v2277, %v2364
          %v2368 = vmul.f32 %v2366, 0.25
          %v2369 = vmul.f32 %v2367, 0.25
          %v2370 = vadd.f32 %v721, %v2368
          %v2371 = vadd.f32 %v722, %v2369
        $region73: #{_lambda_.3} parent=67 // loop_footer
          %s720 = sadd.s32 1, %s716
        $region74: #{_lambda_.3} parent=67 // loop_footer_branch
          %715 = sbr.rel target = $region70
        $region75: #{_lambda_.3} parent=67 // loop_exit
          _
        %v2372 = vld [vmem:[%s4] sm:$0xff]
        %v2373 = vld [vmem:[%s4 + $0x8] sm:$0xff]
        %v2374 = vld [vmem:[%s4 + $0x10] sm:$0xff]
        %v2375 = vld [vmem:[%s4 + $0x18] sm:$0xff]
        %v2376 = vld [vmem:[%s4 + $0x20] sm:$0xff]
        %v2377 = vld [vmem:[%s4 + $0x28] sm:$0xff]
        %v2378 = vld [vmem:[%s4 + $0x30] sm:$0xff]
        %v2379 = vld [vmem:[%s4 + $0x38] sm:$0xff]
        %v2380 = vld [vmem:[%s4 + $0x40] sm:$0xff]
        %v2381 = vld [vmem:[%s4 + $0x48] sm:$0xff]
        %v2382 = vld [vmem:[%s4 + $0x50] sm:$0xff]
        %v2383 = vld [vmem:[%s4 + $0x58] sm:$0xff]
        %v2384 = vld [vmem:[%s4 + $0x60] sm:$0xff]
        %v2385 = vld [vmem:[%s4 + $0x68] sm:$0xff]
        %v2386 = vld [vmem:[%s4 + $0x70] sm:$0xff]
        %v2387 = vld [vmem:[%s4 + $0x78] sm:$0xff]
        %v2388 = vld [vmem:[%s4 + $0x80] sm:$0xff]
        %v2389 = vld [vmem:[%s4 + $0x88] sm:$0xff]
        %v2390 = vld [vmem:[%s4 + $0x90] sm:$0xff]
        %v2391 = vld [vmem:[%s4 + $0x98] sm:$0xff]
        %v2392 = vld [vmem:[%s4 + $0xa0] sm:$0xff]
        %v2393 = vld [vmem:[%s4 + $0xa8] sm:$0xff]
        %v2394 = vld [vmem:[%s4 + $0xb0] sm:$0xff]
        %v2395 = vld [vmem:[%s4 + $0xb8] sm:$0xff]
        %v2396 = vld [vmem:[%s4 + $0xc0] sm:$0xff]
        %v2397 = vld [vmem:[%s4 + $0xc8] sm:$0xff]
        %v2398 = vld [vmem:[%s4 + $0xd0] sm:$0xff]
        %v2399 = vld [vmem:[%s4 + $0xd8] sm:$0xff]
        %v2400 = vld [vmem:[%s4 + $0xe0] sm:$0xff]
        %v2401 = vld [vmem:[%s4 + $0xe8] sm:$0xff]
        %v2402 = vld [vmem:[%s4 + $0xf0] sm:$0xff]
        %v2403 = vld [vmem:[%s4 + $0xf8] sm:$0xff]
        %2404 = vmatprep.subr.mxu0 0.0
        %2405 = vmatpush1.msra.mxu0 %v2387
        %2406 = vmatprep.subr.mxu0 0.0
        %2407 = vmatpush1.msra.mxu0 %v2386
        %2408 = vmatprep.subr.mxu0 0.0
        %2409 = vmatpush1.msra.mxu0 %v2385
        %2410 = vmatprep.subr.mxu0 0.0
        %2411 = vmatpush1.msra.mxu0 %v2384
        %2412 = vmatprep.subr.mxu0 0.0
        %2413 = vmatpush1.msra.mxu0 %v2383
        %2414 = vmatprep.subr.mxu0 0.0
        %2415 = vmatpush1.msra.mxu0 %v2382
        %2416 = vmatprep.subr.mxu0 0.0
        %2417 = vmatpush1.msra.mxu0 %v2381
        %2418 = vmatprep.subr.mxu0 0.0
        %2419 = vmatpush1.msra.mxu0 %v2380
        %2420 = vmatprep.subr.mxu0 0.0
        %2421 = vmatpush1.msra.mxu0 %v2379
        %2422 = vmatprep.subr.mxu0 0.0
        %2423 = vmatpush1.msra.mxu0 %v2378
        %2424 = vmatprep.subr.mxu0 0.0
        %2425 = vmatpush1.msra.mxu0 %v2377
        %2426 = vmatprep.subr.mxu0 0.0
        %2427 = vmatpush1.msra.mxu0 %v2376
        %2428 = vmatprep.subr.mxu0 0.0
        %2429 = vmatpush1.msra.mxu0 %v2375
        %2430 = vmatprep.subr.mxu0 0.0
        %2431 = vmatpush1.msra.mxu0 %v2374
        %2432 = vmatprep.subr.mxu0 0.0
        %2433 = vmatpush1.msra.mxu0 %v2373
        %2434 = vmatprep.subr.mxu0 0.0
        %2435 = vmatpush1.msra.mxu0 %v2372
        %2436 = vmatprep.subr.mxu0 0.0
        %2437 = vmatpush2.msra.mxu0 %v2403
        %2438 = vmatprep.subr.mxu0 0.0
        %2439 = vmatpush2.msra.mxu0 %v2402
        %2440 = vmatprep.subr.mxu0 0.0
        %2441 = vmatpush2.msra.mxu0 %v2401
        %2442 = vmatprep.subr.mxu0 0.0
        %2443 = vmatpush2.msra.mxu0 %v2400
        %2444 = vmatprep.subr.mxu0 0.0
        %2445 = vmatpush2.msra.mxu0 %v2399
        %2446 = vmatprep.subr.mxu0 0.0
        %2447 = vmatpush2.msra.mxu0 %v2398
        %2448 = vmatprep.subr.mxu0 0.0
        %2449 = vmatpush2.msra.mxu0 %v2397
        %2450 = vmatprep.subr.mxu0 0.0
        %2451 = vmatpush2.msra.mxu0 %v2396
        %2452 = vmatprep.subr.mxu0 0.0
        %2453 = vmatpush2.msra.mxu0 %v2395
        %2454 = vmatprep.subr.mxu0 0.0
        %2455 = vmatpush2.msra.mxu0 %v2394
        %2456 = vmatprep.subr.mxu0 0.0
        %2457 = vmatpush2.msra.mxu0 %v2393
        %2458 = vmatprep.subr.mxu0 0.0
        %2459 = vmatpush2.msra.mxu0 %v2392
        %2460 = vmatprep.subr.mxu0 0.0
        %2461 = vmatpush2.msra.mxu0 %v2391
        %2462 = vmatprep.subr.mxu0 0.0
        %2463 = vmatpush2.msra.mxu0 %v2390
        %2464 = vmatprep.subr.mxu0 0.0
        %2465 = vmatpush2.msra.mxu0 %v2389
        %2466 = vmatprep.subr.mxu0 0.0
        %2467 = vmatpush2.msra.mxu0 %v2388
        %2468 = vmatprep.mubr.f32.mxu0 %v722
        %2469 = vmatmul.mubr.f32.gmra.mxu0 %v721
        %v2470 = vpop.f32.mrf.mxu0
        %v2471 = vadd.f32 0.0, %v2470
        %v2472 = vpop.f32.mrf.mxu0
        %2473 = vdwg.mxu0
        %v2474 = vld [vmem:[%s5] sm:$0xff]
        %v2475 = vld [vmem:[%s5 + $0x8] sm:$0xff]
        %v2476 = vld [vmem:[%s5 + $0x10] sm:$0xff]
        %v2477 = vld [vmem:[%s5 + $0x18] sm:$0xff]
        %v2478 = vld [vmem:[%s5 + $0x20] sm:$0xff]
        %v2479 = vld [vmem:[%s5 + $0x28] sm:$0xff]
        %v2480 = vld [vmem:[%s5 + $0x30] sm:$0xff]
        %v2481 = vld [vmem:[%s5 + $0x38] sm:$0xff]
        %v2482 = vld [vmem:[%s5 + $0x40] sm:$0xff]
        %v2483 = vld [vmem:[%s5 + $0x48] sm:$0xff]
        %v2484 = vld [vmem:[%s5 + $0x50] sm:$0xff]
        %v2485 = vld [vmem:[%s5 + $0x58] sm:$0xff]
        %v2486 = vld [vmem:[%s5 + $0x60] sm:$0xff]
        %v2487 = vld [vmem:[%s5 + $0x68] sm:$0xff]
        %v2488 = vld [vmem:[%s5 + $0x70] sm:$0xff]
        %v2489 = vld [vmem:[%s5 + $0x78] sm:$0xff]
        %v2490 = vld [vmem:[%s5 + $0x80] sm:$0xff]
        %v2491 = vld [vmem:[%s5 + $0x88] sm:$0xff]
        %v2492 = vld [vmem:[%s5 + $0x90] sm:$0xff]
        %v2493 = vld [vmem:[%s5 + $0x98] sm:$0xff]
        %v2494 = vld [vmem:[%s5 + $0xa0] sm:$0xff]
        %v2495 = vld [vmem:[%s5 + $0xa8] sm:$0xff]
        %v2496 = vld [vmem:[%s5 + $0xb0] sm:$0xff]
        %v2497 = vld [vmem:[%s5 + $0xb8] sm:$0xff]
        %v2498 = vld [vmem:[%s5 + $0xc0] sm:$0xff]
        %v2499 = vld [vmem:[%s5 + $0xc8] sm:$0xff]
        %v2500 = vld [vmem:[%s5 + $0xd0] sm:$0xff]
        %v2501 = vld [vmem:[%s5 + $0xd8] sm:$0xff]
        %v2502 = vld [vmem:[%s5 + $0xe0] sm:$0xff]
        %v2503 = vld [vmem:[%s5 + $0xe8] sm:$0xff]
        %v2504 = vld [vmem:[%s5 + $0xf0] sm:$0xff]
        %v2505 = vld [vmem:[%s5 + $0xf8] sm:$0xff]
        %2506 = vmatprep.subr.mxu0 0.0
        %2507 = vmatpush1.msra.mxu0 %v2489
        %2508 = vmatprep.subr.mxu0 0.0
        %2509 = vmatpush1.msra.mxu0 %v2488
        %2510 = vmatprep.subr.mxu0 0.0
        %2511 = vmatpush1.msra.mxu0 %v2487
        %2512 = vmatprep.subr.mxu0 0.0
        %2513 = vmatpush1.msra.mxu0 %v2486
        %2514 = vmatprep.subr.mxu0 0.0
        %2515 = vmatpush1.msra.mxu0 %v2485
        %2516 = vmatprep.subr.mxu0 0.0
        %2517 = vmatpush1.msra.mxu0 %v2484
        %2518 = vmatprep.subr.mxu0 0.0
        %2519 = vmatpush1.msra.mxu0 %v2483
        %2520 = vmatprep.subr.mxu0 0.0
        %2521 = vmatpush1.msra.mxu0 %v2482
        %2522 = vmatprep.subr.mxu0 0.0
        %2523 = vmatpush1.msra.mxu0 %v2481
        %2524 = vmatprep.subr.mxu0 0.0
        %2525 = vmatpush1.msra.mxu0 %v2480
        %2526 = vmatprep.subr.mxu0 0.0
        %2527 = vmatpush1.msra.mxu0 %v2479
        %2528 = vmatprep.subr.mxu0 0.0
        %2529 = vmatpush1.msra.mxu0 %v2478
        %2530 = vmatprep.subr.mxu0 0.0
        %2531 = vmatpush1.msra.mxu0 %v2477
        %2532 = vmatprep.subr.mxu0 0.0
        %2533 = vmatpush1.msra.mxu0 %v2476
        %2534 = vmatprep.subr.mxu0 0.0
        %2535 = vmatpush1.msra.mxu0 %v2475
        %2536 = vmatprep.subr.mxu0 0.0
        %2537 = vmatpush1.msra.mxu0 %v2474
        %2538 = vmatprep.subr.mxu0 0.0
        %2539 = vmatpush2.msra.mxu0 %v2505
        %2540 = vmatprep.subr.mxu0 0.0
        %2541 = vmatpush2.msra.mxu0 %v2504
        %2542 = vmatprep.subr.mxu0 0.0
        %2543 = vmatpush2.msra.mxu0 %v2503
        %2544 = vmatprep.subr.mxu0 0.0
        %2545 = vmatpush2.msra.mxu0 %v2502
        %2546 = vmatprep.subr.mxu0 0.0
        %2547 = vmatpush2.msra.mxu0 %v2501
        %2548 = vmatprep.subr.mxu0 0.0
        %2549 = vmatpush2.msra.mxu0 %v2500
        %2550 = vmatprep.subr.mxu0 0.0
        %2551 = vmatpush2.msra.mxu0 %v2499
        %2552 = vmatprep.subr.mxu0 0.0
        %2553 = vmatpush2.msra.mxu0 %v2498
        %2554 = vmatprep.subr.mxu0 0.0
        %2555 = vmatpush2.msra.mxu0 %v2497
        %2556 = vmatprep.subr.mxu0 0.0
        %2557 = vmatpush2.msra.mxu0 %v2496
        %2558 = vmatprep.subr.mxu0 0.0
        %2559 = vmatpush2.msra.mxu0 %v2495
        %2560 = vmatprep.subr.mxu0 0.0
        %2561 = vmatpush2.msra.mxu0 %v2494
        %2562 = vmatprep.subr.mxu0 0.0
        %2563 = vmatpush2.msra.mxu0 %v2493
        %2564 = vmatprep.subr.mxu0 0.0
        %2565 = vmatpush2.msra.mxu0 %v2492
        %2566 = vmatprep.subr.mxu0 0.0
        %2567 = vmatpush2.msra.mxu0 %v2491
        %2568 = vmatprep.subr.mxu0 0.0
        %2569 = vmatpush2.msra.mxu0 %v2490
        %2570 = vmatprep.mubr.f32.mxu0 %v722
        %2571 = vmatmul.mubr.f32.gmra.mxu0 %v721
        %v2572 = vpop.f32.mrf.mxu0
        %v2573 = vadd.f32 0.0, %v2572
        %v2574 = vpop.f32.mrf.mxu0
        %2575 = vdwg.mxu0
        %v2576 = vld [vmem:[%s460] sm:$0xff]
        %v2577 = vld [vmem:[%s460 + $0x8] sm:$0xff]
        %v2578 = vld [vmem:[%s460 + $0x10] sm:$0xff]
        %v2579 = vld [vmem:[%s460 + $0x18] sm:$0x1]
        %v2581 = vsel %vm475, %v2471, 0
        %v2584 = vsel %vm479, %v2579, 0
        %2586 = vmatprep.subr.mxu0 0.0
        %2587 = vmatpush1.msra.mxu0 0.0
        %2588 = vmatprep.subr.mxu0 0.0
        %2589 = vmatpush1.msra.mxu0 0.0
        %2590 = vmatprep.subr.mxu0 0.0
        %2591 = vmatpush1.msra.mxu0 0.0
        %2592 = vmatprep.subr.mxu0 0.0
        %2593 = vmatpush1.msra.mxu0 0.0
        %2594 = vmatprep.subr.mxu0 0.0
        %2595 = vmatpush1.msra.mxu0 0.0
        %2596 = vmatprep.subr.mxu0 0.0
        %2597 = vmatpush1.msra.mxu0 0.0
        %2598 = vmatprep.subr.mxu0 0.0
        %2599 = vmatpush1.msra.mxu0 0.0
        %2600 = vmatprep.subr.mxu0 0.0
        %2601 = vmatpush1.msra.mxu0 0.0
        %2602 = vmatprep.subr.mxu0 0.0
        %2603 = vmatpush1.msra.mxu0 0.0
        %2604 = vmatprep.subr.mxu0 0.0
        %2605 = vmatpush1.msra.mxu0 0.0
        %2606 = vmatprep.subr.mxu0 0.0
        %2607 = vmatpush1.msra.mxu0 0.0
        %2608 = vmatprep.subr.mxu0 0.0
        %2609 = vmatpush1.msra.mxu0 0.0
        %2610 = vmatprep.subr.mxu0 0.0
        %2611 = vmatpush1.msra.mxu0 %v2584
        %2612 = vmatprep.subr.mxu0 0.0
        %2613 = vmatpush1.msra.mxu0 %v2578
        %2614 = vmatprep.subr.mxu0 0.0
        %2615 = vmatpush1.msra.mxu0 %v2577
        %2616 = vmatprep.subr.mxu0 0.0
        %2617 = vmatpush1.msra.mxu0 %v2576
        %2618 = vmatprep.subr.mxu0 0.0
        %2619 = vmatpush2.msra.mxu0 0.0
        %2620 = vmatprep.subr.mxu0 0.0
        %2621 = vmatpush2.msra.mxu0 0.0
        %2622 = vmatprep.subr.mxu0 0.0
        %2623 = vmatpush2.msra.mxu0 0.0
        %2624 = vmatprep.subr.mxu0 0.0
        %2625 = vmatpush2.msra.mxu0 0.0
        %2626 = vmatprep.subr.mxu0 0.0
        %2627 = vmatpush2.msra.mxu0 0.0
        %2628 = vmatprep.subr.mxu0 0.0
        %2629 = vmatpush2.msra.mxu0 0.0
        %2630 = vmatprep.subr.mxu0 0.0
        %2631 = vmatpush2.msra.mxu0 0.0
        %2632 = vmatprep.subr.mxu0 0.0
        %2633 = vmatpush2.msra.mxu0 0.0
        %2634 = vmatprep.subr.mxu0 0.0
        %2635 = vmatpush2.msra.mxu0 0.0
        %2636 = vmatprep.subr.mxu0 0.0
        %2637 = vmatpush2.msra.mxu0 0.0
        %2638 = vmatprep.subr.mxu0 0.0
        %2639 = vmatpush2.msra.mxu0 0.0
        %2640 = vmatprep.subr.mxu0 0.0
        %2641 = vmatpush2.msra.mxu0 0.0
        %2642 = vmatprep.subr.mxu0 0.0
        %2643 = vmatpush2.msra.mxu0 0.0
        %2644 = vmatprep.subr.mxu0 0.0
        %2645 = vmatpush2.msra.mxu0 0.0
        %2646 = vmatprep.subr.mxu0 0.0
        %2647 = vmatpush2.msra.mxu0 0.0
        %2648 = vmatprep.subr.mxu0 0.0
        %2649 = vmatpush2.msra.mxu0 0.0
        %2650 = vmatprep.mubr.f32.mxu0 0.0
        %2651 = vmatmul.mubr.f32.gmra.mxu0 %v2581
        %v2652 = vpop.f32.mrf.mxu0
        %v2653 = vadd.f32 0.0, %v2652
        %v2654 = vpop.f32.mrf.mxu0
        %2655 = vdwg.mxu0
        %v2656 = vld [vmem:[%s465] sm:$0xff]
        %v2657 = vld [vmem:[%s465 + $0x8] sm:$0xff]
        %v2658 = vld [vmem:[%s465 + $0x10] sm:$0xff]
        %v2659 = vld [vmem:[%s465 + $0x18] sm:$0x1]
        %v2661 = vsel %vm475, %v2573, 0
        %v2664 = vsel %vm479, %v2659, 0
        %2666 = vmatprep.subr.mxu0 0.0
        %2667 = vmatpush1.msra.mxu0 0.0
        %2668 = vmatprep.subr.mxu0 0.0
        %2669 = vmatpush1.msra.mxu0 0.0
        %2670 = vmatprep.subr.mxu0 0.0
        %2671 = vmatpush1.msra.mxu0 0.0
        %2672 = vmatprep.subr.mxu0 0.0
        %2673 = vmatpush1.msra.mxu0 0.0
        %2674 = vmatprep.subr.mxu0 0.0
        %2675 = vmatpush1.msra.mxu0 0.0
        %2676 = vmatprep.subr.mxu0 0.0
        %2677 = vmatpush1.msra.mxu0 0.0
        %2678 = vmatprep.subr.mxu0 0.0
        %2679 = vmatpush1.msra.mxu0 0.0
        %2680 = vmatprep.subr.mxu0 0.0
        %2681 = vmatpush1.msra.mxu0 0.0
        %2682 = vmatprep.subr.mxu0 0.0
        %2683 = vmatpush1.msra.mxu0 0.0
        %2684 = vmatprep.subr.mxu0 0.0
        %2685 = vmatpush1.msra.mxu0 0.0
        %2686 = vmatprep.subr.mxu0 0.0
        %2687 = vmatpush1.msra.mxu0 0.0
        %2688 = vmatprep.subr.mxu0 0.0
        %2689 = vmatpush1.msra.mxu0 0.0
        %2690 = vmatprep.subr.mxu0 0.0
        %2691 = vmatpush1.msra.mxu0 %v2664
        %2692 = vmatprep.subr.mxu0 0.0
        %2693 = vmatpush1.msra.mxu0 %v2658
        %2694 = vmatprep.subr.mxu0 0.0
        %2695 = vmatpush1.msra.mxu0 %v2657
        %2696 = vmatprep.subr.mxu0 0.0
        %2697 = vmatpush1.msra.mxu0 %v2656
        %2698 = vmatprep.subr.mxu0 0.0
        %2699 = vmatpush2.msra.mxu0 0.0
        %2700 = vmatprep.subr.mxu0 0.0
        %2701 = vmatpush2.msra.mxu0 0.0
        %2702 = vmatprep.subr.mxu0 0.0
        %2703 = vmatpush2.msra.mxu0 0.0
        %2704 = vmatprep.subr.mxu0 0.0
        %2705 = vmatpush2.msra.mxu0 0.0
        %2706 = vmatprep.subr.mxu0 0.0
        %2707 = vmatpush2.msra.mxu0 0.0
        %2708 = vmatprep.subr.mxu0 0.0
        %2709 = vmatpush2.msra.mxu0 0.0
        %2710 = vmatprep.subr.mxu0 0.0
        %2711 = vmatpush2.msra.mxu0 0.0
        %2712 = vmatprep.subr.mxu0 0.0
        %2713 = vmatpush2.msra.mxu0 0.0
        %2714 = vmatprep.subr.mxu0 0.0
        %2715 = vmatpush2.msra.mxu0 0.0
        %2716 = vmatprep.subr.mxu0 0.0
        %2717 = vmatpush2.msra.mxu0 0.0
        %2718 = vmatprep.subr.mxu0 0.0
        %2719 = vmatpush2.msra.mxu0 0.0
        %2720 = vmatprep.subr.mxu0 0.0
        %2721 = vmatpush2.msra.mxu0 0.0
        %2722 = vmatprep.subr.mxu0 0.0
        %2723 = vmatpush2.msra.mxu0 0.0
        %2724 = vmatprep.subr.mxu0 0.0
        %2725 = vmatpush2.msra.mxu0 0.0
        %2726 = vmatprep.subr.mxu0 0.0
        %2727 = vmatpush2.msra.mxu0 0.0
        %2728 = vmatprep.subr.mxu0 0.0
        %2729 = vmatpush2.msra.mxu0 0.0
        %2730 = vmatprep.mubr.f32.mxu0 0.0
        %2731 = vmatmul.mubr.f32.gmra.mxu0 %v2661
        %v2732 = vpop.f32.mrf.mxu0
        %v2733 = vadd.f32 0.0, %v2732
        %v2734 = vpop.f32.mrf.mxu0
        %2735 = vdwg.mxu0
        %v2736 = vsub.f32 %v2653, %v2733
        %vm2737 = vcmask 519168
        %2738 = vst.msk [vmem:[%s447] sm:$0xf] %vm2737, %v2736
        %s2739 = sand.u32 %s306, 1
        %s2740 = scalar_lea.sflag [#allocation3], %s2739
        %s2741 = sand.u32 %s306, 1
        %s2742 = smul.addr %s2741, 4
        %s2743 = scalar_lea.vmem [#allocation2], %s2742
        // Predicated region
        $region76: #{_lambda_.3} parent=67 // pred_check
          %p2744 = pneg %p316
        $region77: #{_lambda_.3} parent=67 // pred_check_branch
          %2746 = sbr.rel (%p2744) target = $region79
        $region78: #{_lambda_.3} parent=67 // pred_region
          %s2748 = ssub.s32 64, 64
          %2749 = vsyncadd %s2740, %s2748
          %s2750 = smul.addr %s26, 64
          %s2751 = scalar_lea.hbm %s12, %s2750
          %s2753 = sshll.u32 %s2743, 4
          %s2754 = int_to_ptr.vmem [resolvable:$true] %s2753
          %2756 = dma.vmem_to_hbm [thread:$0]  %s2754, 64, %s2751, %s2740
        $region79: #{_lambda_.3} parent=67 // pred_fallthru
          _
      $region68: #{_lambda_.3} parent=5 // pred_fallthru
        _
      %p2757 = scmp.le.s32.totalorder 2, %s21
      // Predicated region
      $region80: #{_lambda_.3} parent=5 // pred_check
        %p2758 = pneg %p2757
      $region81: #{_lambda_.3} parent=5 // pred_check_branch
        %2760 = sbr.rel (%p2758) target = $region83
      $region82: #{_lambda_.3} parent=5 // pred_region
        %s2761 = ssub.s32 %s21, 2
        // Predicated region
        $region84: #{_lambda_.3} parent=82 // pred_check
          %p2762 = pneg %p322
        $region85: #{_lambda_.3} parent=82 // pred_check_branch
          %2764 = sbr.rel (%p2762) target = $region87
        $region86: #{_lambda_.3} parent=82 // pred_region
          %s2765 = sand.u32 %s307, 1
          %s2766 = scalar_lea.sflag [#allocation3], %s2765
          %s2767 = sand.u32 %s307, 1
          %s2768 = smul.addr %s2767, 4
          %s2769 = scalar_lea.vmem [#allocation2], %s2768
          %2770 = dma.done %s2766, 64
        $region87: #{_lambda_.3} parent=82 // pred_fallthru
          _
      $region83: #{_lambda_.3} parent=5 // pred_fallthru
        _
    $region6: #{_lambda_.3} parent=1 // loop_footer
      %s25 = sadd.s32 1, %s21
    $region7: #{_lambda_.3} parent=1 // loop_footer_branch
      %20 = sbr.rel target = $region3
    $region8: #{_lambda_.3} parent=1 // loop_exit
      _
    %2771 = vsyncpa [#allocation3], 1
    %s2772 = scalar_lea.sflag [#allocation3], 1
    %2773 = vsyncpa %s2772, 1

</llo_original>
